<compile_context>
chip_gen: v6e
topology: v6e:2x2x1
jax: 0.10.0
libtpu: 0.0.40
codegen_flags: <defaults>
</compile_context>

<pallas_src>
import jax
import jax.numpy as jnp
from jax import lax
from jax.experimental import pallas as pl
from jax.experimental.pallas import tpu as pltpu

INPLANES = 4
PLANES = 8
N, H, W = 2, 16, 16
EPS = 1e-5

LANE = 128     # TPU lane width: channel axis padded to this for lane-dense stores.
PAD_S = 8      # spatial halo in the VMEM out1 scratch; 8 keeps interior writes
               # sublane-aligned (only 1 halo pixel is logically needed).


# ------------------------------ Pallas kernel ------------------------------ #

def _basic_block_kernel(xp_ref, w1_ref, wsk_ref, w2_ref,
                        s1_ref, b1_ref, ssk_ref, bsk_ref, s2_ref, b2_ref,
                        o_ref, out1_pad, acc):
    # xp_ref : (1, H+2, W+2, Cin)   f32   spatially padded input, one image
    # w1_ref : (9, Cin, CP)         bf16  conv1 weights per tap (kh*3+kw)
    # wsk_ref: (Cin, CP)            bf16  1x1 skip conv weights
    # w2_ref : (9, CP, CP)          bf16  conv2 weights per tap
    # s*/b*  : (1, CP)              f32   folded-BN scale / bias
    # o_ref  : (1, H*W, CP)         f32   output (lane-dense, channel-padded)
    # out1_pad: VMEM (H+2P, W+2P, CP) f32 scratch (zero halo for conv2 taps)
    # acc    : VMEM (H*W, CP)       f32   matmul accumulator
    _, hp, wp, cin = xp_ref.shape
    h, w = hp - 2, wp - 2
    cp = o_ref.shape[-1]
    rows = h * w

    x = xp_ref[0]                                      # (h+2, w+2, cin) f32

    # -------- conv1 (3x3, pad=1): 9 accumulated tap matmuls on the MXU ------
    acc[...] = jnp.zeros_like(acc)
    for kh in range(3):
        for kw in range(3):
            tap = x[kh:kh + h, kw:kw + w, :].reshape(rows, cin)
            acc[...] += jnp.dot(tap.astype(jnp.bfloat16), w1_ref[kh * 3 + kw],
                                preferred_element_type=jnp.float32)
    out1 = jnp.maximum(acc[...] * s1_ref[...] + b1_ref[...], 0.0)   # BN1+ReLU

    # -------- skip branch: 1x1 conv (channel matmul) + BN -------------------
    x2d = x[1:1 + h, 1:1 + w, :].reshape(rows, cin)
    res = jnp.dot(x2d.astype(jnp.bfloat16), wsk_ref[...],
                  preferred_element_type=jnp.float32)
    res = res * ssk_ref[...] + bsk_ref[...]

    # -------- stage out1 into a zero-haloed VMEM scratch (stays on chip) ----
    out1_pad[...] = jnp.zeros_like(out1_pad)
    out1_pad[PAD_S:PAD_S + h, PAD_S:PAD_S + w, :] = out1.reshape(h, w, cp)

    # -------- conv2 (3x3, pad=1) + BN2 + residual add + final ReLU ----------
    acc[...] = jnp.zeros_like(acc)
    for kh in range(3):
        for kw in range(3):
            r0 = PAD_S - 1 + kh
            c0 = PAD_S - 1 + kw
            tap = out1_pad[r0:r0 + h, c0:c0 + w, :].reshape(rows, cp)
            acc[...] += jnp.dot(tap.astype(jnp.bfloat16), w2_ref[kh * 3 + kw],
                                preferred_element_type=jnp.float32)
    out2 = acc[...] * s2_ref[...] + b2_ref[...]
    o_ref[0] = jnp.maximum(out2 + res, 0.0).astype(o_ref.dtype)


# ------------------------------ forward wrapper ----------------------------- #

def basic_block_forward(x_nchw, params, *, cout):
    n, cin, h, w = x_nchw.shape
    cp = params['w1'].shape[-1]
    rows = h * w

    # TODO(synk): for an NHWC pipeline drop these transposes; kept for NCHW
    # PyTorch interface parity.
    x_nhwc = jnp.transpose(x_nchw, (0, 2, 3, 1)).astype(jnp.float32)
    xp = jnp.pad(x_nhwc, ((0, 0), (1, 1), (1, 1), (0, 0)))

    in_specs = [
        pl.BlockSpec((1, h + 2, w + 2, cin), lambda b: (b, 0, 0, 0)),  # input
        pl.BlockSpec((9, cin, cp), lambda b: (0, 0, 0)),               # w1 (resident)
        pl.BlockSpec((cin, cp), lambda b: (0, 0)),                     # wsk
        pl.BlockSpec((9, cp, cp), lambda b: (0, 0, 0)),                # w2
    ] + [pl.BlockSpec((1, cp), lambda b: (0, 0)) for _ in range(6)]    # s/b x3

    # TODO(synk): for production ResNet shapes also tile the H (rows) axis and
    # re-derive tile sizes for v7x's 64 MiB VMEM; at these toy shapes one image
    # per grid step fits trivially.
    out = pl.pallas_call(
        _basic_block_kernel,
        out_shape=jax.ShapeDtypeStruct((n, rows, cp), jnp.float32),
        grid_spec=pltpu.PrefetchScalarGridSpec(
            num_scalar_prefetch=0,
            grid=(n,),
            in_specs=in_specs,
            out_specs=pl.BlockSpec((1, rows, cp), lambda b: (b, 0, 0)),
            scratch_shapes=[
                pltpu.VMEM((h + 2 * PAD_S, w + 2 * PAD_S, cp), jnp.float32),
                pltpu.VMEM((rows, cp), jnp.float32),
            ]),
        compiler_params=pltpu.CompilerParams(
            dimension_semantics=("parallel",)),
    )(xp, params['w1'], params['wsk'], params['w2'],
      params['s1'], params['b1'], params['ssk'], params['bsk'],
      params['s2'], params['b2'])

    y = out[:, :, :cout].reshape(n, h, w, cout)
    return jnp.transpose(y, (0, 3, 1, 2))


basic_block_forward_jit = jax.jit(basic_block_forward, static_argnames=("cout",))


# ------------------------------ parameter init ----------------------------- #

def init_params(key, cin, cout):
    cp = max(LANE, ((cout + LANE - 1) // LANE) * LANE)   # lane-padded channels
    ks = jax.random.split(key, 6)
    # PyTorch conv weights, OIHW, no bias.
    w1 = jax.random.normal(ks[0], (cout, cin, 3, 3), jnp.float32) * 0.1
    w2 = jax.random.normal(ks[1], (cout, cout, 3, 3), jnp.float32) * 0.1
    wsk = jax.random.normal(ks[2], (cout, cin, 1, 1), jnp.float32) * 0.1

    def bn_init(k):
        k1, k2, k3, k4 = jax.random.split(k, 4)
        gamma = jax.random.uniform(k1, (cout,), minval=0.5, maxval=1.5)
        beta = jax.random.normal(k2, (cout,)) * 0.1
        mean = jax.random.normal(k3, (cout,)) * 0.1
        var = jax.random.uniform(k4, (cout,), minval=0.5, maxval=1.5)
        return gamma, beta, mean, var

    bn1, bn2, bnsk = bn_init(ks[3]), bn_init(ks[4]), bn_init(ks[5])

    def fold(bn):
        g, b, m, v = bn
        scale = g / jnp.sqrt(v + EPS)
        bias = b - m * scale
        pad = cp - cout
        return (jnp.pad(scale, (0, pad)).reshape(1, cp),
                jnp.pad(bias, (0, pad)).reshape(1, cp))

    s1, b1 = fold(bn1)
    s2, b2 = fold(bn2)
    ssk, bsk = fold(bnsk)

    # OIHW -> (kh*3+kw, cin, cout), zero-padded to the 128-lane tile, bf16.
    w1_mat = jnp.transpose(w1, (2, 3, 1, 0)).reshape(9, cin, cout)
    w1_mat = jnp.pad(w1_mat, ((0, 0), (0, 0), (0, cp - cout))).astype(jnp.bfloat16)
    w2_mat = jnp.transpose(w2, (2, 3, 1, 0)).reshape(9, cout, cout)
    w2_mat = jnp.pad(w2_mat, ((0, 0), (0, cp - cout), (0, cp - cout))).astype(jnp.bfloat16)
    wsk_mat = jnp.pad(wsk[:, :, 0, 0].T, ((0, 0), (0, cp - cout))).astype(jnp.bfloat16)

    kernel_params = dict(w1=w1_mat, w2=w2_mat, wsk=wsk_mat,
                         s1=s1, b1=b1, s2=s2, b2=b2, ssk=ssk, bsk=bsk)
    raw = dict(w1=w1, w2=w2, wsk=wsk, bn1=bn1, bn2=bn2, bnsk=bnsk)
    return kernel_params, raw


# --------------------------- pure-JAX reference ----------------------------- #

def reference_forward(x_nchw, raw):
    # Mirror the kernel's numerics: bf16 matmul operands, f32 accumulation,
    # f32 BN / ReLU / residual (standard TPU mixed precision).
    def q(a):
        return a.astype(jnp.bfloat16).astype(jnp.float32)

    def conv(x, wgt, pad):
        return lax.conv_general_dilated(
            q(x), q(wgt), (1, 1), [(pad, pad), (pad, pad)],
            dimension_numbers=('NCHW', 'OIHW', 'NCHW'),
            precision=lax.Precision.HIGHEST)

    def bn(x, g, b, m, v):
        g, b, m, v = (a[None, :, None, None] for a in (g, b, m, v))
        return (x - m) / jnp.sqrt(v + EPS) * g + b

    residual = bn(conv(x_nchw, raw['wsk'], 0), *raw['bnsk'])
    out = jax.nn.relu(bn(conv(x_nchw, raw['w1'], 1), *raw['bn1']))
    out = bn(conv(out, raw['w2'], 1), *raw['bn2'])
    return jax.nn.relu(out + residual)


# ----------------------------------- main ----------------------------------- #

if __name__ == "__main__":
    key = jax.random.PRNGKey(0)
    kx, kp = jax.random.split(key)
    x = jax.random.normal(kx, (N, INPLANES, H, W), jnp.float32)

    params, raw = init_params(kp, INPLANES, PLANES)

    y = basic_block_forward_jit(x, params, cout=PLANES)
    y = jax.block_until_ready(y)

    y_ref = reference_forward(x, raw)
    err = float(jnp.max(jnp.abs(y - y_ref)))
    assert y.shape == (N, PLANES, H, W), y.shape
    assert err < 1e-2, f"max abs error {err}"

    # TODO(synk): keyword-dependent variants (fixup/DCHR/bacs/bcas/shrink,
    # addition_skip, base>1 multi-branch) are not modeled; this implements the
    # canonical 'fix'+'cbas', base=1, stride=1 path.
    print("KERNEL_OK")
</pallas_src>

<mosaic_0001>
module attributes {stable_mosaic.version = 11 : i64} {
  func.func @_basic_block_kernel(%arg0: i32, %arg1: memref<1x18x18x4xf32, #tpu.memory_space<vmem>>, %arg2: memref<9x4x128xbf16, #tpu.memory_space<vmem>>, %arg3: memref<4x128xbf16, #tpu.memory_space<vmem>>, %arg4: memref<9x128x128xbf16, #tpu.memory_space<vmem>>, %arg5: memref<1x128xf32, #tpu.memory_space<vmem>>, %arg6: memref<1x128xf32, #tpu.memory_space<vmem>>, %arg7: memref<1x128xf32, #tpu.memory_space<vmem>>, %arg8: memref<1x128xf32, #tpu.memory_space<vmem>>, %arg9: memref<1x128xf32, #tpu.memory_space<vmem>>, %arg10: memref<1x128xf32, #tpu.memory_space<vmem>>, %arg11: memref<1x256x128xf32, #tpu.memory_space<vmem>>, %arg12: memref<32x32x128xf32, #tpu.memory_space<vmem>>, %arg13: memref<256x128xf32, #tpu.memory_space<vmem>>) attributes {dimension_semantics = [#tpu.dimension_semantics<parallel>], iteration_bounds = array<i64: 2>, scalar_prefetch = 0 : i64, scratch_operands = 2 : i64, tpu.core_type = #tpu.core_type<tc>, window_params = [{transform_indices = @transform_0, window_bounds = array<i64: 1, 18, 18, 4>}, {pipeline_mode = #tpu.pipeline_mode<synchronous>, transform_indices = @transform_1, window_bounds = array<i64: 9, 4, 128>}, {pipeline_mode = #tpu.pipeline_mode<synchronous>, transform_indices = @transform_2, window_bounds = array<i64: 4, 128>}, {pipeline_mode = #tpu.pipeline_mode<synchronous>, transform_indices = @transform_3, window_bounds = array<i64: 9, 128, 128>}, {pipeline_mode = #tpu.pipeline_mode<synchronous>, transform_indices = @transform_4, window_bounds = array<i64: 1, 128>}, {pipeline_mode = #tpu.pipeline_mode<synchronous>, transform_indices = @transform_5, window_bounds = array<i64: 1, 128>}, {pipeline_mode = #tpu.pipeline_mode<synchronous>, transform_indices = @transform_6, window_bounds = array<i64: 1, 128>}, {pipeline_mode = #tpu.pipeline_mode<synchronous>, transform_indices = @transform_7, window_bounds = array<i64: 1, 128>}, {pipeline_mode = #tpu.pipeline_mode<synchronous>, transform_indices = @transform_8, window_bounds = array<i64: 1, 128>}, {pipeline_mode = #tpu.pipeline_mode<synchronous>, transform_indices = @transform_9, window_bounds = array<i64: 1, 128>}, {transform_indices = @transform_10, window_bounds = array<i64: 1, 256, 128>}]} {
    %c0 = arith.constant 0 : index
    %c0_0 = arith.constant 0 : index
    %c0_1 = arith.constant 0 : index
    %c0_2 = arith.constant 0 : index
    %0 = vector.load %arg1[%c0, %c0_0, %c0_1, %c0_2] : memref<1x18x18x4xf32, #tpu.memory_space<vmem>>, vector<1x18x18x4xf32>
    %1 = vector.shape_cast %0 : vector<1x18x18x4xf32> to vector<18x18x4xf32>
    %cst = arith.constant 0.000000e+00 : f32
    %2 = vector.broadcast %cst : f32 to vector<256x128xf32>
    %c0_3 = arith.constant 0 : index
    %c0_4 = arith.constant 0 : index
    %3 = vector.load %arg13[%c0_3, %c0_4] : memref<256x128xf32, #tpu.memory_space<vmem>>, vector<256x128xf32>
    tpu.vector_store %arg13[%c0_3, %c0_4], %2 {strides = array<i32>} : memref<256x128xf32, #tpu.memory_space<vmem>>, vector<256x128xf32>,
    %4 = vector.extract_strided_slice %1 {offsets = [0, 0, 0], sizes = [16, 16, 4], strides = [1, 1, 1]} : vector<18x18x4xf32> to vector<16x16x4xf32>
    %5 = vector.shape_cast %4 : vector<16x16x4xf32> to vector<256x4xf32>
    %c0_5 = arith.constant 0 : index
    %c0_6 = arith.constant 0 : index
    %6 = vector.load %arg13[%c0_5, %c0_6] : memref<256x128xf32, #tpu.memory_space<vmem>>, vector<256x128xf32>
    %7 = arith.truncf %5 : vector<256x4xf32> to vector<256x4xbf16>
    %c0_7 = arith.constant 0 : index
    %c0_8 = arith.constant 0 : index
    %c0_9 = arith.constant 0 : index
    %8 = vector.load %arg2[%c0_7, %c0_8, %c0_9] : memref<9x4x128xbf16, #tpu.memory_space<vmem>>, vector<1x4x128xbf16>
    %9 = vector.shape_cast %8 : vector<1x4x128xbf16> to vector<4x128xbf16>
    %cst_10 = arith.constant dense<0.000000e+00> : vector<256x128xf32>
    %10 = tpu.matmul %7, %9, %cst_10 {dimension_numbers = #tpu.dot_dimension_numbers<[1], [0], [0], [1], [0, 0, 1, 1], [], []>} : vector<256x4xbf16>, vector<4x128xbf16>, vector<256x128xf32> -> vector<256x128xf32>
    %11 = arith.addf %6, %10 : vector<256x128xf32>
    %c0_11 = arith.constant 0 : index
    %c0_12 = arith.constant 0 : index
    %12 = vector.load %arg13[%c0_11, %c0_12] : memref<256x128xf32, #tpu.memory_space<vmem>>, vector<256x128xf32>
    tpu.vector_store %arg13[%c0_11, %c0_12], %11 {strides = array<i32>} : memref<256x128xf32, #tpu.memory_space<vmem>>, vector<256x128xf32>,
    %13 = vector.extract_strided_slice %1 {offsets = [0, 1, 0], sizes = [16, 16, 4], strides = [1, 1, 1]} : vector<18x18x4xf32> to vector<16x16x4xf32>
    %14 = vector.shape_cast %13 : vector<16x16x4xf32> to vector<256x4xf32>
    %c0_13 = arith.constant 0 : index
    %c0_14 = arith.constant 0 : index
    %15 = vector.load %arg13[%c0_13, %c0_14] : memref<256x128xf32, #tpu.memory_space<vmem>>, vector<256x128xf32>
    %16 = arith.truncf %14 : vector<256x4xf32> to vector<256x4xbf16>
    %c1 = arith.constant 1 : index
    %c0_15 = arith.constant 0 : index
    %c0_16 = arith.constant 0 : index
    %17 = vector.load %arg2[%c1, %c0_15, %c0_16] : memref<9x4x128xbf16, #tpu.memory_space<vmem>>, vector<1x4x128xbf16>
    %18 = vector.shape_cast %17 : vector<1x4x128xbf16> to vector<4x128xbf16>
    %cst_17 = arith.constant dense<0.000000e+00> : vector<256x128xf32>
    %19 = tpu.matmul %16, %18, %cst_17 {dimension_numbers = #tpu.dot_dimension_numbers<[1], [0], [0], [1], [0, 0, 1, 1], [], []>} : vector<256x4xbf16>, vector<4x128xbf16>, vector<256x128xf32> -> vector<256x128xf32>
    %20 = arith.addf %15, %19 : vector<256x128xf32>
    %c0_18 = arith.constant 0 : index
    %c0_19 = arith.constant 0 : index
    %21 = vector.load %arg13[%c0_18, %c0_19] : memref<256x128xf32, #tpu.memory_space<vmem>>, vector<256x128xf32>
    tpu.vector_store %arg13[%c0_18, %c0_19], %20 {strides = array<i32>} : memref<256x128xf32, #tpu.memory_space<vmem>>, vector<256x128xf32>,
    %22 = vector.extract_strided_slice %1 {offsets = [0, 2, 0], sizes = [16, 16, 4], strides = [1, 1, 1]} : vector<18x18x4xf32> to vector<16x16x4xf32>
    %23 = vector.shape_cast %22 : vector<16x16x4xf32> to vector<256x4xf32>
    %c0_20 = arith.constant 0 : index
    %c0_21 = arith.constant 0 : index
    %24 = vector.load %arg13[%c0_20, %c0_21] : memref<256x128xf32, #tpu.memory_space<vmem>>, vector<256x128xf32>
    %25 = arith.truncf %23 : vector<256x4xf32> to vector<256x4xbf16>
    %c2 = arith.constant 2 : index
    %c0_22 = arith.constant 0 : index
    %c0_23 = arith.constant 0 : index
    %26 = vector.load %arg2[%c2, %c0_22, %c0_23] : memref<9x4x128xbf16, #tpu.memory_space<vmem>>, vector<1x4x128xbf16>
    %27 = vector.shape_cast %26 : vector<1x4x128xbf16> to vector<4x128xbf16>
    %cst_24 = arith.constant dense<0.000000e+00> : vector<256x128xf32>
    %28 = tpu.matmul %25, %27, %cst_24 {dimension_numbers = #tpu.dot_dimension_numbers<[1], [0], [0], [1], [0, 0, 1, 1], [], []>} : vector<256x4xbf16>, vector<4x128xbf16>, vector<256x128xf32> -> vector<256x128xf32>
    %29 = arith.addf %24, %28 : vector<256x128xf32>
    %c0_25 = arith.constant 0 : index
    %c0_26 = arith.constant 0 : index
    %30 = vector.load %arg13[%c0_25, %c0_26] : memref<256x128xf32, #tpu.memory_space<vmem>>, vector<256x128xf32>
    tpu.vector_store %arg13[%c0_25, %c0_26], %29 {strides = array<i32>} : memref<256x128xf32, #tpu.memory_space<vmem>>, vector<256x128xf32>,
    %31 = vector.extract_strided_slice %1 {offsets = [1, 0, 0], sizes = [16, 16, 4], strides = [1, 1, 1]} : vector<18x18x4xf32> to vector<16x16x4xf32>
    %32 = vector.shape_cast %31 : vector<16x16x4xf32> to vector<256x4xf32>
    %c0_27 = arith.constant 0 : index
    %c0_28 = arith.constant 0 : index
    %33 = vector.load %arg13[%c0_27, %c0_28] : memref<256x128xf32, #tpu.memory_space<vmem>>, vector<256x128xf32>
    %34 = arith.truncf %32 : vector<256x4xf32> to vector<256x4xbf16>
    %c3 = arith.constant 3 : index
    %c0_29 = arith.constant 0 : index
    %c0_30 = arith.constant 0 : index
    %35 = vector.load %arg2[%c3, %c0_29, %c0_30] : memref<9x4x128xbf16, #tpu.memory_space<vmem>>, vector<1x4x128xbf16>
    %36 = vector.shape_cast %35 : vector<1x4x128xbf16> to vector<4x128xbf16>
    %cst_31 = arith.constant dense<0.000000e+00> : vector<256x128xf32>
    %37 = tpu.matmul %34, %36, %cst_31 {dimension_numbers = #tpu.dot_dimension_numbers<[1], [0], [0], [1], [0, 0, 1, 1], [], []>} : vector<256x4xbf16>, vector<4x128xbf16>, vector<256x128xf32> -> vector<256x128xf32>
    %38 = arith.addf %33, %37 : vector<256x128xf32>
    %c0_32 = arith.constant 0 : index
    %c0_33 = arith.constant 0 : index
    %39 = vector.load %arg13[%c0_32, %c0_33] : memref<256x128xf32, #tpu.memory_space<vmem>>, vector<256x128xf32>
    tpu.vector_store %arg13[%c0_32, %c0_33], %38 {strides = array<i32>} : memref<256x128xf32, #tpu.memory_space<vmem>>, vector<256x128xf32>,
    %40 = vector.extract_strided_slice %1 {offsets = [1, 1, 0], sizes = [16, 16, 4], strides = [1, 1, 1]} : vector<18x18x4xf32> to vector<16x16x4xf32>
    %41 = vector.shape_cast %40 : vector<16x16x4xf32> to vector<256x4xf32>
    %c0_34 = arith.constant 0 : index
    %c0_35 = arith.constant 0 : index
    %42 = vector.load %arg13[%c0_34, %c0_35] : memref<256x128xf32, #tpu.memory_space<vmem>>, vector<256x128xf32>
    %43 = arith.truncf %41 : vector<256x4xf32> to vector<256x4xbf16>
    %c4 = arith.constant 4 : index
    %c0_36 = arith.constant 0 : index
    %c0_37 = arith.constant 0 : index
    %44 = vector.load %arg2[%c4, %c0_36, %c0_37] : memref<9x4x128xbf16, #tpu.memory_space<vmem>>, vector<1x4x128xbf16>
    %45 = vector.shape_cast %44 : vector<1x4x128xbf16> to vector<4x128xbf16>
    %cst_38 = arith.constant dense<0.000000e+00> : vector<256x128xf32>
    %46 = tpu.matmul %43, %45, %cst_38 {dimension_numbers = #tpu.dot_dimension_numbers<[1], [0], [0], [1], [0, 0, 1, 1], [], []>} : vector<256x4xbf16>, vector<4x128xbf16>, vector<256x128xf32> -> vector<256x128xf32>
    %47 = arith.addf %42, %46 : vector<256x128xf32>
    %c0_39 = arith.constant 0 : index
    %c0_40 = arith.constant 0 : index
    %48 = vector.load %arg13[%c0_39, %c0_40] : memref<256x128xf32, #tpu.memory_space<vmem>>, vector<256x128xf32>
    tpu.vector_store %arg13[%c0_39, %c0_40], %47 {strides = array<i32>} : memref<256x128xf32, #tpu.memory_space<vmem>>, vector<256x128xf32>,
    %49 = vector.extract_strided_slice %1 {offsets = [1, 2, 0], sizes = [16, 16, 4], strides = [1, 1, 1]} : vector<18x18x4xf32> to vector<16x16x4xf32>
    %50 = vector.shape_cast %49 : vector<16x16x4xf32> to vector<256x4xf32>
    %c0_41 = arith.constant 0 : index
    %c0_42 = arith.constant 0 : index
    %51 = vector.load %arg13[%c0_41, %c0_42] : memref<256x128xf32, #tpu.memory_space<vmem>>, vector<256x128xf32>
    %52 = arith.truncf %50 : vector<256x4xf32> to vector<256x4xbf16>
    %c5 = arith.constant 5 : index
    %c0_43 = arith.constant 0 : index
    %c0_44 = arith.constant 0 : index
    %53 = vector.load %arg2[%c5, %c0_43, %c0_44] : memref<9x4x128xbf16, #tpu.memory_space<vmem>>, vector<1x4x128xbf16>
    %54 = vector.shape_cast %53 : vector<1x4x128xbf16> to vector<4x128xbf16>
    %cst_45 = arith.constant dense<0.000000e+00> : vector<256x128xf32>
    %55 = tpu.matmul %52, %54, %cst_45 {dimension_numbers = #tpu.dot_dimension_numbers<[1], [0], [0], [1], [0, 0, 1, 1], [], []>} : vector<256x4xbf16>, vector<4x128xbf16>, vector<256x128xf32> -> vector<256x128xf32>
    %56 = arith.addf %51, %55 : vector<256x128xf32>
    %c0_46 = arith.constant 0 : index
    %c0_47 = arith.constant 0 : index
    %57 = vector.load %arg13[%c0_46, %c0_47] : memref<256x128xf32, #tpu.memory_space<vmem>>, vector<256x128xf32>
    tpu.vector_store %arg13[%c0_46, %c0_47], %56 {strides = array<i32>} : memref<256x128xf32, #tpu.memory_space<vmem>>, vector<256x128xf32>,
    %58 = vector.extract_strided_slice %1 {offsets = [2, 0, 0], sizes = [16, 16, 4], strides = [1, 1, 1]} : vector<18x18x4xf32> to vector<16x16x4xf32>
    %59 = vector.shape_cast %58 : vector<16x16x4xf32> to vector<256x4xf32>
    %c0_48 = arith.constant 0 : index
    %c0_49 = arith.constant 0 : index
    %60 = vector.load %arg13[%c0_48, %c0_49] : memref<256x128xf32, #tpu.memory_space<vmem>>, vector<256x128xf32>
    %61 = arith.truncf %59 : vector<256x4xf32> to vector<256x4xbf16>
    %c6 = arith.constant 6 : index
    %c0_50 = arith.constant 0 : index
    %c0_51 = arith.constant 0 : index
    %62 = vector.load %arg2[%c6, %c0_50, %c0_51] : memref<9x4x128xbf16, #tpu.memory_space<vmem>>, vector<1x4x128xbf16>
    %63 = vector.shape_cast %62 : vector<1x4x128xbf16> to vector<4x128xbf16>
    %cst_52 = arith.constant dense<0.000000e+00> : vector<256x128xf32>
    %64 = tpu.matmul %61, %63, %cst_52 {dimension_numbers = #tpu.dot_dimension_numbers<[1], [0], [0], [1], [0, 0, 1, 1], [], []>} : vector<256x4xbf16>, vector<4x128xbf16>, vector<256x128xf32> -> vector<256x128xf32>
    %65 = arith.addf %60, %64 : vector<256x128xf32>
    %c0_53 = arith.constant 0 : index
    %c0_54 = arith.constant 0 : index
    %66 = vector.load %arg13[%c0_53, %c0_54] : memref<256x128xf32, #tpu.memory_space<vmem>>, vector<256x128xf32>
    tpu.vector_store %arg13[%c0_53, %c0_54], %65 {strides = array<i32>} : memref<256x128xf32, #tpu.memory_space<vmem>>, vector<256x128xf32>,
    %67 = vector.extract_strided_slice %1 {offsets = [2, 1, 0], sizes = [16, 16, 4], strides = [1, 1, 1]} : vector<18x18x4xf32> to vector<16x16x4xf32>
    %68 = vector.shape_cast %67 : vector<16x16x4xf32> to vector<256x4xf32>
    %c0_55 = arith.constant 0 : index
    %c0_56 = arith.constant 0 : index
    %69 = vector.load %arg13[%c0_55, %c0_56] : memref<256x128xf32, #tpu.memory_space<vmem>>, vector<256x128xf32>
    %70 = arith.truncf %68 : vector<256x4xf32> to vector<256x4xbf16>
    %c7 = arith.constant 7 : index
    %c0_57 = arith.constant 0 : index
    %c0_58 = arith.constant 0 : index
    %71 = vector.load %arg2[%c7, %c0_57, %c0_58] : memref<9x4x128xbf16, #tpu.memory_space<vmem>>, vector<1x4x128xbf16>
    %72 = vector.shape_cast %71 : vector<1x4x128xbf16> to vector<4x128xbf16>
    %cst_59 = arith.constant dense<0.000000e+00> : vector<256x128xf32>
    %73 = tpu.matmul %70, %72, %cst_59 {dimension_numbers = #tpu.dot_dimension_numbers<[1], [0], [0], [1], [0, 0, 1, 1], [], []>} : vector<256x4xbf16>, vector<4x128xbf16>, vector<256x128xf32> -> vector<256x128xf32>
    %74 = arith.addf %69, %73 : vector<256x128xf32>
    %c0_60 = arith.constant 0 : index
    %c0_61 = arith.constant 0 : index
    %75 = vector.load %arg13[%c0_60, %c0_61] : memref<256x128xf32, #tpu.memory_space<vmem>>, vector<256x128xf32>
    tpu.vector_store %arg13[%c0_60, %c0_61], %74 {strides = array<i32>} : memref<256x128xf32, #tpu.memory_space<vmem>>, vector<256x128xf32>,
    %76 = vector.extract_strided_slice %1 {offsets = [2, 2, 0], sizes = [16, 16, 4], strides = [1, 1, 1]} : vector<18x18x4xf32> to vector<16x16x4xf32>
    %77 = vector.shape_cast %76 : vector<16x16x4xf32> to vector<256x4xf32>
    %c0_62 = arith.constant 0 : index
    %c0_63 = arith.constant 0 : index
    %78 = vector.load %arg13[%c0_62, %c0_63] : memref<256x128xf32, #tpu.memory_space<vmem>>, vector<256x128xf32>
    %79 = arith.truncf %77 : vector<256x4xf32> to vector<256x4xbf16>
    %c8 = arith.constant 8 : index
    %c0_64 = arith.constant 0 : index
    %c0_65 = arith.constant 0 : index
    %80 = vector.load %arg2[%c8, %c0_64, %c0_65] : memref<9x4x128xbf16, #tpu.memory_space<vmem>>, vector<1x4x128xbf16>
    %81 = vector.shape_cast %80 : vector<1x4x128xbf16> to vector<4x128xbf16>
    %cst_66 = arith.constant dense<0.000000e+00> : vector<256x128xf32>
    %82 = tpu.matmul %79, %81, %cst_66 {dimension_numbers = #tpu.dot_dimension_numbers<[1], [0], [0], [1], [0, 0, 1, 1], [], []>} : vector<256x4xbf16>, vector<4x128xbf16>, vector<256x128xf32> -> vector<256x128xf32>
    %83 = arith.addf %78, %82 : vector<256x128xf32>
    %c0_67 = arith.constant 0 : index
    %c0_68 = arith.constant 0 : index
    %84 = vector.load %arg13[%c0_67, %c0_68] : memref<256x128xf32, #tpu.memory_space<vmem>>, vector<256x128xf32>
    tpu.vector_store %arg13[%c0_67, %c0_68], %83 {strides = array<i32>} : memref<256x128xf32, #tpu.memory_space<vmem>>, vector<256x128xf32>,
    %c0_69 = arith.constant 0 : index
    %c0_70 = arith.constant 0 : index
    %85 = vector.load %arg13[%c0_69, %c0_70] : memref<256x128xf32, #tpu.memory_space<vmem>>, vector<256x128xf32>
    %c0_71 = arith.constant 0 : index
    %c0_72 = arith.constant 0 : index
    %86 = vector.load %arg5[%c0_71, %c0_72] : memref<1x128xf32, #tpu.memory_space<vmem>>, vector<1x128xf32>
    %87 = vector.broadcast %86 : vector<1x128xf32> to vector<256x128xf32>
    %88 = arith.mulf %85, %87 : vector<256x128xf32>
    %c0_73 = arith.constant 0 : index
    %c0_74 = arith.constant 0 : index
    %89 = vector.load %arg6[%c0_73, %c0_74] : memref<1x128xf32, #tpu.memory_space<vmem>>, vector<1x128xf32>
    %90 = vector.broadcast %89 : vector<1x128xf32> to vector<256x128xf32>
    %91 = arith.addf %88, %90 : vector<256x128xf32>
    %cst_75 = arith.constant 0.000000e+00 : f32
    %92 = vector.broadcast %cst_75 : f32 to vector<256x128xf32>
    %93 = arith.maximumf %91, %92 : vector<256x128xf32>
    %94 = vector.extract_strided_slice %1 {offsets = [1, 1, 0], sizes = [16, 16, 4], strides = [1, 1, 1]} : vector<18x18x4xf32> to vector<16x16x4xf32>
    %95 = vector.shape_cast %94 : vector<16x16x4xf32> to vector<256x4xf32>
    %96 = arith.truncf %95 : vector<256x4xf32> to vector<256x4xbf16>
    %c0_76 = arith.constant 0 : index
    %c0_77 = arith.constant 0 : index
    %97 = vector.load %arg3[%c0_76, %c0_77] : memref<4x128xbf16, #tpu.memory_space<vmem>>, vector<4x128xbf16>
    %cst_78 = arith.constant dense<0.000000e+00> : vector<256x128xf32>
    %98 = tpu.matmul %96, %97, %cst_78 {dimension_numbers = #tpu.dot_dimension_numbers<[1], [0], [0], [1], [0, 0, 1, 1], [], []>} : vector<256x4xbf16>, vector<4x128xbf16>, vector<256x128xf32> -> vector<256x128xf32>
    %c0_79 = arith.constant 0 : index
    %c0_80 = arith.constant 0 : index
    %99 = vector.load %arg7[%c0_79, %c0_80] : memref<1x128xf32, #tpu.memory_space<vmem>>, vector<1x128xf32>
    %100 = vector.broadcast %99 : vector<1x128xf32> to vector<256x128xf32>
    %101 = arith.mulf %98, %100 : vector<256x128xf32>
    %c0_81 = arith.constant 0 : index
    %c0_82 = arith.constant 0 : index
    %102 = vector.load %arg8[%c0_81, %c0_82] : memref<1x128xf32, #tpu.memory_space<vmem>>, vector<1x128xf32>
    %103 = vector.broadcast %102 : vector<1x128xf32> to vector<256x128xf32>
    %104 = arith.addf %101, %103 : vector<256x128xf32>
    %cst_83 = arith.constant 0.000000e+00 : f32
    %105 = vector.broadcast %cst_83 : f32 to vector<32x32x128xf32>
    %c0_84 = arith.constant 0 : index
    %c0_85 = arith.constant 0 : index
    %c0_86 = arith.constant 0 : index
    %106 = vector.load %arg12[%c0_84, %c0_85, %c0_86] : memref<32x32x128xf32, #tpu.memory_space<vmem>>, vector<32x32x128xf32>
    tpu.vector_store %arg12[%c0_84, %c0_85, %c0_86], %105 {strides = array<i32>} : memref<32x32x128xf32, #tpu.memory_space<vmem>>, vector<32x32x128xf32>,
    %107 = vector.shape_cast %93 : vector<256x128xf32> to vector<16x16x128xf32>
    %c8_87 = arith.constant 8 : index
    %c8_88 = arith.constant 8 : index
    %c0_89 = arith.constant 0 : index
    %108 = vector.load %arg12[%c8_87, %c8_88, %c0_89] : memref<32x32x128xf32, #tpu.memory_space<vmem>>, vector<16x16x128xf32>
    tpu.vector_store %arg12[%c8_87, %c8_88, %c0_89], %107 {strides = array<i32>} : memref<32x32x128xf32, #tpu.memory_space<vmem>>, vector<16x16x128xf32>,
    %cst_90 = arith.constant 0.000000e+00 : f32
    %109 = vector.broadcast %cst_90 : f32 to vector<256x128xf32>
    %c0_91 = arith.constant 0 : index
    %c0_92 = arith.constant 0 : index
    %110 = vector.load %arg13[%c0_91, %c0_92] : memref<256x128xf32, #tpu.memory_space<vmem>>, vector<256x128xf32>
    tpu.vector_store %arg13[%c0_91, %c0_92], %109 {strides = array<i32>} : memref<256x128xf32, #tpu.memory_space<vmem>>, vector<256x128xf32>,
    %c7_93 = arith.constant 7 : index
    %c7_94 = arith.constant 7 : index
    %c0_95 = arith.constant 0 : index
    %111 = vector.load %arg12[%c7_93, %c7_94, %c0_95] : memref<32x32x128xf32, #tpu.memory_space<vmem>>, vector<16x16x128xf32>
    %112 = vector.shape_cast %111 : vector<16x16x128xf32> to vector<256x128xf32>
    %c0_96 = arith.constant 0 : index
    %c0_97 = arith.constant 0 : index
    %113 = vector.load %arg13[%c0_96, %c0_97] : memref<256x128xf32, #tpu.memory_space<vmem>>, vector<256x128xf32>
    %114 = arith.truncf %112 : vector<256x128xf32> to vector<256x128xbf16>
    %c0_98 = arith.constant 0 : index
    %c0_99 = arith.constant 0 : index
    %c0_100 = arith.constant 0 : index
    %115 = vector.load %arg4[%c0_98, %c0_99, %c0_100] : memref<9x128x128xbf16, #tpu.memory_space<vmem>>, vector<1x128x128xbf16>
    %116 = vector.shape_cast %115 : vector<1x128x128xbf16> to vector<128x128xbf16>
    %cst_101 = arith.constant dense<0.000000e+00> : vector<256x128xf32>
    %117 = tpu.matmul %114, %116, %cst_101 {dimension_numbers = #tpu.dot_dimension_numbers<[1], [0], [0], [1], [0, 0, 1, 1], [], []>} : vector<256x128xbf16>, vector<128x128xbf16>, vector<256x128xf32> -> vector<256x128xf32>
    %118 = arith.addf %113, %117 : vector<256x128xf32>
    %c0_102 = arith.constant 0 : index
    %c0_103 = arith.constant 0 : index
    %119 = vector.load %arg13[%c0_102, %c0_103] : memref<256x128xf32, #tpu.memory_space<vmem>>, vector<256x128xf32>
    tpu.vector_store %arg13[%c0_102, %c0_103], %118 {strides = array<i32>} : memref<256x128xf32, #tpu.memory_space<vmem>>, vector<256x128xf32>,
    %c7_104 = arith.constant 7 : index
    %c8_105 = arith.constant 8 : index
    %c0_106 = arith.constant 0 : index
    %120 = vector.load %arg12[%c7_104, %c8_105, %c0_106] : memref<32x32x128xf32, #tpu.memory_space<vmem>>, vector<16x16x128xf32>
    %121 = vector.shape_cast %120 : vector<16x16x128xf32> to vector<256x128xf32>
    %c0_107 = arith.constant 0 : index
    %c0_108 = arith.constant 0 : index
    %122 = vector.load %arg13[%c0_107, %c0_108] : memref<256x128xf32, #tpu.memory_space<vmem>>, vector<256x128xf32>
    %123 = arith.truncf %121 : vector<256x128xf32> to vector<256x128xbf16>
    %c1_109 = arith.constant 1 : index
    %c0_110 = arith.constant 0 : index
    %c0_111 = arith.constant 0 : index
    %124 = vector.load %arg4[%c1_109, %c0_110, %c0_111] : memref<9x128x128xbf16, #tpu.memory_space<vmem>>, vector<1x128x128xbf16>
    %125 = vector.shape_cast %124 : vector<1x128x128xbf16> to vector<128x128xbf16>
    %cst_112 = arith.constant dense<0.000000e+00> : vector<256x128xf32>
    %126 = tpu.matmul %123, %125, %cst_112 {dimension_numbers = #tpu.dot_dimension_numbers<[1], [0], [0], [1], [0, 0, 1, 1], [], []>} : vector<256x128xbf16>, vector<128x128xbf16>, vector<256x128xf32> -> vector<256x128xf32>
    %127 = arith.addf %122, %126 : vector<256x128xf32>
    %c0_113 = arith.constant 0 : index
    %c0_114 = arith.constant 0 : index
    %128 = vector.load %arg13[%c0_113, %c0_114] : memref<256x128xf32, #tpu.memory_space<vmem>>, vector<256x128xf32>
    tpu.vector_store %arg13[%c0_113, %c0_114], %127 {strides = array<i32>} : memref<256x128xf32, #tpu.memory_space<vmem>>, vector<256x128xf32>,
    %c7_115 = arith.constant 7 : index
    %c9 = arith.constant 9 : index
    %c0_116 = arith.constant 0 : index
    %129 = vector.load %arg12[%c7_115, %c9, %c0_116] : memref<32x32x128xf32, #tpu.memory_space<vmem>>, vector<16x16x128xf32>
    %130 = vector.shape_cast %129 : vector<16x16x128xf32> to vector<256x128xf32>
    %c0_117 = arith.constant 0 : index
    %c0_118 = arith.constant 0 : index
    %131 = vector.load %arg13[%c0_117, %c0_118] : memref<256x128xf32, #tpu.memory_space<vmem>>, vector<256x128xf32>
    %132 = arith.truncf %130 : vector<256x128xf32> to vector<256x128xbf16>
    %c2_119 = arith.constant 2 : index
    %c0_120 = arith.constant 0 : index
    %c0_121 = arith.constant 0 : index
    %133 = vector.load %arg4[%c2_119, %c0_120, %c0_121] : memref<9x128x128xbf16, #tpu.memory_space<vmem>>, vector<1x128x128xbf16>
    %134 = vector.shape_cast %133 : vector<1x128x128xbf16> to vector<128x128xbf16>
    %cst_122 = arith.constant dense<0.000000e+00> : vector<256x128xf32>
    %135 = tpu.matmul %132, %134, %cst_122 {dimension_numbers = #tpu.dot_dimension_numbers<[1], [0], [0], [1], [0, 0, 1, 1], [], []>} : vector<256x128xbf16>, vector<128x128xbf16>, vector<256x128xf32> -> vector<256x128xf32>
    %136 = arith.addf %131, %135 : vector<256x128xf32>
    %c0_123 = arith.constant 0 : index
    %c0_124 = arith.constant 0 : index
    %137 = vector.load %arg13[%c0_123, %c0_124] : memref<256x128xf32, #tpu.memory_space<vmem>>, vector<256x128xf32>
    tpu.vector_store %arg13[%c0_123, %c0_124], %136 {strides = array<i32>} : memref<256x128xf32, #tpu.memory_space<vmem>>, vector<256x128xf32>,
    %c8_125 = arith.constant 8 : index
    %c7_126 = arith.constant 7 : index
    %c0_127 = arith.constant 0 : index
    %138 = vector.load %arg12[%c8_125, %c7_126, %c0_127] : memref<32x32x128xf32, #tpu.memory_space<vmem>>, vector<16x16x128xf32>
    %139 = vector.shape_cast %138 : vector<16x16x128xf32> to vector<256x128xf32>
    %c0_128 = arith.constant 0 : index
    %c0_129 = arith.constant 0 : index
    %140 = vector.load %arg13[%c0_128, %c0_129] : memref<256x128xf32, #tpu.memory_space<vmem>>, vector<256x128xf32>
    %141 = arith.truncf %139 : vector<256x128xf32> to vector<256x128xbf16>
    %c3_130 = arith.constant 3 : index
    %c0_131 = arith.constant 0 : index
    %c0_132 = arith.constant 0 : index
    %142 = vector.load %arg4[%c3_130, %c0_131, %c0_132] : memref<9x128x128xbf16, #tpu.memory_space<vmem>>, vector<1x128x128xbf16>
    %143 = vector.shape_cast %142 : vector<1x128x128xbf16> to vector<128x128xbf16>
    %cst_133 = arith.constant dense<0.000000e+00> : vector<256x128xf32>
    %144 = tpu.matmul %141, %143, %cst_133 {dimension_numbers = #tpu.dot_dimension_numbers<[1], [0], [0], [1], [0, 0, 1, 1], [], []>} : vector<256x128xbf16>, vector<128x128xbf16>, vector<256x128xf32> -> vector<256x128xf32>
    %145 = arith.addf %140, %144 : vector<256x128xf32>
    %c0_134 = arith.constant 0 : index
    %c0_135 = arith.constant 0 : index
    %146 = vector.load %arg13[%c0_134, %c0_135] : memref<256x128xf32, #tpu.memory_space<vmem>>, vector<256x128xf32>
    tpu.vector_store %arg13[%c0_134, %c0_135], %145 {strides = array<i32>} : memref<256x128xf32, #tpu.memory_space<vmem>>, vector<256x128xf32>,
    %c8_136 = arith.constant 8 : index
    %c8_137 = arith.constant 8 : index
    %c0_138 = arith.constant 0 : index
    %147 = vector.load %arg12[%c8_136, %c8_137, %c0_138] : memref<32x32x128xf32, #tpu.memory_space<vmem>>, vector<16x16x128xf32>
    %148 = vector.shape_cast %147 : vector<16x16x128xf32> to vector<256x128xf32>
    %c0_139 = arith.constant 0 : index
    %c0_140 = arith.constant 0 : index
    %149 = vector.load %arg13[%c0_139, %c0_140] : memref<256x128xf32, #tpu.memory_space<vmem>>, vector<256x128xf32>
    %150 = arith.truncf %148 : vector<256x128xf32> to vector<256x128xbf16>
    %c4_141 = arith.constant 4 : index
    %c0_142 = arith.constant 0 : index
    %c0_143 = arith.constant 0 : index
    %151 = vector.load %arg4[%c4_141, %c0_142, %c0_143] : memref<9x128x128xbf16, #tpu.memory_space<vmem>>, vector<1x128x128xbf16>
    %152 = vector.shape_cast %151 : vector<1x128x128xbf16> to vector<128x128xbf16>
    %cst_144 = arith.constant dense<0.000000e+00> : vector<256x128xf32>
    %153 = tpu.matmul %150, %152, %cst_144 {dimension_numbers = #tpu.dot_dimension_numbers<[1], [0], [0], [1], [0, 0, 1, 1], [], []>} : vector<256x128xbf16>, vector<128x128xbf16>, vector<256x128xf32> -> vector<256x128xf32>
    %154 = arith.addf %149, %153 : vector<256x128xf32>
    %c0_145 = arith.constant 0 : index
    %c0_146 = arith.constant 0 : index
    %155 = vector.load %arg13[%c0_145, %c0_146] : memref<256x128xf32, #tpu.memory_space<vmem>>, vector<256x128xf32>
    tpu.vector_store %arg13[%c0_145, %c0_146], %154 {strides = array<i32>} : memref<256x128xf32, #tpu.memory_space<vmem>>, vector<256x128xf32>,
    %c8_147 = arith.constant 8 : index
    %c9_148 = arith.constant 9 : index
    %c0_149 = arith.constant 0 : index
    %156 = vector.load %arg12[%c8_147, %c9_148, %c0_149] : memref<32x32x128xf32, #tpu.memory_space<vmem>>, vector<16x16x128xf32>
    %157 = vector.shape_cast %156 : vector<16x16x128xf32> to vector<256x128xf32>
    %c0_150 = arith.constant 0 : index
    %c0_151 = arith.constant 0 : index
    %158 = vector.load %arg13[%c0_150, %c0_151] : memref<256x128xf32, #tpu.memory_space<vmem>>, vector<256x128xf32>
    %159 = arith.truncf %157 : vector<256x128xf32> to vector<256x128xbf16>
    %c5_152 = arith.constant 5 : index
    %c0_153 = arith.constant 0 : index
    %c0_154 = arith.constant 0 : index
    %160 = vector.load %arg4[%c5_152, %c0_153, %c0_154] : memref<9x128x128xbf16, #tpu.memory_space<vmem>>, vector<1x128x128xbf16>
    %161 = vector.shape_cast %160 : vector<1x128x128xbf16> to vector<128x128xbf16>
    %cst_155 = arith.constant dense<0.000000e+00> : vector<256x128xf32>
    %162 = tpu.matmul %159, %161, %cst_155 {dimension_numbers = #tpu.dot_dimension_numbers<[1], [0], [0], [1], [0, 0, 1, 1], [], []>} : vector<256x128xbf16>, vector<128x128xbf16>, vector<256x128xf32> -> vector<256x128xf32>
    %163 = arith.addf %158, %162 : vector<256x128xf32>
    %c0_156 = arith.constant 0 : index
    %c0_157 = arith.constant 0 : index
    %164 = vector.load %arg13[%c0_156, %c0_157] : memref<256x128xf32, #tpu.memory_space<vmem>>, vector<256x128xf32>
    tpu.vector_store %arg13[%c0_156, %c0_157], %163 {strides = array<i32>} : memref<256x128xf32, #tpu.memory_space<vmem>>, vector<256x128xf32>,
    %c9_158 = arith.constant 9 : index
    %c7_159 = arith.constant 7 : index
    %c0_160 = arith.constant 0 : index
    %165 = vector.load %arg12[%c9_158, %c7_159, %c0_160] : memref<32x32x128xf32, #tpu.memory_space<vmem>>, vector<16x16x128xf32>
    %166 = vector.shape_cast %165 : vector<16x16x128xf32> to vector<256x128xf32>
    %c0_161 = arith.constant 0 : index
    %c0_162 = arith.constant 0 : index
    %167 = vector.load %arg13[%c0_161, %c0_162] : memref<256x128xf32, #tpu.memory_space<vmem>>, vector<256x128xf32>
    %168 = arith.truncf %166 : vector<256x128xf32> to vector<256x128xbf16>
    %c6_163 = arith.constant 6 : index
    %c0_164 = arith.constant 0 : index
    %c0_165 = arith.constant 0 : index
    %169 = vector.load %arg4[%c6_163, %c0_164, %c0_165] : memref<9x128x128xbf16, #tpu.memory_space<vmem>>, vector<1x128x128xbf16>
    %170 = vector.shape_cast %169 : vector<1x128x128xbf16> to vector<128x128xbf16>
    %cst_166 = arith.constant dense<0.000000e+00> : vector<256x128xf32>
    %171 = tpu.matmul %168, %170, %cst_166 {dimension_numbers = #tpu.dot_dimension_numbers<[1], [0], [0], [1], [0, 0, 1, 1], [], []>} : vector<256x128xbf16>, vector<128x128xbf16>, vector<256x128xf32> -> vector<256x128xf32>
    %172 = arith.addf %167, %171 : vector<256x128xf32>
    %c0_167 = arith.constant 0 : index
    %c0_168 = arith.constant 0 : index
    %173 = vector.load %arg13[%c0_167, %c0_168] : memref<256x128xf32, #tpu.memory_space<vmem>>, vector<256x128xf32>
    tpu.vector_store %arg13[%c0_167, %c0_168], %172 {strides = array<i32>} : memref<256x128xf32, #tpu.memory_space<vmem>>, vector<256x128xf32>,
    %c9_169 = arith.constant 9 : index
    %c8_170 = arith.constant 8 : index
    %c0_171 = arith.constant 0 : index
    %174 = vector.load %arg12[%c9_169, %c8_170, %c0_171] : memref<32x32x128xf32, #tpu.memory_space<vmem>>, vector<16x16x128xf32>
    %175 = vector.shape_cast %174 : vector<16x16x128xf32> to vector<256x128xf32>
    %c0_172 = arith.constant 0 : index
    %c0_173 = arith.constant 0 : index
    %176 = vector.load %arg13[%c0_172, %c0_173] : memref<256x128xf32, #tpu.memory_space<vmem>>, vector<256x128xf32>
    %177 = arith.truncf %175 : vector<256x128xf32> to vector<256x128xbf16>
    %c7_174 = arith.constant 7 : index
    %c0_175 = arith.constant 0 : index
    %c0_176 = arith.constant 0 : index
    %178 = vector.load %arg4[%c7_174, %c0_175, %c0_176] : memref<9x128x128xbf16, #tpu.memory_space<vmem>>, vector<1x128x128xbf16>
    %179 = vector.shape_cast %178 : vector<1x128x128xbf16> to vector<128x128xbf16>
    %cst_177 = arith.constant dense<0.000000e+00> : vector<256x128xf32>
    %180 = tpu.matmul %177, %179, %cst_177 {dimension_numbers = #tpu.dot_dimension_numbers<[1], [0], [0], [1], [0, 0, 1, 1], [], []>} : vector<256x128xbf16>, vector<128x128xbf16>, vector<256x128xf32> -> vector<256x128xf32>
    %181 = arith.addf %176, %180 : vector<256x128xf32>
    %c0_178 = arith.constant 0 : index
    %c0_179 = arith.constant 0 : index
    %182 = vector.load %arg13[%c0_178, %c0_179] : memref<256x128xf32, #tpu.memory_space<vmem>>, vector<256x128xf32>
    tpu.vector_store %arg13[%c0_178, %c0_179], %181 {strides = array<i32>} : memref<256x128xf32, #tpu.memory_space<vmem>>, vector<256x128xf32>,
    %c9_180 = arith.constant 9 : index
    %c9_181 = arith.constant 9 : index
    %c0_182 = arith.constant 0 : index
    %183 = vector.load %arg12[%c9_180, %c9_181, %c0_182] : memref<32x32x128xf32, #tpu.memory_space<vmem>>, vector<16x16x128xf32>
    %184 = vector.shape_cast %183 : vector<16x16x128xf32> to vector<256x128xf32>
    %c0_183 = arith.constant 0 : index
    %c0_184 = arith.constant 0 : index
    %185 = vector.load %arg13[%c0_183, %c0_184] : memref<256x128xf32, #tpu.memory_space<vmem>>, vector<256x128xf32>
    %186 = arith.truncf %184 : vector<256x128xf32> to vector<256x128xbf16>
    %c8_185 = arith.constant 8 : index
    %c0_186 = arith.constant 0 : index
    %c0_187 = arith.constant 0 : index
    %187 = vector.load %arg4[%c8_185, %c0_186, %c0_187] : memref<9x128x128xbf16, #tpu.memory_space<vmem>>, vector<1x128x128xbf16>
    %188 = vector.shape_cast %187 : vector<1x128x128xbf16> to vector<128x128xbf16>
    %cst_188 = arith.constant dense<0.000000e+00> : vector<256x128xf32>
    %189 = tpu.matmul %186, %188, %cst_188 {dimension_numbers = #tpu.dot_dimension_numbers<[1], [0], [0], [1], [0, 0, 1, 1], [], []>} : vector<256x128xbf16>, vector<128x128xbf16>, vector<256x128xf32> -> vector<256x128xf32>
    %190 = arith.addf %185, %189 : vector<256x128xf32>
    %c0_189 = arith.constant 0 : index
    %c0_190 = arith.constant 0 : index
    %191 = vector.load %arg13[%c0_189, %c0_190] : memref<256x128xf32, #tpu.memory_space<vmem>>, vector<256x128xf32>
    tpu.vector_store %arg13[%c0_189, %c0_190], %190 {strides = array<i32>} : memref<256x128xf32, #tpu.memory_space<vmem>>, vector<256x128xf32>,
    %c0_191 = arith.constant 0 : index
    %c0_192 = arith.constant 0 : index
    %192 = vector.load %arg13[%c0_191, %c0_192] : memref<256x128xf32, #tpu.memory_space<vmem>>, vector<256x128xf32>
    %c0_193 = arith.constant 0 : index
    %c0_194 = arith.constant 0 : index
    %193 = vector.load %arg9[%c0_193, %c0_194] : memref<1x128xf32, #tpu.memory_space<vmem>>, vector<1x128xf32>
    %194 = vector.broadcast %193 : vector<1x128xf32> to vector<256x128xf32>
    %195 = arith.mulf %192, %194 : vector<256x128xf32>
    %c0_195 = arith.constant 0 : index
    %c0_196 = arith.constant 0 : index
    %196 = vector.load %arg10[%c0_195, %c0_196] : memref<1x128xf32, #tpu.memory_space<vmem>>, vector<1x128xf32>
    %197 = vector.broadcast %196 : vector<1x128xf32> to vector<256x128xf32>
    %198 = arith.addf %195, %197 : vector<256x128xf32>
    %199 = arith.addf %198, %104 : vector<256x128xf32>
    %cst_197 = arith.constant 0.000000e+00 : f32
    %200 = vector.broadcast %cst_197 : f32 to vector<256x128xf32>
    %201 = arith.maximumf %199, %200 : vector<256x128xf32>
    %c0_198 = arith.constant 0 : index
    %c0_199 = arith.constant 0 : index
    %c0_200 = arith.constant 0 : index
    %202 = vector.load %arg11[%c0_198, %c0_199, %c0_200] : memref<1x256x128xf32, #tpu.memory_space<vmem>>, vector<1x256x128xf32>
    %203 = vector.shape_cast %202 : vector<1x256x128xf32> to vector<256x128xf32>
    %204 = vector.shape_cast %201 : vector<256x128xf32> to vector<1x256x128xf32>
    tpu.vector_store %arg11[%c0_198, %c0_199, %c0_200], %204 {strides = array<i32>} : memref<1x256x128xf32, #tpu.memory_space<vmem>>, vector<1x256x128xf32>,
    return
  }
  func.func @transform_0(%arg0: i32) -> (i32, i32, i32, i32) {
    %c0_i32 = arith.constant 0 : i32
    %c0_i32_0 = arith.constant 0 : i32
    %c0_i32_1 = arith.constant 0 : i32
    %c0_i32_2 = arith.constant 0 : i32
    return %arg0, %c0_i32, %c0_i32_0, %c0_i32_1 : i32, i32, i32, i32
  }
  func.func @transform_1(%arg0: i32) -> (i32, i32, i32) {
    %c0_i32 = arith.constant 0 : i32
    %c0_i32_0 = arith.constant 0 : i32
    %c0_i32_1 = arith.constant 0 : i32
    %c0_i32_2 = arith.constant 0 : i32
    return %c0_i32, %c0_i32_0, %c0_i32_1 : i32, i32, i32
  }
  func.func @transform_2(%arg0: i32) -> (i32, i32) {
    %c0_i32 = arith.constant 0 : i32
    %c0_i32_0 = arith.constant 0 : i32
    %c0_i32_1 = arith.constant 0 : i32
    return %c0_i32, %c0_i32_0 : i32, i32
  }
  func.func @transform_3(%arg0: i32) -> (i32, i32, i32) {
    %c0_i32 = arith.constant 0 : i32
    %c0_i32_0 = arith.constant 0 : i32
    %c0_i32_1 = arith.constant 0 : i32
    %c0_i32_2 = arith.constant 0 : i32
    return %c0_i32, %c0_i32_0, %c0_i32_1 : i32, i32, i32
  }
  func.func @transform_4(%arg0: i32) -> (i32, i32) {
    %c0_i32 = arith.constant 0 : i32
    %c0_i32_0 = arith.constant 0 : i32
    %c0_i32_1 = arith.constant 0 : i32
    return %c0_i32, %c0_i32_0 : i32, i32
  }
  func.func @transform_5(%arg0: i32) -> (i32, i32) {
    %c0_i32 = arith.constant 0 : i32
    %c0_i32_0 = arith.constant 0 : i32
    %c0_i32_1 = arith.constant 0 : i32
    return %c0_i32, %c0_i32_0 : i32, i32
  }
  func.func @transform_6(%arg0: i32) -> (i32, i32) {
    %c0_i32 = arith.constant 0 : i32
    %c0_i32_0 = arith.constant 0 : i32
    %c0_i32_1 = arith.constant 0 : i32
    return %c0_i32, %c0_i32_0 : i32, i32
  }
  func.func @transform_7(%arg0: i32) -> (i32, i32) {
    %c0_i32 = arith.constant 0 : i32
    %c0_i32_0 = arith.constant 0 : i32
    %c0_i32_1 = arith.constant 0 : i32
    return %c0_i32, %c0_i32_0 : i32, i32
  }
  func.func @transform_8(%arg0: i32) -> (i32, i32) {
    %c0_i32 = arith.constant 0 : i32
    %c0_i32_0 = arith.constant 0 : i32
    %c0_i32_1 = arith.constant 0 : i32
    return %c0_i32, %c0_i32_0 : i32, i32
  }
  func.func @transform_9(%arg0: i32) -> (i32, i32) {
    %c0_i32 = arith.constant 0 : i32
    %c0_i32_0 = arith.constant 0 : i32
    %c0_i32_1 = arith.constant 0 : i32
    return %c0_i32, %c0_i32_0 : i32, i32
  }
  func.func @transform_10(%arg0: i32) -> (i32, i32, i32) {
    %c0_i32 = arith.constant 0 : i32
    %c0_i32_0 = arith.constant 0 : i32
    %c0_i32_1 = arith.constant 0 : i32
    return %arg0, %c0_i32, %c0_i32_0 : i32, i32, i32
  }
}

</mosaic_0001>

<llo_original>
// kernel: basic_block_forward.1
$region0: #{basic_block_forward.1}
  #allocation0 [shape = 'u32[]', space=smem, size = 0x4, offset = 0x4, fixed_abs, tag = 'smem constant byte address 0x4 - core index']
  #allocation1 [shape = 'u32[144,128]{1,0:T(1,128)}', space=vmem, size = 0x12000, scoped, tag = 'internal scratch']
  #allocation2 [shape = 'f32[32,32,128]{2,1,0:T(8,128)}', space=vmem, size = 0x80000, scoped, tag = 'scratch operand']
  #allocation3 [shape = 'f32[256,128]{1,0:T(8,128)}', space=vmem, size = 0x20000, scoped, tag = 'scratch operand']
  %s0 = inlined_call_operand.vmem [shape: f32[2,18,18,4], index: 0, kind: input, shape index: {}]
  %s1 = inlined_call_operand.vmem [shape: bf16[9,4,128], index: 1, kind: input, shape index: {}]
  %s2 = inlined_call_operand.vmem [shape: bf16[4,128], index: 2, kind: input, shape index: {}]
  %s3 = inlined_call_operand.vmem [shape: bf16[9,128,128], index: 3, kind: input, shape index: {}]
  %s4 = inlined_call_operand.vmem [shape: f32[1,128], index: 4, kind: input, shape index: {}]
  %s5 = inlined_call_operand.vmem [shape: f32[1,128], index: 5, kind: input, shape index: {}]
  %s6 = inlined_call_operand.vmem [shape: f32[1,128], index: 6, kind: input, shape index: {}]
  %s7 = inlined_call_operand.vmem [shape: f32[1,128], index: 7, kind: input, shape index: {}]
  %s8 = inlined_call_operand.vmem [shape: f32[1,128], index: 8, kind: input, shape index: {}]
  %s9 = inlined_call_operand.vmem [shape: f32[1,128], index: 9, kind: input, shape index: {}]
  %s10 = inlined_call_operand.vmem [shape: f32[2,256,128], index: 10, kind: output, shape index: {}]
  %s11 = sld [smem:[#allocation0]]
  $region73: #{basic_block_forward.1} parent=0
    _
  %s13 = ssub.s32 1, %s11
  %s14 = scalar_select 0, %s13, %s11
  loop: start=0, step=1, limit=4
  $region2: #{basic_block_forward.1} parent=0 // loop_pre_header
    _
  $region3: #{basic_block_forward.1} parent=0 // loop_header
    %s16 = sphi 0, %s20
    %p17 = scmp.ge.s32.totalorder %s16, 4
    %s26 = sphi 0, %s28
    %s29 = sphi 0, %s26
    %s30 = sphi 0, %s29
    %s46 = sphi 0, %s30
    %s50 = sphi 0, %s50
    %s52 = sphi 0, %s50
    %s53 = sphi 0, %s52
    %s67 = sphi 0, %s53
    %s71 = sphi 0, %s71
    %s73 = sphi 0, %s71
    %s74 = sphi 0, %s73
    %s88 = sphi 0, %s74
    %s92 = sphi 0, %s92
    %s94 = sphi 0, %s92
    %s95 = sphi 0, %s94
    %s109 = sphi 0, %s95
    %s113 = sphi 0, %s113
    %s115 = sphi 0, %s113
    %s116 = sphi 0, %s115
    %s130 = sphi 0, %s116
    %s134 = sphi 0, %s134
    %s136 = sphi 0, %s134
    %s137 = sphi 0, %s136
    %s151 = sphi 0, %s137
    %s155 = sphi 0, %s155
    %s157 = sphi 0, %s155
    %s158 = sphi 0, %s157
    %s172 = sphi 0, %s158
    %s176 = sphi 0, %s176
    %s178 = sphi 0, %s176
    %s179 = sphi 0, %s178
    %s193 = sphi 0, %s179
    %s197 = sphi 0, %s197
    %s199 = sphi 0, %s197
    %s200 = sphi 0, %s199
    %s214 = sphi 0, %s200
    %s218 = sphi 0, %s218
    %s220 = sphi 0, %s218
    %s221 = sphi 0, %s220
    %s235 = sphi 0, %s221
    %s241 = sphi 0, %s243
    %s244 = sphi 0, %s241
    %s245 = sphi 0, %s244
    %s261 = sphi 0, %s245
  $region4: #{basic_block_forward.1} parent=0 // loop_header_branch
    %19 = sbr.rel (%p17) target = $region8
  $region5: #{basic_block_forward.1} parent=0 // loop_body
    %s21 = ssub.s32 %s16, 1
    %s22 = ssub.s32 %s16, 2
    %s23 = sadd.s32 %s16, 1
    %s24 = ssub.s32 %s16, %s23
    %p25 = scmp.eq.s32.totalorder %s24, 0
    %s27 = sadd.s32 %s26, 1
    %s28 = scalar_select %p25, %s26, %s27
    %p31 = pneg %p25
    %p32 = scmp.eq.s32.totalorder %s16, 1
    %p33 = por %p31, %p32
    %p34 = scmp.ne.s32.totalorder %s26, %s29
    %p35 = scmp.eq.s32.totalorder %s16, 0
    %p36 = por %p34, %p35
    %p37 = scmp.ne.s32.totalorder %s26, %s29
    %p38 = scmp.eq.s32.totalorder %s21, 1
    %p39 = por %p37, %p38
    %p40 = scmp.ne.s32.totalorder %s29, %s30
    %p41 = scmp.eq.s32.totalorder %s21, 0
    %p42 = por %p40, %p41
    %p43 = scmp.ne.s32.totalorder %s29, %s30
    %p44 = scmp.eq.s32.totalorder %s22, 1
    %p45 = por %p43, %p44
    %p47 = scmp.ne.s32.totalorder %s30, %s46
    %p48 = scmp.eq.s32.totalorder %s22, 0
    %p49 = por %p47, %p48
    %s51 = sadd.s32 %s50, 1
    %p54 = scmp.eq.s32.totalorder %s16, 1
    %p55 = scmp.ne.s32.totalorder %s50, %s52
    %p56 = scmp.eq.s32.totalorder %s16, 0
    %p57 = por %p55, %p56
    %p58 = scmp.ne.s32.totalorder %s50, %s52
    %p59 = scmp.eq.s32.totalorder %s21, 1
    %p60 = por %p58, %p59
    %p61 = scmp.ne.s32.totalorder %s52, %s53
    %p62 = scmp.eq.s32.totalorder %s21, 0
    %p63 = por %p61, %p62
    %p64 = scmp.ne.s32.totalorder %s52, %s53
    %p65 = scmp.eq.s32.totalorder %s22, 1
    %p66 = por %p64, %p65
    %p68 = scmp.ne.s32.totalorder %s53, %s67
    %p69 = scmp.eq.s32.totalorder %s22, 0
    %p70 = por %p68, %p69
    %s72 = sadd.s32 %s71, 1
    %p75 = scmp.eq.s32.totalorder %s16, 1
    %p76 = scmp.ne.s32.totalorder %s71, %s73
    %p77 = scmp.eq.s32.totalorder %s16, 0
    %p78 = por %p76, %p77
    %p79 = scmp.ne.s32.totalorder %s71, %s73
    %p80 = scmp.eq.s32.totalorder %s21, 1
    %p81 = por %p79, %p80
    %p82 = scmp.ne.s32.totalorder %s73, %s74
    %p83 = scmp.eq.s32.totalorder %s21, 0
    %p84 = por %p82, %p83
    %p85 = scmp.ne.s32.totalorder %s73, %s74
    %p86 = scmp.eq.s32.totalorder %s22, 1
    %p87 = por %p85, %p86
    %p89 = scmp.ne.s32.totalorder %s74, %s88
    %p90 = scmp.eq.s32.totalorder %s22, 0
    %p91 = por %p89, %p90
    %s93 = sadd.s32 %s92, 1
    %p96 = scmp.eq.s32.totalorder %s16, 1
    %p97 = scmp.ne.s32.totalorder %s92, %s94
    %p98 = scmp.eq.s32.totalorder %s16, 0
    %p99 = por %p97, %p98
    %p100 = scmp.ne.s32.totalorder %s92, %s94
    %p101 = scmp.eq.s32.totalorder %s21, 1
    %p102 = por %p100, %p101
    %p103 = scmp.ne.s32.totalorder %s94, %s95
    %p104 = scmp.eq.s32.totalorder %s21, 0
    %p105 = por %p103, %p104
    %p106 = scmp.ne.s32.totalorder %s94, %s95
    %p107 = scmp.eq.s32.totalorder %s22, 1
    %p108 = por %p106, %p107
    %p110 = scmp.ne.s32.totalorder %s95, %s109
    %p111 = scmp.eq.s32.totalorder %s22, 0
    %p112 = por %p110, %p111
    %s114 = sadd.s32 %s113, 1
    %p117 = scmp.eq.s32.totalorder %s16, 1
    %p118 = scmp.ne.s32.totalorder %s113, %s115
    %p119 = scmp.eq.s32.totalorder %s16, 0
    %p120 = por %p118, %p119
    %p121 = scmp.ne.s32.totalorder %s113, %s115
    %p122 = scmp.eq.s32.totalorder %s21, 1
    %p123 = por %p121, %p122
    %p124 = scmp.ne.s32.totalorder %s115, %s116
    %p125 = scmp.eq.s32.totalorder %s21, 0
    %p126 = por %p124, %p125
    %p127 = scmp.ne.s32.totalorder %s115, %s116
    %p128 = scmp.eq.s32.totalorder %s22, 1
    %p129 = por %p127, %p128
    %p131 = scmp.ne.s32.totalorder %s116, %s130
    %p132 = scmp.eq.s32.totalorder %s22, 0
    %p133 = por %p131, %p132
    %s135 = sadd.s32 %s134, 1
    %p138 = scmp.eq.s32.totalorder %s16, 1
    %p139 = scmp.ne.s32.totalorder %s134, %s136
    %p140 = scmp.eq.s32.totalorder %s16, 0
    %p141 = por %p139, %p140
    %p142 = scmp.ne.s32.totalorder %s134, %s136
    %p143 = scmp.eq.s32.totalorder %s21, 1
    %p144 = por %p142, %p143
    %p145 = scmp.ne.s32.totalorder %s136, %s137
    %p146 = scmp.eq.s32.totalorder %s21, 0
    %p147 = por %p145, %p146
    %p148 = scmp.ne.s32.totalorder %s136, %s137
    %p149 = scmp.eq.s32.totalorder %s22, 1
    %p150 = por %p148, %p149
    %p152 = scmp.ne.s32.totalorder %s137, %s151
    %p153 = scmp.eq.s32.totalorder %s22, 0
    %p154 = por %p152, %p153
    %s156 = sadd.s32 %s155, 1
    %p159 = scmp.eq.s32.totalorder %s16, 1
    %p160 = scmp.ne.s32.totalorder %s155, %s157
    %p161 = scmp.eq.s32.totalorder %s16, 0
    %p162 = por %p160, %p161
    %p163 = scmp.ne.s32.totalorder %s155, %s157
    %p164 = scmp.eq.s32.totalorder %s21, 1
    %p165 = por %p163, %p164
    %p166 = scmp.ne.s32.totalorder %s157, %s158
    %p167 = scmp.eq.s32.totalorder %s21, 0
    %p168 = por %p166, %p167
    %p169 = scmp.ne.s32.totalorder %s157, %s158
    %p170 = scmp.eq.s32.totalorder %s22, 1
    %p171 = por %p169, %p170
    %p173 = scmp.ne.s32.totalorder %s158, %s172
    %p174 = scmp.eq.s32.totalorder %s22, 0
    %p175 = por %p173, %p174
    %s177 = sadd.s32 %s176, 1
    %p180 = scmp.eq.s32.totalorder %s16, 1
    %p181 = scmp.ne.s32.totalorder %s176, %s178
    %p182 = scmp.eq.s32.totalorder %s16, 0
    %p183 = por %p181, %p182
    %p184 = scmp.ne.s32.totalorder %s176, %s178
    %p185 = scmp.eq.s32.totalorder %s21, 1
    %p186 = por %p184, %p185
    %p187 = scmp.ne.s32.totalorder %s178, %s179
    %p188 = scmp.eq.s32.totalorder %s21, 0
    %p189 = por %p187, %p188
    %p190 = scmp.ne.s32.totalorder %s178, %s179
    %p191 = scmp.eq.s32.totalorder %s22, 1
    %p192 = por %p190, %p191
    %p194 = scmp.ne.s32.totalorder %s179, %s193
    %p195 = scmp.eq.s32.totalorder %s22, 0
    %p196 = por %p194, %p195
    %s198 = sadd.s32 %s197, 1
    %p201 = scmp.eq.s32.totalorder %s16, 1
    %p202 = scmp.ne.s32.totalorder %s197, %s199
    %p203 = scmp.eq.s32.totalorder %s16, 0
    %p204 = por %p202, %p203
    %p205 = scmp.ne.s32.totalorder %s197, %s199
    %p206 = scmp.eq.s32.totalorder %s21, 1
    %p207 = por %p205, %p206
    %p208 = scmp.ne.s32.totalorder %s199, %s200
    %p209 = scmp.eq.s32.totalorder %s21, 0
    %p210 = por %p208, %p209
    %p211 = scmp.ne.s32.totalorder %s199, %s200
    %p212 = scmp.eq.s32.totalorder %s22, 1
    %p213 = por %p211, %p212
    %p215 = scmp.ne.s32.totalorder %s200, %s214
    %p216 = scmp.eq.s32.totalorder %s22, 0
    %p217 = por %p215, %p216
    %s219 = sadd.s32 %s218, 1
    %p222 = scmp.eq.s32.totalorder %s16, 1
    %p223 = scmp.ne.s32.totalorder %s218, %s220
    %p224 = scmp.eq.s32.totalorder %s16, 0
    %p225 = por %p223, %p224
    %p226 = scmp.ne.s32.totalorder %s218, %s220
    %p227 = scmp.eq.s32.totalorder %s21, 1
    %p228 = por %p226, %p227
    %p229 = scmp.ne.s32.totalorder %s220, %s221
    %p230 = scmp.eq.s32.totalorder %s21, 0
    %p231 = por %p229, %p230
    %p232 = scmp.ne.s32.totalorder %s220, %s221
    %p233 = scmp.eq.s32.totalorder %s22, 1
    %p234 = por %p232, %p233
    %p236 = scmp.ne.s32.totalorder %s221, %s235
    %p237 = scmp.eq.s32.totalorder %s22, 0
    %p238 = por %p236, %p237
    %s239 = ssub.s32 %s16, %s23
    %p240 = scmp.eq.s32.totalorder %s239, 0
    %s242 = sadd.s32 %s241, 1
    %s243 = scalar_select %p240, %s241, %s242
    %p246 = pneg %p240
    %p247 = scmp.eq.s32.totalorder %s16, 1
    %p248 = por %p246, %p247
    %p249 = scmp.ne.s32.totalorder %s241, %s244
    %p250 = scmp.eq.s32.totalorder %s16, 0
    %p251 = por %p249, %p250
    %p252 = scmp.ne.s32.totalorder %s241, %s244
    %p253 = scmp.eq.s32.totalorder %s21, 1
    %p254 = por %p252, %p253
    %p255 = scmp.ne.s32.totalorder %s244, %s245
    %p256 = scmp.eq.s32.totalorder %s21, 0
    %p257 = por %p255, %p256
    %p258 = scmp.ne.s32.totalorder %s244, %s245
    %p259 = scmp.eq.s32.totalorder %s22, 1
    %p260 = por %p258, %p259
    %p262 = scmp.ne.s32.totalorder %s245, %s261
    %p263 = scmp.eq.s32.totalorder %s22, 0
    %p264 = por %p262, %p263
    %p265 = scmp.le.s32.totalorder 1, %s16
    %p266 = scmp.lt.s32.totalorder %s16, 3
    %p267 = pnand %p265, %p266
    %p268 = pneg %p267
    // Predicated region
    $region9: #{basic_block_forward.1} parent=5 // pred_check
      _
    $region10: #{basic_block_forward.1} parent=5 // pred_check_branch
      %270 = sbr.rel (%p267) target = $region12
    $region11: #{basic_block_forward.1} parent=5 // pred_region
      %s271 = ssub.s32 %s16, 1
      // Predicated region
      $region13: #{basic_block_forward.1} parent=11 // pred_check
        %p272 = pneg %p63
      $region14: #{basic_block_forward.1} parent=11 // pred_check_branch
        %274 = sbr.rel (%p272) target = $region16
      $region15: #{basic_block_forward.1} parent=11 // pred_region
        _
      $region16: #{basic_block_forward.1} parent=11 // pred_fallthru
        _
      // Predicated region
      $region17: #{basic_block_forward.1} parent=11 // pred_check
        %p275 = pneg %p84
      $region18: #{basic_block_forward.1} parent=11 // pred_check_branch
        %277 = sbr.rel (%p275) target = $region20
      $region19: #{basic_block_forward.1} parent=11 // pred_region
        _
      $region20: #{basic_block_forward.1} parent=11 // pred_fallthru
        _
      // Predicated region
      $region21: #{basic_block_forward.1} parent=11 // pred_check
        %p278 = pneg %p105
      $region22: #{basic_block_forward.1} parent=11 // pred_check_branch
        %280 = sbr.rel (%p278) target = $region24
      $region23: #{basic_block_forward.1} parent=11 // pred_region
        _
      $region24: #{basic_block_forward.1} parent=11 // pred_fallthru
        _
      // Predicated region
      $region25: #{basic_block_forward.1} parent=11 // pred_check
        %p281 = pneg %p126
      $region26: #{basic_block_forward.1} parent=11 // pred_check_branch
        %283 = sbr.rel (%p281) target = $region28
      $region27: #{basic_block_forward.1} parent=11 // pred_region
        _
      $region28: #{basic_block_forward.1} parent=11 // pred_fallthru
        _
      // Predicated region
      $region29: #{basic_block_forward.1} parent=11 // pred_check
        %p284 = pneg %p147
      $region30: #{basic_block_forward.1} parent=11 // pred_check_branch
        %286 = sbr.rel (%p284) target = $region32
      $region31: #{basic_block_forward.1} parent=11 // pred_region
        _
      $region32: #{basic_block_forward.1} parent=11 // pred_fallthru
        _
      // Predicated region
      $region33: #{basic_block_forward.1} parent=11 // pred_check
        %p287 = pneg %p168
      $region34: #{basic_block_forward.1} parent=11 // pred_check_branch
        %289 = sbr.rel (%p287) target = $region36
      $region35: #{basic_block_forward.1} parent=11 // pred_region
        _
      $region36: #{basic_block_forward.1} parent=11 // pred_fallthru
        _
      // Predicated region
      $region37: #{basic_block_forward.1} parent=11 // pred_check
        %p290 = pneg %p189
      $region38: #{basic_block_forward.1} parent=11 // pred_check_branch
        %292 = sbr.rel (%p290) target = $region40
      $region39: #{basic_block_forward.1} parent=11 // pred_region
        _
      $region40: #{basic_block_forward.1} parent=11 // pred_fallthru
        _
      // Predicated region
      $region41: #{basic_block_forward.1} parent=11 // pred_check
        %p293 = pneg %p210
      $region42: #{basic_block_forward.1} parent=11 // pred_check_branch
        %295 = sbr.rel (%p293) target = $region44
      $region43: #{basic_block_forward.1} parent=11 // pred_region
        _
      $region44: #{basic_block_forward.1} parent=11 // pred_fallthru
        _
      // Predicated region
      $region45: #{basic_block_forward.1} parent=11 // pred_check
        %p296 = pneg %p231
      $region46: #{basic_block_forward.1} parent=11 // pred_check_branch
        %298 = sbr.rel (%p296) target = $region48
      $region47: #{basic_block_forward.1} parent=11 // pred_region
        _
      $region48: #{basic_block_forward.1} parent=11 // pred_fallthru
        _
    $region12: #{basic_block_forward.1} parent=5 // pred_fallthru
      _
    %p299 = scmp.lt.s32.totalorder %s16, 2
    // Predicated region
    $region49: #{basic_block_forward.1} parent=5 // pred_check
      %p300 = pneg %p299
    $region50: #{basic_block_forward.1} parent=5 // pred_check_branch
      %302 = sbr.rel (%p300) target = $region52
    $region51: #{basic_block_forward.1} parent=5 // pred_region
      // Predicated region
      $region53: #{basic_block_forward.1} parent=51 // pred_check
        %p303 = pneg %p36
      $region54: #{basic_block_forward.1} parent=51 // pred_check_branch
        %305 = sbr.rel (%p303) target = $region56
      $region55: #{basic_block_forward.1} parent=51 // pred_region
        %p306 = scmp.lt.s32.totalorder %s16, 1
        %s307 = scalar_select %p306, %s16, 1
        %s308 = smul.addr %s307, 54
        %s309 = smul.addr %s308, 8
        %s310 = scalar_lea.vmem %s0, %s309
      $region56: #{basic_block_forward.1} parent=51 // pred_fallthru
        _
    $region52: #{basic_block_forward.1} parent=5 // pred_fallthru
      _
    %p311 = scmp.le.s32.totalorder 1, %s16
    %p312 = scmp.lt.s32.totalorder %s16, 3
    %p313 = pnand %p311, %p312
    %p314 = pneg %p313
    // Predicated region
    $region57: #{basic_block_forward.1} parent=5 // pred_check
      _
    $region58: #{basic_block_forward.1} parent=5 // pred_check_branch
      %316 = sbr.rel (%p313) target = $region60
    $region59: #{basic_block_forward.1} parent=5 // pred_region
      %s317 = ssub.s32 %s16, 1
      %p318 = scmp.lt.s32.totalorder %s21, 1
      %s319 = scalar_select %p318, %s21, 1
      %s320 = smul.addr %s319, 54
      %s321 = smul.addr %s320, 8
      %s322 = scalar_lea.vmem %s0, %s321
      %p323 = pneg %p42
      %p324 = pneg %p39
      %p325 = pneg %p63
      %p326 = pneg %p60
      %p327 = pneg %p84
      %p328 = pneg %p81
      %p329 = pneg %p105
      %p330 = pneg %p102
      %p331 = pneg %p126
      %p332 = pneg %p123
      %p333 = pneg %p147
      %p334 = pneg %p144
      %p335 = pneg %p168
      %p336 = pneg %p165
      %p337 = pneg %p189
      %p338 = pneg %p186
      %p339 = pneg %p210
      %p340 = pneg %p207
      %p341 = pneg %p231
      %p342 = pneg %p228
      %p343 = pneg %p257
      %p344 = pneg %p254
      %p345 = scmp.lt.s32.totalorder %s21, 1
      %s346 = scalar_select %p345, %s21, 1
      %s347 = smul.addr %s346, 32
      %s348 = smul.addr %s347, 8
      %s349 = scalar_lea.vmem %s10, %s348
      %p350 = scmp.lt.s32.totalorder %s21, 1
      %s351 = scalar_select %p350, %s21, 1
      %s352 = smul.addr %s351, 54
      %s353 = smul.addr %s352, 8
      %s354 = scalar_lea.vmem %s0, %s353
      %p355 = scmp.lt.s32.totalorder %s21, 1
      %s356 = scalar_select %p355, %s21, 1
      %s357 = smul.addr %s356, 32
      %s358 = smul.addr %s357, 8
      %s359 = scalar_lea.vmem %s10, %s358
      %v361 = vld [vmem:[%s354] sm:$0xff]
      %v362 = vld [vmem:[%s354 + $0x8] sm:$0xff]
      %v363 = vld [vmem:[%s354 + $0x10] sm:$0x3]
      %v364 = vld [vmem:[%s354 + $0x18] sm:$0xff]
      %v365 = vld [vmem:[%s354 + $0x20] sm:$0xff]
      %v366 = vld [vmem:[%s354 + $0x28] sm:$0x3]
      %v367 = vld [vmem:[%s354 + $0x30] sm:$0xff]
      %v368 = vld [vmem:[%s354 + $0x38] sm:$0xff]
      %v369 = vld [vmem:[%s354 + $0x40] sm:$0x3]
      %v370 = vld [vmem:[%s354 + $0x48] sm:$0xff]
      %v371 = vld [vmem:[%s354 + $0x50] sm:$0xff]
      %v372 = vld [vmem:[%s354 + $0x58] sm:$0x3]
      %v373 = vld [vmem:[%s354 + $0x60] sm:$0xff]
      %v374 = vld [vmem:[%s354 + $0x68] sm:$0xff]
      %v375 = vld [vmem:[%s354 + $0x70] sm:$0x3]
      %v376 = vld [vmem:[%s354 + $0x78] sm:$0xff]
      %v377 = vld [vmem:[%s354 + $0x80] sm:$0xff]
      %v378 = vld [vmem:[%s354 + $0x88] sm:$0x3]
      %v379 = vld [vmem:[%s354 + $0x90] sm:$0xff]
      %v380 = vld [vmem:[%s354 + $0x98] sm:$0xff]
      %v381 = vld [vmem:[%s354 + $0xa0] sm:$0x3]
      %v382 = vld [vmem:[%s354 + $0xa8] sm:$0xff]
      %v383 = vld [vmem:[%s354 + $0xb0] sm:$0xff]
      %v384 = vld [vmem:[%s354 + $0xb8] sm:$0x3]
      %v385 = vld [vmem:[%s354 + $0xc0] sm:$0xff]
      %v386 = vld [vmem:[%s354 + $0xc8] sm:$0xff]
      %v387 = vld [vmem:[%s354 + $0xd0] sm:$0x3]
      %v388 = vld [vmem:[%s354 + $0xd8] sm:$0xff]
      %v389 = vld [vmem:[%s354 + $0xe0] sm:$0xff]
      %v390 = vld [vmem:[%s354 + $0xe8] sm:$0x3]
      %v391 = vld [vmem:[%s354 + $0xf0] sm:$0xff]
      %v392 = vld [vmem:[%s354 + $0xf8] sm:$0xff]
      %v393 = vld [vmem:[%s354 + $0x100] sm:$0x3]
      %v394 = vld [vmem:[%s354 + $0x108] sm:$0xff]
      %v395 = vld [vmem:[%s354 + $0x110] sm:$0xff]
      %v396 = vld [vmem:[%s354 + $0x118] sm:$0x3]
      %v397 = vld [vmem:[%s354 + $0x120] sm:$0xff]
      %v398 = vld [vmem:[%s354 + $0x128] sm:$0xff]
      %v399 = vld [vmem:[%s354 + $0x130] sm:$0x3]
      %v400 = vld [vmem:[%s354 + $0x138] sm:$0xff]
      %v401 = vld [vmem:[%s354 + $0x140] sm:$0xff]
      %v402 = vld [vmem:[%s354 + $0x148] sm:$0x3]
      %v403 = vld [vmem:[%s354 + $0x150] sm:$0xff]
      %v404 = vld [vmem:[%s354 + $0x158] sm:$0xff]
      %v405 = vld [vmem:[%s354 + $0x160] sm:$0x3]
      %v406 = vld [vmem:[%s354 + $0x168] sm:$0xff]
      %v407 = vld [vmem:[%s354 + $0x170] sm:$0xff]
      %v408 = vld [vmem:[%s354 + $0x178] sm:$0x3]
      %v409 = vld [vmem:[%s354 + $0x180] sm:$0xff]
      %v410 = vld [vmem:[%s354 + $0x188] sm:$0xff]
      %v411 = vld [vmem:[%s354 + $0x190] sm:$0x3]
      %v412 = vld [vmem:[%s354 + $0x198] sm:$0xff]
      %v413 = vld [vmem:[%s354 + $0x1a0] sm:$0xff]
      %v414 = vld [vmem:[%s354 + $0x1a8] sm:$0x3]
      %415 = vst [vmem:[#allocation3] sm:$0xff] 0.0
      %416 = vst [vmem:[#allocation3 + $0x8] sm:$0xff] 0.0
      %417 = vst [vmem:[#allocation3 + $0x10] sm:$0xff] 0.0
      %418 = vst [vmem:[#allocation3 + $0x18] sm:$0xff] 0.0
      %419 = vst [vmem:[#allocation3 + $0x20] sm:$0xff] 0.0
      %420 = vst [vmem:[#allocation3 + $0x28] sm:$0xff] 0.0
      %421 = vst [vmem:[#allocation3 + $0x30] sm:$0xff] 0.0
      %422 = vst [vmem:[#allocation3 + $0x38] sm:$0xff] 0.0
      %423 = vst [vmem:[#allocation3 + $0x40] sm:$0xff] 0.0
      %424 = vst [vmem:[#allocation3 + $0x48] sm:$0xff] 0.0
      %425 = vst [vmem:[#allocation3 + $0x50] sm:$0xff] 0.0
      %426 = vst [vmem:[#allocation3 + $0x58] sm:$0xff] 0.0
      %427 = vst [vmem:[#allocation3 + $0x60] sm:$0xff] 0.0
      %428 = vst [vmem:[#allocation3 + $0x68] sm:$0xff] 0.0
      %429 = vst [vmem:[#allocation3 + $0x70] sm:$0xff] 0.0
      %430 = vst [vmem:[#allocation3 + $0x78] sm:$0xff] 0.0
      %431 = vst [vmem:[#allocation3 + $0x80] sm:$0xff] 0.0
      %432 = vst [vmem:[#allocation3 + $0x88] sm:$0xff] 0.0
      %433 = vst [vmem:[#allocation3 + $0x90] sm:$0xff] 0.0
      %434 = vst [vmem:[#allocation3 + $0x98] sm:$0xff] 0.0
      %435 = vst [vmem:[#allocation3 + $0xa0] sm:$0xff] 0.0
      %436 = vst [vmem:[#allocation3 + $0xa8] sm:$0xff] 0.0
      %437 = vst [vmem:[#allocation3 + $0xb0] sm:$0xff] 0.0
      %438 = vst [vmem:[#allocation3 + $0xb8] sm:$0xff] 0.0
      %439 = vst [vmem:[#allocation3 + $0xc0] sm:$0xff] 0.0
      %440 = vst [vmem:[#allocation3 + $0xc8] sm:$0xff] 0.0
      %441 = vst [vmem:[#allocation3 + $0xd0] sm:$0xff] 0.0
      %442 = vst [vmem:[#allocation3 + $0xd8] sm:$0xff] 0.0
      %443 = vst [vmem:[#allocation3 + $0xe0] sm:$0xff] 0.0
      %444 = vst [vmem:[#allocation3 + $0xe8] sm:$0xff] 0.0
      %445 = vst [vmem:[#allocation3 + $0xf0] sm:$0xff] 0.0
      %446 = vst [vmem:[#allocation3 + $0xf8] sm:$0xff] 0.0
      %v447 = vld [vmem:[#allocation3] sm:$0xff]
      %v448 = vld [vmem:[#allocation3 + $0x8] sm:$0xff]
      %v449 = vld [vmem:[#allocation3 + $0x10] sm:$0xff]
      %v450 = vld [vmem:[#allocation3 + $0x18] sm:$0xff]
      %v451 = vld [vmem:[#allocation3 + $0x20] sm:$0xff]
      %v452 = vld [vmem:[#allocation3 + $0x28] sm:$0xff]
      %v453 = vld [vmem:[#allocation3 + $0x30] sm:$0xff]
      %v454 = vld [vmem:[#allocation3 + $0x38] sm:$0xff]
      %v455 = vld [vmem:[#allocation3 + $0x40] sm:$0xff]
      %v456 = vld [vmem:[#allocation3 + $0x48] sm:$0xff]
      %v457 = vld [vmem:[#allocation3 + $0x50] sm:$0xff]
      %v458 = vld [vmem:[#allocation3 + $0x58] sm:$0xff]
      %v459 = vld [vmem:[#allocation3 + $0x60] sm:$0xff]
      %v460 = vld [vmem:[#allocation3 + $0x68] sm:$0xff]
      %v461 = vld [vmem:[#allocation3 + $0x70] sm:$0xff]
      %v462 = vld [vmem:[#allocation3 + $0x78] sm:$0xff]
      %v463 = vld [vmem:[#allocation3 + $0x80] sm:$0xff]
      %v464 = vld [vmem:[#allocation3 + $0x88] sm:$0xff]
      %v465 = vld [vmem:[#allocation3 + $0x90] sm:$0xff]
      %v466 = vld [vmem:[#allocation3 + $0x98] sm:$0xff]
      %v467 = vld [vmem:[#allocation3 + $0xa0] sm:$0xff]
      %v468 = vld [vmem:[#allocation3 + $0xa8] sm:$0xff]
      %v469 = vld [vmem:[#allocation3 + $0xb0] sm:$0xff]
      %v470 = vld [vmem:[#allocation3 + $0xb8] sm:$0xff]
      %v471 = vld [vmem:[#allocation3 + $0xc0] sm:$0xff]
      %v472 = vld [vmem:[#allocation3 + $0xc8] sm:$0xff]
      %v473 = vld [vmem:[#allocation3 + $0xd0] sm:$0xff]
      %v474 = vld [vmem:[#allocation3 + $0xd8] sm:$0xff]
      %v475 = vld [vmem:[#allocation3 + $0xe0] sm:$0xff]
      %v476 = vld [vmem:[#allocation3 + $0xe8] sm:$0xff]
      %v477 = vld [vmem:[#allocation3 + $0xf0] sm:$0xff]
      %v478 = vld [vmem:[#allocation3 + $0xf8] sm:$0xff]
      %v479 = vpack.c.bf16 %v362, %v361
      %v480 = vpack.c.bf16 %v365, %v364
      %v481 = vpack.c.bf16 %v368, %v367
      %v482 = vpack.c.bf16 %v371, %v370
      %v483 = vpack.c.bf16 %v374, %v373
      %v484 = vpack.c.bf16 %v377, %v376
      %v485 = vpack.c.bf16 %v380, %v379
      %v486 = vpack.c.bf16 %v383, %v382
      %v487 = vpack.c.bf16 %v386, %v385
      %v488 = vpack.c.bf16 %v389, %v388
      %v489 = vpack.c.bf16 %v392, %v391
      %v490 = vpack.c.bf16 %v395, %v394
      %v491 = vpack.c.bf16 %v398, %v397
      %v492 = vpack.c.bf16 %v401, %v400
      %v493 = vpack.c.bf16 %v404, %v403
      %v494 = vpack.c.bf16 %v407, %v406
      %v495 = vld [vmem:[%s1] sm:$0x3]
      %vm496 = vcmask 31744
      %v498 = vsel %vm496, %v479, 0
      %v501 = vsel %vm496, %v480, 0
      %v504 = vsel %vm496, %v481, 0
      %v507 = vsel %vm496, %v482, 0
      %v510 = vsel %vm496, %v483, 0
      %v513 = vsel %vm496, %v484, 0
      %v516 = vsel %vm496, %v485, 0
      %v519 = vsel %vm496, %v486, 0
      %v522 = vsel %vm496, %v487, 0
      %v525 = vsel %vm496, %v488, 0
      %v528 = vsel %vm496, %v489, 0
      %v531 = vsel %vm496, %v490, 0
      %v534 = vsel %vm496, %v491, 0
      %v537 = vsel %vm496, %v492, 0
      %v540 = vsel %vm496, %v493, 0
      %v543 = vsel %vm496, %v494, 0
      %vm545 = vcmask 1041408
      %v547 = vsel %vm545, %v495, 0
      %549 = vmatprep.subr.bf16.mxu0 0
      %550 = vmatpush1.bf16.msra.mxu0 0
      %551 = vmatprep.subr.bf16.mxu0 0
      %552 = vmatpush1.bf16.msra.mxu0 0
      %553 = vmatprep.subr.bf16.mxu0 0
      %554 = vmatpush1.bf16.msra.mxu0 0
      %555 = vmatprep.subr.bf16.mxu0 0
      %556 = vmatpush1.bf16.msra.mxu0 0
      %557 = vmatprep.subr.bf16.mxu0 0
      %558 = vmatpush1.bf16.msra.mxu0 0
      %559 = vmatprep.subr.bf16.mxu0 0
      %560 = vmatpush1.bf16.msra.mxu0 0
      %561 = vmatprep.subr.bf16.mxu0 0
      %562 = vmatpush1.bf16.msra.mxu0 0
      %563 = vmatprep.subr.bf16.mxu0 0
      %564 = vmatpush1.bf16.msra.mxu0 %v547
      %565 = vmatprep.subr.bf16.mxu0 0
      %566 = vmatpush2.bf16.msra.mxu0 0
      %567 = vmatprep.subr.bf16.mxu0 0
      %568 = vmatpush2.bf16.msra.mxu0 0
      %569 = vmatprep.subr.bf16.mxu0 0
      %570 = vmatpush2.bf16.msra.mxu0 0
      %571 = vmatprep.subr.bf16.mxu0 0
      %572 = vmatpush2.bf16.msra.mxu0 0
      %573 = vmatprep.subr.bf16.mxu0 0
      %574 = vmatpush2.bf16.msra.mxu0 0
      %575 = vmatprep.subr.bf16.mxu0 0
      %576 = vmatpush2.bf16.msra.mxu0 0
      %577 = vmatprep.subr.bf16.mxu0 0
      %578 = vmatpush2.bf16.msra.mxu0 0
      %579 = vmatprep.subr.bf16.mxu0 0
      %580 = vmatpush2.bf16.msra.mxu0 0
      %581 = vmatprep.mubr.bf16.mxu0 0
      %582 = vmatmul.mubr.bf16.gmra.mxu0 %v498
      %v583 = vpop.f32.mrf.mxu0
      %v584 = vadd.f32 0.0, %v583
      %v585 = vpop.f32.mrf.mxu0
      %v586 = vpop.f32.mrf.mxu0
      %v587 = vadd.f32 0.0, %v586
      %v588 = vpop.f32.mrf.mxu0
      %589 = vmatprep.mubr.bf16.mxu0 0
      %590 = vmatmul.mubr.bf16.gmra.mxu0 %v501
      %v591 = vpop.f32.mrf.mxu0
      %v592 = vadd.f32 0.0, %v591
      %v593 = vpop.f32.mrf.mxu0
      %v594 = vpop.f32.mrf.mxu0
      %v595 = vadd.f32 0.0, %v594
      %v596 = vpop.f32.mrf.mxu0
      %597 = vmatprep.mubr.bf16.mxu0 0
      %598 = vmatmul.mubr.bf16.gmra.mxu0 %v504
      %v599 = vpop.f32.mrf.mxu0
      %v600 = vadd.f32 0.0, %v599
      %v601 = vpop.f32.mrf.mxu0
      %v602 = vpop.f32.mrf.mxu0
      %v603 = vadd.f32 0.0, %v602
      %v604 = vpop.f32.mrf.mxu0
      %605 = vmatprep.mubr.bf16.mxu0 0
      %606 = vmatmul.mubr.bf16.gmra.mxu0 %v507
      %v607 = vpop.f32.mrf.mxu0
      %v608 = vadd.f32 0.0, %v607
      %v609 = vpop.f32.mrf.mxu0
      %v610 = vpop.f32.mrf.mxu0
      %v611 = vadd.f32 0.0, %v610
      %v612 = vpop.f32.mrf.mxu0
      %613 = vmatprep.mubr.bf16.mxu0 0
      %614 = vmatmul.mubr.bf16.gmra.mxu0 %v510
      %v615 = vpop.f32.mrf.mxu0
      %v616 = vadd.f32 0.0, %v615
      %v617 = vpop.f32.mrf.mxu0
      %v618 = vpop.f32.mrf.mxu0
      %v619 = vadd.f32 0.0, %v618
      %v620 = vpop.f32.mrf.mxu0
      %621 = vmatprep.mubr.bf16.mxu0 0
      %622 = vmatmul.mubr.bf16.gmra.mxu0 %v513
      %v623 = vpop.f32.mrf.mxu0
      %v624 = vadd.f32 0.0, %v623
      %v625 = vpop.f32.mrf.mxu0
      %v626 = vpop.f32.mrf.mxu0
      %v627 = vadd.f32 0.0, %v626
      %v628 = vpop.f32.mrf.mxu0
      %629 = vmatprep.mubr.bf16.mxu0 0
      %630 = vmatmul.mubr.bf16.gmra.mxu0 %v516
      %v631 = vpop.f32.mrf.mxu0
      %v632 = vadd.f32 0.0, %v631
      %v633 = vpop.f32.mrf.mxu0
      %v634 = vpop.f32.mrf.mxu0
      %v635 = vadd.f32 0.0, %v634
      %v636 = vpop.f32.mrf.mxu0
      %637 = vmatprep.mubr.bf16.mxu0 0
      %638 = vmatmul.mubr.bf16.gmra.mxu0 %v519
      %v639 = vpop.f32.mrf.mxu0
      %v640 = vadd.f32 0.0, %v639
      %v641 = vpop.f32.mrf.mxu0
      %v642 = vpop.f32.mrf.mxu0
      %v643 = vadd.f32 0.0, %v642
      %v644 = vpop.f32.mrf.mxu0
      %645 = vmatprep.mubr.bf16.mxu0 0
      %646 = vmatmul.mubr.bf16.gmra.mxu0 %v522
      %v647 = vpop.f32.mrf.mxu0
      %v648 = vadd.f32 0.0, %v647
      %v649 = vpop.f32.mrf.mxu0
      %v650 = vpop.f32.mrf.mxu0
      %v651 = vadd.f32 0.0, %v650
      %v652 = vpop.f32.mrf.mxu0
      %653 = vmatprep.mubr.bf16.mxu0 0
      %654 = vmatmul.mubr.bf16.gmra.mxu0 %v525
      %v655 = vpop.f32.mrf.mxu0
      %v656 = vadd.f32 0.0, %v655
      %v657 = vpop.f32.mrf.mxu0
      %v658 = vpop.f32.mrf.mxu0
      %v659 = vadd.f32 0.0, %v658
      %v660 = vpop.f32.mrf.mxu0
      %661 = vmatprep.mubr.bf16.mxu0 0
      %662 = vmatmul.mubr.bf16.gmra.mxu0 %v528
      %v663 = vpop.f32.mrf.mxu0
      %v664 = vadd.f32 0.0, %v663
      %v665 = vpop.f32.mrf.mxu0
      %v666 = vpop.f32.mrf.mxu0
      %v667 = vadd.f32 0.0, %v666
      %v668 = vpop.f32.mrf.mxu0
      %669 = vmatprep.mubr.bf16.mxu0 0
      %670 = vmatmul.mubr.bf16.gmra.mxu0 %v531
      %v671 = vpop.f32.mrf.mxu0
      %v672 = vadd.f32 0.0, %v671
      %v673 = vpop.f32.mrf.mxu0
      %v674 = vpop.f32.mrf.mxu0
      %v675 = vadd.f32 0.0, %v674
      %v676 = vpop.f32.mrf.mxu0
      %677 = vmatprep.mubr.bf16.mxu0 0
      %678 = vmatmul.mubr.bf16.gmra.mxu0 %v534
      %v679 = vpop.f32.mrf.mxu0
      %v680 = vadd.f32 0.0, %v679
      %v681 = vpop.f32.mrf.mxu0
      %v682 = vpop.f32.mrf.mxu0
      %v683 = vadd.f32 0.0, %v682
      %v684 = vpop.f32.mrf.mxu0
      %685 = vmatprep.mubr.bf16.mxu0 0
      %686 = vmatmul.mubr.bf16.gmra.mxu0 %v537
      %v687 = vpop.f32.mrf.mxu0
      %v688 = vadd.f32 0.0, %v687
      %v689 = vpop.f32.mrf.mxu0
      %v690 = vpop.f32.mrf.mxu0
      %v691 = vadd.f32 0.0, %v690
      %v692 = vpop.f32.mrf.mxu0
      %693 = vmatprep.mubr.bf16.mxu0 0
      %694 = vmatmul.mubr.bf16.gmra.mxu0 %v540
      %v695 = vpop.f32.mrf.mxu0
      %v696 = vadd.f32 0.0, %v695
      %v697 = vpop.f32.mrf.mxu0
      %v698 = vpop.f32.mrf.mxu0
      %v699 = vadd.f32 0.0, %v698
      %v700 = vpop.f32.mrf.mxu0
      %701 = vmatprep.mubr.bf16.mxu0 0
      %702 = vmatmul.mubr.bf16.gmra.mxu0 %v543
      %v703 = vpop.f32.mrf.mxu0
      %v704 = vadd.f32 0.0, %v703
      %v705 = vpop.f32.mrf.mxu0
      %v706 = vpop.f32.mrf.mxu0
      %v707 = vadd.f32 0.0, %v706
      %v708 = vpop.f32.mrf.mxu0
      %709 = vdwg.mxu0
      %v710 = vadd.f32 %v447, %v584
      %v711 = vadd.f32 %v448, %v587
      %v712 = vadd.f32 %v449, %v592
      %v713 = vadd.f32 %v450, %v595
      %v714 = vadd.f32 %v451, %v600
      %v715 = vadd.f32 %v452, %v603
      %v716 = vadd.f32 %v453, %v608
      %v717 = vadd.f32 %v454, %v611
      %v718 = vadd.f32 %v455, %v616
      %v719 = vadd.f32 %v456, %v619
      %v720 = vadd.f32 %v457, %v624
      %v721 = vadd.f32 %v458, %v627
      %v722 = vadd.f32 %v459, %v632
      %v723 = vadd.f32 %v460, %v635
      %v724 = vadd.f32 %v461, %v640
      %v725 = vadd.f32 %v462, %v643
      %v726 = vadd.f32 %v463, %v648
      %v727 = vadd.f32 %v464, %v651
      %v728 = vadd.f32 %v465, %v656
      %v729 = vadd.f32 %v466, %v659
      %v730 = vadd.f32 %v467, %v664
      %v731 = vadd.f32 %v468, %v667
      %v732 = vadd.f32 %v469, %v672
      %v733 = vadd.f32 %v470, %v675
      %v734 = vadd.f32 %v471, %v680
      %v735 = vadd.f32 %v472, %v683
      %v736 = vadd.f32 %v473, %v688
      %v737 = vadd.f32 %v474, %v691
      %v738 = vadd.f32 %v475, %v696
      %v739 = vadd.f32 %v476, %v699
      %v740 = vadd.f32 %v477, %v704
      %v741 = vadd.f32 %v478, %v707
      %742 = vst [vmem:[#allocation3] sm:$0xff] %v710
      %743 = vst [vmem:[#allocation3 + $0x8] sm:$0xff] %v711
      %744 = vst [vmem:[#allocation3 + $0x10] sm:$0xff] %v712
      %745 = vst [vmem:[#allocation3 + $0x18] sm:$0xff] %v713
      %746 = vst [vmem:[#allocation3 + $0x20] sm:$0xff] %v714
      %747 = vst [vmem:[#allocation3 + $0x28] sm:$0xff] %v715
      %748 = vst [vmem:[#allocation3 + $0x30] sm:$0xff] %v716
      %749 = vst [vmem:[#allocation3 + $0x38] sm:$0xff] %v717
      %750 = vst [vmem:[#allocation3 + $0x40] sm:$0xff] %v718
      %751 = vst [vmem:[#allocation3 + $0x48] sm:$0xff] %v719
      %752 = vst [vmem:[#allocation3 + $0x50] sm:$0xff] %v720
      %753 = vst [vmem:[#allocation3 + $0x58] sm:$0xff] %v721
      %754 = vst [vmem:[#allocation3 + $0x60] sm:$0xff] %v722
      %755 = vst [vmem:[#allocation3 + $0x68] sm:$0xff] %v723
      %756 = vst [vmem:[#allocation3 + $0x70] sm:$0xff] %v724
      %757 = vst [vmem:[#allocation3 + $0x78] sm:$0xff] %v725
      %758 = vst [vmem:[#allocation3 + $0x80] sm:$0xff] %v726
      %759 = vst [vmem:[#allocation3 + $0x88] sm:$0xff] %v727
      %760 = vst [vmem:[#allocation3 + $0x90] sm:$0xff] %v728
      %761 = vst [vmem:[#allocation3 + $0x98] sm:$0xff] %v729
      %762 = vst [vmem:[#allocation3 + $0xa0] sm:$0xff] %v730
      %763 = vst [vmem:[#allocation3 + $0xa8] sm:$0xff] %v731
      %764 = vst [vmem:[#allocation3 + $0xb0] sm:$0xff] %v732
      %765 = vst [vmem:[#allocation3 + $0xb8] sm:$0xff] %v733
      %766 = vst [vmem:[#allocation3 + $0xc0] sm:$0xff] %v734
      %767 = vst [vmem:[#allocation3 + $0xc8] sm:$0xff] %v735
      %768 = vst [vmem:[#allocation3 + $0xd0] sm:$0xff] %v736
      %769 = vst [vmem:[#allocation3 + $0xd8] sm:$0xff] %v737
      %770 = vst [vmem:[#allocation3 + $0xe0] sm:$0xff] %v738
      %771 = vst [vmem:[#allocation3 + $0xe8] sm:$0xff] %v739
      %772 = vst [vmem:[#allocation3 + $0xf0] sm:$0xff] %v740
      %773 = vst [vmem:[#allocation3 + $0xf8] sm:$0xff] %v741
      %vm822 = vcmask 1046528
      %v823 = vrot.slane %v361, 1
      %v824 = vrot.slane %v362, 1
      %v825 = vsel %vm822, %v823, %v824
      %v826 = vrot.slane %v363, 1
      %v827 = vsel %vm822, %v824, %v826
      %v828 = vrot.slane %v364, 1
      %v829 = vrot.slane %v365, 1
      %v830 = vsel %vm822, %v828, %v829
      %v831 = vrot.slane %v366, 1
      %v832 = vsel %vm822, %v829, %v831
      %v833 = vrot.slane %v367, 1
      %v834 = vrot.slane %v368, 1
      %v835 = vsel %vm822, %v833, %v834
      %v836 = vrot.slane %v369, 1
      %v837 = vsel %vm822, %v834, %v836
      %v838 = vrot.slane %v370, 1
      %v839 = vrot.slane %v371, 1
      %v840 = vsel %vm822, %v838, %v839
      %v841 = vrot.slane %v372, 1
      %v842 = vsel %vm822, %v839, %v841
      %v843 = vrot.slane %v373, 1
      %v844 = vrot.slane %v374, 1
      %v845 = vsel %vm822, %v843, %v844
      %v846 = vrot.slane %v375, 1
      %v847 = vsel %vm822, %v844, %v846
      %v848 = vrot.slane %v376, 1
      %v849 = vrot.slane %v377, 1
      %v850 = vsel %vm822, %v848, %v849
      %v851 = vrot.slane %v378, 1
      %v852 = vsel %vm822, %v849, %v851
      %v853 = vrot.slane %v379, 1
      %v854 = vrot.slane %v380, 1
      %v855 = vsel %vm822, %v853, %v854
      %v856 = vrot.slane %v381, 1
      %v857 = vsel %vm822, %v854, %v856
      %v858 = vrot.slane %v382, 1
      %v859 = vrot.slane %v383, 1
      %v860 = vsel %vm822, %v858, %v859
      %v861 = vrot.slane %v384, 1
      %v862 = vsel %vm822, %v859, %v861
      %v863 = vrot.slane %v385, 1
      %v864 = vrot.slane %v386, 1
      %v865 = vsel %vm822, %v863, %v864
      %v866 = vrot.slane %v387, 1
      %v867 = vsel %vm822, %v864, %v866
      %v868 = vrot.slane %v388, 1
      %v869 = vrot.slane %v389, 1
      %v870 = vsel %vm822, %v868, %v869
      %v871 = vrot.slane %v390, 1
      %v872 = vsel %vm822, %v869, %v871
      %v873 = vrot.slane %v391, 1
      %v874 = vrot.slane %v392, 1
      %v875 = vsel %vm822, %v873, %v874
      %v876 = vrot.slane %v393, 1
      %v877 = vsel %vm822, %v874, %v876
      %v878 = vrot.slane %v394, 1
      %v879 = vrot.slane %v395, 1
      %v880 = vsel %vm822, %v878, %v879
      %v881 = vrot.slane %v396, 1
      %v882 = vsel %vm822, %v879, %v881
      %v883 = vrot.slane %v397, 1
      %v884 = vrot.slane %v398, 1
      %v885 = vsel %vm822, %v883, %v884
      %v886 = vrot.slane %v399, 1
      %v887 = vsel %vm822, %v884, %v886
      %v888 = vrot.slane %v400, 1
      %v889 = vrot.slane %v401, 1
      %v890 = vsel %vm822, %v888, %v889
      %v891 = vrot.slane %v402, 1
      %v892 = vsel %vm822, %v889, %v891
      %v893 = vrot.slane %v403, 1
      %v894 = vrot.slane %v404, 1
      %v895 = vsel %vm822, %v893, %v894
      %v896 = vrot.slane %v405, 1
      %v897 = vsel %vm822, %v894, %v896
      %v898 = vrot.slane %v406, 1
      %v899 = vrot.slane %v407, 1
      %v900 = vsel %vm822, %v898, %v899
      %v901 = vrot.slane %v408, 1
      %v902 = vsel %vm822, %v899, %v901
      %v935 = vld [vmem:[#allocation3] sm:$0xff]
      %v936 = vld [vmem:[#allocation3 + $0x8] sm:$0xff]
      %v937 = vld [vmem:[#allocation3 + $0x10] sm:$0xff]
      %v938 = vld [vmem:[#allocation3 + $0x18] sm:$0xff]
      %v939 = vld [vmem:[#allocation3 + $0x20] sm:$0xff]
      %v940 = vld [vmem:[#allocation3 + $0x28] sm:$0xff]
      %v941 = vld [vmem:[#allocation3 + $0x30] sm:$0xff]
      %v942 = vld [vmem:[#allocation3 + $0x38] sm:$0xff]
      %v943 = vld [vmem:[#allocation3 + $0x40] sm:$0xff]
      %v944 = vld [vmem:[#allocation3 + $0x48] sm:$0xff]
      %v945 = vld [vmem:[#allocation3 + $0x50] sm:$0xff]
      %v946 = vld [vmem:[#allocation3 + $0x58] sm:$0xff]
      %v947 = vld [vmem:[#allocation3 + $0x60] sm:$0xff]
      %v948 = vld [vmem:[#allocation3 + $0x68] sm:$0xff]
      %v949 = vld [vmem:[#allocation3 + $0x70] sm:$0xff]
      %v950 = vld [vmem:[#allocation3 + $0x78] sm:$0xff]
      %v951 = vld [vmem:[#allocation3 + $0x80] sm:$0xff]
      %v952 = vld [vmem:[#allocation3 + $0x88] sm:$0xff]
      %v953 = vld [vmem:[#allocation3 + $0x90] sm:$0xff]
      %v954 = vld [vmem:[#allocation3 + $0x98] sm:$0xff]
      %v955 = vld [vmem:[#allocation3 + $0xa0] sm:$0xff]
      %v956 = vld [vmem:[#allocation3 + $0xa8] sm:$0xff]
      %v957 = vld [vmem:[#allocation3 + $0xb0] sm:$0xff]
      %v958 = vld [vmem:[#allocation3 + $0xb8] sm:$0xff]
      %v959 = vld [vmem:[#allocation3 + $0xc0] sm:$0xff]
      %v960 = vld [vmem:[#allocation3 + $0xc8] sm:$0xff]
      %v961 = vld [vmem:[#allocation3 + $0xd0] sm:$0xff]
      %v962 = vld [vmem:[#allocation3 + $0xd8] sm:$0xff]
      %v963 = vld [vmem:[#allocation3 + $0xe0] sm:$0xff]
      %v964 = vld [vmem:[#allocation3 + $0xe8] sm:$0xff]
      %v965 = vld [vmem:[#allocation3 + $0xf0] sm:$0xff]
      %v966 = vld [vmem:[#allocation3 + $0xf8] sm:$0xff]
      %v967 = vpack.c.bf16 %v827, %v825
      %v968 = vpack.c.bf16 %v832, %v830
      %v969 = vpack.c.bf16 %v837, %v835
      %v970 = vpack.c.bf16 %v842, %v840
      %v971 = vpack.c.bf16 %v847, %v845
      %v972 = vpack.c.bf16 %v852, %v850
      %v973 = vpack.c.bf16 %v857, %v855
      %v974 = vpack.c.bf16 %v862, %v860
      %v975 = vpack.c.bf16 %v867, %v865
      %v976 = vpack.c.bf16 %v872, %v870
      %v977 = vpack.c.bf16 %v877, %v875
      %v978 = vpack.c.bf16 %v882, %v880
      %v979 = vpack.c.bf16 %v887, %v885
      %v980 = vpack.c.bf16 %v892, %v890
      %v981 = vpack.c.bf16 %v897, %v895
      %v982 = vpack.c.bf16 %v902, %v900
      %s983 = scalar_lea.vmem %s1, 2
      %v984 = vld [vmem:[%s983] sm:$0x3]
      %v986 = vsel %vm496, %v967, 0
      %v989 = vsel %vm496, %v968, 0
      %v992 = vsel %vm496, %v969, 0
      %v995 = vsel %vm496, %v970, 0
      %v998 = vsel %vm496, %v971, 0
      %v1001 = vsel %vm496, %v972, 0
      %v1004 = vsel %vm496, %v973, 0
      %v1007 = vsel %vm496, %v974, 0
      %v1010 = vsel %vm496, %v975, 0
      %v1013 = vsel %vm496, %v976, 0
      %v1016 = vsel %vm496, %v977, 0
      %v1019 = vsel %vm496, %v978, 0
      %v1022 = vsel %vm496, %v979, 0
      %v1025 = vsel %vm496, %v980, 0
      %v1028 = vsel %vm496, %v981, 0
      %v1031 = vsel %vm496, %v982, 0
      %v1034 = vsel %vm545, %v984, 0
      %1036 = vmatprep.subr.bf16.mxu0 0
      %1037 = vmatpush1.bf16.msra.mxu0 0
      %1038 = vmatprep.subr.bf16.mxu0 0
      %1039 = vmatpush1.bf16.msra.mxu0 0
      %1040 = vmatprep.subr.bf16.mxu0 0
      %1041 = vmatpush1.bf16.msra.mxu0 0
      %1042 = vmatprep.subr.bf16.mxu0 0
      %1043 = vmatpush1.bf16.msra.mxu0 0
      %1044 = vmatprep.subr.bf16.mxu0 0
      %1045 = vmatpush1.bf16.msra.mxu0 0
      %1046 = vmatprep.subr.bf16.mxu0 0
      %1047 = vmatpush1.bf16.msra.mxu0 0
      %1048 = vmatprep.subr.bf16.mxu0 0
      %1049 = vmatpush1.bf16.msra.mxu0 0
      %1050 = vmatprep.subr.bf16.mxu0 0
      %1051 = vmatpush1.bf16.msra.mxu0 %v1034
      %1052 = vmatprep.subr.bf16.mxu0 0
      %1053 = vmatpush2.bf16.msra.mxu0 0
      %1054 = vmatprep.subr.bf16.mxu0 0
      %1055 = vmatpush2.bf16.msra.mxu0 0
      %1056 = vmatprep.subr.bf16.mxu0 0
      %1057 = vmatpush2.bf16.msra.mxu0 0
      %1058 = vmatprep.subr.bf16.mxu0 0
      %1059 = vmatpush2.bf16.msra.mxu0 0
      %1060 = vmatprep.subr.bf16.mxu0 0
      %1061 = vmatpush2.bf16.msra.mxu0 0
      %1062 = vmatprep.subr.bf16.mxu0 0
      %1063 = vmatpush2.bf16.msra.mxu0 0
      %1064 = vmatprep.subr.bf16.mxu0 0
      %1065 = vmatpush2.bf16.msra.mxu0 0
      %1066 = vmatprep.subr.bf16.mxu0 0
      %1067 = vmatpush2.bf16.msra.mxu0 0
      %1068 = vmatprep.mubr.bf16.mxu0 0
      %1069 = vmatmul.mubr.bf16.gmra.mxu0 %v986
      %v1070 = vpop.f32.mrf.mxu0
      %v1071 = vadd.f32 0.0, %v1070
      %v1072 = vpop.f32.mrf.mxu0
      %v1073 = vpop.f32.mrf.mxu0
      %v1074 = vadd.f32 0.0, %v1073
      %v1075 = vpop.f32.mrf.mxu0
      %1076 = vmatprep.mubr.bf16.mxu0 0
      %1077 = vmatmul.mubr.bf16.gmra.mxu0 %v989
      %v1078 = vpop.f32.mrf.mxu0
      %v1079 = vadd.f32 0.0, %v1078
      %v1080 = vpop.f32.mrf.mxu0
      %v1081 = vpop.f32.mrf.mxu0
      %v1082 = vadd.f32 0.0, %v1081
      %v1083 = vpop.f32.mrf.mxu0
      %1084 = vmatprep.mubr.bf16.mxu0 0
      %1085 = vmatmul.mubr.bf16.gmra.mxu0 %v992
      %v1086 = vpop.f32.mrf.mxu0
      %v1087 = vadd.f32 0.0, %v1086
      %v1088 = vpop.f32.mrf.mxu0
      %v1089 = vpop.f32.mrf.mxu0
      %v1090 = vadd.f32 0.0, %v1089
      %v1091 = vpop.f32.mrf.mxu0
      %1092 = vmatprep.mubr.bf16.mxu0 0
      %1093 = vmatmul.mubr.bf16.gmra.mxu0 %v995
      %v1094 = vpop.f32.mrf.mxu0
      %v1095 = vadd.f32 0.0, %v1094
      %v1096 = vpop.f32.mrf.mxu0
      %v1097 = vpop.f32.mrf.mxu0
      %v1098 = vadd.f32 0.0, %v1097
      %v1099 = vpop.f32.mrf.mxu0
      %1100 = vmatprep.mubr.bf16.mxu0 0
      %1101 = vmatmul.mubr.bf16.gmra.mxu0 %v998
      %v1102 = vpop.f32.mrf.mxu0
      %v1103 = vadd.f32 0.0, %v1102
      %v1104 = vpop.f32.mrf.mxu0
      %v1105 = vpop.f32.mrf.mxu0
      %v1106 = vadd.f32 0.0, %v1105
      %v1107 = vpop.f32.mrf.mxu0
      %1108 = vmatprep.mubr.bf16.mxu0 0
      %1109 = vmatmul.mubr.bf16.gmra.mxu0 %v1001
      %v1110 = vpop.f32.mrf.mxu0
      %v1111 = vadd.f32 0.0, %v1110
      %v1112 = vpop.f32.mrf.mxu0
      %v1113 = vpop.f32.mrf.mxu0
      %v1114 = vadd.f32 0.0, %v1113
      %v1115 = vpop.f32.mrf.mxu0
      %1116 = vmatprep.mubr.bf16.mxu0 0
      %1117 = vmatmul.mubr.bf16.gmra.mxu0 %v1004
      %v1118 = vpop.f32.mrf.mxu0
      %v1119 = vadd.f32 0.0, %v1118
      %v1120 = vpop.f32.mrf.mxu0
      %v1121 = vpop.f32.mrf.mxu0
      %v1122 = vadd.f32 0.0, %v1121
      %v1123 = vpop.f32.mrf.mxu0
      %1124 = vmatprep.mubr.bf16.mxu0 0
      %1125 = vmatmul.mubr.bf16.gmra.mxu0 %v1007
      %v1126 = vpop.f32.mrf.mxu0
      %v1127 = vadd.f32 0.0, %v1126
      %v1128 = vpop.f32.mrf.mxu0
      %v1129 = vpop.f32.mrf.mxu0
      %v1130 = vadd.f32 0.0, %v1129
      %v1131 = vpop.f32.mrf.mxu0
      %1132 = vmatprep.mubr.bf16.mxu0 0
      %1133 = vmatmul.mubr.bf16.gmra.mxu0 %v1010
      %v1134 = vpop.f32.mrf.mxu0
      %v1135 = vadd.f32 0.0, %v1134
      %v1136 = vpop.f32.mrf.mxu0
      %v1137 = vpop.f32.mrf.mxu0
      %v1138 = vadd.f32 0.0, %v1137
      %v1139 = vpop.f32.mrf.mxu0
      %1140 = vmatprep.mubr.bf16.mxu0 0
      %1141 = vmatmul.mubr.bf16.gmra.mxu0 %v1013
      %v1142 = vpop.f32.mrf.mxu0
      %v1143 = vadd.f32 0.0, %v1142
      %v1144 = vpop.f32.mrf.mxu0
      %v1145 = vpop.f32.mrf.mxu0
      %v1146 = vadd.f32 0.0, %v1145
      %v1147 = vpop.f32.mrf.mxu0
      %1148 = vmatprep.mubr.bf16.mxu0 0
      %1149 = vmatmul.mubr.bf16.gmra.mxu0 %v1016
      %v1150 = vpop.f32.mrf.mxu0
      %v1151 = vadd.f32 0.0, %v1150
      %v1152 = vpop.f32.mrf.mxu0
      %v1153 = vpop.f32.mrf.mxu0
      %v1154 = vadd.f32 0.0, %v1153
      %v1155 = vpop.f32.mrf.mxu0
      %1156 = vmatprep.mubr.bf16.mxu0 0
      %1157 = vmatmul.mubr.bf16.gmra.mxu0 %v1019
      %v1158 = vpop.f32.mrf.mxu0
      %v1159 = vadd.f32 0.0, %v1158
      %v1160 = vpop.f32.mrf.mxu0
      %v1161 = vpop.f32.mrf.mxu0
      %v1162 = vadd.f32 0.0, %v1161
      %v1163 = vpop.f32.mrf.mxu0
      %1164 = vmatprep.mubr.bf16.mxu0 0
      %1165 = vmatmul.mubr.bf16.gmra.mxu0 %v1022
      %v1166 = vpop.f32.mrf.mxu0
      %v1167 = vadd.f32 0.0, %v1166
      %v1168 = vpop.f32.mrf.mxu0
      %v1169 = vpop.f32.mrf.mxu0
      %v1170 = vadd.f32 0.0, %v1169
      %v1171 = vpop.f32.mrf.mxu0
      %1172 = vmatprep.mubr.bf16.mxu0 0
      %1173 = vmatmul.mubr.bf16.gmra.mxu0 %v1025
      %v1174 = vpop.f32.mrf.mxu0
      %v1175 = vadd.f32 0.0, %v1174
      %v1176 = vpop.f32.mrf.mxu0
      %v1177 = vpop.f32.mrf.mxu0
      %v1178 = vadd.f32 0.0, %v1177
      %v1179 = vpop.f32.mrf.mxu0
      %1180 = vmatprep.mubr.bf16.mxu0 0
      %1181 = vmatmul.mubr.bf16.gmra.mxu0 %v1028
      %v1182 = vpop.f32.mrf.mxu0
      %v1183 = vadd.f32 0.0, %v1182
      %v1184 = vpop.f32.mrf.mxu0
      %v1185 = vpop.f32.mrf.mxu0
      %v1186 = vadd.f32 0.0, %v1185
      %v1187 = vpop.f32.mrf.mxu0
      %1188 = vmatprep.mubr.bf16.mxu0 0
      %1189 = vmatmul.mubr.bf16.gmra.mxu0 %v1031
      %v1190 = vpop.f32.mrf.mxu0
      %v1191 = vadd.f32 0.0, %v1190
      %v1192 = vpop.f32.mrf.mxu0
      %v1193 = vpop.f32.mrf.mxu0
      %v1194 = vadd.f32 0.0, %v1193
      %v1195 = vpop.f32.mrf.mxu0
      %1196 = vdwg.mxu0
      %v1197 = vadd.f32 %v935, %v1071
      %v1198 = vadd.f32 %v936, %v1074
      %v1199 = vadd.f32 %v937, %v1079
      %v1200 = vadd.f32 %v938, %v1082
      %v1201 = vadd.f32 %v939, %v1087
      %v1202 = vadd.f32 %v940, %v1090
      %v1203 = vadd.f32 %v941, %v1095
      %v1204 = vadd.f32 %v942, %v1098
      %v1205 = vadd.f32 %v943, %v1103
      %v1206 = vadd.f32 %v944, %v1106
      %v1207 = vadd.f32 %v945, %v1111
      %v1208 = vadd.f32 %v946, %v1114
      %v1209 = vadd.f32 %v947, %v1119
      %v1210 = vadd.f32 %v948, %v1122
      %v1211 = vadd.f32 %v949, %v1127
      %v1212 = vadd.f32 %v950, %v1130
      %v1213 = vadd.f32 %v951, %v1135
      %v1214 = vadd.f32 %v952, %v1138
      %v1215 = vadd.f32 %v953, %v1143
      %v1216 = vadd.f32 %v954, %v1146
      %v1217 = vadd.f32 %v955, %v1151
      %v1218 = vadd.f32 %v956, %v1154
      %v1219 = vadd.f32 %v957, %v1159
      %v1220 = vadd.f32 %v958, %v1162
      %v1221 = vadd.f32 %v959, %v1167
      %v1222 = vadd.f32 %v960, %v1170
      %v1223 = vadd.f32 %v961, %v1175
      %v1224 = vadd.f32 %v962, %v1178
      %v1225 = vadd.f32 %v963, %v1183
      %v1226 = vadd.f32 %v964, %v1186
      %v1227 = vadd.f32 %v965, %v1191
      %v1228 = vadd.f32 %v966, %v1194
      %1229 = vst [vmem:[#allocation3] sm:$0xff] %v1197
      %1230 = vst [vmem:[#allocation3 + $0x8] sm:$0xff] %v1198
      %1231 = vst [vmem:[#allocation3 + $0x10] sm:$0xff] %v1199
      %1232 = vst [vmem:[#allocation3 + $0x18] sm:$0xff] %v1200
      %1233 = vst [vmem:[#allocation3 + $0x20] sm:$0xff] %v1201
      %1234 = vst [vmem:[#allocation3 + $0x28] sm:$0xff] %v1202
      %1235 = vst [vmem:[#allocation3 + $0x30] sm:$0xff] %v1203
      %1236 = vst [vmem:[#allocation3 + $0x38] sm:$0xff] %v1204
      %1237 = vst [vmem:[#allocation3 + $0x40] sm:$0xff] %v1205
      %1238 = vst [vmem:[#allocation3 + $0x48] sm:$0xff] %v1206
      %1239 = vst [vmem:[#allocation3 + $0x50] sm:$0xff] %v1207
      %1240 = vst [vmem:[#allocation3 + $0x58] sm:$0xff] %v1208
      %1241 = vst [vmem:[#allocation3 + $0x60] sm:$0xff] %v1209
      %1242 = vst [vmem:[#allocation3 + $0x68] sm:$0xff] %v1210
      %1243 = vst [vmem:[#allocation3 + $0x70] sm:$0xff] %v1211
      %1244 = vst [vmem:[#allocation3 + $0x78] sm:$0xff] %v1212
      %1245 = vst [vmem:[#allocation3 + $0x80] sm:$0xff] %v1213
      %1246 = vst [vmem:[#allocation3 + $0x88] sm:$0xff] %v1214
      %1247 = vst [vmem:[#allocation3 + $0x90] sm:$0xff] %v1215
      %1248 = vst [vmem:[#allocation3 + $0x98] sm:$0xff] %v1216
      %1249 = vst [vmem:[#allocation3 + $0xa0] sm:$0xff] %v1217
      %1250 = vst [vmem:[#allocation3 + $0xa8] sm:$0xff] %v1218
      %1251 = vst [vmem:[#allocation3 + $0xb0] sm:$0xff] %v1219
      %1252 = vst [vmem:[#allocation3 + $0xb8] sm:$0xff] %v1220
      %1253 = vst [vmem:[#allocation3 + $0xc0] sm:$0xff] %v1221
      %1254 = vst [vmem:[#allocation3 + $0xc8] sm:$0xff] %v1222
      %1255 = vst [vmem:[#allocation3 + $0xd0] sm:$0xff] %v1223
      %1256 = vst [vmem:[#allocation3 + $0xd8] sm:$0xff] %v1224
      %1257 = vst [vmem:[#allocation3 + $0xe0] sm:$0xff] %v1225
      %1258 = vst [vmem:[#allocation3 + $0xe8] sm:$0xff] %v1226
      %1259 = vst [vmem:[#allocation3 + $0xf0] sm:$0xff] %v1227
      %1260 = vst [vmem:[#allocation3 + $0xf8] sm:$0xff] %v1228
      %vm1261 = vcmask 1045504
      %v1262 = vrot.slane %v361, 2
      %v1263 = vrot.slane %v362, 2
      %v1264 = vsel %vm1261, %v1262, %v1263
      %v1265 = vrot.slane %v363, 2
      %v1266 = vsel %vm1261, %v1263, %v1265
      %v1267 = vrot.slane %v364, 2
      %v1268 = vrot.slane %v365, 2
      %v1269 = vsel %vm1261, %v1267, %v1268
      %v1270 = vrot.slane %v366, 2
      %v1271 = vsel %vm1261, %v1268, %v1270
      %v1272 = vrot.slane %v367, 2
      %v1273 = vrot.slane %v368, 2
      %v1274 = vsel %vm1261, %v1272, %v1273
      %v1275 = vrot.slane %v369, 2
      %v1276 = vsel %vm1261, %v1273, %v1275
      %v1277 = vrot.slane %v370, 2
      %v1278 = vrot.slane %v371, 2
      %v1279 = vsel %vm1261, %v1277, %v1278
      %v1280 = vrot.slane %v372, 2
      %v1281 = vsel %vm1261, %v1278, %v1280
      %v1282 = vrot.slane %v373, 2
      %v1283 = vrot.slane %v374, 2
      %v1284 = vsel %vm1261, %v1282, %v1283
      %v1285 = vrot.slane %v375, 2
      %v1286 = vsel %vm1261, %v1283, %v1285
      %v1287 = vrot.slane %v376, 2
      %v1288 = vrot.slane %v377, 2
      %v1289 = vsel %vm1261, %v1287, %v1288
      %v1290 = vrot.slane %v378, 2
      %v1291 = vsel %vm1261, %v1288, %v1290
      %v1292 = vrot.slane %v379, 2
      %v1293 = vrot.slane %v380, 2
      %v1294 = vsel %vm1261, %v1292, %v1293
      %v1295 = vrot.slane %v381, 2
      %v1296 = vsel %vm1261, %v1293, %v1295
      %v1297 = vrot.slane %v382, 2
      %v1298 = vrot.slane %v383, 2
      %v1299 = vsel %vm1261, %v1297, %v1298
      %v1300 = vrot.slane %v384, 2
      %v1301 = vsel %vm1261, %v1298, %v1300
      %v1302 = vrot.slane %v385, 2
      %v1303 = vrot.slane %v386, 2
      %v1304 = vsel %vm1261, %v1302, %v1303
      %v1305 = vrot.slane %v387, 2
      %v1306 = vsel %vm1261, %v1303, %v1305
      %v1307 = vrot.slane %v388, 2
      %v1308 = vrot.slane %v389, 2
      %v1309 = vsel %vm1261, %v1307, %v1308
      %v1310 = vrot.slane %v390, 2
      %v1311 = vsel %vm1261, %v1308, %v1310
      %v1312 = vrot.slane %v391, 2
      %v1313 = vrot.slane %v392, 2
      %v1314 = vsel %vm1261, %v1312, %v1313
      %v1315 = vrot.slane %v393, 2
      %v1316 = vsel %vm1261, %v1313, %v1315
      %v1317 = vrot.slane %v394, 2
      %v1318 = vrot.slane %v395, 2
      %v1319 = vsel %vm1261, %v1317, %v1318
      %v1320 = vrot.slane %v396, 2
      %v1321 = vsel %vm1261, %v1318, %v1320
      %v1322 = vrot.slane %v397, 2
      %v1323 = vrot.slane %v398, 2
      %v1324 = vsel %vm1261, %v1322, %v1323
      %v1325 = vrot.slane %v399, 2
      %v1326 = vsel %vm1261, %v1323, %v1325
      %v1327 = vrot.slane %v400, 2
      %v1328 = vrot.slane %v401, 2
      %v1329 = vsel %vm1261, %v1327, %v1328
      %v1330 = vrot.slane %v402, 2
      %v1331 = vsel %vm1261, %v1328, %v1330
      %v1332 = vrot.slane %v403, 2
      %v1333 = vrot.slane %v404, 2
      %v1334 = vsel %vm1261, %v1332, %v1333
      %v1335 = vrot.slane %v405, 2
      %v1336 = vsel %vm1261, %v1333, %v1335
      %v1337 = vrot.slane %v406, 2
      %v1338 = vrot.slane %v407, 2
      %v1339 = vsel %vm1261, %v1337, %v1338
      %v1340 = vrot.slane %v408, 2
      %v1341 = vsel %vm1261, %v1338, %v1340
      %v1374 = vld [vmem:[#allocation3] sm:$0xff]
      %v1375 = vld [vmem:[#allocation3 + $0x8] sm:$0xff]
      %v1376 = vld [vmem:[#allocation3 + $0x10] sm:$0xff]
      %v1377 = vld [vmem:[#allocation3 + $0x18] sm:$0xff]
      %v1378 = vld [vmem:[#allocation3 + $0x20] sm:$0xff]
      %v1379 = vld [vmem:[#allocation3 + $0x28] sm:$0xff]
      %v1380 = vld [vmem:[#allocation3 + $0x30] sm:$0xff]
      %v1381 = vld [vmem:[#allocation3 + $0x38] sm:$0xff]
      %v1382 = vld [vmem:[#allocation3 + $0x40] sm:$0xff]
      %v1383 = vld [vmem:[#allocation3 + $0x48] sm:$0xff]
      %v1384 = vld [vmem:[#allocation3 + $0x50] sm:$0xff]
      %v1385 = vld [vmem:[#allocation3 + $0x58] sm:$0xff]
      %v1386 = vld [vmem:[#allocation3 + $0x60] sm:$0xff]
      %v1387 = vld [vmem:[#allocation3 + $0x68] sm:$0xff]
      %v1388 = vld [vmem:[#allocation3 + $0x70] sm:$0xff]
      %v1389 = vld [vmem:[#allocation3 + $0x78] sm:$0xff]
      %v1390 = vld [vmem:[#allocation3 + $0x80] sm:$0xff]
      %v1391 = vld [vmem:[#allocation3 + $0x88] sm:$0xff]
      %v1392 = vld [vmem:[#allocation3 + $0x90] sm:$0xff]
      %v1393 = vld [vmem:[#allocation3 + $0x98] sm:$0xff]
      %v1394 = vld [vmem:[#allocation3 + $0xa0] sm:$0xff]
      %v1395 = vld [vmem:[#allocation3 + $0xa8] sm:$0xff]
      %v1396 = vld [vmem:[#allocation3 + $0xb0] sm:$0xff]
      %v1397 = vld [vmem:[#allocation3 + $0xb8] sm:$0xff]
      %v1398 = vld [vmem:[#allocation3 + $0xc0] sm:$0xff]
      %v1399 = vld [vmem:[#allocation3 + $0xc8] sm:$0xff]
      %v1400 = vld [vmem:[#allocation3 + $0xd0] sm:$0xff]
      %v1401 = vld [vmem:[#allocation3 + $0xd8] sm:$0xff]
      %v1402 = vld [vmem:[#allocation3 + $0xe0] sm:$0xff]
      %v1403 = vld [vmem:[#allocation3 + $0xe8] sm:$0xff]
      %v1404 = vld [vmem:[#allocation3 + $0xf0] sm:$0xff]
      %v1405 = vld [vmem:[#allocation3 + $0xf8] sm:$0xff]
      %v1406 = vpack.c.bf16 %v1266, %v1264
      %v1407 = vpack.c.bf16 %v1271, %v1269
      %v1408 = vpack.c.bf16 %v1276, %v1274
      %v1409 = vpack.c.bf16 %v1281, %v1279
      %v1410 = vpack.c.bf16 %v1286, %v1284
      %v1411 = vpack.c.bf16 %v1291, %v1289
      %v1412 = vpack.c.bf16 %v1296, %v1294
      %v1413 = vpack.c.bf16 %v1301, %v1299
      %v1414 = vpack.c.bf16 %v1306, %v1304
      %v1415 = vpack.c.bf16 %v1311, %v1309
      %v1416 = vpack.c.bf16 %v1316, %v1314
      %v1417 = vpack.c.bf16 %v1321, %v1319
      %v1418 = vpack.c.bf16 %v1326, %v1324
      %v1419 = vpack.c.bf16 %v1331, %v1329
      %v1420 = vpack.c.bf16 %v1336, %v1334
      %v1421 = vpack.c.bf16 %v1341, %v1339
      %s1422 = scalar_lea.vmem %s1, 4
      %v1423 = vld [vmem:[%s1422] sm:$0x3]
      %v1425 = vsel %vm496, %v1406, 0
      %v1428 = vsel %vm496, %v1407, 0
      %v1431 = vsel %vm496, %v1408, 0
      %v1434 = vsel %vm496, %v1409, 0
      %v1437 = vsel %vm496, %v1410, 0
      %v1440 = vsel %vm496, %v1411, 0
      %v1443 = vsel %vm496, %v1412, 0
      %v1446 = vsel %vm496, %v1413, 0
      %v1449 = vsel %vm496, %v1414, 0
      %v1452 = vsel %vm496, %v1415, 0
      %v1455 = vsel %vm496, %v1416, 0
      %v1458 = vsel %vm496, %v1417, 0
      %v1461 = vsel %vm496, %v1418, 0
      %v1464 = vsel %vm496, %v1419, 0
      %v1467 = vsel %vm496, %v1420, 0
      %v1470 = vsel %vm496, %v1421, 0
      %v1473 = vsel %vm545, %v1423, 0
      %1475 = vmatprep.subr.bf16.mxu0 0
      %1476 = vmatpush1.bf16.msra.mxu0 0
      %1477 = vmatprep.subr.bf16.mxu0 0
      %1478 = vmatpush1.bf16.msra.mxu0 0
      %1479 = vmatprep.subr.bf16.mxu0 0
      %1480 = vmatpush1.bf16.msra.mxu0 0
      %1481 = vmatprep.subr.bf16.mxu0 0
      %1482 = vmatpush1.bf16.msra.mxu0 0
      %1483 = vmatprep.subr.bf16.mxu0 0
      %1484 = vmatpush1.bf16.msra.mxu0 0
      %1485 = vmatprep.subr.bf16.mxu0 0
      %1486 = vmatpush1.bf16.msra.mxu0 0
      %1487 = vmatprep.subr.bf16.mxu0 0
      %1488 = vmatpush1.bf16.msra.mxu0 0
      %1489 = vmatprep.subr.bf16.mxu0 0
      %1490 = vmatpush1.bf16.msra.mxu0 %v1473
      %1491 = vmatprep.subr.bf16.mxu0 0
      %1492 = vmatpush2.bf16.msra.mxu0 0
      %1493 = vmatprep.subr.bf16.mxu0 0
      %1494 = vmatpush2.bf16.msra.mxu0 0
      %1495 = vmatprep.subr.bf16.mxu0 0
      %1496 = vmatpush2.bf16.msra.mxu0 0
      %1497 = vmatprep.subr.bf16.mxu0 0
      %1498 = vmatpush2.bf16.msra.mxu0 0
      %1499 = vmatprep.subr.bf16.mxu0 0
      %1500 = vmatpush2.bf16.msra.mxu0 0
      %1501 = vmatprep.subr.bf16.mxu0 0
      %1502 = vmatpush2.bf16.msra.mxu0 0
      %1503 = vmatprep.subr.bf16.mxu0 0
      %1504 = vmatpush2.bf16.msra.mxu0 0
      %1505 = vmatprep.subr.bf16.mxu0 0
      %1506 = vmatpush2.bf16.msra.mxu0 0
      %1507 = vmatprep.mubr.bf16.mxu0 0
      %1508 = vmatmul.mubr.bf16.gmra.mxu0 %v1425
      %v1509 = vpop.f32.mrf.mxu0
      %v1510 = vadd.f32 0.0, %v1509
      %v1511 = vpop.f32.mrf.mxu0
      %v1512 = vpop.f32.mrf.mxu0
      %v1513 = vadd.f32 0.0, %v1512
      %v1514 = vpop.f32.mrf.mxu0
      %1515 = vmatprep.mubr.bf16.mxu0 0
      %1516 = vmatmul.mubr.bf16.gmra.mxu0 %v1428
      %v1517 = vpop.f32.mrf.mxu0
      %v1518 = vadd.f32 0.0, %v1517
      %v1519 = vpop.f32.mrf.mxu0
      %v1520 = vpop.f32.mrf.mxu0
      %v1521 = vadd.f32 0.0, %v1520
      %v1522 = vpop.f32.mrf.mxu0
      %1523 = vmatprep.mubr.bf16.mxu0 0
      %1524 = vmatmul.mubr.bf16.gmra.mxu0 %v1431
      %v1525 = vpop.f32.mrf.mxu0
      %v1526 = vadd.f32 0.0, %v1525
      %v1527 = vpop.f32.mrf.mxu0
      %v1528 = vpop.f32.mrf.mxu0
      %v1529 = vadd.f32 0.0, %v1528
      %v1530 = vpop.f32.mrf.mxu0
      %1531 = vmatprep.mubr.bf16.mxu0 0
      %1532 = vmatmul.mubr.bf16.gmra.mxu0 %v1434
      %v1533 = vpop.f32.mrf.mxu0
      %v1534 = vadd.f32 0.0, %v1533
      %v1535 = vpop.f32.mrf.mxu0
      %v1536 = vpop.f32.mrf.mxu0
      %v1537 = vadd.f32 0.0, %v1536
      %v1538 = vpop.f32.mrf.mxu0
      %1539 = vmatprep.mubr.bf16.mxu0 0
      %1540 = vmatmul.mubr.bf16.gmra.mxu0 %v1437
      %v1541 = vpop.f32.mrf.mxu0
      %v1542 = vadd.f32 0.0, %v1541
      %v1543 = vpop.f32.mrf.mxu0
      %v1544 = vpop.f32.mrf.mxu0
      %v1545 = vadd.f32 0.0, %v1544
      %v1546 = vpop.f32.mrf.mxu0
      %1547 = vmatprep.mubr.bf16.mxu0 0
      %1548 = vmatmul.mubr.bf16.gmra.mxu0 %v1440
      %v1549 = vpop.f32.mrf.mxu0
      %v1550 = vadd.f32 0.0, %v1549
      %v1551 = vpop.f32.mrf.mxu0
      %v1552 = vpop.f32.mrf.mxu0
      %v1553 = vadd.f32 0.0, %v1552
      %v1554 = vpop.f32.mrf.mxu0
      %1555 = vmatprep.mubr.bf16.mxu0 0
      %1556 = vmatmul.mubr.bf16.gmra.mxu0 %v1443
      %v1557 = vpop.f32.mrf.mxu0
      %v1558 = vadd.f32 0.0, %v1557
      %v1559 = vpop.f32.mrf.mxu0
      %v1560 = vpop.f32.mrf.mxu0
      %v1561 = vadd.f32 0.0, %v1560
      %v1562 = vpop.f32.mrf.mxu0
      %1563 = vmatprep.mubr.bf16.mxu0 0
      %1564 = vmatmul.mubr.bf16.gmra.mxu0 %v1446
      %v1565 = vpop.f32.mrf.mxu0
      %v1566 = vadd.f32 0.0, %v1565
      %v1567 = vpop.f32.mrf.mxu0
      %v1568 = vpop.f32.mrf.mxu0
      %v1569 = vadd.f32 0.0, %v1568
      %v1570 = vpop.f32.mrf.mxu0
      %1571 = vmatprep.mubr.bf16.mxu0 0
      %1572 = vmatmul.mubr.bf16.gmra.mxu0 %v1449
      %v1573 = vpop.f32.mrf.mxu0
      %v1574 = vadd.f32 0.0, %v1573
      %v1575 = vpop.f32.mrf.mxu0
      %v1576 = vpop.f32.mrf.mxu0
      %v1577 = vadd.f32 0.0, %v1576
      %v1578 = vpop.f32.mrf.mxu0
      %1579 = vmatprep.mubr.bf16.mxu0 0
      %1580 = vmatmul.mubr.bf16.gmra.mxu0 %v1452
      %v1581 = vpop.f32.mrf.mxu0
      %v1582 = vadd.f32 0.0, %v1581
      %v1583 = vpop.f32.mrf.mxu0
      %v1584 = vpop.f32.mrf.mxu0
      %v1585 = vadd.f32 0.0, %v1584
      %v1586 = vpop.f32.mrf.mxu0
      %1587 = vmatprep.mubr.bf16.mxu0 0
      %1588 = vmatmul.mubr.bf16.gmra.mxu0 %v1455
      %v1589 = vpop.f32.mrf.mxu0
      %v1590 = vadd.f32 0.0, %v1589
      %v1591 = vpop.f32.mrf.mxu0
      %v1592 = vpop.f32.mrf.mxu0
      %v1593 = vadd.f32 0.0, %v1592
      %v1594 = vpop.f32.mrf.mxu0
      %1595 = vmatprep.mubr.bf16.mxu0 0
      %1596 = vmatmul.mubr.bf16.gmra.mxu0 %v1458
      %v1597 = vpop.f32.mrf.mxu0
      %v1598 = vadd.f32 0.0, %v1597
      %v1599 = vpop.f32.mrf.mxu0
      %v1600 = vpop.f32.mrf.mxu0
      %v1601 = vadd.f32 0.0, %v1600
      %v1602 = vpop.f32.mrf.mxu0
      %1603 = vmatprep.mubr.bf16.mxu0 0
      %1604 = vmatmul.mubr.bf16.gmra.mxu0 %v1461
      %v1605 = vpop.f32.mrf.mxu0
      %v1606 = vadd.f32 0.0, %v1605
      %v1607 = vpop.f32.mrf.mxu0
      %v1608 = vpop.f32.mrf.mxu0
      %v1609 = vadd.f32 0.0, %v1608
      %v1610 = vpop.f32.mrf.mxu0
      %1611 = vmatprep.mubr.bf16.mxu0 0
      %1612 = vmatmul.mubr.bf16.gmra.mxu0 %v1464
      %v1613 = vpop.f32.mrf.mxu0
      %v1614 = vadd.f32 0.0, %v1613
      %v1615 = vpop.f32.mrf.mxu0
      %v1616 = vpop.f32.mrf.mxu0
      %v1617 = vadd.f32 0.0, %v1616
      %v1618 = vpop.f32.mrf.mxu0
      %1619 = vmatprep.mubr.bf16.mxu0 0
      %1620 = vmatmul.mubr.bf16.gmra.mxu0 %v1467
      %v1621 = vpop.f32.mrf.mxu0
      %v1622 = vadd.f32 0.0, %v1621
      %v1623 = vpop.f32.mrf.mxu0
      %v1624 = vpop.f32.mrf.mxu0
      %v1625 = vadd.f32 0.0, %v1624
      %v1626 = vpop.f32.mrf.mxu0
      %1627 = vmatprep.mubr.bf16.mxu0 0
      %1628 = vmatmul.mubr.bf16.gmra.mxu0 %v1470
      %v1629 = vpop.f32.mrf.mxu0
      %v1630 = vadd.f32 0.0, %v1629
      %v1631 = vpop.f32.mrf.mxu0
      %v1632 = vpop.f32.mrf.mxu0
      %v1633 = vadd.f32 0.0, %v1632
      %v1634 = vpop.f32.mrf.mxu0
      %1635 = vdwg.mxu0
      %v1636 = vadd.f32 %v1374, %v1510
      %v1637 = vadd.f32 %v1375, %v1513
      %v1638 = vadd.f32 %v1376, %v1518
      %v1639 = vadd.f32 %v1377, %v1521
      %v1640 = vadd.f32 %v1378, %v1526
      %v1641 = vadd.f32 %v1379, %v1529
      %v1642 = vadd.f32 %v1380, %v1534
      %v1643 = vadd.f32 %v1381, %v1537
      %v1644 = vadd.f32 %v1382, %v1542
      %v1645 = vadd.f32 %v1383, %v1545
      %v1646 = vadd.f32 %v1384, %v1550
      %v1647 = vadd.f32 %v1385, %v1553
      %v1648 = vadd.f32 %v1386, %v1558
      %v1649 = vadd.f32 %v1387, %v1561
      %v1650 = vadd.f32 %v1388, %v1566
      %v1651 = vadd.f32 %v1389, %v1569
      %v1652 = vadd.f32 %v1390, %v1574
      %v1653 = vadd.f32 %v1391, %v1577
      %v1654 = vadd.f32 %v1392, %v1582
      %v1655 = vadd.f32 %v1393, %v1585
      %v1656 = vadd.f32 %v1394, %v1590
      %v1657 = vadd.f32 %v1395, %v1593
      %v1658 = vadd.f32 %v1396, %v1598
      %v1659 = vadd.f32 %v1397, %v1601
      %v1660 = vadd.f32 %v1398, %v1606
      %v1661 = vadd.f32 %v1399, %v1609
      %v1662 = vadd.f32 %v1400, %v1614
      %v1663 = vadd.f32 %v1401, %v1617
      %v1664 = vadd.f32 %v1402, %v1622
      %v1665 = vadd.f32 %v1403, %v1625
      %v1666 = vadd.f32 %v1404, %v1630
      %v1667 = vadd.f32 %v1405, %v1633
      %1668 = vst [vmem:[#allocation3] sm:$0xff] %v1636
      %1669 = vst [vmem:[#allocation3 + $0x8] sm:$0xff] %v1637
      %1670 = vst [vmem:[#allocation3 + $0x10] sm:$0xff] %v1638
      %1671 = vst [vmem:[#allocation3 + $0x18] sm:$0xff] %v1639
      %1672 = vst [vmem:[#allocation3 + $0x20] sm:$0xff] %v1640
      %1673 = vst [vmem:[#allocation3 + $0x28] sm:$0xff] %v1641
      %1674 = vst [vmem:[#allocation3 + $0x30] sm:$0xff] %v1642
      %1675 = vst [vmem:[#allocation3 + $0x38] sm:$0xff] %v1643
      %1676 = vst [vmem:[#allocation3 + $0x40] sm:$0xff] %v1644
      %1677 = vst [vmem:[#allocation3 + $0x48] sm:$0xff] %v1645
      %1678 = vst [vmem:[#allocation3 + $0x50] sm:$0xff] %v1646
      %1679 = vst [vmem:[#allocation3 + $0x58] sm:$0xff] %v1647
      %1680 = vst [vmem:[#allocation3 + $0x60] sm:$0xff] %v1648
      %1681 = vst [vmem:[#allocation3 + $0x68] sm:$0xff] %v1649
      %1682 = vst [vmem:[#allocation3 + $0x70] sm:$0xff] %v1650
      %1683 = vst [vmem:[#allocation3 + $0x78] sm:$0xff] %v1651
      %1684 = vst [vmem:[#allocation3 + $0x80] sm:$0xff] %v1652
      %1685 = vst [vmem:[#allocation3 + $0x88] sm:$0xff] %v1653
      %1686 = vst [vmem:[#allocation3 + $0x90] sm:$0xff] %v1654
      %1687 = vst [vmem:[#allocation3 + $0x98] sm:$0xff] %v1655
      %1688 = vst [vmem:[#allocation3 + $0xa0] sm:$0xff] %v1656
      %1689 = vst [vmem:[#allocation3 + $0xa8] sm:$0xff] %v1657
      %1690 = vst [vmem:[#allocation3 + $0xb0] sm:$0xff] %v1658
      %1691 = vst [vmem:[#allocation3 + $0xb8] sm:$0xff] %v1659
      %1692 = vst [vmem:[#allocation3 + $0xc0] sm:$0xff] %v1660
      %1693 = vst [vmem:[#allocation3 + $0xc8] sm:$0xff] %v1661
      %1694 = vst [vmem:[#allocation3 + $0xd0] sm:$0xff] %v1662
      %1695 = vst [vmem:[#allocation3 + $0xd8] sm:$0xff] %v1663
      %1696 = vst [vmem:[#allocation3 + $0xe0] sm:$0xff] %v1664
      %1697 = vst [vmem:[#allocation3 + $0xe8] sm:$0xff] %v1665
      %1698 = vst [vmem:[#allocation3 + $0xf0] sm:$0xff] %v1666
      %1699 = vst [vmem:[#allocation3 + $0xf8] sm:$0xff] %v1667
      %v1700 = vld [vmem:[#allocation3] sm:$0xff]
      %v1701 = vld [vmem:[#allocation3 + $0x8] sm:$0xff]
      %v1702 = vld [vmem:[#allocation3 + $0x10] sm:$0xff]
      %v1703 = vld [vmem:[#allocation3 + $0x18] sm:$0xff]
      %v1704 = vld [vmem:[#allocation3 + $0x20] sm:$0xff]
      %v1705 = vld [vmem:[#allocation3 + $0x28] sm:$0xff]
      %v1706 = vld [vmem:[#allocation3 + $0x30] sm:$0xff]
      %v1707 = vld [vmem:[#allocation3 + $0x38] sm:$0xff]
      %v1708 = vld [vmem:[#allocation3 + $0x40] sm:$0xff]
      %v1709 = vld [vmem:[#allocation3 + $0x48] sm:$0xff]
      %v1710 = vld [vmem:[#allocation3 + $0x50] sm:$0xff]
      %v1711 = vld [vmem:[#allocation3 + $0x58] sm:$0xff]
      %v1712 = vld [vmem:[#allocation3 + $0x60] sm:$0xff]
      %v1713 = vld [vmem:[#allocation3 + $0x68] sm:$0xff]
      %v1714 = vld [vmem:[#allocation3 + $0x70] sm:$0xff]
      %v1715 = vld [vmem:[#allocation3 + $0x78] sm:$0xff]
      %v1716 = vld [vmem:[#allocation3 + $0x80] sm:$0xff]
      %v1717 = vld [vmem:[#allocation3 + $0x88] sm:$0xff]
      %v1718 = vld [vmem:[#allocation3 + $0x90] sm:$0xff]
      %v1719 = vld [vmem:[#allocation3 + $0x98] sm:$0xff]
      %v1720 = vld [vmem:[#allocation3 + $0xa0] sm:$0xff]
      %v1721 = vld [vmem:[#allocation3 + $0xa8] sm:$0xff]
      %v1722 = vld [vmem:[#allocation3 + $0xb0] sm:$0xff]
      %v1723 = vld [vmem:[#allocation3 + $0xb8] sm:$0xff]
      %v1724 = vld [vmem:[#allocation3 + $0xc0] sm:$0xff]
      %v1725 = vld [vmem:[#allocation3 + $0xc8] sm:$0xff]
      %v1726 = vld [vmem:[#allocation3 + $0xd0] sm:$0xff]
      %v1727 = vld [vmem:[#allocation3 + $0xd8] sm:$0xff]
      %v1728 = vld [vmem:[#allocation3 + $0xe0] sm:$0xff]
      %v1729 = vld [vmem:[#allocation3 + $0xe8] sm:$0xff]
      %v1730 = vld [vmem:[#allocation3 + $0xf0] sm:$0xff]
      %v1731 = vld [vmem:[#allocation3 + $0xf8] sm:$0xff]
      %v1732 = vpack.c.bf16 %v410, %v409
      %s1733 = scalar_lea.vmem %s1, 6
      %v1734 = vld [vmem:[%s1733] sm:$0x3]
      %v1736 = vsel %vm496, %v1732, 0
      %v1739 = vsel %vm545, %v1734, 0
      %1741 = vmatprep.subr.bf16.mxu0 0
      %1742 = vmatpush1.bf16.msra.mxu0 0
      %1743 = vmatprep.subr.bf16.mxu0 0
      %1744 = vmatpush1.bf16.msra.mxu0 0
      %1745 = vmatprep.subr.bf16.mxu0 0
      %1746 = vmatpush1.bf16.msra.mxu0 0
      %1747 = vmatprep.subr.bf16.mxu0 0
      %1748 = vmatpush1.bf16.msra.mxu0 0
      %1749 = vmatprep.subr.bf16.mxu0 0
      %1750 = vmatpush1.bf16.msra.mxu0 0
      %1751 = vmatprep.subr.bf16.mxu0 0
      %1752 = vmatpush1.bf16.msra.mxu0 0
      %1753 = vmatprep.subr.bf16.mxu0 0
      %1754 = vmatpush1.bf16.msra.mxu0 0
      %1755 = vmatprep.subr.bf16.mxu0 0
      %1756 = vmatpush1.bf16.msra.mxu0 %v1739
      %1757 = vmatprep.subr.bf16.mxu0 0
      %1758 = vmatpush2.bf16.msra.mxu0 0
      %1759 = vmatprep.subr.bf16.mxu0 0
      %1760 = vmatpush2.bf16.msra.mxu0 0
      %1761 = vmatprep.subr.bf16.mxu0 0
      %1762 = vmatpush2.bf16.msra.mxu0 0
      %1763 = vmatprep.subr.bf16.mxu0 0
      %1764 = vmatpush2.bf16.msra.mxu0 0
      %1765 = vmatprep.subr.bf16.mxu0 0
      %1766 = vmatpush2.bf16.msra.mxu0 0
      %1767 = vmatprep.subr.bf16.mxu0 0
      %1768 = vmatpush2.bf16.msra.mxu0 0
      %1769 = vmatprep.subr.bf16.mxu0 0
      %1770 = vmatpush2.bf16.msra.mxu0 0
      %1771 = vmatprep.subr.bf16.mxu0 0
      %1772 = vmatpush2.bf16.msra.mxu0 0
      %1773 = vmatprep.mubr.bf16.mxu0 0
      %1774 = vmatmul.mubr.bf16.gmra.mxu0 %v501
      %v1775 = vpop.f32.mrf.mxu0
      %v1776 = vadd.f32 0.0, %v1775
      %v1777 = vpop.f32.mrf.mxu0
      %v1778 = vpop.f32.mrf.mxu0
      %v1779 = vadd.f32 0.0, %v1778
      %v1780 = vpop.f32.mrf.mxu0
      %1781 = vmatprep.mubr.bf16.mxu0 0
      %1782 = vmatmul.mubr.bf16.gmra.mxu0 %v504
      %v1783 = vpop.f32.mrf.mxu0
      %v1784 = vadd.f32 0.0, %v1783
      %v1785 = vpop.f32.mrf.mxu0
      %v1786 = vpop.f32.mrf.mxu0
      %v1787 = vadd.f32 0.0, %v1786
      %v1788 = vpop.f32.mrf.mxu0
      %1789 = vmatprep.mubr.bf16.mxu0 0
      %1790 = vmatmul.mubr.bf16.gmra.mxu0 %v507
      %v1791 = vpop.f32.mrf.mxu0
      %v1792 = vadd.f32 0.0, %v1791
      %v1793 = vpop.f32.mrf.mxu0
      %v1794 = vpop.f32.mrf.mxu0
      %v1795 = vadd.f32 0.0, %v1794
      %v1796 = vpop.f32.mrf.mxu0
      %1797 = vmatprep.mubr.bf16.mxu0 0
      %1798 = vmatmul.mubr.bf16.gmra.mxu0 %v510
      %v1799 = vpop.f32.mrf.mxu0
      %v1800 = vadd.f32 0.0, %v1799
      %v1801 = vpop.f32.mrf.mxu0
      %v1802 = vpop.f32.mrf.mxu0
      %v1803 = vadd.f32 0.0, %v1802
      %v1804 = vpop.f32.mrf.mxu0
      %1805 = vmatprep.mubr.bf16.mxu0 0
      %1806 = vmatmul.mubr.bf16.gmra.mxu0 %v513
      %v1807 = vpop.f32.mrf.mxu0
      %v1808 = vadd.f32 0.0, %v1807
      %v1809 = vpop.f32.mrf.mxu0
      %v1810 = vpop.f32.mrf.mxu0
      %v1811 = vadd.f32 0.0, %v1810
      %v1812 = vpop.f32.mrf.mxu0
      %1813 = vmatprep.mubr.bf16.mxu0 0
      %1814 = vmatmul.mubr.bf16.gmra.mxu0 %v516
      %v1815 = vpop.f32.mrf.mxu0
      %v1816 = vadd.f32 0.0, %v1815
      %v1817 = vpop.f32.mrf.mxu0
      %v1818 = vpop.f32.mrf.mxu0
      %v1819 = vadd.f32 0.0, %v1818
      %v1820 = vpop.f32.mrf.mxu0
      %1821 = vmatprep.mubr.bf16.mxu0 0
      %1822 = vmatmul.mubr.bf16.gmra.mxu0 %v519
      %v1823 = vpop.f32.mrf.mxu0
      %v1824 = vadd.f32 0.0, %v1823
      %v1825 = vpop.f32.mrf.mxu0
      %v1826 = vpop.f32.mrf.mxu0
      %v1827 = vadd.f32 0.0, %v1826
      %v1828 = vpop.f32.mrf.mxu0
      %1829 = vmatprep.mubr.bf16.mxu0 0
      %1830 = vmatmul.mubr.bf16.gmra.mxu0 %v522
      %v1831 = vpop.f32.mrf.mxu0
      %v1832 = vadd.f32 0.0, %v1831
      %v1833 = vpop.f32.mrf.mxu0
      %v1834 = vpop.f32.mrf.mxu0
      %v1835 = vadd.f32 0.0, %v1834
      %v1836 = vpop.f32.mrf.mxu0
      %1837 = vmatprep.mubr.bf16.mxu0 0
      %1838 = vmatmul.mubr.bf16.gmra.mxu0 %v525
      %v1839 = vpop.f32.mrf.mxu0
      %v1840 = vadd.f32 0.0, %v1839
      %v1841 = vpop.f32.mrf.mxu0
      %v1842 = vpop.f32.mrf.mxu0
      %v1843 = vadd.f32 0.0, %v1842
      %v1844 = vpop.f32.mrf.mxu0
      %1845 = vmatprep.mubr.bf16.mxu0 0
      %1846 = vmatmul.mubr.bf16.gmra.mxu0 %v528
      %v1847 = vpop.f32.mrf.mxu0
      %v1848 = vadd.f32 0.0, %v1847
      %v1849 = vpop.f32.mrf.mxu0
      %v1850 = vpop.f32.mrf.mxu0
      %v1851 = vadd.f32 0.0, %v1850
      %v1852 = vpop.f32.mrf.mxu0
      %1853 = vmatprep.mubr.bf16.mxu0 0
      %1854 = vmatmul.mubr.bf16.gmra.mxu0 %v531
      %v1855 = vpop.f32.mrf.mxu0
      %v1856 = vadd.f32 0.0, %v1855
      %v1857 = vpop.f32.mrf.mxu0
      %v1858 = vpop.f32.mrf.mxu0
      %v1859 = vadd.f32 0.0, %v1858
      %v1860 = vpop.f32.mrf.mxu0
      %1861 = vmatprep.mubr.bf16.mxu0 0
      %1862 = vmatmul.mubr.bf16.gmra.mxu0 %v534
      %v1863 = vpop.f32.mrf.mxu0
      %v1864 = vadd.f32 0.0, %v1863
      %v1865 = vpop.f32.mrf.mxu0
      %v1866 = vpop.f32.mrf.mxu0
      %v1867 = vadd.f32 0.0, %v1866
      %v1868 = vpop.f32.mrf.mxu0
      %1869 = vmatprep.mubr.bf16.mxu0 0
      %1870 = vmatmul.mubr.bf16.gmra.mxu0 %v537
      %v1871 = vpop.f32.mrf.mxu0
      %v1872 = vadd.f32 0.0, %v1871
      %v1873 = vpop.f32.mrf.mxu0
      %v1874 = vpop.f32.mrf.mxu0
      %v1875 = vadd.f32 0.0, %v1874
      %v1876 = vpop.f32.mrf.mxu0
      %1877 = vmatprep.mubr.bf16.mxu0 0
      %1878 = vmatmul.mubr.bf16.gmra.mxu0 %v540
      %v1879 = vpop.f32.mrf.mxu0
      %v1880 = vadd.f32 0.0, %v1879
      %v1881 = vpop.f32.mrf.mxu0
      %v1882 = vpop.f32.mrf.mxu0
      %v1883 = vadd.f32 0.0, %v1882
      %v1884 = vpop.f32.mrf.mxu0
      %1885 = vmatprep.mubr.bf16.mxu0 0
      %1886 = vmatmul.mubr.bf16.gmra.mxu0 %v543
      %v1887 = vpop.f32.mrf.mxu0
      %v1888 = vadd.f32 0.0, %v1887
      %v1889 = vpop.f32.mrf.mxu0
      %v1890 = vpop.f32.mrf.mxu0
      %v1891 = vadd.f32 0.0, %v1890
      %v1892 = vpop.f32.mrf.mxu0
      %1893 = vmatprep.mubr.bf16.mxu0 0
      %1894 = vmatmul.mubr.bf16.gmra.mxu0 %v1736
      %v1895 = vpop.f32.mrf.mxu0
      %v1896 = vadd.f32 0.0, %v1895
      %v1897 = vpop.f32.mrf.mxu0
      %v1898 = vpop.f32.mrf.mxu0
      %v1899 = vadd.f32 0.0, %v1898
      %v1900 = vpop.f32.mrf.mxu0
      %1901 = vdwg.mxu0
      %v1902 = vadd.f32 %v1700, %v1776
      %v1903 = vadd.f32 %v1701, %v1779
      %v1904 = vadd.f32 %v1702, %v1784
      %v1905 = vadd.f32 %v1703, %v1787
      %v1906 = vadd.f32 %v1704, %v1792
      %v1907 = vadd.f32 %v1705, %v1795
      %v1908 = vadd.f32 %v1706, %v1800
      %v1909 = vadd.f32 %v1707, %v1803
      %v1910 = vadd.f32 %v1708, %v1808
      %v1911 = vadd.f32 %v1709, %v1811
      %v1912 = vadd.f32 %v1710, %v1816
      %v1913 = vadd.f32 %v1711, %v1819
      %v1914 = vadd.f32 %v1712, %v1824
      %v1915 = vadd.f32 %v1713, %v1827
      %v1916 = vadd.f32 %v1714, %v1832
      %v1917 = vadd.f32 %v1715, %v1835
      %v1918 = vadd.f32 %v1716, %v1840
      %v1919 = vadd.f32 %v1717, %v1843
      %v1920 = vadd.f32 %v1718, %v1848
      %v1921 = vadd.f32 %v1719, %v1851
      %v1922 = vadd.f32 %v1720, %v1856
      %v1923 = vadd.f32 %v1721, %v1859
      %v1924 = vadd.f32 %v1722, %v1864
      %v1925 = vadd.f32 %v1723, %v1867
      %v1926 = vadd.f32 %v1724, %v1872
      %v1927 = vadd.f32 %v1725, %v1875
      %v1928 = vadd.f32 %v1726, %v1880
      %v1929 = vadd.f32 %v1727, %v1883
      %v1930 = vadd.f32 %v1728, %v1888
      %v1931 = vadd.f32 %v1729, %v1891
      %v1932 = vadd.f32 %v1730, %v1896
      %v1933 = vadd.f32 %v1731, %v1899
      %1934 = vst [vmem:[#allocation3] sm:$0xff] %v1902
      %1935 = vst [vmem:[#allocation3 + $0x8] sm:$0xff] %v1903
      %1936 = vst [vmem:[#allocation3 + $0x10] sm:$0xff] %v1904
      %1937 = vst [vmem:[#allocation3 + $0x18] sm:$0xff] %v1905
      %1938 = vst [vmem:[#allocation3 + $0x20] sm:$0xff] %v1906
      %1939 = vst [vmem:[#allocation3 + $0x28] sm:$0xff] %v1907
      %1940 = vst [vmem:[#allocation3 + $0x30] sm:$0xff] %v1908
      %1941 = vst [vmem:[#allocation3 + $0x38] sm:$0xff] %v1909
      %1942 = vst [vmem:[#allocation3 + $0x40] sm:$0xff] %v1910
      %1943 = vst [vmem:[#allocation3 + $0x48] sm:$0xff] %v1911
      %1944 = vst [vmem:[#allocation3 + $0x50] sm:$0xff] %v1912
      %1945 = vst [vmem:[#allocation3 + $0x58] sm:$0xff] %v1913
      %1946 = vst [vmem:[#allocation3 + $0x60] sm:$0xff] %v1914
      %1947 = vst [vmem:[#allocation3 + $0x68] sm:$0xff] %v1915
      %1948 = vst [vmem:[#allocation3 + $0x70] sm:$0xff] %v1916
      %1949 = vst [vmem:[#allocation3 + $0x78] sm:$0xff] %v1917
      %1950 = vst [vmem:[#allocation3 + $0x80] sm:$0xff] %v1918
      %1951 = vst [vmem:[#allocation3 + $0x88] sm:$0xff] %v1919
      %1952 = vst [vmem:[#allocation3 + $0x90] sm:$0xff] %v1920
      %1953 = vst [vmem:[#allocation3 + $0x98] sm:$0xff] %v1921
      %1954 = vst [vmem:[#allocation3 + $0xa0] sm:$0xff] %v1922
      %1955 = vst [vmem:[#allocation3 + $0xa8] sm:$0xff] %v1923
      %1956 = vst [vmem:[#allocation3 + $0xb0] sm:$0xff] %v1924
      %1957 = vst [vmem:[#allocation3 + $0xb8] sm:$0xff] %v1925
      %1958 = vst [vmem:[#allocation3 + $0xc0] sm:$0xff] %v1926
      %1959 = vst [vmem:[#allocation3 + $0xc8] sm:$0xff] %v1927
      %1960 = vst [vmem:[#allocation3 + $0xd0] sm:$0xff] %v1928
      %1961 = vst [vmem:[#allocation3 + $0xd8] sm:$0xff] %v1929
      %1962 = vst [vmem:[#allocation3 + $0xe0] sm:$0xff] %v1930
      %1963 = vst [vmem:[#allocation3 + $0xe8] sm:$0xff] %v1931
      %1964 = vst [vmem:[#allocation3 + $0xf0] sm:$0xff] %v1932
      %1965 = vst [vmem:[#allocation3 + $0xf8] sm:$0xff] %v1933
      %v1969 = vrot.slane %v409, 1
      %v1970 = vrot.slane %v410, 1
      %v1971 = vsel %vm822, %v1969, %v1970
      %v1972 = vrot.slane %v411, 1
      %v1973 = vsel %vm822, %v1970, %v1972
      %v1976 = vld [vmem:[#allocation3] sm:$0xff]
      %v1977 = vld [vmem:[#allocation3 + $0x8] sm:$0xff]
      %v1978 = vld [vmem:[#allocation3 + $0x10] sm:$0xff]
      %v1979 = vld [vmem:[#allocation3 + $0x18] sm:$0xff]
      %v1980 = vld [vmem:[#allocation3 + $0x20] sm:$0xff]
      %v1981 = vld [vmem:[#allocation3 + $0x28] sm:$0xff]
      %v1982 = vld [vmem:[#allocation3 + $0x30] sm:$0xff]
      %v1983 = vld [vmem:[#allocation3 + $0x38] sm:$0xff]
      %v1984 = vld [vmem:[#allocation3 + $0x40] sm:$0xff]
      %v1985 = vld [vmem:[#allocation3 + $0x48] sm:$0xff]
      %v1986 = vld [vmem:[#allocation3 + $0x50] sm:$0xff]
      %v1987 = vld [vmem:[#allocation3 + $0x58] sm:$0xff]
      %v1988 = vld [vmem:[#allocation3 + $0x60] sm:$0xff]
      %v1989 = vld [vmem:[#allocation3 + $0x68] sm:$0xff]
      %v1990 = vld [vmem:[#allocation3 + $0x70] sm:$0xff]
      %v1991 = vld [vmem:[#allocation3 + $0x78] sm:$0xff]
      %v1992 = vld [vmem:[#allocation3 + $0x80] sm:$0xff]
      %v1993 = vld [vmem:[#allocation3 + $0x88] sm:$0xff]
      %v1994 = vld [vmem:[#allocation3 + $0x90] sm:$0xff]
      %v1995 = vld [vmem:[#allocation3 + $0x98] sm:$0xff]
      %v1996 = vld [vmem:[#allocation3 + $0xa0] sm:$0xff]
      %v1997 = vld [vmem:[#allocation3 + $0xa8] sm:$0xff]
      %v1998 = vld [vmem:[#allocation3 + $0xb0] sm:$0xff]
      %v1999 = vld [vmem:[#allocation3 + $0xb8] sm:$0xff]
      %v2000 = vld [vmem:[#allocation3 + $0xc0] sm:$0xff]
      %v2001 = vld [vmem:[#allocation3 + $0xc8] sm:$0xff]
      %v2002 = vld [vmem:[#allocation3 + $0xd0] sm:$0xff]
      %v2003 = vld [vmem:[#allocation3 + $0xd8] sm:$0xff]
      %v2004 = vld [vmem:[#allocation3 + $0xe0] sm:$0xff]
      %v2005 = vld [vmem:[#allocation3 + $0xe8] sm:$0xff]
      %v2006 = vld [vmem:[#allocation3 + $0xf0] sm:$0xff]
      %v2007 = vld [vmem:[#allocation3 + $0xf8] sm:$0xff]
      %v2008 = vpack.c.bf16 %v1973, %v1971
      %s2009 = scalar_lea.vmem %s1, 8
      %v2010 = vld [vmem:[%s2009] sm:$0x3]
      %v2012 = vsel %vm496, %v2008, 0
      %v2015 = vsel %vm545, %v2010, 0
      %2017 = vmatprep.subr.bf16.mxu0 0
      %2018 = vmatpush1.bf16.msra.mxu0 0
      %2019 = vmatprep.subr.bf16.mxu0 0
      %2020 = vmatpush1.bf16.msra.mxu0 0
      %2021 = vmatprep.subr.bf16.mxu0 0
      %2022 = vmatpush1.bf16.msra.mxu0 0
      %2023 = vmatprep.subr.bf16.mxu0 0
      %2024 = vmatpush1.bf16.msra.mxu0 0
      %2025 = vmatprep.subr.bf16.mxu0 0
      %2026 = vmatpush1.bf16.msra.mxu0 0
      %2027 = vmatprep.subr.bf16.mxu0 0
      %2028 = vmatpush1.bf16.msra.mxu0 0
      %2029 = vmatprep.subr.bf16.mxu0 0
      %2030 = vmatpush1.bf16.msra.mxu0 0
      %2031 = vmatprep.subr.bf16.mxu0 0
      %2032 = vmatpush1.bf16.msra.mxu0 %v2015
      %2033 = vmatprep.subr.bf16.mxu0 0
      %2034 = vmatpush2.bf16.msra.mxu0 0
      %2035 = vmatprep.subr.bf16.mxu0 0
      %2036 = vmatpush2.bf16.msra.mxu0 0
      %2037 = vmatprep.subr.bf16.mxu0 0
      %2038 = vmatpush2.bf16.msra.mxu0 0
      %2039 = vmatprep.subr.bf16.mxu0 0
      %2040 = vmatpush2.bf16.msra.mxu0 0
      %2041 = vmatprep.subr.bf16.mxu0 0
      %2042 = vmatpush2.bf16.msra.mxu0 0
      %2043 = vmatprep.subr.bf16.mxu0 0
      %2044 = vmatpush2.bf16.msra.mxu0 0
      %2045 = vmatprep.subr.bf16.mxu0 0
      %2046 = vmatpush2.bf16.msra.mxu0 0
      %2047 = vmatprep.subr.bf16.mxu0 0
      %2048 = vmatpush2.bf16.msra.mxu0 0
      %2049 = vmatprep.mubr.bf16.mxu0 0
      %2050 = vmatmul.mubr.bf16.gmra.mxu0 %v989
      %v2051 = vpop.f32.mrf.mxu0
      %v2052 = vadd.f32 0.0, %v2051
      %v2053 = vpop.f32.mrf.mxu0
      %v2054 = vpop.f32.mrf.mxu0
      %v2055 = vadd.f32 0.0, %v2054
      %v2056 = vpop.f32.mrf.mxu0
      %2057 = vmatprep.mubr.bf16.mxu0 0
      %2058 = vmatmul.mubr.bf16.gmra.mxu0 %v992
      %v2059 = vpop.f32.mrf.mxu0
      %v2060 = vadd.f32 0.0, %v2059
      %v2061 = vpop.f32.mrf.mxu0
      %v2062 = vpop.f32.mrf.mxu0
      %v2063 = vadd.f32 0.0, %v2062
      %v2064 = vpop.f32.mrf.mxu0
      %2065 = vmatprep.mubr.bf16.mxu0 0
      %2066 = vmatmul.mubr.bf16.gmra.mxu0 %v995
      %v2067 = vpop.f32.mrf.mxu0
      %v2068 = vadd.f32 0.0, %v2067
      %v2069 = vpop.f32.mrf.mxu0
      %v2070 = vpop.f32.mrf.mxu0
      %v2071 = vadd.f32 0.0, %v2070
      %v2072 = vpop.f32.mrf.mxu0
      %2073 = vmatprep.mubr.bf16.mxu0 0
      %2074 = vmatmul.mubr.bf16.gmra.mxu0 %v998
      %v2075 = vpop.f32.mrf.mxu0
      %v2076 = vadd.f32 0.0, %v2075
      %v2077 = vpop.f32.mrf.mxu0
      %v2078 = vpop.f32.mrf.mxu0
      %v2079 = vadd.f32 0.0, %v2078
      %v2080 = vpop.f32.mrf.mxu0
      %2081 = vmatprep.mubr.bf16.mxu0 0
      %2082 = vmatmul.mubr.bf16.gmra.mxu0 %v1001
      %v2083 = vpop.f32.mrf.mxu0
      %v2084 = vadd.f32 0.0, %v2083
      %v2085 = vpop.f32.mrf.mxu0
      %v2086 = vpop.f32.mrf.mxu0
      %v2087 = vadd.f32 0.0, %v2086
      %v2088 = vpop.f32.mrf.mxu0
      %2089 = vmatprep.mubr.bf16.mxu0 0
      %2090 = vmatmul.mubr.bf16.gmra.mxu0 %v1004
      %v2091 = vpop.f32.mrf.mxu0
      %v2092 = vadd.f32 0.0, %v2091
      %v2093 = vpop.f32.mrf.mxu0
      %v2094 = vpop.f32.mrf.mxu0
      %v2095 = vadd.f32 0.0, %v2094
      %v2096 = vpop.f32.mrf.mxu0
      %2097 = vmatprep.mubr.bf16.mxu0 0
      %2098 = vmatmul.mubr.bf16.gmra.mxu0 %v1007
      %v2099 = vpop.f32.mrf.mxu0
      %v2100 = vadd.f32 0.0, %v2099
      %v2101 = vpop.f32.mrf.mxu0
      %v2102 = vpop.f32.mrf.mxu0
      %v2103 = vadd.f32 0.0, %v2102
      %v2104 = vpop.f32.mrf.mxu0
      %2105 = vmatprep.mubr.bf16.mxu0 0
      %2106 = vmatmul.mubr.bf16.gmra.mxu0 %v1010
      %v2107 = vpop.f32.mrf.mxu0
      %v2108 = vadd.f32 0.0, %v2107
      %v2109 = vpop.f32.mrf.mxu0
      %v2110 = vpop.f32.mrf.mxu0
      %v2111 = vadd.f32 0.0, %v2110
      %v2112 = vpop.f32.mrf.mxu0
      %2113 = vmatprep.mubr.bf16.mxu0 0
      %2114 = vmatmul.mubr.bf16.gmra.mxu0 %v1013
      %v2115 = vpop.f32.mrf.mxu0
      %v2116 = vadd.f32 0.0, %v2115
      %v2117 = vpop.f32.mrf.mxu0
      %v2118 = vpop.f32.mrf.mxu0
      %v2119 = vadd.f32 0.0, %v2118
      %v2120 = vpop.f32.mrf.mxu0
      %2121 = vmatprep.mubr.bf16.mxu0 0
      %2122 = vmatmul.mubr.bf16.gmra.mxu0 %v1016
      %v2123 = vpop.f32.mrf.mxu0
      %v2124 = vadd.f32 0.0, %v2123
      %v2125 = vpop.f32.mrf.mxu0
      %v2126 = vpop.f32.mrf.mxu0
      %v2127 = vadd.f32 0.0, %v2126
      %v2128 = vpop.f32.mrf.mxu0
      %2129 = vmatprep.mubr.bf16.mxu0 0
      %2130 = vmatmul.mubr.bf16.gmra.mxu0 %v1019
      %v2131 = vpop.f32.mrf.mxu0
      %v2132 = vadd.f32 0.0, %v2131
      %v2133 = vpop.f32.mrf.mxu0
      %v2134 = vpop.f32.mrf.mxu0
      %v2135 = vadd.f32 0.0, %v2134
      %v2136 = vpop.f32.mrf.mxu0
      %2137 = vmatprep.mubr.bf16.mxu0 0
      %2138 = vmatmul.mubr.bf16.gmra.mxu0 %v1022
      %v2139 = vpop.f32.mrf.mxu0
      %v2140 = vadd.f32 0.0, %v2139
      %v2141 = vpop.f32.mrf.mxu0
      %v2142 = vpop.f32.mrf.mxu0
      %v2143 = vadd.f32 0.0, %v2142
      %v2144 = vpop.f32.mrf.mxu0
      %2145 = vmatprep.mubr.bf16.mxu0 0
      %2146 = vmatmul.mubr.bf16.gmra.mxu0 %v1025
      %v2147 = vpop.f32.mrf.mxu0
      %v2148 = vadd.f32 0.0, %v2147
      %v2149 = vpop.f32.mrf.mxu0
      %v2150 = vpop.f32.mrf.mxu0
      %v2151 = vadd.f32 0.0, %v2150
      %v2152 = vpop.f32.mrf.mxu0
      %2153 = vmatprep.mubr.bf16.mxu0 0
      %2154 = vmatmul.mubr.bf16.gmra.mxu0 %v1028
      %v2155 = vpop.f32.mrf.mxu0
      %v2156 = vadd.f32 0.0, %v2155
      %v2157 = vpop.f32.mrf.mxu0
      %v2158 = vpop.f32.mrf.mxu0
      %v2159 = vadd.f32 0.0, %v2158
      %v2160 = vpop.f32.mrf.mxu0
      %2161 = vmatprep.mubr.bf16.mxu0 0
      %2162 = vmatmul.mubr.bf16.gmra.mxu0 %v1031
      %v2163 = vpop.f32.mrf.mxu0
      %v2164 = vadd.f32 0.0, %v2163
      %v2165 = vpop.f32.mrf.mxu0
      %v2166 = vpop.f32.mrf.mxu0
      %v2167 = vadd.f32 0.0, %v2166
      %v2168 = vpop.f32.mrf.mxu0
      %2169 = vmatprep.mubr.bf16.mxu0 0
      %2170 = vmatmul.mubr.bf16.gmra.mxu0 %v2012
      %v2171 = vpop.f32.mrf.mxu0
      %v2172 = vadd.f32 0.0, %v2171
      %v2173 = vpop.f32.mrf.mxu0
      %v2174 = vpop.f32.mrf.mxu0
      %v2175 = vadd.f32 0.0, %v2174
      %v2176 = vpop.f32.mrf.mxu0
      %2177 = vdwg.mxu0
      %v2178 = vadd.f32 %v1976, %v2052
      %v2179 = vadd.f32 %v1977, %v2055
      %v2180 = vadd.f32 %v1978, %v2060
      %v2181 = vadd.f32 %v1979, %v2063
      %v2182 = vadd.f32 %v1980, %v2068
      %v2183 = vadd.f32 %v1981, %v2071
      %v2184 = vadd.f32 %v1982, %v2076
      %v2185 = vadd.f32 %v1983, %v2079
      %v2186 = vadd.f32 %v1984, %v2084
      %v2187 = vadd.f32 %v1985, %v2087
      %v2188 = vadd.f32 %v1986, %v2092
      %v2189 = vadd.f32 %v1987, %v2095
      %v2190 = vadd.f32 %v1988, %v2100
      %v2191 = vadd.f32 %v1989, %v2103
      %v2192 = vadd.f32 %v1990, %v2108
      %v2193 = vadd.f32 %v1991, %v2111
      %v2194 = vadd.f32 %v1992, %v2116
      %v2195 = vadd.f32 %v1993, %v2119
      %v2196 = vadd.f32 %v1994, %v2124
      %v2197 = vadd.f32 %v1995, %v2127
      %v2198 = vadd.f32 %v1996, %v2132
      %v2199 = vadd.f32 %v1997, %v2135
      %v2200 = vadd.f32 %v1998, %v2140
      %v2201 = vadd.f32 %v1999, %v2143
      %v2202 = vadd.f32 %v2000, %v2148
      %v2203 = vadd.f32 %v2001, %v2151
      %v2204 = vadd.f32 %v2002, %v2156
      %v2205 = vadd.f32 %v2003, %v2159
      %v2206 = vadd.f32 %v2004, %v2164
      %v2207 = vadd.f32 %v2005, %v2167
      %v2208 = vadd.f32 %v2006, %v2172
      %v2209 = vadd.f32 %v2007, %v2175
      %2210 = vst [vmem:[#allocation3] sm:$0xff] %v2178
      %2211 = vst [vmem:[#allocation3 + $0x8] sm:$0xff] %v2179
      %2212 = vst [vmem:[#allocation3 + $0x10] sm:$0xff] %v2180
      %2213 = vst [vmem:[#allocation3 + $0x18] sm:$0xff] %v2181
      %2214 = vst [vmem:[#allocation3 + $0x20] sm:$0xff] %v2182
      %2215 = vst [vmem:[#allocation3 + $0x28] sm:$0xff] %v2183
      %2216 = vst [vmem:[#allocation3 + $0x30] sm:$0xff] %v2184
      %2217 = vst [vmem:[#allocation3 + $0x38] sm:$0xff] %v2185
      %2218 = vst [vmem:[#allocation3 + $0x40] sm:$0xff] %v2186
      %2219 = vst [vmem:[#allocation3 + $0x48] sm:$0xff] %v2187
      %2220 = vst [vmem:[#allocation3 + $0x50] sm:$0xff] %v2188
      %2221 = vst [vmem:[#allocation3 + $0x58] sm:$0xff] %v2189
      %2222 = vst [vmem:[#allocation3 + $0x60] sm:$0xff] %v2190
      %2223 = vst [vmem:[#allocation3 + $0x68] sm:$0xff] %v2191
      %2224 = vst [vmem:[#allocation3 + $0x70] sm:$0xff] %v2192
      %2225 = vst [vmem:[#allocation3 + $0x78] sm:$0xff] %v2193
      %2226 = vst [vmem:[#allocation3 + $0x80] sm:$0xff] %v2194
      %2227 = vst [vmem:[#allocation3 + $0x88] sm:$0xff] %v2195
      %2228 = vst [vmem:[#allocation3 + $0x90] sm:$0xff] %v2196
      %2229 = vst [vmem:[#allocation3 + $0x98] sm:$0xff] %v2197
      %2230 = vst [vmem:[#allocation3 + $0xa0] sm:$0xff] %v2198
      %2231 = vst [vmem:[#allocation3 + $0xa8] sm:$0xff] %v2199
      %2232 = vst [vmem:[#allocation3 + $0xb0] sm:$0xff] %v2200
      %2233 = vst [vmem:[#allocation3 + $0xb8] sm:$0xff] %v2201
      %2234 = vst [vmem:[#allocation3 + $0xc0] sm:$0xff] %v2202
      %2235 = vst [vmem:[#allocation3 + $0xc8] sm:$0xff] %v2203
      %2236 = vst [vmem:[#allocation3 + $0xd0] sm:$0xff] %v2204
      %2237 = vst [vmem:[#allocation3 + $0xd8] sm:$0xff] %v2205
      %2238 = vst [vmem:[#allocation3 + $0xe0] sm:$0xff] %v2206
      %2239 = vst [vmem:[#allocation3 + $0xe8] sm:$0xff] %v2207
      %2240 = vst [vmem:[#allocation3 + $0xf0] sm:$0xff] %v2208
      %2241 = vst [vmem:[#allocation3 + $0xf8] sm:$0xff] %v2209
      %v2242 = vrot.slane %v409, 2
      %v2243 = vrot.slane %v410, 2
      %v2244 = vsel %vm1261, %v2242, %v2243
      %v2245 = vrot.slane %v411, 2
      %v2246 = vsel %vm1261, %v2243, %v2245
      %v2249 = vld [vmem:[#allocation3] sm:$0xff]
      %v2250 = vld [vmem:[#allocation3 + $0x8] sm:$0xff]
      %v2251 = vld [vmem:[#allocation3 + $0x10] sm:$0xff]
      %v2252 = vld [vmem:[#allocation3 + $0x18] sm:$0xff]
      %v2253 = vld [vmem:[#allocation3 + $0x20] sm:$0xff]
      %v2254 = vld [vmem:[#allocation3 + $0x28] sm:$0xff]
      %v2255 = vld [vmem:[#allocation3 + $0x30] sm:$0xff]
      %v2256 = vld [vmem:[#allocation3 + $0x38] sm:$0xff]
      %v2257 = vld [vmem:[#allocation3 + $0x40] sm:$0xff]
      %v2258 = vld [vmem:[#allocation3 + $0x48] sm:$0xff]
      %v2259 = vld [vmem:[#allocation3 + $0x50] sm:$0xff]
      %v2260 = vld [vmem:[#allocation3 + $0x58] sm:$0xff]
      %v2261 = vld [vmem:[#allocation3 + $0x60] sm:$0xff]
      %v2262 = vld [vmem:[#allocation3 + $0x68] sm:$0xff]
      %v2263 = vld [vmem:[#allocation3 + $0x70] sm:$0xff]
      %v2264 = vld [vmem:[#allocation3 + $0x78] sm:$0xff]
      %v2265 = vld [vmem:[#allocation3 + $0x80] sm:$0xff]
      %v2266 = vld [vmem:[#allocation3 + $0x88] sm:$0xff]
      %v2267 = vld [vmem:[#allocation3 + $0x90] sm:$0xff]
      %v2268 = vld [vmem:[#allocation3 + $0x98] sm:$0xff]
      %v2269 = vld [vmem:[#allocation3 + $0xa0] sm:$0xff]
      %v2270 = vld [vmem:[#allocation3 + $0xa8] sm:$0xff]
      %v2271 = vld [vmem:[#allocation3 + $0xb0] sm:$0xff]
      %v2272 = vld [vmem:[#allocation3 + $0xb8] sm:$0xff]
      %v2273 = vld [vmem:[#allocation3 + $0xc0] sm:$0xff]
      %v2274 = vld [vmem:[#allocation3 + $0xc8] sm:$0xff]
      %v2275 = vld [vmem:[#allocation3 + $0xd0] sm:$0xff]
      %v2276 = vld [vmem:[#allocation3 + $0xd8] sm:$0xff]
      %v2277 = vld [vmem:[#allocation3 + $0xe0] sm:$0xff]
      %v2278 = vld [vmem:[#allocation3 + $0xe8] sm:$0xff]
      %v2279 = vld [vmem:[#allocation3 + $0xf0] sm:$0xff]
      %v2280 = vld [vmem:[#allocation3 + $0xf8] sm:$0xff]
      %v2281 = vpack.c.bf16 %v2246, %v2244
      %s2282 = scalar_lea.vmem %s1, 10
      %v2283 = vld [vmem:[%s2282] sm:$0x3]
      %v2285 = vsel %vm496, %v2281, 0
      %v2288 = vsel %vm545, %v2283, 0
      %2290 = vmatprep.subr.bf16.mxu0 0
      %2291 = vmatpush1.bf16.msra.mxu0 0
      %2292 = vmatprep.subr.bf16.mxu0 0
      %2293 = vmatpush1.bf16.msra.mxu0 0
      %2294 = vmatprep.subr.bf16.mxu0 0
      %2295 = vmatpush1.bf16.msra.mxu0 0
      %2296 = vmatprep.subr.bf16.mxu0 0
      %2297 = vmatpush1.bf16.msra.mxu0 0
      %2298 = vmatprep.subr.bf16.mxu0 0
      %2299 = vmatpush1.bf16.msra.mxu0 0
      %2300 = vmatprep.subr.bf16.mxu0 0
      %2301 = vmatpush1.bf16.msra.mxu0 0
      %2302 = vmatprep.subr.bf16.mxu0 0
      %2303 = vmatpush1.bf16.msra.mxu0 0
      %2304 = vmatprep.subr.bf16.mxu0 0
      %2305 = vmatpush1.bf16.msra.mxu0 %v2288
      %2306 = vmatprep.subr.bf16.mxu0 0
      %2307 = vmatpush2.bf16.msra.mxu0 0
      %2308 = vmatprep.subr.bf16.mxu0 0
      %2309 = vmatpush2.bf16.msra.mxu0 0
      %2310 = vmatprep.subr.bf16.mxu0 0
      %2311 = vmatpush2.bf16.msra.mxu0 0
      %2312 = vmatprep.subr.bf16.mxu0 0
      %2313 = vmatpush2.bf16.msra.mxu0 0
      %2314 = vmatprep.subr.bf16.mxu0 0
      %2315 = vmatpush2.bf16.msra.mxu0 0
      %2316 = vmatprep.subr.bf16.mxu0 0
      %2317 = vmatpush2.bf16.msra.mxu0 0
      %2318 = vmatprep.subr.bf16.mxu0 0
      %2319 = vmatpush2.bf16.msra.mxu0 0
      %2320 = vmatprep.subr.bf16.mxu0 0
      %2321 = vmatpush2.bf16.msra.mxu0 0
      %2322 = vmatprep.mubr.bf16.mxu0 0
      %2323 = vmatmul.mubr.bf16.gmra.mxu0 %v1428
      %v2324 = vpop.f32.mrf.mxu0
      %v2325 = vadd.f32 0.0, %v2324
      %v2326 = vpop.f32.mrf.mxu0
      %v2327 = vpop.f32.mrf.mxu0
      %v2328 = vadd.f32 0.0, %v2327
      %v2329 = vpop.f32.mrf.mxu0
      %2330 = vmatprep.mubr.bf16.mxu0 0
      %2331 = vmatmul.mubr.bf16.gmra.mxu0 %v1431
      %v2332 = vpop.f32.mrf.mxu0
      %v2333 = vadd.f32 0.0, %v2332
      %v2334 = vpop.f32.mrf.mxu0
      %v2335 = vpop.f32.mrf.mxu0
      %v2336 = vadd.f32 0.0, %v2335
      %v2337 = vpop.f32.mrf.mxu0
      %2338 = vmatprep.mubr.bf16.mxu0 0
      %2339 = vmatmul.mubr.bf16.gmra.mxu0 %v1434
      %v2340 = vpop.f32.mrf.mxu0
      %v2341 = vadd.f32 0.0, %v2340
      %v2342 = vpop.f32.mrf.mxu0
      %v2343 = vpop.f32.mrf.mxu0
      %v2344 = vadd.f32 0.0, %v2343
      %v2345 = vpop.f32.mrf.mxu0
      %2346 = vmatprep.mubr.bf16.mxu0 0
      %2347 = vmatmul.mubr.bf16.gmra.mxu0 %v1437
      %v2348 = vpop.f32.mrf.mxu0
      %v2349 = vadd.f32 0.0, %v2348
      %v2350 = vpop.f32.mrf.mxu0
      %v2351 = vpop.f32.mrf.mxu0
      %v2352 = vadd.f32 0.0, %v2351
      %v2353 = vpop.f32.mrf.mxu0
      %2354 = vmatprep.mubr.bf16.mxu0 0
      %2355 = vmatmul.mubr.bf16.gmra.mxu0 %v1440
      %v2356 = vpop.f32.mrf.mxu0
      %v2357 = vadd.f32 0.0, %v2356
      %v2358 = vpop.f32.mrf.mxu0
      %v2359 = vpop.f32.mrf.mxu0
      %v2360 = vadd.f32 0.0, %v2359
      %v2361 = vpop.f32.mrf.mxu0
      %2362 = vmatprep.mubr.bf16.mxu0 0
      %2363 = vmatmul.mubr.bf16.gmra.mxu0 %v1443
      %v2364 = vpop.f32.mrf.mxu0
      %v2365 = vadd.f32 0.0, %v2364
      %v2366 = vpop.f32.mrf.mxu0
      %v2367 = vpop.f32.mrf.mxu0
      %v2368 = vadd.f32 0.0, %v2367
      %v2369 = vpop.f32.mrf.mxu0
      %2370 = vmatprep.mubr.bf16.mxu0 0
      %2371 = vmatmul.mubr.bf16.gmra.mxu0 %v1446
      %v2372 = vpop.f32.mrf.mxu0
      %v2373 = vadd.f32 0.0, %v2372
      %v2374 = vpop.f32.mrf.mxu0
      %v2375 = vpop.f32.mrf.mxu0
      %v2376 = vadd.f32 0.0, %v2375
      %v2377 = vpop.f32.mrf.mxu0
      %2378 = vmatprep.mubr.bf16.mxu0 0
      %2379 = vmatmul.mubr.bf16.gmra.mxu0 %v1449
      %v2380 = vpop.f32.mrf.mxu0
      %v2381 = vadd.f32 0.0, %v2380
      %v2382 = vpop.f32.mrf.mxu0
      %v2383 = vpop.f32.mrf.mxu0
      %v2384 = vadd.f32 0.0, %v2383
      %v2385 = vpop.f32.mrf.mxu0
      %2386 = vmatprep.mubr.bf16.mxu0 0
      %2387 = vmatmul.mubr.bf16.gmra.mxu0 %v1452
      %v2388 = vpop.f32.mrf.mxu0
      %v2389 = vadd.f32 0.0, %v2388
      %v2390 = vpop.f32.mrf.mxu0
      %v2391 = vpop.f32.mrf.mxu0
      %v2392 = vadd.f32 0.0, %v2391
      %v2393 = vpop.f32.mrf.mxu0
      %2394 = vmatprep.mubr.bf16.mxu0 0
      %2395 = vmatmul.mubr.bf16.gmra.mxu0 %v1455
      %v2396 = vpop.f32.mrf.mxu0
      %v2397 = vadd.f32 0.0, %v2396
      %v2398 = vpop.f32.mrf.mxu0
      %v2399 = vpop.f32.mrf.mxu0
      %v2400 = vadd.f32 0.0, %v2399
      %v2401 = vpop.f32.mrf.mxu0
      %2402 = vmatprep.mubr.bf16.mxu0 0
      %2403 = vmatmul.mubr.bf16.gmra.mxu0 %v1458
      %v2404 = vpop.f32.mrf.mxu0
      %v2405 = vadd.f32 0.0, %v2404
      %v2406 = vpop.f32.mrf.mxu0
      %v2407 = vpop.f32.mrf.mxu0
      %v2408 = vadd.f32 0.0, %v2407
      %v2409 = vpop.f32.mrf.mxu0
      %2410 = vmatprep.mubr.bf16.mxu0 0
      %2411 = vmatmul.mubr.bf16.gmra.mxu0 %v1461
      %v2412 = vpop.f32.mrf.mxu0
      %v2413 = vadd.f32 0.0, %v2412
      %v2414 = vpop.f32.mrf.mxu0
      %v2415 = vpop.f32.mrf.mxu0
      %v2416 = vadd.f32 0.0, %v2415
      %v2417 = vpop.f32.mrf.mxu0
      %2418 = vmatprep.mubr.bf16.mxu0 0
      %2419 = vmatmul.mubr.bf16.gmra.mxu0 %v1464
      %v2420 = vpop.f32.mrf.mxu0
      %v2421 = vadd.f32 0.0, %v2420
      %v2422 = vpop.f32.mrf.mxu0
      %v2423 = vpop.f32.mrf.mxu0
      %v2424 = vadd.f32 0.0, %v2423
      %v2425 = vpop.f32.mrf.mxu0
      %2426 = vmatprep.mubr.bf16.mxu0 0
      %2427 = vmatmul.mubr.bf16.gmra.mxu0 %v1467
      %v2428 = vpop.f32.mrf.mxu0
      %v2429 = vadd.f32 0.0, %v2428
      %v2430 = vpop.f32.mrf.mxu0
      %v2431 = vpop.f32.mrf.mxu0
      %v2432 = vadd.f32 0.0, %v2431
      %v2433 = vpop.f32.mrf.mxu0
      %2434 = vmatprep.mubr.bf16.mxu0 0
      %2435 = vmatmul.mubr.bf16.gmra.mxu0 %v1470
      %v2436 = vpop.f32.mrf.mxu0
      %v2437 = vadd.f32 0.0, %v2436
      %v2438 = vpop.f32.mrf.mxu0
      %v2439 = vpop.f32.mrf.mxu0
      %v2440 = vadd.f32 0.0, %v2439
      %v2441 = vpop.f32.mrf.mxu0
      %2442 = vmatprep.mubr.bf16.mxu0 0
      %2443 = vmatmul.mubr.bf16.gmra.mxu0 %v2285
      %v2444 = vpop.f32.mrf.mxu0
      %v2445 = vadd.f32 0.0, %v2444
      %v2446 = vpop.f32.mrf.mxu0
      %v2447 = vpop.f32.mrf.mxu0
      %v2448 = vadd.f32 0.0, %v2447
      %v2449 = vpop.f32.mrf.mxu0
      %2450 = vdwg.mxu0
      %v2451 = vadd.f32 %v2249, %v2325
      %v2452 = vadd.f32 %v2250, %v2328
      %v2453 = vadd.f32 %v2251, %v2333
      %v2454 = vadd.f32 %v2252, %v2336
      %v2455 = vadd.f32 %v2253, %v2341
      %v2456 = vadd.f32 %v2254, %v2344
      %v2457 = vadd.f32 %v2255, %v2349
      %v2458 = vadd.f32 %v2256, %v2352
      %v2459 = vadd.f32 %v2257, %v2357
      %v2460 = vadd.f32 %v2258, %v2360
      %v2461 = vadd.f32 %v2259, %v2365
      %v2462 = vadd.f32 %v2260, %v2368
      %v2463 = vadd.f32 %v2261, %v2373
      %v2464 = vadd.f32 %v2262, %v2376
      %v2465 = vadd.f32 %v2263, %v2381
      %v2466 = vadd.f32 %v2264, %v2384
      %v2467 = vadd.f32 %v2265, %v2389
      %v2468 = vadd.f32 %v2266, %v2392
      %v2469 = vadd.f32 %v2267, %v2397
      %v2470 = vadd.f32 %v2268, %v2400
      %v2471 = vadd.f32 %v2269, %v2405
      %v2472 = vadd.f32 %v2270, %v2408
      %v2473 = vadd.f32 %v2271, %v2413
      %v2474 = vadd.f32 %v2272, %v2416
      %v2475 = vadd.f32 %v2273, %v2421
      %v2476 = vadd.f32 %v2274, %v2424
      %v2477 = vadd.f32 %v2275, %v2429
      %v2478 = vadd.f32 %v2276, %v2432
      %v2479 = vadd.f32 %v2277, %v2437
      %v2480 = vadd.f32 %v2278, %v2440
      %v2481 = vadd.f32 %v2279, %v2445
      %v2482 = vadd.f32 %v2280, %v2448
      %2483 = vst [vmem:[#allocation3] sm:$0xff] %v2451
      %2484 = vst [vmem:[#allocation3 + $0x8] sm:$0xff] %v2452
      %2485 = vst [vmem:[#allocation3 + $0x10] sm:$0xff] %v2453
      %2486 = vst [vmem:[#allocation3 + $0x18] sm:$0xff] %v2454
      %2487 = vst [vmem:[#allocation3 + $0x20] sm:$0xff] %v2455
      %2488 = vst [vmem:[#allocation3 + $0x28] sm:$0xff] %v2456
      %2489 = vst [vmem:[#allocation3 + $0x30] sm:$0xff] %v2457
      %2490 = vst [vmem:[#allocation3 + $0x38] sm:$0xff] %v2458
      %2491 = vst [vmem:[#allocation3 + $0x40] sm:$0xff] %v2459
      %2492 = vst [vmem:[#allocation3 + $0x48] sm:$0xff] %v2460
      %2493 = vst [vmem:[#allocation3 + $0x50] sm:$0xff] %v2461
      %2494 = vst [vmem:[#allocation3 + $0x58] sm:$0xff] %v2462
      %2495 = vst [vmem:[#allocation3 + $0x60] sm:$0xff] %v2463
      %2496 = vst [vmem:[#allocation3 + $0x68] sm:$0xff] %v2464
      %2497 = vst [vmem:[#allocation3 + $0x70] sm:$0xff] %v2465
      %2498 = vst [vmem:[#allocation3 + $0x78] sm:$0xff] %v2466
      %2499 = vst [vmem:[#allocation3 + $0x80] sm:$0xff] %v2467
      %2500 = vst [vmem:[#allocation3 + $0x88] sm:$0xff] %v2468
      %2501 = vst [vmem:[#allocation3 + $0x90] sm:$0xff] %v2469
      %2502 = vst [vmem:[#allocation3 + $0x98] sm:$0xff] %v2470
      %2503 = vst [vmem:[#allocation3 + $0xa0] sm:$0xff] %v2471
      %2504 = vst [vmem:[#allocation3 + $0xa8] sm:$0xff] %v2472
      %2505 = vst [vmem:[#allocation3 + $0xb0] sm:$0xff] %v2473
      %2506 = vst [vmem:[#allocation3 + $0xb8] sm:$0xff] %v2474
      %2507 = vst [vmem:[#allocation3 + $0xc0] sm:$0xff] %v2475
      %2508 = vst [vmem:[#allocation3 + $0xc8] sm:$0xff] %v2476
      %2509 = vst [vmem:[#allocation3 + $0xd0] sm:$0xff] %v2477
      %2510 = vst [vmem:[#allocation3 + $0xd8] sm:$0xff] %v2478
      %2511 = vst [vmem:[#allocation3 + $0xe0] sm:$0xff] %v2479
      %2512 = vst [vmem:[#allocation3 + $0xe8] sm:$0xff] %v2480
      %2513 = vst [vmem:[#allocation3 + $0xf0] sm:$0xff] %v2481
      %2514 = vst [vmem:[#allocation3 + $0xf8] sm:$0xff] %v2482
      %v2515 = vld [vmem:[#allocation3] sm:$0xff]
      %v2516 = vld [vmem:[#allocation3 + $0x8] sm:$0xff]
      %v2517 = vld [vmem:[#allocation3 + $0x10] sm:$0xff]
      %v2518 = vld [vmem:[#allocation3 + $0x18] sm:$0xff]
      %v2519 = vld [vmem:[#allocation3 + $0x20] sm:$0xff]
      %v2520 = vld [vmem:[#allocation3 + $0x28] sm:$0xff]
      %v2521 = vld [vmem:[#allocation3 + $0x30] sm:$0xff]
      %v2522 = vld [vmem:[#allocation3 + $0x38] sm:$0xff]
      %v2523 = vld [vmem:[#allocation3 + $0x40] sm:$0xff]
      %v2524 = vld [vmem:[#allocation3 + $0x48] sm:$0xff]
      %v2525 = vld [vmem:[#allocation3 + $0x50] sm:$0xff]
      %v2526 = vld [vmem:[#allocation3 + $0x58] sm:$0xff]
      %v2527 = vld [vmem:[#allocation3 + $0x60] sm:$0xff]
      %v2528 = vld [vmem:[#allocation3 + $0x68] sm:$0xff]
      %v2529 = vld [vmem:[#allocation3 + $0x70] sm:$0xff]
      %v2530 = vld [vmem:[#allocation3 + $0x78] sm:$0xff]
      %v2531 = vld [vmem:[#allocation3 + $0x80] sm:$0xff]
      %v2532 = vld [vmem:[#allocation3 + $0x88] sm:$0xff]
      %v2533 = vld [vmem:[#allocation3 + $0x90] sm:$0xff]
      %v2534 = vld [vmem:[#allocation3 + $0x98] sm:$0xff]
      %v2535 = vld [vmem:[#allocation3 + $0xa0] sm:$0xff]
      %v2536 = vld [vmem:[#allocation3 + $0xa8] sm:$0xff]
      %v2537 = vld [vmem:[#allocation3 + $0xb0] sm:$0xff]
      %v2538 = vld [vmem:[#allocation3 + $0xb8] sm:$0xff]
      %v2539 = vld [vmem:[#allocation3 + $0xc0] sm:$0xff]
      %v2540 = vld [vmem:[#allocation3 + $0xc8] sm:$0xff]
      %v2541 = vld [vmem:[#allocation3 + $0xd0] sm:$0xff]
      %v2542 = vld [vmem:[#allocation3 + $0xd8] sm:$0xff]
      %v2543 = vld [vmem:[#allocation3 + $0xe0] sm:$0xff]
      %v2544 = vld [vmem:[#allocation3 + $0xe8] sm:$0xff]
      %v2545 = vld [vmem:[#allocation3 + $0xf0] sm:$0xff]
      %v2546 = vld [vmem:[#allocation3 + $0xf8] sm:$0xff]
      %v2547 = vpack.c.bf16 %v413, %v412
      %s2548 = scalar_lea.vmem %s1, 12
      %v2549 = vld [vmem:[%s2548] sm:$0x3]
      %v2551 = vsel %vm496, %v2547, 0
      %v2554 = vsel %vm545, %v2549, 0
      %2556 = vmatprep.subr.bf16.mxu0 0
      %2557 = vmatpush1.bf16.msra.mxu0 0
      %2558 = vmatprep.subr.bf16.mxu0 0
      %2559 = vmatpush1.bf16.msra.mxu0 0
      %2560 = vmatprep.subr.bf16.mxu0 0
      %2561 = vmatpush1.bf16.msra.mxu0 0
      %2562 = vmatprep.subr.bf16.mxu0 0
      %2563 = vmatpush1.bf16.msra.mxu0 0
      %2564 = vmatprep.subr.bf16.mxu0 0
      %2565 = vmatpush1.bf16.msra.mxu0 0
      %2566 = vmatprep.subr.bf16.mxu0 0
      %2567 = vmatpush1.bf16.msra.mxu0 0
      %2568 = vmatprep.subr.bf16.mxu0 0
      %2569 = vmatpush1.bf16.msra.mxu0 0
      %2570 = vmatprep.subr.bf16.mxu0 0
      %2571 = vmatpush1.bf16.msra.mxu0 %v2554
      %2572 = vmatprep.subr.bf16.mxu0 0
      %2573 = vmatpush2.bf16.msra.mxu0 0
      %2574 = vmatprep.subr.bf16.mxu0 0
      %2575 = vmatpush2.bf16.msra.mxu0 0
      %2576 = vmatprep.subr.bf16.mxu0 0
      %2577 = vmatpush2.bf16.msra.mxu0 0
      %2578 = vmatprep.subr.bf16.mxu0 0
      %2579 = vmatpush2.bf16.msra.mxu0 0
      %2580 = vmatprep.subr.bf16.mxu0 0
      %2581 = vmatpush2.bf16.msra.mxu0 0
      %2582 = vmatprep.subr.bf16.mxu0 0
      %2583 = vmatpush2.bf16.msra.mxu0 0
      %2584 = vmatprep.subr.bf16.mxu0 0
      %2585 = vmatpush2.bf16.msra.mxu0 0
      %2586 = vmatprep.subr.bf16.mxu0 0
      %2587 = vmatpush2.bf16.msra.mxu0 0
      %2588 = vmatprep.mubr.bf16.mxu0 0
      %2589 = vmatmul.mubr.bf16.gmra.mxu0 %v504
      %v2590 = vpop.f32.mrf.mxu0
      %v2591 = vadd.f32 0.0, %v2590
      %v2592 = vpop.f32.mrf.mxu0
      %v2593 = vpop.f32.mrf.mxu0
      %v2594 = vadd.f32 0.0, %v2593
      %v2595 = vpop.f32.mrf.mxu0
      %2596 = vmatprep.mubr.bf16.mxu0 0
      %2597 = vmatmul.mubr.bf16.gmra.mxu0 %v507
      %v2598 = vpop.f32.mrf.mxu0
      %v2599 = vadd.f32 0.0, %v2598
      %v2600 = vpop.f32.mrf.mxu0
      %v2601 = vpop.f32.mrf.mxu0
      %v2602 = vadd.f32 0.0, %v2601
      %v2603 = vpop.f32.mrf.mxu0
      %2604 = vmatprep.mubr.bf16.mxu0 0
      %2605 = vmatmul.mubr.bf16.gmra.mxu0 %v510
      %v2606 = vpop.f32.mrf.mxu0
      %v2607 = vadd.f32 0.0, %v2606
      %v2608 = vpop.f32.mrf.mxu0
      %v2609 = vpop.f32.mrf.mxu0
      %v2610 = vadd.f32 0.0, %v2609
      %v2611 = vpop.f32.mrf.mxu0
      %2612 = vmatprep.mubr.bf16.mxu0 0
      %2613 = vmatmul.mubr.bf16.gmra.mxu0 %v513
      %v2614 = vpop.f32.mrf.mxu0
      %v2615 = vadd.f32 0.0, %v2614
      %v2616 = vpop.f32.mrf.mxu0
      %v2617 = vpop.f32.mrf.mxu0
      %v2618 = vadd.f32 0.0, %v2617
      %v2619 = vpop.f32.mrf.mxu0
      %2620 = vmatprep.mubr.bf16.mxu0 0
      %2621 = vmatmul.mubr.bf16.gmra.mxu0 %v516
      %v2622 = vpop.f32.mrf.mxu0
      %v2623 = vadd.f32 0.0, %v2622
      %v2624 = vpop.f32.mrf.mxu0
      %v2625 = vpop.f32.mrf.mxu0
      %v2626 = vadd.f32 0.0, %v2625
      %v2627 = vpop.f32.mrf.mxu0
      %2628 = vmatprep.mubr.bf16.mxu0 0
      %2629 = vmatmul.mubr.bf16.gmra.mxu0 %v519
      %v2630 = vpop.f32.mrf.mxu0
      %v2631 = vadd.f32 0.0, %v2630
      %v2632 = vpop.f32.mrf.mxu0
      %v2633 = vpop.f32.mrf.mxu0
      %v2634 = vadd.f32 0.0, %v2633
      %v2635 = vpop.f32.mrf.mxu0
      %2636 = vmatprep.mubr.bf16.mxu0 0
      %2637 = vmatmul.mubr.bf16.gmra.mxu0 %v522
      %v2638 = vpop.f32.mrf.mxu0
      %v2639 = vadd.f32 0.0, %v2638
      %v2640 = vpop.f32.mrf.mxu0
      %v2641 = vpop.f32.mrf.mxu0
      %v2642 = vadd.f32 0.0, %v2641
      %v2643 = vpop.f32.mrf.mxu0
      %2644 = vmatprep.mubr.bf16.mxu0 0
      %2645 = vmatmul.mubr.bf16.gmra.mxu0 %v525
      %v2646 = vpop.f32.mrf.mxu0
      %v2647 = vadd.f32 0.0, %v2646
      %v2648 = vpop.f32.mrf.mxu0
      %v2649 = vpop.f32.mrf.mxu0
      %v2650 = vadd.f32 0.0, %v2649
      %v2651 = vpop.f32.mrf.mxu0
      %2652 = vmatprep.mubr.bf16.mxu0 0
      %2653 = vmatmul.mubr.bf16.gmra.mxu0 %v528
      %v2654 = vpop.f32.mrf.mxu0
      %v2655 = vadd.f32 0.0, %v2654
      %v2656 = vpop.f32.mrf.mxu0
      %v2657 = vpop.f32.mrf.mxu0
      %v2658 = vadd.f32 0.0, %v2657
      %v2659 = vpop.f32.mrf.mxu0
      %2660 = vmatprep.mubr.bf16.mxu0 0
      %2661 = vmatmul.mubr.bf16.gmra.mxu0 %v531
      %v2662 = vpop.f32.mrf.mxu0
      %v2663 = vadd.f32 0.0, %v2662
      %v2664 = vpop.f32.mrf.mxu0
      %v2665 = vpop.f32.mrf.mxu0
      %v2666 = vadd.f32 0.0, %v2665
      %v2667 = vpop.f32.mrf.mxu0
      %2668 = vmatprep.mubr.bf16.mxu0 0
      %2669 = vmatmul.mubr.bf16.gmra.mxu0 %v534
      %v2670 = vpop.f32.mrf.mxu0
      %v2671 = vadd.f32 0.0, %v2670
      %v2672 = vpop.f32.mrf.mxu0
      %v2673 = vpop.f32.mrf.mxu0
      %v2674 = vadd.f32 0.0, %v2673
      %v2675 = vpop.f32.mrf.mxu0
      %2676 = vmatprep.mubr.bf16.mxu0 0
      %2677 = vmatmul.mubr.bf16.gmra.mxu0 %v537
      %v2678 = vpop.f32.mrf.mxu0
      %v2679 = vadd.f32 0.0, %v2678
      %v2680 = vpop.f32.mrf.mxu0
      %v2681 = vpop.f32.mrf.mxu0
      %v2682 = vadd.f32 0.0, %v2681
      %v2683 = vpop.f32.mrf.mxu0
      %2684 = vmatprep.mubr.bf16.mxu0 0
      %2685 = vmatmul.mubr.bf16.gmra.mxu0 %v540
      %v2686 = vpop.f32.mrf.mxu0
      %v2687 = vadd.f32 0.0, %v2686
      %v2688 = vpop.f32.mrf.mxu0
      %v2689 = vpop.f32.mrf.mxu0
      %v2690 = vadd.f32 0.0, %v2689
      %v2691 = vpop.f32.mrf.mxu0
      %2692 = vmatprep.mubr.bf16.mxu0 0
      %2693 = vmatmul.mubr.bf16.gmra.mxu0 %v543
      %v2694 = vpop.f32.mrf.mxu0
      %v2695 = vadd.f32 0.0, %v2694
      %v2696 = vpop.f32.mrf.mxu0
      %v2697 = vpop.f32.mrf.mxu0
      %v2698 = vadd.f32 0.0, %v2697
      %v2699 = vpop.f32.mrf.mxu0
      %2700 = vmatprep.mubr.bf16.mxu0 0
      %2701 = vmatmul.mubr.bf16.gmra.mxu0 %v1736
      %v2702 = vpop.f32.mrf.mxu0
      %v2703 = vadd.f32 0.0, %v2702
      %v2704 = vpop.f32.mrf.mxu0
      %v2705 = vpop.f32.mrf.mxu0
      %v2706 = vadd.f32 0.0, %v2705
      %v2707 = vpop.f32.mrf.mxu0
      %2708 = vmatprep.mubr.bf16.mxu0 0
      %2709 = vmatmul.mubr.bf16.gmra.mxu0 %v2551
      %v2710 = vpop.f32.mrf.mxu0
      %v2711 = vadd.f32 0.0, %v2710
      %v2712 = vpop.f32.mrf.mxu0
      %v2713 = vpop.f32.mrf.mxu0
      %v2714 = vadd.f32 0.0, %v2713
      %v2715 = vpop.f32.mrf.mxu0
      %2716 = vdwg.mxu0
      %v2717 = vadd.f32 %v2515, %v2591
      %v2718 = vadd.f32 %v2516, %v2594
      %v2719 = vadd.f32 %v2517, %v2599
      %v2720 = vadd.f32 %v2518, %v2602
      %v2721 = vadd.f32 %v2519, %v2607
      %v2722 = vadd.f32 %v2520, %v2610
      %v2723 = vadd.f32 %v2521, %v2615
      %v2724 = vadd.f32 %v2522, %v2618
      %v2725 = vadd.f32 %v2523, %v2623
      %v2726 = vadd.f32 %v2524, %v2626
      %v2727 = vadd.f32 %v2525, %v2631
      %v2728 = vadd.f32 %v2526, %v2634
      %v2729 = vadd.f32 %v2527, %v2639
      %v2730 = vadd.f32 %v2528, %v2642
      %v2731 = vadd.f32 %v2529, %v2647
      %v2732 = vadd.f32 %v2530, %v2650
      %v2733 = vadd.f32 %v2531, %v2655
      %v2734 = vadd.f32 %v2532, %v2658
      %v2735 = vadd.f32 %v2533, %v2663
      %v2736 = vadd.f32 %v2534, %v2666
      %v2737 = vadd.f32 %v2535, %v2671
      %v2738 = vadd.f32 %v2536, %v2674
      %v2739 = vadd.f32 %v2537, %v2679
      %v2740 = vadd.f32 %v2538, %v2682
      %v2741 = vadd.f32 %v2539, %v2687
      %v2742 = vadd.f32 %v2540, %v2690
      %v2743 = vadd.f32 %v2541, %v2695
      %v2744 = vadd.f32 %v2542, %v2698
      %v2745 = vadd.f32 %v2543, %v2703
      %v2746 = vadd.f32 %v2544, %v2706
      %v2747 = vadd.f32 %v2545, %v2711
      %v2748 = vadd.f32 %v2546, %v2714
      %2749 = vst [vmem:[#allocation3] sm:$0xff] %v2717
      %2750 = vst [vmem:[#allocation3 + $0x8] sm:$0xff] %v2718
      %2751 = vst [vmem:[#allocation3 + $0x10] sm:$0xff] %v2719
      %2752 = vst [vmem:[#allocation3 + $0x18] sm:$0xff] %v2720
      %2753 = vst [vmem:[#allocation3 + $0x20] sm:$0xff] %v2721
      %2754 = vst [vmem:[#allocation3 + $0x28] sm:$0xff] %v2722
      %2755 = vst [vmem:[#allocation3 + $0x30] sm:$0xff] %v2723
      %2756 = vst [vmem:[#allocation3 + $0x38] sm:$0xff] %v2724
      %2757 = vst [vmem:[#allocation3 + $0x40] sm:$0xff] %v2725
      %2758 = vst [vmem:[#allocation3 + $0x48] sm:$0xff] %v2726
      %2759 = vst [vmem:[#allocation3 + $0x50] sm:$0xff] %v2727
      %2760 = vst [vmem:[#allocation3 + $0x58] sm:$0xff] %v2728
      %2761 = vst [vmem:[#allocation3 + $0x60] sm:$0xff] %v2729
      %2762 = vst [vmem:[#allocation3 + $0x68] sm:$0xff] %v2730
      %2763 = vst [vmem:[#allocation3 + $0x70] sm:$0xff] %v2731
      %2764 = vst [vmem:[#allocation3 + $0x78] sm:$0xff] %v2732
      %2765 = vst [vmem:[#allocation3 + $0x80] sm:$0xff] %v2733
      %2766 = vst [vmem:[#allocation3 + $0x88] sm:$0xff] %v2734
      %2767 = vst [vmem:[#allocation3 + $0x90] sm:$0xff] %v2735
      %2768 = vst [vmem:[#allocation3 + $0x98] sm:$0xff] %v2736
      %2769 = vst [vmem:[#allocation3 + $0xa0] sm:$0xff] %v2737
      %2770 = vst [vmem:[#allocation3 + $0xa8] sm:$0xff] %v2738
      %2771 = vst [vmem:[#allocation3 + $0xb0] sm:$0xff] %v2739
      %2772 = vst [vmem:[#allocation3 + $0xb8] sm:$0xff] %v2740
      %2773 = vst [vmem:[#allocation3 + $0xc0] sm:$0xff] %v2741
      %2774 = vst [vmem:[#allocation3 + $0xc8] sm:$0xff] %v2742
      %2775 = vst [vmem:[#allocation3 + $0xd0] sm:$0xff] %v2743
      %2776 = vst [vmem:[#allocation3 + $0xd8] sm:$0xff] %v2744
      %2777 = vst [vmem:[#allocation3 + $0xe0] sm:$0xff] %v2745
      %2778 = vst [vmem:[#allocation3 + $0xe8] sm:$0xff] %v2746
      %2779 = vst [vmem:[#allocation3 + $0xf0] sm:$0xff] %v2747
      %2780 = vst [vmem:[#allocation3 + $0xf8] sm:$0xff] %v2748
      %v2784 = vrot.slane %v412, 1
      %v2785 = vrot.slane %v413, 1
      %v2786 = vsel %vm822, %v2784, %v2785
      %v2787 = vrot.slane %v414, 1
      %v2788 = vsel %vm822, %v2785, %v2787
      %v2791 = vld [vmem:[#allocation3] sm:$0xff]
      %v2792 = vld [vmem:[#allocation3 + $0x8] sm:$0xff]
      %v2793 = vld [vmem:[#allocation3 + $0x10] sm:$0xff]
      %v2794 = vld [vmem:[#allocation3 + $0x18] sm:$0xff]
      %v2795 = vld [vmem:[#allocation3 + $0x20] sm:$0xff]
      %v2796 = vld [vmem:[#allocation3 + $0x28] sm:$0xff]
      %v2797 = vld [vmem:[#allocation3 + $0x30] sm:$0xff]
      %v2798 = vld [vmem:[#allocation3 + $0x38] sm:$0xff]
      %v2799 = vld [vmem:[#allocation3 + $0x40] sm:$0xff]
      %v2800 = vld [vmem:[#allocation3 + $0x48] sm:$0xff]
      %v2801 = vld [vmem:[#allocation3 + $0x50] sm:$0xff]
      %v2802 = vld [vmem:[#allocation3 + $0x58] sm:$0xff]
      %v2803 = vld [vmem:[#allocation3 + $0x60] sm:$0xff]
      %v2804 = vld [vmem:[#allocation3 + $0x68] sm:$0xff]
      %v2805 = vld [vmem:[#allocation3 + $0x70] sm:$0xff]
      %v2806 = vld [vmem:[#allocation3 + $0x78] sm:$0xff]
      %v2807 = vld [vmem:[#allocation3 + $0x80] sm:$0xff]
      %v2808 = vld [vmem:[#allocation3 + $0x88] sm:$0xff]
      %v2809 = vld [vmem:[#allocation3 + $0x90] sm:$0xff]
      %v2810 = vld [vmem:[#allocation3 + $0x98] sm:$0xff]
      %v2811 = vld [vmem:[#allocation3 + $0xa0] sm:$0xff]
      %v2812 = vld [vmem:[#allocation3 + $0xa8] sm:$0xff]
      %v2813 = vld [vmem:[#allocation3 + $0xb0] sm:$0xff]
      %v2814 = vld [vmem:[#allocation3 + $0xb8] sm:$0xff]
      %v2815 = vld [vmem:[#allocation3 + $0xc0] sm:$0xff]
      %v2816 = vld [vmem:[#allocation3 + $0xc8] sm:$0xff]
      %v2817 = vld [vmem:[#allocation3 + $0xd0] sm:$0xff]
      %v2818 = vld [vmem:[#allocation3 + $0xd8] sm:$0xff]
      %v2819 = vld [vmem:[#allocation3 + $0xe0] sm:$0xff]
      %v2820 = vld [vmem:[#allocation3 + $0xe8] sm:$0xff]
      %v2821 = vld [vmem:[#allocation3 + $0xf0] sm:$0xff]
      %v2822 = vld [vmem:[#allocation3 + $0xf8] sm:$0xff]
      %v2823 = vpack.c.bf16 %v2788, %v2786
      %s2824 = scalar_lea.vmem %s1, 14
      %v2825 = vld [vmem:[%s2824] sm:$0x3]
      %v2827 = vsel %vm496, %v2823, 0
      %v2830 = vsel %vm545, %v2825, 0
      %2832 = vmatprep.subr.bf16.mxu0 0
      %2833 = vmatpush1.bf16.msra.mxu0 0
      %2834 = vmatprep.subr.bf16.mxu0 0
      %2835 = vmatpush1.bf16.msra.mxu0 0
      %2836 = vmatprep.subr.bf16.mxu0 0
      %2837 = vmatpush1.bf16.msra.mxu0 0
      %2838 = vmatprep.subr.bf16.mxu0 0
      %2839 = vmatpush1.bf16.msra.mxu0 0
      %2840 = vmatprep.subr.bf16.mxu0 0
      %2841 = vmatpush1.bf16.msra.mxu0 0
      %2842 = vmatprep.subr.bf16.mxu0 0
      %2843 = vmatpush1.bf16.msra.mxu0 0
      %2844 = vmatprep.subr.bf16.mxu0 0
      %2845 = vmatpush1.bf16.msra.mxu0 0
      %2846 = vmatprep.subr.bf16.mxu0 0
      %2847 = vmatpush1.bf16.msra.mxu0 %v2830
      %2848 = vmatprep.subr.bf16.mxu0 0
      %2849 = vmatpush2.bf16.msra.mxu0 0
      %2850 = vmatprep.subr.bf16.mxu0 0
      %2851 = vmatpush2.bf16.msra.mxu0 0
      %2852 = vmatprep.subr.bf16.mxu0 0
      %2853 = vmatpush2.bf16.msra.mxu0 0
      %2854 = vmatprep.subr.bf16.mxu0 0
      %2855 = vmatpush2.bf16.msra.mxu0 0
      %2856 = vmatprep.subr.bf16.mxu0 0
      %2857 = vmatpush2.bf16.msra.mxu0 0
      %2858 = vmatprep.subr.bf16.mxu0 0
      %2859 = vmatpush2.bf16.msra.mxu0 0
      %2860 = vmatprep.subr.bf16.mxu0 0
      %2861 = vmatpush2.bf16.msra.mxu0 0
      %2862 = vmatprep.subr.bf16.mxu0 0
      %2863 = vmatpush2.bf16.msra.mxu0 0
      %2864 = vmatprep.mubr.bf16.mxu0 0
      %2865 = vmatmul.mubr.bf16.gmra.mxu0 %v992
      %v2866 = vpop.f32.mrf.mxu0
      %v2867 = vadd.f32 0.0, %v2866
      %v2868 = vpop.f32.mrf.mxu0
      %v2869 = vpop.f32.mrf.mxu0
      %v2870 = vadd.f32 0.0, %v2869
      %v2871 = vpop.f32.mrf.mxu0
      %2872 = vmatprep.mubr.bf16.mxu0 0
      %2873 = vmatmul.mubr.bf16.gmra.mxu0 %v995
      %v2874 = vpop.f32.mrf.mxu0
      %v2875 = vadd.f32 0.0, %v2874
      %v2876 = vpop.f32.mrf.mxu0
      %v2877 = vpop.f32.mrf.mxu0
      %v2878 = vadd.f32 0.0, %v2877
      %v2879 = vpop.f32.mrf.mxu0
      %2880 = vmatprep.mubr.bf16.mxu0 0
      %2881 = vmatmul.mubr.bf16.gmra.mxu0 %v998
      %v2882 = vpop.f32.mrf.mxu0
      %v2883 = vadd.f32 0.0, %v2882
      %v2884 = vpop.f32.mrf.mxu0
      %v2885 = vpop.f32.mrf.mxu0
      %v2886 = vadd.f32 0.0, %v2885
      %v2887 = vpop.f32.mrf.mxu0
      %2888 = vmatprep.mubr.bf16.mxu0 0
      %2889 = vmatmul.mubr.bf16.gmra.mxu0 %v1001
      %v2890 = vpop.f32.mrf.mxu0
      %v2891 = vadd.f32 0.0, %v2890
      %v2892 = vpop.f32.mrf.mxu0
      %v2893 = vpop.f32.mrf.mxu0
      %v2894 = vadd.f32 0.0, %v2893
      %v2895 = vpop.f32.mrf.mxu0
      %2896 = vmatprep.mubr.bf16.mxu0 0
      %2897 = vmatmul.mubr.bf16.gmra.mxu0 %v1004
      %v2898 = vpop.f32.mrf.mxu0
      %v2899 = vadd.f32 0.0, %v2898
      %v2900 = vpop.f32.mrf.mxu0
      %v2901 = vpop.f32.mrf.mxu0
      %v2902 = vadd.f32 0.0, %v2901
      %v2903 = vpop.f32.mrf.mxu0
      %2904 = vmatprep.mubr.bf16.mxu0 0
      %2905 = vmatmul.mubr.bf16.gmra.mxu0 %v1007
      %v2906 = vpop.f32.mrf.mxu0
      %v2907 = vadd.f32 0.0, %v2906
      %v2908 = vpop.f32.mrf.mxu0
      %v2909 = vpop.f32.mrf.mxu0
      %v2910 = vadd.f32 0.0, %v2909
      %v2911 = vpop.f32.mrf.mxu0
      %2912 = vmatprep.mubr.bf16.mxu0 0
      %2913 = vmatmul.mubr.bf16.gmra.mxu0 %v1010
      %v2914 = vpop.f32.mrf.mxu0
      %v2915 = vadd.f32 0.0, %v2914
      %v2916 = vpop.f32.mrf.mxu0
      %v2917 = vpop.f32.mrf.mxu0
      %v2918 = vadd.f32 0.0, %v2917
      %v2919 = vpop.f32.mrf.mxu0
      %2920 = vmatprep.mubr.bf16.mxu0 0
      %2921 = vmatmul.mubr.bf16.gmra.mxu0 %v1013
      %v2922 = vpop.f32.mrf.mxu0
      %v2923 = vadd.f32 0.0, %v2922
      %v2924 = vpop.f32.mrf.mxu0
      %v2925 = vpop.f32.mrf.mxu0
      %v2926 = vadd.f32 0.0, %v2925
      %v2927 = vpop.f32.mrf.mxu0
      %2928 = vmatprep.mubr.bf16.mxu0 0
      %2929 = vmatmul.mubr.bf16.gmra.mxu0 %v1016
      %v2930 = vpop.f32.mrf.mxu0
      %v2931 = vadd.f32 0.0, %v2930
      %v2932 = vpop.f32.mrf.mxu0
      %v2933 = vpop.f32.mrf.mxu0
      %v2934 = vadd.f32 0.0, %v2933
      %v2935 = vpop.f32.mrf.mxu0
      %2936 = vmatprep.mubr.bf16.mxu0 0
      %2937 = vmatmul.mubr.bf16.gmra.mxu0 %v1019
      %v2938 = vpop.f32.mrf.mxu0
      %v2939 = vadd.f32 0.0, %v2938
      %v2940 = vpop.f32.mrf.mxu0
      %v2941 = vpop.f32.mrf.mxu0
      %v2942 = vadd.f32 0.0, %v2941
      %v2943 = vpop.f32.mrf.mxu0
      %2944 = vmatprep.mubr.bf16.mxu0 0
      %2945 = vmatmul.mubr.bf16.gmra.mxu0 %v1022
      %v2946 = vpop.f32.mrf.mxu0
      %v2947 = vadd.f32 0.0, %v2946
      %v2948 = vpop.f32.mrf.mxu0
      %v2949 = vpop.f32.mrf.mxu0
      %v2950 = vadd.f32 0.0, %v2949
      %v2951 = vpop.f32.mrf.mxu0
      %2952 = vmatprep.mubr.bf16.mxu0 0
      %2953 = vmatmul.mubr.bf16.gmra.mxu0 %v1025
      %v2954 = vpop.f32.mrf.mxu0
      %v2955 = vadd.f32 0.0, %v2954
      %v2956 = vpop.f32.mrf.mxu0
      %v2957 = vpop.f32.mrf.mxu0
      %v2958 = vadd.f32 0.0, %v2957
      %v2959 = vpop.f32.mrf.mxu0
      %2960 = vmatprep.mubr.bf16.mxu0 0
      %2961 = vmatmul.mubr.bf16.gmra.mxu0 %v1028
      %v2962 = vpop.f32.mrf.mxu0
      %v2963 = vadd.f32 0.0, %v2962
      %v2964 = vpop.f32.mrf.mxu0
      %v2965 = vpop.f32.mrf.mxu0
      %v2966 = vadd.f32 0.0, %v2965
      %v2967 = vpop.f32.mrf.mxu0
      %2968 = vmatprep.mubr.bf16.mxu0 0
      %2969 = vmatmul.mubr.bf16.gmra.mxu0 %v1031
      %v2970 = vpop.f32.mrf.mxu0
      %v2971 = vadd.f32 0.0, %v2970
      %v2972 = vpop.f32.mrf.mxu0
      %v2973 = vpop.f32.mrf.mxu0
      %v2974 = vadd.f32 0.0, %v2973
      %v2975 = vpop.f32.mrf.mxu0
      %2976 = vmatprep.mubr.bf16.mxu0 0
      %2977 = vmatmul.mubr.bf16.gmra.mxu0 %v2012
      %v2978 = vpop.f32.mrf.mxu0
      %v2979 = vadd.f32 0.0, %v2978
      %v2980 = vpop.f32.mrf.mxu0
      %v2981 = vpop.f32.mrf.mxu0
      %v2982 = vadd.f32 0.0, %v2981
      %v2983 = vpop.f32.mrf.mxu0
      %2984 = vmatprep.mubr.bf16.mxu0 0
      %2985 = vmatmul.mubr.bf16.gmra.mxu0 %v2827
      %v2986 = vpop.f32.mrf.mxu0
      %v2987 = vadd.f32 0.0, %v2986
      %v2988 = vpop.f32.mrf.mxu0
      %v2989 = vpop.f32.mrf.mxu0
      %v2990 = vadd.f32 0.0, %v2989
      %v2991 = vpop.f32.mrf.mxu0
      %2992 = vdwg.mxu0
      %v2993 = vadd.f32 %v2791, %v2867
      %v2994 = vadd.f32 %v2792, %v2870
      %v2995 = vadd.f32 %v2793, %v2875
      %v2996 = vadd.f32 %v2794, %v2878
      %v2997 = vadd.f32 %v2795, %v2883
      %v2998 = vadd.f32 %v2796, %v2886
      %v2999 = vadd.f32 %v2797, %v2891
      %v3000 = vadd.f32 %v2798, %v2894
      %v3001 = vadd.f32 %v2799, %v2899
      %v3002 = vadd.f32 %v2800, %v2902
      %v3003 = vadd.f32 %v2801, %v2907
      %v3004 = vadd.f32 %v2802, %v2910
      %v3005 = vadd.f32 %v2803, %v2915
      %v3006 = vadd.f32 %v2804, %v2918
      %v3007 = vadd.f32 %v2805, %v2923
      %v3008 = vadd.f32 %v2806, %v2926
      %v3009 = vadd.f32 %v2807, %v2931
      %v3010 = vadd.f32 %v2808, %v2934
      %v3011 = vadd.f32 %v2809, %v2939
      %v3012 = vadd.f32 %v2810, %v2942
      %v3013 = vadd.f32 %v2811, %v2947
      %v3014 = vadd.f32 %v2812, %v2950
      %v3015 = vadd.f32 %v2813, %v2955
      %v3016 = vadd.f32 %v2814, %v2958
      %v3017 = vadd.f32 %v2815, %v2963
      %v3018 = vadd.f32 %v2816, %v2966
      %v3019 = vadd.f32 %v2817, %v2971
      %v3020 = vadd.f32 %v2818, %v2974
      %v3021 = vadd.f32 %v2819, %v2979
      %v3022 = vadd.f32 %v2820, %v2982
      %v3023 = vadd.f32 %v2821, %v2987
      %v3024 = vadd.f32 %v2822, %v2990
      %3025 = vst [vmem:[#allocation3] sm:$0xff] %v2993
      %3026 = vst [vmem:[#allocation3 + $0x8] sm:$0xff] %v2994
      %3027 = vst [vmem:[#allocation3 + $0x10] sm:$0xff] %v2995
      %3028 = vst [vmem:[#allocation3 + $0x18] sm:$0xff] %v2996
      %3029 = vst [vmem:[#allocation3 + $0x20] sm:$0xff] %v2997
      %3030 = vst [vmem:[#allocation3 + $0x28] sm:$0xff] %v2998
      %3031 = vst [vmem:[#allocation3 + $0x30] sm:$0xff] %v2999
      %3032 = vst [vmem:[#allocation3 + $0x38] sm:$0xff] %v3000
      %3033 = vst [vmem:[#allocation3 + $0x40] sm:$0xff] %v3001
      %3034 = vst [vmem:[#allocation3 + $0x48] sm:$0xff] %v3002
      %3035 = vst [vmem:[#allocation3 + $0x50] sm:$0xff] %v3003
      %3036 = vst [vmem:[#allocation3 + $0x58] sm:$0xff] %v3004
      %3037 = vst [vmem:[#allocation3 + $0x60] sm:$0xff] %v3005
      %3038 = vst [vmem:[#allocation3 + $0x68] sm:$0xff] %v3006
      %3039 = vst [vmem:[#allocation3 + $0x70] sm:$0xff] %v3007
      %3040 = vst [vmem:[#allocation3 + $0x78] sm:$0xff] %v3008
      %3041 = vst [vmem:[#allocation3 + $0x80] sm:$0xff] %v3009
      %3042 = vst [vmem:[#allocation3 + $0x88] sm:$0xff] %v3010
      %3043 = vst [vmem:[#allocation3 + $0x90] sm:$0xff] %v3011
      %3044 = vst [vmem:[#allocation3 + $0x98] sm:$0xff] %v3012
      %3045 = vst [vmem:[#allocation3 + $0xa0] sm:$0xff] %v3013
      %3046 = vst [vmem:[#allocation3 + $0xa8] sm:$0xff] %v3014
      %3047 = vst [vmem:[#allocation3 + $0xb0] sm:$0xff] %v3015
      %3048 = vst [vmem:[#allocation3 + $0xb8] sm:$0xff] %v3016
      %3049 = vst [vmem:[#allocation3 + $0xc0] sm:$0xff] %v3017
      %3050 = vst [vmem:[#allocation3 + $0xc8] sm:$0xff] %v3018
      %3051 = vst [vmem:[#allocation3 + $0xd0] sm:$0xff] %v3019
      %3052 = vst [vmem:[#allocation3 + $0xd8] sm:$0xff] %v3020
      %3053 = vst [vmem:[#allocation3 + $0xe0] sm:$0xff] %v3021
      %3054 = vst [vmem:[#allocation3 + $0xe8] sm:$0xff] %v3022
      %3055 = vst [vmem:[#allocation3 + $0xf0] sm:$0xff] %v3023
      %3056 = vst [vmem:[#allocation3 + $0xf8] sm:$0xff] %v3024
      %v3057 = vrot.slane %v412, 2
      %v3058 = vrot.slane %v413, 2
      %v3059 = vsel %vm1261, %v3057, %v3058
      %v3060 = vrot.slane %v414, 2
      %v3061 = vsel %vm1261, %v3058, %v3060
      %v3064 = vld [vmem:[#allocation3] sm:$0xff]
      %v3065 = vld [vmem:[#allocation3 + $0x8] sm:$0xff]
      %v3066 = vld [vmem:[#allocation3 + $0x10] sm:$0xff]
      %v3067 = vld [vmem:[#allocation3 + $0x18] sm:$0xff]
      %v3068 = vld [vmem:[#allocation3 + $0x20] sm:$0xff]
      %v3069 = vld [vmem:[#allocation3 + $0x28] sm:$0xff]
      %v3070 = vld [vmem:[#allocation3 + $0x30] sm:$0xff]
      %v3071 = vld [vmem:[#allocation3 + $0x38] sm:$0xff]
      %v3072 = vld [vmem:[#allocation3 + $0x40] sm:$0xff]
      %v3073 = vld [vmem:[#allocation3 + $0x48] sm:$0xff]
      %v3074 = vld [vmem:[#allocation3 + $0x50] sm:$0xff]
      %v3075 = vld [vmem:[#allocation3 + $0x58] sm:$0xff]
      %v3076 = vld [vmem:[#allocation3 + $0x60] sm:$0xff]
      %v3077 = vld [vmem:[#allocation3 + $0x68] sm:$0xff]
      %v3078 = vld [vmem:[#allocation3 + $0x70] sm:$0xff]
      %v3079 = vld [vmem:[#allocation3 + $0x78] sm:$0xff]
      %v3080 = vld [vmem:[#allocation3 + $0x80] sm:$0xff]
      %v3081 = vld [vmem:[#allocation3 + $0x88] sm:$0xff]
      %v3082 = vld [vmem:[#allocation3 + $0x90] sm:$0xff]
      %v3083 = vld [vmem:[#allocation3 + $0x98] sm:$0xff]
      %v3084 = vld [vmem:[#allocation3 + $0xa0] sm:$0xff]
      %v3085 = vld [vmem:[#allocation3 + $0xa8] sm:$0xff]
      %v3086 = vld [vmem:[#allocation3 + $0xb0] sm:$0xff]
      %v3087 = vld [vmem:[#allocation3 + $0xb8] sm:$0xff]
      %v3088 = vld [vmem:[#allocation3 + $0xc0] sm:$0xff]
      %v3089 = vld [vmem:[#allocation3 + $0xc8] sm:$0xff]
      %v3090 = vld [vmem:[#allocation3 + $0xd0] sm:$0xff]
      %v3091 = vld [vmem:[#allocation3 + $0xd8] sm:$0xff]
      %v3092 = vld [vmem:[#allocation3 + $0xe0] sm:$0xff]
      %v3093 = vld [vmem:[#allocation3 + $0xe8] sm:$0xff]
      %v3094 = vld [vmem:[#allocation3 + $0xf0] sm:$0xff]
      %v3095 = vld [vmem:[#allocation3 + $0xf8] sm:$0xff]
      %v3096 = vpack.c.bf16 %v3061, %v3059
      %s3097 = scalar_lea.vmem %s1, 16
      %v3098 = vld [vmem:[%s3097] sm:$0x3]
      %v3100 = vsel %vm496, %v3096, 0
      %v3103 = vsel %vm545, %v3098, 0
      %3105 = vmatprep.subr.bf16.mxu0 0
      %3106 = vmatpush1.bf16.msra.mxu0 0
      %3107 = vmatprep.subr.bf16.mxu0 0
      %3108 = vmatpush1.bf16.msra.mxu0 0
      %3109 = vmatprep.subr.bf16.mxu0 0
      %3110 = vmatpush1.bf16.msra.mxu0 0
      %3111 = vmatprep.subr.bf16.mxu0 0
      %3112 = vmatpush1.bf16.msra.mxu0 0
      %3113 = vmatprep.subr.bf16.mxu0 0
      %3114 = vmatpush1.bf16.msra.mxu0 0
      %3115 = vmatprep.subr.bf16.mxu0 0
      %3116 = vmatpush1.bf16.msra.mxu0 0
      %3117 = vmatprep.subr.bf16.mxu0 0
      %3118 = vmatpush1.bf16.msra.mxu0 0
      %3119 = vmatprep.subr.bf16.mxu0 0
      %3120 = vmatpush1.bf16.msra.mxu0 %v3103
      %3121 = vmatprep.subr.bf16.mxu0 0
      %3122 = vmatpush2.bf16.msra.mxu0 0
      %3123 = vmatprep.subr.bf16.mxu0 0
      %3124 = vmatpush2.bf16.msra.mxu0 0
      %3125 = vmatprep.subr.bf16.mxu0 0
      %3126 = vmatpush2.bf16.msra.mxu0 0
      %3127 = vmatprep.subr.bf16.mxu0 0
      %3128 = vmatpush2.bf16.msra.mxu0 0
      %3129 = vmatprep.subr.bf16.mxu0 0
      %3130 = vmatpush2.bf16.msra.mxu0 0
      %3131 = vmatprep.subr.bf16.mxu0 0
      %3132 = vmatpush2.bf16.msra.mxu0 0
      %3133 = vmatprep.subr.bf16.mxu0 0
      %3134 = vmatpush2.bf16.msra.mxu0 0
      %3135 = vmatprep.subr.bf16.mxu0 0
      %3136 = vmatpush2.bf16.msra.mxu0 0
      %3137 = vmatprep.mubr.bf16.mxu0 0
      %3138 = vmatmul.mubr.bf16.gmra.mxu0 %v1431
      %v3139 = vpop.f32.mrf.mxu0
      %v3140 = vadd.f32 0.0, %v3139
      %v3141 = vpop.f32.mrf.mxu0
      %v3142 = vpop.f32.mrf.mxu0
      %v3143 = vadd.f32 0.0, %v3142
      %v3144 = vpop.f32.mrf.mxu0
      %3145 = vmatprep.mubr.bf16.mxu0 0
      %3146 = vmatmul.mubr.bf16.gmra.mxu0 %v1434
      %v3147 = vpop.f32.mrf.mxu0
      %v3148 = vadd.f32 0.0, %v3147
      %v3149 = vpop.f32.mrf.mxu0
      %v3150 = vpop.f32.mrf.mxu0
      %v3151 = vadd.f32 0.0, %v3150
      %v3152 = vpop.f32.mrf.mxu0
      %3153 = vmatprep.mubr.bf16.mxu0 0
      %3154 = vmatmul.mubr.bf16.gmra.mxu0 %v1437
      %v3155 = vpop.f32.mrf.mxu0
      %v3156 = vadd.f32 0.0, %v3155
      %v3157 = vpop.f32.mrf.mxu0
      %v3158 = vpop.f32.mrf.mxu0
      %v3159 = vadd.f32 0.0, %v3158
      %v3160 = vpop.f32.mrf.mxu0
      %3161 = vmatprep.mubr.bf16.mxu0 0
      %3162 = vmatmul.mubr.bf16.gmra.mxu0 %v1440
      %v3163 = vpop.f32.mrf.mxu0
      %v3164 = vadd.f32 0.0, %v3163
      %v3165 = vpop.f32.mrf.mxu0
      %v3166 = vpop.f32.mrf.mxu0
      %v3167 = vadd.f32 0.0, %v3166
      %v3168 = vpop.f32.mrf.mxu0
      %3169 = vmatprep.mubr.bf16.mxu0 0
      %3170 = vmatmul.mubr.bf16.gmra.mxu0 %v1443
      %v3171 = vpop.f32.mrf.mxu0
      %v3172 = vadd.f32 0.0, %v3171
      %v3173 = vpop.f32.mrf.mxu0
      %v3174 = vpop.f32.mrf.mxu0
      %v3175 = vadd.f32 0.0, %v3174
      %v3176 = vpop.f32.mrf.mxu0
      %3177 = vmatprep.mubr.bf16.mxu0 0
      %3178 = vmatmul.mubr.bf16.gmra.mxu0 %v1446
      %v3179 = vpop.f32.mrf.mxu0
      %v3180 = vadd.f32 0.0, %v3179
      %v3181 = vpop.f32.mrf.mxu0
      %v3182 = vpop.f32.mrf.mxu0
      %v3183 = vadd.f32 0.0, %v3182
      %v3184 = vpop.f32.mrf.mxu0
      %3185 = vmatprep.mubr.bf16.mxu0 0
      %3186 = vmatmul.mubr.bf16.gmra.mxu0 %v1449
      %v3187 = vpop.f32.mrf.mxu0
      %v3188 = vadd.f32 0.0, %v3187
      %v3189 = vpop.f32.mrf.mxu0
      %v3190 = vpop.f32.mrf.mxu0
      %v3191 = vadd.f32 0.0, %v3190
      %v3192 = vpop.f32.mrf.mxu0
      %3193 = vmatprep.mubr.bf16.mxu0 0
      %3194 = vmatmul.mubr.bf16.gmra.mxu0 %v1452
      %v3195 = vpop.f32.mrf.mxu0
      %v3196 = vadd.f32 0.0, %v3195
      %v3197 = vpop.f32.mrf.mxu0
      %v3198 = vpop.f32.mrf.mxu0
      %v3199 = vadd.f32 0.0, %v3198
      %v3200 = vpop.f32.mrf.mxu0
      %3201 = vmatprep.mubr.bf16.mxu0 0
      %3202 = vmatmul.mubr.bf16.gmra.mxu0 %v1455
      %v3203 = vpop.f32.mrf.mxu0
      %v3204 = vadd.f32 0.0, %v3203
      %v3205 = vpop.f32.mrf.mxu0
      %v3206 = vpop.f32.mrf.mxu0
      %v3207 = vadd.f32 0.0, %v3206
      %v3208 = vpop.f32.mrf.mxu0
      %3209 = vmatprep.mubr.bf16.mxu0 0
      %3210 = vmatmul.mubr.bf16.gmra.mxu0 %v1458
      %v3211 = vpop.f32.mrf.mxu0
      %v3212 = vadd.f32 0.0, %v3211
      %v3213 = vpop.f32.mrf.mxu0
      %v3214 = vpop.f32.mrf.mxu0
      %v3215 = vadd.f32 0.0, %v3214
      %v3216 = vpop.f32.mrf.mxu0
      %3217 = vmatprep.mubr.bf16.mxu0 0
      %3218 = vmatmul.mubr.bf16.gmra.mxu0 %v1461
      %v3219 = vpop.f32.mrf.mxu0
      %v3220 = vadd.f32 0.0, %v3219
      %v3221 = vpop.f32.mrf.mxu0
      %v3222 = vpop.f32.mrf.mxu0
      %v3223 = vadd.f32 0.0, %v3222
      %v3224 = vpop.f32.mrf.mxu0
      %3225 = vmatprep.mubr.bf16.mxu0 0
      %3226 = vmatmul.mubr.bf16.gmra.mxu0 %v1464
      %v3227 = vpop.f32.mrf.mxu0
      %v3228 = vadd.f32 0.0, %v3227
      %v3229 = vpop.f32.mrf.mxu0
      %v3230 = vpop.f32.mrf.mxu0
      %v3231 = vadd.f32 0.0, %v3230
      %v3232 = vpop.f32.mrf.mxu0
      %3233 = vmatprep.mubr.bf16.mxu0 0
      %3234 = vmatmul.mubr.bf16.gmra.mxu0 %v1467
      %v3235 = vpop.f32.mrf.mxu0
      %v3236 = vadd.f32 0.0, %v3235
      %v3237 = vpop.f32.mrf.mxu0
      %v3238 = vpop.f32.mrf.mxu0
      %v3239 = vadd.f32 0.0, %v3238
      %v3240 = vpop.f32.mrf.mxu0
      %3241 = vmatprep.mubr.bf16.mxu0 0
      %3242 = vmatmul.mubr.bf16.gmra.mxu0 %v1470
      %v3243 = vpop.f32.mrf.mxu0
      %v3244 = vadd.f32 0.0, %v3243
      %v3245 = vpop.f32.mrf.mxu0
      %v3246 = vpop.f32.mrf.mxu0
      %v3247 = vadd.f32 0.0, %v3246
      %v3248 = vpop.f32.mrf.mxu0
      %3249 = vmatprep.mubr.bf16.mxu0 0
      %3250 = vmatmul.mubr.bf16.gmra.mxu0 %v2285
      %v3251 = vpop.f32.mrf.mxu0
      %v3252 = vadd.f32 0.0, %v3251
      %v3253 = vpop.f32.mrf.mxu0
      %v3254 = vpop.f32.mrf.mxu0
      %v3255 = vadd.f32 0.0, %v3254
      %v3256 = vpop.f32.mrf.mxu0
      %3257 = vmatprep.mubr.bf16.mxu0 0
      %3258 = vmatmul.mubr.bf16.gmra.mxu0 %v3100
      %v3259 = vpop.f32.mrf.mxu0
      %v3260 = vadd.f32 0.0, %v3259
      %v3261 = vpop.f32.mrf.mxu0
      %v3262 = vpop.f32.mrf.mxu0
      %v3263 = vadd.f32 0.0, %v3262
      %v3264 = vpop.f32.mrf.mxu0
      %3265 = vdwg.mxu0
      %v3266 = vadd.f32 %v3064, %v3140
      %v3267 = vadd.f32 %v3065, %v3143
      %v3268 = vadd.f32 %v3066, %v3148
      %v3269 = vadd.f32 %v3067, %v3151
      %v3270 = vadd.f32 %v3068, %v3156
      %v3271 = vadd.f32 %v3069, %v3159
      %v3272 = vadd.f32 %v3070, %v3164
      %v3273 = vadd.f32 %v3071, %v3167
      %v3274 = vadd.f32 %v3072, %v3172
      %v3275 = vadd.f32 %v3073, %v3175
      %v3276 = vadd.f32 %v3074, %v3180
      %v3277 = vadd.f32 %v3075, %v3183
      %v3278 = vadd.f32 %v3076, %v3188
      %v3279 = vadd.f32 %v3077, %v3191
      %v3280 = vadd.f32 %v3078, %v3196
      %v3281 = vadd.f32 %v3079, %v3199
      %v3282 = vadd.f32 %v3080, %v3204
      %v3283 = vadd.f32 %v3081, %v3207
      %v3284 = vadd.f32 %v3082, %v3212
      %v3285 = vadd.f32 %v3083, %v3215
      %v3286 = vadd.f32 %v3084, %v3220
      %v3287 = vadd.f32 %v3085, %v3223
      %v3288 = vadd.f32 %v3086, %v3228
      %v3289 = vadd.f32 %v3087, %v3231
      %v3290 = vadd.f32 %v3088, %v3236
      %v3291 = vadd.f32 %v3089, %v3239
      %v3292 = vadd.f32 %v3090, %v3244
      %v3293 = vadd.f32 %v3091, %v3247
      %v3294 = vadd.f32 %v3092, %v3252
      %v3295 = vadd.f32 %v3093, %v3255
      %v3296 = vadd.f32 %v3094, %v3260
      %v3297 = vadd.f32 %v3095, %v3263
      %3298 = vst [vmem:[#allocation3] sm:$0xff] %v3266
      %3299 = vst [vmem:[#allocation3 + $0x8] sm:$0xff] %v3267
      %3300 = vst [vmem:[#allocation3 + $0x10] sm:$0xff] %v3268
      %3301 = vst [vmem:[#allocation3 + $0x18] sm:$0xff] %v3269
      %3302 = vst [vmem:[#allocation3 + $0x20] sm:$0xff] %v3270
      %3303 = vst [vmem:[#allocation3 + $0x28] sm:$0xff] %v3271
      %3304 = vst [vmem:[#allocation3 + $0x30] sm:$0xff] %v3272
      %3305 = vst [vmem:[#allocation3 + $0x38] sm:$0xff] %v3273
      %3306 = vst [vmem:[#allocation3 + $0x40] sm:$0xff] %v3274
      %3307 = vst [vmem:[#allocation3 + $0x48] sm:$0xff] %v3275
      %3308 = vst [vmem:[#allocation3 + $0x50] sm:$0xff] %v3276
      %3309 = vst [vmem:[#allocation3 + $0x58] sm:$0xff] %v3277
      %3310 = vst [vmem:[#allocation3 + $0x60] sm:$0xff] %v3278
      %3311 = vst [vmem:[#allocation3 + $0x68] sm:$0xff] %v3279
      %3312 = vst [vmem:[#allocation3 + $0x70] sm:$0xff] %v3280
      %3313 = vst [vmem:[#allocation3 + $0x78] sm:$0xff] %v3281
      %3314 = vst [vmem:[#allocation3 + $0x80] sm:$0xff] %v3282
      %3315 = vst [vmem:[#allocation3 + $0x88] sm:$0xff] %v3283
      %3316 = vst [vmem:[#allocation3 + $0x90] sm:$0xff] %v3284
      %3317 = vst [vmem:[#allocation3 + $0x98] sm:$0xff] %v3285
      %3318 = vst [vmem:[#allocation3 + $0xa0] sm:$0xff] %v3286
      %3319 = vst [vmem:[#allocation3 + $0xa8] sm:$0xff] %v3287
      %3320 = vst [vmem:[#allocation3 + $0xb0] sm:$0xff] %v3288
      %3321 = vst [vmem:[#allocation3 + $0xb8] sm:$0xff] %v3289
      %3322 = vst [vmem:[#allocation3 + $0xc0] sm:$0xff] %v3290
      %3323 = vst [vmem:[#allocation3 + $0xc8] sm:$0xff] %v3291
      %3324 = vst [vmem:[#allocation3 + $0xd0] sm:$0xff] %v3292
      %3325 = vst [vmem:[#allocation3 + $0xd8] sm:$0xff] %v3293
      %3326 = vst [vmem:[#allocation3 + $0xe0] sm:$0xff] %v3294
      %3327 = vst [vmem:[#allocation3 + $0xe8] sm:$0xff] %v3295
      %3328 = vst [vmem:[#allocation3 + $0xf0] sm:$0xff] %v3296
      %3329 = vst [vmem:[#allocation3 + $0xf8] sm:$0xff] %v3297
      %v3330 = vld [vmem:[#allocation3] sm:$0xff]
      %v3331 = vld [vmem:[#allocation3 + $0x8] sm:$0xff]
      %v3332 = vld [vmem:[#allocation3 + $0x10] sm:$0xff]
      %v3333 = vld [vmem:[#allocation3 + $0x18] sm:$0xff]
      %v3334 = vld [vmem:[#allocation3 + $0x20] sm:$0xff]
      %v3335 = vld [vmem:[#allocation3 + $0x28] sm:$0xff]
      %v3336 = vld [vmem:[#allocation3 + $0x30] sm:$0xff]
      %v3337 = vld [vmem:[#allocation3 + $0x38] sm:$0xff]
      %v3338 = vld [vmem:[#allocation3 + $0x40] sm:$0xff]
      %v3339 = vld [vmem:[#allocation3 + $0x48] sm:$0xff]
      %v3340 = vld [vmem:[#allocation3 + $0x50] sm:$0xff]
      %v3341 = vld [vmem:[#allocation3 + $0x58] sm:$0xff]
      %v3342 = vld [vmem:[#allocation3 + $0x60] sm:$0xff]
      %v3343 = vld [vmem:[#allocation3 + $0x68] sm:$0xff]
      %v3344 = vld [vmem:[#allocation3 + $0x70] sm:$0xff]
      %v3345 = vld [vmem:[#allocation3 + $0x78] sm:$0xff]
      %v3346 = vld [vmem:[#allocation3 + $0x80] sm:$0xff]
      %v3347 = vld [vmem:[#allocation3 + $0x88] sm:$0xff]
      %v3348 = vld [vmem:[#allocation3 + $0x90] sm:$0xff]
      %v3349 = vld [vmem:[#allocation3 + $0x98] sm:$0xff]
      %v3350 = vld [vmem:[#allocation3 + $0xa0] sm:$0xff]
      %v3351 = vld [vmem:[#allocation3 + $0xa8] sm:$0xff]
      %v3352 = vld [vmem:[#allocation3 + $0xb0] sm:$0xff]
      %v3353 = vld [vmem:[#allocation3 + $0xb8] sm:$0xff]
      %v3354 = vld [vmem:[#allocation3 + $0xc0] sm:$0xff]
      %v3355 = vld [vmem:[#allocation3 + $0xc8] sm:$0xff]
      %v3356 = vld [vmem:[#allocation3 + $0xd0] sm:$0xff]
      %v3357 = vld [vmem:[#allocation3 + $0xd8] sm:$0xff]
      %v3358 = vld [vmem:[#allocation3 + $0xe0] sm:$0xff]
      %v3359 = vld [vmem:[#allocation3 + $0xe8] sm:$0xff]
      %v3360 = vld [vmem:[#allocation3 + $0xf0] sm:$0xff]
      %v3361 = vld [vmem:[#allocation3 + $0xf8] sm:$0xff]
      %v3362 = vld [vmem:[%s4] sm:$0x1]
      %v3364 = vlaneseq
      %v3365 = vshrl.u32 %v3364, 7
      %v3366 = vsub.s32 0, %v3365
      %v3367 = vrot.slane %v3362, %v3366
      %v3369 = vmul.f32 %v3330, %v3367
      %v3370 = vmul.f32 %v3331, %v3367
      %v3371 = vmul.f32 %v3332, %v3367
      %v3372 = vmul.f32 %v3333, %v3367
      %v3373 = vmul.f32 %v3334, %v3367
      %v3374 = vmul.f32 %v3335, %v3367
      %v3375 = vmul.f32 %v3336, %v3367
      %v3376 = vmul.f32 %v3337, %v3367
      %v3377 = vmul.f32 %v3338, %v3367
      %v3378 = vmul.f32 %v3339, %v3367
      %v3379 = vmul.f32 %v3340, %v3367
      %v3380 = vmul.f32 %v3341, %v3367
      %v3381 = vmul.f32 %v3342, %v3367
      %v3382 = vmul.f32 %v3343, %v3367
      %v3383 = vmul.f32 %v3344, %v3367
      %v3384 = vmul.f32 %v3345, %v3367
      %v3385 = vmul.f32 %v3346, %v3367
      %v3386 = vmul.f32 %v3347, %v3367
      %v3387 = vmul.f32 %v3348, %v3367
      %v3388 = vmul.f32 %v3349, %v3367
      %v3389 = vmul.f32 %v3350, %v3367
      %v3390 = vmul.f32 %v3351, %v3367
      %v3391 = vmul.f32 %v3352, %v3367
      %v3392 = vmul.f32 %v3353, %v3367
      %v3393 = vmul.f32 %v3354, %v3367
      %v3394 = vmul.f32 %v3355, %v3367
      %v3395 = vmul.f32 %v3356, %v3367
      %v3396 = vmul.f32 %v3357, %v3367
      %v3397 = vmul.f32 %v3358, %v3367
      %v3398 = vmul.f32 %v3359, %v3367
      %v3399 = vmul.f32 %v3360, %v3367
      %v3400 = vmul.f32 %v3361, %v3367
      %v3401 = vld [vmem:[%s5] sm:$0x1]
      %v3403 = vlaneseq
      %v3404 = vshrl.u32 %v3403, 7
      %v3405 = vsub.s32 0, %v3404
      %v3406 = vrot.slane %v3401, %v3405
      %v3408 = vadd.f32 %v3369, %v3406
      %v3409 = vadd.f32 %v3370, %v3406
      %v3410 = vadd.f32 %v3371, %v3406
      %v3411 = vadd.f32 %v3372, %v3406
      %v3412 = vadd.f32 %v3373, %v3406
      %v3413 = vadd.f32 %v3374, %v3406
      %v3414 = vadd.f32 %v3375, %v3406
      %v3415 = vadd.f32 %v3376, %v3406
      %v3416 = vadd.f32 %v3377, %v3406
      %v3417 = vadd.f32 %v3378, %v3406
      %v3418 = vadd.f32 %v3379, %v3406
      %v3419 = vadd.f32 %v3380, %v3406
      %v3420 = vadd.f32 %v3381, %v3406
      %v3421 = vadd.f32 %v3382, %v3406
      %v3422 = vadd.f32 %v3383, %v3406
      %v3423 = vadd.f32 %v3384, %v3406
      %v3424 = vadd.f32 %v3385, %v3406
      %v3425 = vadd.f32 %v3386, %v3406
      %v3426 = vadd.f32 %v3387, %v3406
      %v3427 = vadd.f32 %v3388, %v3406
      %v3428 = vadd.f32 %v3389, %v3406
      %v3429 = vadd.f32 %v3390, %v3406
      %v3430 = vadd.f32 %v3391, %v3406
      %v3431 = vadd.f32 %v3392, %v3406
      %v3432 = vadd.f32 %v3393, %v3406
      %v3433 = vadd.f32 %v3394, %v3406
      %v3434 = vadd.f32 %v3395, %v3406
      %v3435 = vadd.f32 %v3396, %v3406
      %v3436 = vadd.f32 %v3397, %v3406
      %v3437 = vadd.f32 %v3398, %v3406
      %v3438 = vadd.f32 %v3399, %v3406
      %v3439 = vadd.f32 %v3400, %v3406
      %v3440 = vmax.f32 %v3408, 0.0
      %v3441 = vmax.f32 %v3409, 0.0
      %v3442 = vmax.f32 %v3410, 0.0
      %v3443 = vmax.f32 %v3411, 0.0
      %v3444 = vmax.f32 %v3412, 0.0
      %v3445 = vmax.f32 %v3413, 0.0
      %v3446 = vmax.f32 %v3414, 0.0
      %v3447 = vmax.f32 %v3415, 0.0
      %v3448 = vmax.f32 %v3416, 0.0
      %v3449 = vmax.f32 %v3417, 0.0
      %v3450 = vmax.f32 %v3418, 0.0
      %v3451 = vmax.f32 %v3419, 0.0
      %v3452 = vmax.f32 %v3420, 0.0
      %v3453 = vmax.f32 %v3421, 0.0
      %v3454 = vmax.f32 %v3422, 0.0
      %v3455 = vmax.f32 %v3423, 0.0
      %v3456 = vmax.f32 %v3424, 0.0
      %v3457 = vmax.f32 %v3425, 0.0
      %v3458 = vmax.f32 %v3426, 0.0
      %v3459 = vmax.f32 %v3427, 0.0
      %v3460 = vmax.f32 %v3428, 0.0
      %v3461 = vmax.f32 %v3429, 0.0
      %v3462 = vmax.f32 %v3430, 0.0
      %v3463 = vmax.f32 %v3431, 0.0
      %v3464 = vmax.f32 %v3432, 0.0
      %v3465 = vmax.f32 %v3433, 0.0
      %v3466 = vmax.f32 %v3434, 0.0
      %v3467 = vmax.f32 %v3435, 0.0
      %v3468 = vmax.f32 %v3436, 0.0
      %v3469 = vmax.f32 %v3437, 0.0
      %v3470 = vmax.f32 %v3438, 0.0
      %v3471 = vmax.f32 %v3439, 0.0
      %v3472 = vld [vmem:[%s2] sm:$0x3]
      %v3474 = vsel %vm545, %v3472, 0
      %3476 = vmatprep.subr.bf16.mxu0 0
      %3477 = vmatpush1.bf16.msra.mxu0 0
      %3478 = vmatprep.subr.bf16.mxu0 0
      %3479 = vmatpush1.bf16.msra.mxu0 0
      %3480 = vmatprep.subr.bf16.mxu0 0
      %3481 = vmatpush1.bf16.msra.mxu0 0
      %3482 = vmatprep.subr.bf16.mxu0 0
      %3483 = vmatpush1.bf16.msra.mxu0 0
      %3484 = vmatprep.subr.bf16.mxu0 0
      %3485 = vmatpush1.bf16.msra.mxu0 0
      %3486 = vmatprep.subr.bf16.mxu0 0
      %3487 = vmatpush1.bf16.msra.mxu0 0
      %3488 = vmatprep.subr.bf16.mxu0 0
      %3489 = vmatpush1.bf16.msra.mxu0 0
      %3490 = vmatprep.subr.bf16.mxu0 0
      %3491 = vmatpush1.bf16.msra.mxu0 %v3474
      %3492 = vmatprep.subr.bf16.mxu0 0
      %3493 = vmatpush2.bf16.msra.mxu0 0
      %3494 = vmatprep.subr.bf16.mxu0 0
      %3495 = vmatpush2.bf16.msra.mxu0 0
      %3496 = vmatprep.subr.bf16.mxu0 0
      %3497 = vmatpush2.bf16.msra.mxu0 0
      %3498 = vmatprep.subr.bf16.mxu0 0
      %3499 = vmatpush2.bf16.msra.mxu0 0
      %3500 = vmatprep.subr.bf16.mxu0 0
      %3501 = vmatpush2.bf16.msra.mxu0 0
      %3502 = vmatprep.subr.bf16.mxu0 0
      %3503 = vmatpush2.bf16.msra.mxu0 0
      %3504 = vmatprep.subr.bf16.mxu0 0
      %3505 = vmatpush2.bf16.msra.mxu0 0
      %3506 = vmatprep.subr.bf16.mxu0 0
      %3507 = vmatpush2.bf16.msra.mxu0 0
      %3508 = vmatprep.mubr.bf16.mxu0 0
      %3509 = vmatmul.mubr.bf16.gmra.mxu0 %v989
      %v3510 = vpop.f32.mrf.mxu0
      %v3511 = vadd.f32 0.0, %v3510
      %v3512 = vpop.f32.mrf.mxu0
      %v3513 = vpop.f32.mrf.mxu0
      %v3514 = vadd.f32 0.0, %v3513
      %v3515 = vpop.f32.mrf.mxu0
      %3516 = vmatprep.mubr.bf16.mxu0 0
      %3517 = vmatmul.mubr.bf16.gmra.mxu0 %v992
      %v3518 = vpop.f32.mrf.mxu0
      %v3519 = vadd.f32 0.0, %v3518
      %v3520 = vpop.f32.mrf.mxu0
      %v3521 = vpop.f32.mrf.mxu0
      %v3522 = vadd.f32 0.0, %v3521
      %v3523 = vpop.f32.mrf.mxu0
      %3524 = vmatprep.mubr.bf16.mxu0 0
      %3525 = vmatmul.mubr.bf16.gmra.mxu0 %v995
      %v3526 = vpop.f32.mrf.mxu0
      %v3527 = vadd.f32 0.0, %v3526
      %v3528 = vpop.f32.mrf.mxu0
      %v3529 = vpop.f32.mrf.mxu0
      %v3530 = vadd.f32 0.0, %v3529
      %v3531 = vpop.f32.mrf.mxu0
      %3532 = vmatprep.mubr.bf16.mxu0 0
      %3533 = vmatmul.mubr.bf16.gmra.mxu0 %v998
      %v3534 = vpop.f32.mrf.mxu0
      %v3535 = vadd.f32 0.0, %v3534
      %v3536 = vpop.f32.mrf.mxu0
      %v3537 = vpop.f32.mrf.mxu0
      %v3538 = vadd.f32 0.0, %v3537
      %v3539 = vpop.f32.mrf.mxu0
      %3540 = vmatprep.mubr.bf16.mxu0 0
      %3541 = vmatmul.mubr.bf16.gmra.mxu0 %v1001
      %v3542 = vpop.f32.mrf.mxu0
      %v3543 = vadd.f32 0.0, %v3542
      %v3544 = vpop.f32.mrf.mxu0
      %v3545 = vpop.f32.mrf.mxu0
      %v3546 = vadd.f32 0.0, %v3545
      %v3547 = vpop.f32.mrf.mxu0
      %3548 = vmatprep.mubr.bf16.mxu0 0
      %3549 = vmatmul.mubr.bf16.gmra.mxu0 %v1004
      %v3550 = vpop.f32.mrf.mxu0
      %v3551 = vadd.f32 0.0, %v3550
      %v3552 = vpop.f32.mrf.mxu0
      %v3553 = vpop.f32.mrf.mxu0
      %v3554 = vadd.f32 0.0, %v3553
      %v3555 = vpop.f32.mrf.mxu0
      %3556 = vmatprep.mubr.bf16.mxu0 0
      %3557 = vmatmul.mubr.bf16.gmra.mxu0 %v1007
      %v3558 = vpop.f32.mrf.mxu0
      %v3559 = vadd.f32 0.0, %v3558
      %v3560 = vpop.f32.mrf.mxu0
      %v3561 = vpop.f32.mrf.mxu0
      %v3562 = vadd.f32 0.0, %v3561
      %v3563 = vpop.f32.mrf.mxu0
      %3564 = vmatprep.mubr.bf16.mxu0 0
      %3565 = vmatmul.mubr.bf16.gmra.mxu0 %v1010
      %v3566 = vpop.f32.mrf.mxu0
      %v3567 = vadd.f32 0.0, %v3566
      %v3568 = vpop.f32.mrf.mxu0
      %v3569 = vpop.f32.mrf.mxu0
      %v3570 = vadd.f32 0.0, %v3569
      %v3571 = vpop.f32.mrf.mxu0
      %3572 = vmatprep.mubr.bf16.mxu0 0
      %3573 = vmatmul.mubr.bf16.gmra.mxu0 %v1013
      %v3574 = vpop.f32.mrf.mxu0
      %v3575 = vadd.f32 0.0, %v3574
      %v3576 = vpop.f32.mrf.mxu0
      %v3577 = vpop.f32.mrf.mxu0
      %v3578 = vadd.f32 0.0, %v3577
      %v3579 = vpop.f32.mrf.mxu0
      %3580 = vmatprep.mubr.bf16.mxu0 0
      %3581 = vmatmul.mubr.bf16.gmra.mxu0 %v1016
      %v3582 = vpop.f32.mrf.mxu0
      %v3583 = vadd.f32 0.0, %v3582
      %v3584 = vpop.f32.mrf.mxu0
      %v3585 = vpop.f32.mrf.mxu0
      %v3586 = vadd.f32 0.0, %v3585
      %v3587 = vpop.f32.mrf.mxu0
      %3588 = vmatprep.mubr.bf16.mxu0 0
      %3589 = vmatmul.mubr.bf16.gmra.mxu0 %v1019
      %v3590 = vpop.f32.mrf.mxu0
      %v3591 = vadd.f32 0.0, %v3590
      %v3592 = vpop.f32.mrf.mxu0
      %v3593 = vpop.f32.mrf.mxu0
      %v3594 = vadd.f32 0.0, %v3593
      %v3595 = vpop.f32.mrf.mxu0
      %3596 = vmatprep.mubr.bf16.mxu0 0
      %3597 = vmatmul.mubr.bf16.gmra.mxu0 %v1022
      %v3598 = vpop.f32.mrf.mxu0
      %v3599 = vadd.f32 0.0, %v3598
      %v3600 = vpop.f32.mrf.mxu0
      %v3601 = vpop.f32.mrf.mxu0
      %v3602 = vadd.f32 0.0, %v3601
      %v3603 = vpop.f32.mrf.mxu0
      %3604 = vmatprep.mubr.bf16.mxu0 0
      %3605 = vmatmul.mubr.bf16.gmra.mxu0 %v1025
      %v3606 = vpop.f32.mrf.mxu0
      %v3607 = vadd.f32 0.0, %v3606
      %v3608 = vpop.f32.mrf.mxu0
      %v3609 = vpop.f32.mrf.mxu0
      %v3610 = vadd.f32 0.0, %v3609
      %v3611 = vpop.f32.mrf.mxu0
      %3612 = vmatprep.mubr.bf16.mxu0 0
      %3613 = vmatmul.mubr.bf16.gmra.mxu0 %v1028
      %v3614 = vpop.f32.mrf.mxu0
      %v3615 = vadd.f32 0.0, %v3614
      %v3616 = vpop.f32.mrf.mxu0
      %v3617 = vpop.f32.mrf.mxu0
      %v3618 = vadd.f32 0.0, %v3617
      %v3619 = vpop.f32.mrf.mxu0
      %3620 = vmatprep.mubr.bf16.mxu0 0
      %3621 = vmatmul.mubr.bf16.gmra.mxu0 %v1031
      %v3622 = vpop.f32.mrf.mxu0
      %v3623 = vadd.f32 0.0, %v3622
      %v3624 = vpop.f32.mrf.mxu0
      %v3625 = vpop.f32.mrf.mxu0
      %v3626 = vadd.f32 0.0, %v3625
      %v3627 = vpop.f32.mrf.mxu0
      %3628 = vmatprep.mubr.bf16.mxu0 0
      %3629 = vmatmul.mubr.bf16.gmra.mxu0 %v2012
      %v3630 = vpop.f32.mrf.mxu0
      %v3631 = vadd.f32 0.0, %v3630
      %v3632 = vpop.f32.mrf.mxu0
      %v3633 = vpop.f32.mrf.mxu0
      %v3634 = vadd.f32 0.0, %v3633
      %v3635 = vpop.f32.mrf.mxu0
      %3636 = vdwg.mxu0
      %v3637 = vld [vmem:[%s6] sm:$0x1]
      %v3639 = vlaneseq
      %v3640 = vshrl.u32 %v3639, 7
      %v3641 = vsub.s32 0, %v3640
      %v3642 = vrot.slane %v3637, %v3641
      %v3644 = vmul.f32 %v3511, %v3642
      %v3645 = vmul.f32 %v3514, %v3642
      %v3646 = vmul.f32 %v3519, %v3642
      %v3647 = vmul.f32 %v3522, %v3642
      %v3648 = vmul.f32 %v3527, %v3642
      %v3649 = vmul.f32 %v3530, %v3642
      %v3650 = vmul.f32 %v3535, %v3642
      %v3651 = vmul.f32 %v3538, %v3642
      %v3652 = vmul.f32 %v3543, %v3642
      %v3653 = vmul.f32 %v3546, %v3642
      %v3654 = vmul.f32 %v3551, %v3642
      %v3655 = vmul.f32 %v3554, %v3642
      %v3656 = vmul.f32 %v3559, %v3642
      %v3657 = vmul.f32 %v3562, %v3642
      %v3658 = vmul.f32 %v3567, %v3642
      %v3659 = vmul.f32 %v3570, %v3642
      %v3660 = vmul.f32 %v3575, %v3642
      %v3661 = vmul.f32 %v3578, %v3642
      %v3662 = vmul.f32 %v3583, %v3642
      %v3663 = vmul.f32 %v3586, %v3642
      %v3664 = vmul.f32 %v3591, %v3642
      %v3665 = vmul.f32 %v3594, %v3642
      %v3666 = vmul.f32 %v3599, %v3642
      %v3667 = vmul.f32 %v3602, %v3642
      %v3668 = vmul.f32 %v3607, %v3642
      %v3669 = vmul.f32 %v3610, %v3642
      %v3670 = vmul.f32 %v3615, %v3642
      %v3671 = vmul.f32 %v3618, %v3642
      %v3672 = vmul.f32 %v3623, %v3642
      %v3673 = vmul.f32 %v3626, %v3642
      %v3674 = vmul.f32 %v3631, %v3642
      %v3675 = vmul.f32 %v3634, %v3642
      %v3676 = vld [vmem:[%s7] sm:$0x1]
      %v3678 = vlaneseq
      %v3679 = vshrl.u32 %v3678, 7
      %v3680 = vsub.s32 0, %v3679
      %v3681 = vrot.slane %v3676, %v3680
      %v3683 = vadd.f32 %v3644, %v3681
      %v3684 = vadd.f32 %v3645, %v3681
      %v3685 = vadd.f32 %v3646, %v3681
      %v3686 = vadd.f32 %v3647, %v3681
      %v3687 = vadd.f32 %v3648, %v3681
      %v3688 = vadd.f32 %v3649, %v3681
      %v3689 = vadd.f32 %v3650, %v3681
      %v3690 = vadd.f32 %v3651, %v3681
      %v3691 = vadd.f32 %v3652, %v3681
      %v3692 = vadd.f32 %v3653, %v3681
      %v3693 = vadd.f32 %v3654, %v3681
      %v3694 = vadd.f32 %v3655, %v3681
      %v3695 = vadd.f32 %v3656, %v3681
      %v3696 = vadd.f32 %v3657, %v3681
      %v3697 = vadd.f32 %v3658, %v3681
      %v3698 = vadd.f32 %v3659, %v3681
      %v3699 = vadd.f32 %v3660, %v3681
      %v3700 = vadd.f32 %v3661, %v3681
      %v3701 = vadd.f32 %v3662, %v3681
      %v3702 = vadd.f32 %v3663, %v3681
      %v3703 = vadd.f32 %v3664, %v3681
      %v3704 = vadd.f32 %v3665, %v3681
      %v3705 = vadd.f32 %v3666, %v3681
      %v3706 = vadd.f32 %v3667, %v3681
      %v3707 = vadd.f32 %v3668, %v3681
      %v3708 = vadd.f32 %v3669, %v3681
      %v3709 = vadd.f32 %v3670, %v3681
      %v3710 = vadd.f32 %v3671, %v3681
      %v3711 = vadd.f32 %v3672, %v3681
      %v3712 = vadd.f32 %v3673, %v3681
      %v3713 = vadd.f32 %v3674, %v3681
      %v3714 = vadd.f32 %v3675, %v3681
      %3715 = vst [vmem:[#allocation2] sm:$0xff] 0.0
      %3716 = vst [vmem:[#allocation2 + $0x8] sm:$0xff] 0.0
      %3717 = vst [vmem:[#allocation2 + $0x10] sm:$0xff] 0.0
      %3718 = vst [vmem:[#allocation2 + $0x18] sm:$0xff] 0.0
      %3719 = vst [vmem:[#allocation2 + $0x20] sm:$0xff] 0.0
      %3720 = vst [vmem:[#allocation2 + $0x28] sm:$0xff] 0.0
      %3721 = vst [vmem:[#allocation2 + $0x30] sm:$0xff] 0.0
      %3722 = vst [vmem:[#allocation2 + $0x38] sm:$0xff] 0.0
      %3723 = vst [vmem:[#allocation2 + $0x40] sm:$0xff] 0.0
      %3724 = vst [vmem:[#allocation2 + $0x48] sm:$0xff] 0.0
      %3725 = vst [vmem:[#allocation2 + $0x50] sm:$0xff] 0.0
      %3726 = vst [vmem:[#allocation2 + $0x58] sm:$0xff] 0.0
      %3727 = vst [vmem:[#allocation2 + $0x60] sm:$0xff] 0.0
      %3728 = vst [vmem:[#allocation2 + $0x68] sm:$0xff] 0.0
      %3729 = vst [vmem:[#allocation2 + $0x70] sm:$0xff] 0.0
      %3730 = vst [vmem:[#allocation2 + $0x78] sm:$0xff] 0.0
      %3731 = vst [vmem:[#allocation2 + $0x80] sm:$0xff] 0.0
      %3732 = vst [vmem:[#allocation2 + $0x88] sm:$0xff] 0.0
      %3733 = vst [vmem:[#allocation2 + $0x90] sm:$0xff] 0.0
      %3734 = vst [vmem:[#allocation2 + $0x98] sm:$0xff] 0.0
      %3735 = vst [vmem:[#allocation2 + $0xa0] sm:$0xff] 0.0
      %3736 = vst [vmem:[#allocation2 + $0xa8] sm:$0xff] 0.0
      %3737 = vst [vmem:[#allocation2 + $0xb0] sm:$0xff] 0.0
      %3738 = vst [vmem:[#allocation2 + $0xb8] sm:$0xff] 0.0
      %3739 = vst [vmem:[#allocation2 + $0xc0] sm:$0xff] 0.0
      %3740 = vst [vmem:[#allocation2 + $0xc8] sm:$0xff] 0.0
      %3741 = vst [vmem:[#allocation2 + $0xd0] sm:$0xff] 0.0
      %3742 = vst [vmem:[#allocation2 + $0xd8] sm:$0xff] 0.0
      %3743 = vst [vmem:[#allocation2 + $0xe0] sm:$0xff] 0.0
      %3744 = vst [vmem:[#allocation2 + $0xe8] sm:$0xff] 0.0
      %3745 = vst [vmem:[#allocation2 + $0xf0] sm:$0xff] 0.0
      %3746 = vst [vmem:[#allocation2 + $0xf8] sm:$0xff] 0.0
      %3747 = vst [vmem:[#allocation2 + $0x100] sm:$0xff] 0.0
      %3748 = vst [vmem:[#allocation2 + $0x108] sm:$0xff] 0.0
      %3749 = vst [vmem:[#allocation2 + $0x110] sm:$0xff] 0.0
      %3750 = vst [vmem:[#allocation2 + $0x118] sm:$0xff] 0.0
      %3751 = vst [vmem:[#allocation2 + $0x120] sm:$0xff] 0.0
      %3752 = vst [vmem:[#allocation2 + $0x128] sm:$0xff] 0.0
      %3753 = vst [vmem:[#allocation2 + $0x130] sm:$0xff] 0.0
      %3754 = vst [vmem:[#allocation2 + $0x138] sm:$0xff] 0.0
      %3755 = vst [vmem:[#allocation2 + $0x140] sm:$0xff] 0.0
      %3756 = vst [vmem:[#allocation2 + $0x148] sm:$0xff] 0.0
      %3757 = vst [vmem:[#allocation2 + $0x150] sm:$0xff] 0.0
      %3758 = vst [vmem:[#allocation2 + $0x158] sm:$0xff] 0.0
      %3759 = vst [vmem:[#allocation2 + $0x160] sm:$0xff] 0.0
      %3760 = vst [vmem:[#allocation2 + $0x168] sm:$0xff] 0.0
      %3761 = vst [vmem:[#allocation2 + $0x170] sm:$0xff] 0.0
      %3762 = vst [vmem:[#allocation2 + $0x178] sm:$0xff] 0.0
      %3763 = vst [vmem:[#allocation2 + $0x180] sm:$0xff] 0.0
      %3764 = vst [vmem:[#allocation2 + $0x188] sm:$0xff] 0.0
      %3765 = vst [vmem:[#allocation2 + $0x190] sm:$0xff] 0.0
      %3766 = vst [vmem:[#allocation2 + $0x198] sm:$0xff] 0.0
      %3767 = vst [vmem:[#allocation2 + $0x1a0] sm:$0xff] 0.0
      %3768 = vst [vmem:[#allocation2 + $0x1a8] sm:$0xff] 0.0
      %3769 = vst [vmem:[#allocation2 + $0x1b0] sm:$0xff] 0.0
      %3770 = vst [vmem:[#allocation2 + $0x1b8] sm:$0xff] 0.0
      %3771 = vst [vmem:[#allocation2 + $0x1c0] sm:$0xff] 0.0
      %3772 = vst [vmem:[#allocation2 + $0x1c8] sm:$0xff] 0.0
      %3773 = vst [vmem:[#allocation2 + $0x1d0] sm:$0xff] 0.0
      %3774 = vst [vmem:[#allocation2 + $0x1d8] sm:$0xff] 0.0
      %3775 = vst [vmem:[#allocation2 + $0x1e0] sm:$0xff] 0.0
      %3776 = vst [vmem:[#allocation2 + $0x1e8] sm:$0xff] 0.0
      %3777 = vst [vmem:[#allocation2 + $0x1f0] sm:$0xff] 0.0
      %3778 = vst [vmem:[#allocation2 + $0x1f8] sm:$0xff] 0.0
      %3779 = vst [vmem:[#allocation2 + $0x200] sm:$0xff] 0.0
      %3780 = vst [vmem:[#allocation2 + $0x208] sm:$0xff] 0.0
      %3781 = vst [vmem:[#allocation2 + $0x210] sm:$0xff] 0.0
      %3782 = vst [vmem:[#allocation2 + $0x218] sm:$0xff] 0.0
      %3783 = vst [vmem:[#allocation2 + $0x220] sm:$0xff] 0.0
      %3784 = vst [vmem:[#allocation2 + $0x228] sm:$0xff] 0.0
      %3785 = vst [vmem:[#allocation2 + $0x230] sm:$0xff] 0.0
      %3786 = vst [vmem:[#allocation2 + $0x238] sm:$0xff] 0.0
      %3787 = vst [vmem:[#allocation2 + $0x240] sm:$0xff] 0.0
      %3788 = vst [vmem:[#allocation2 + $0x248] sm:$0xff] 0.0
      %3789 = vst [vmem:[#allocation2 + $0x250] sm:$0xff] 0.0
      %3790 = vst [vmem:[#allocation2 + $0x258] sm:$0xff] 0.0
      %3791 = vst [vmem:[#allocation2 + $0x260] sm:$0xff] 0.0
      %3792 = vst [vmem:[#allocation2 + $0x268] sm:$0xff] 0.0
      %3793 = vst [vmem:[#allocation2 + $0x270] sm:$0xff] 0.0
      %3794 = vst [vmem:[#allocation2 + $0x278] sm:$0xff] 0.0
      %3795 = vst [vmem:[#allocation2 + $0x280] sm:$0xff] 0.0
      %3796 = vst [vmem:[#allocation2 + $0x288] sm:$0xff] 0.0
      %3797 = vst [vmem:[#allocation2 + $0x290] sm:$0xff] 0.0
      %3798 = vst [vmem:[#allocation2 + $0x298] sm:$0xff] 0.0
      %3799 = vst [vmem:[#allocation2 + $0x2a0] sm:$0xff] 0.0
      %3800 = vst [vmem:[#allocation2 + $0x2a8] sm:$0xff] 0.0
      %3801 = vst [vmem:[#allocation2 + $0x2b0] sm:$0xff] 0.0
      %3802 = vst [vmem:[#allocation2 + $0x2b8] sm:$0xff] 0.0
      %3803 = vst [vmem:[#allocation2 + $0x2c0] sm:$0xff] 0.0
      %3804 = vst [vmem:[#allocation2 + $0x2c8] sm:$0xff] 0.0
      %3805 = vst [vmem:[#allocation2 + $0x2d0] sm:$0xff] 0.0
      %3806 = vst [vmem:[#allocation2 + $0x2d8] sm:$0xff] 0.0
      %3807 = vst [vmem:[#allocation2 + $0x2e0] sm:$0xff] 0.0
      %3808 = vst [vmem:[#allocation2 + $0x2e8] sm:$0xff] 0.0
      %3809 = vst [vmem:[#allocation2 + $0x2f0] sm:$0xff] 0.0
      %3810 = vst [vmem:[#allocation2 + $0x2f8] sm:$0xff] 0.0
      %3811 = vst [vmem:[#allocation2 + $0x300] sm:$0xff] 0.0
      %3812 = vst [vmem:[#allocation2 + $0x308] sm:$0xff] 0.0
      %3813 = vst [vmem:[#allocation2 + $0x310] sm:$0xff] 0.0
      %3814 = vst [vmem:[#allocation2 + $0x318] sm:$0xff] 0.0
      %3815 = vst [vmem:[#allocation2 + $0x320] sm:$0xff] 0.0
      %3816 = vst [vmem:[#allocation2 + $0x328] sm:$0xff] 0.0
      %3817 = vst [vmem:[#allocation2 + $0x330] sm:$0xff] 0.0
      %3818 = vst [vmem:[#allocation2 + $0x338] sm:$0xff] 0.0
      %3819 = vst [vmem:[#allocation2 + $0x340] sm:$0xff] 0.0
      %3820 = vst [vmem:[#allocation2 + $0x348] sm:$0xff] 0.0
      %3821 = vst [vmem:[#allocation2 + $0x350] sm:$0xff] 0.0
      %3822 = vst [vmem:[#allocation2 + $0x358] sm:$0xff] 0.0
      %3823 = vst [vmem:[#allocation2 + $0x360] sm:$0xff] 0.0
      %3824 = vst [vmem:[#allocation2 + $0x368] sm:$0xff] 0.0
      %3825 = vst [vmem:[#allocation2 + $0x370] sm:$0xff] 0.0
      %3826 = vst [vmem:[#allocation2 + $0x378] sm:$0xff] 0.0
      %3827 = vst [vmem:[#allocation2 + $0x380] sm:$0xff] 0.0
      %3828 = vst [vmem:[#allocation2 + $0x388] sm:$0xff] 0.0
      %3829 = vst [vmem:[#allocation2 + $0x390] sm:$0xff] 0.0
      %3830 = vst [vmem:[#allocation2 + $0x398] sm:$0xff] 0.0
      %3831 = vst [vmem:[#allocation2 + $0x3a0] sm:$0xff] 0.0
      %3832 = vst [vmem:[#allocation2 + $0x3a8] sm:$0xff] 0.0
      %3833 = vst [vmem:[#allocation2 + $0x3b0] sm:$0xff] 0.0
      %3834 = vst [vmem:[#allocation2 + $0x3b8] sm:$0xff] 0.0
      %3835 = vst [vmem:[#allocation2 + $0x3c0] sm:$0xff] 0.0
      %3836 = vst [vmem:[#allocation2 + $0x3c8] sm:$0xff] 0.0
      %3837 = vst [vmem:[#allocation2 + $0x3d0] sm:$0xff] 0.0
      %3838 = vst [vmem:[#allocation2 + $0x3d8] sm:$0xff] 0.0
      %3839 = vst [vmem:[#allocation2 + $0x3e0] sm:$0xff] 0.0
      %3840 = vst [vmem:[#allocation2 + $0x3e8] sm:$0xff] 0.0
      %3841 = vst [vmem:[#allocation2 + $0x3f0] sm:$0xff] 0.0
      %3842 = vst [vmem:[#allocation2 + $0x3f8] sm:$0xff] 0.0
      %s3843 = scalar_lea.vmem [#allocation2], 256
      %3844 = vst [vmem:[%s3843 + $0x8] sm:$0xff] %v3440
      %3845 = vst [vmem:[%s3843 + $0x10] sm:$0xff] %v3441
      %3846 = vst [vmem:[%s3843 + $0x28] sm:$0xff] %v3442
      %3847 = vst [vmem:[%s3843 + $0x30] sm:$0xff] %v3443
      %3848 = vst [vmem:[%s3843 + $0x48] sm:$0xff] %v3444
      %3849 = vst [vmem:[%s3843 + $0x50] sm:$0xff] %v3445
      %3850 = vst [vmem:[%s3843 + $0x68] sm:$0xff] %v3446
      %3851 = vst [vmem:[%s3843 + $0x70] sm:$0xff] %v3447
      %3852 = vst [vmem:[%s3843 + $0x88] sm:$0xff] %v3448
      %3853 = vst [vmem:[%s3843 + $0x90] sm:$0xff] %v3449
      %3854 = vst [vmem:[%s3843 + $0xa8] sm:$0xff] %v3450
      %3855 = vst [vmem:[%s3843 + $0xb0] sm:$0xff] %v3451
      %3856 = vst [vmem:[%s3843 + $0xc8] sm:$0xff] %v3452
      %3857 = vst [vmem:[%s3843 + $0xd0] sm:$0xff] %v3453
      %3858 = vst [vmem:[%s3843 + $0xe8] sm:$0xff] %v3454
      %3859 = vst [vmem:[%s3843 + $0xf0] sm:$0xff] %v3455
      %3860 = vst [vmem:[%s3843 + $0x108] sm:$0xff] %v3456
      %3861 = vst [vmem:[%s3843 + $0x110] sm:$0xff] %v3457
      %3862 = vst [vmem:[%s3843 + $0x128] sm:$0xff] %v3458
      %3863 = vst [vmem:[%s3843 + $0x130] sm:$0xff] %v3459
      %3864 = vst [vmem:[%s3843 + $0x148] sm:$0xff] %v3460
      %3865 = vst [vmem:[%s3843 + $0x150] sm:$0xff] %v3461
      %3866 = vst [vmem:[%s3843 + $0x168] sm:$0xff] %v3462
      %3867 = vst [vmem:[%s3843 + $0x170] sm:$0xff] %v3463
      %3868 = vst [vmem:[%s3843 + $0x188] sm:$0xff] %v3464
      %3869 = vst [vmem:[%s3843 + $0x190] sm:$0xff] %v3465
      %3870 = vst [vmem:[%s3843 + $0x1a8] sm:$0xff] %v3466
      %3871 = vst [vmem:[%s3843 + $0x1b0] sm:$0xff] %v3467
      %3872 = vst [vmem:[%s3843 + $0x1c8] sm:$0xff] %v3468
      %3873 = vst [vmem:[%s3843 + $0x1d0] sm:$0xff] %v3469
      %3874 = vst [vmem:[%s3843 + $0x1e8] sm:$0xff] %v3470
      %3875 = vst [vmem:[%s3843 + $0x1f0] sm:$0xff] %v3471
      %3876 = vst [vmem:[#allocation3] sm:$0xff] 0.0
      %3877 = vst [vmem:[#allocation3 + $0x8] sm:$0xff] 0.0
      %3878 = vst [vmem:[#allocation3 + $0x10] sm:$0xff] 0.0
      %3879 = vst [vmem:[#allocation3 + $0x18] sm:$0xff] 0.0
      %3880 = vst [vmem:[#allocation3 + $0x20] sm:$0xff] 0.0
      %3881 = vst [vmem:[#allocation3 + $0x28] sm:$0xff] 0.0
      %3882 = vst [vmem:[#allocation3 + $0x30] sm:$0xff] 0.0
      %3883 = vst [vmem:[#allocation3 + $0x38] sm:$0xff] 0.0
      %3884 = vst [vmem:[#allocation3 + $0x40] sm:$0xff] 0.0
      %3885 = vst [vmem:[#allocation3 + $0x48] sm:$0xff] 0.0
      %3886 = vst [vmem:[#allocation3 + $0x50] sm:$0xff] 0.0
      %3887 = vst [vmem:[#allocation3 + $0x58] sm:$0xff] 0.0
      %3888 = vst [vmem:[#allocation3 + $0x60] sm:$0xff] 0.0
      %3889 = vst [vmem:[#allocation3 + $0x68] sm:$0xff] 0.0
      %3890 = vst [vmem:[#allocation3 + $0x70] sm:$0xff] 0.0
      %3891 = vst [vmem:[#allocation3 + $0x78] sm:$0xff] 0.0
      %3892 = vst [vmem:[#allocation3 + $0x80] sm:$0xff] 0.0
      %3893 = vst [vmem:[#allocation3 + $0x88] sm:$0xff] 0.0
      %3894 = vst [vmem:[#allocation3 + $0x90] sm:$0xff] 0.0
      %3895 = vst [vmem:[#allocation3 + $0x98] sm:$0xff] 0.0
      %3896 = vst [vmem:[#allocation3 + $0xa0] sm:$0xff] 0.0
      %3897 = vst [vmem:[#allocation3 + $0xa8] sm:$0xff] 0.0
      %3898 = vst [vmem:[#allocation3 + $0xb0] sm:$0xff] 0.0
      %3899 = vst [vmem:[#allocation3 + $0xb8] sm:$0xff] 0.0
      %3900 = vst [vmem:[#allocation3 + $0xc0] sm:$0xff] 0.0
      %3901 = vst [vmem:[#allocation3 + $0xc8] sm:$0xff] 0.0
      %3902 = vst [vmem:[#allocation3 + $0xd0] sm:$0xff] 0.0
      %3903 = vst [vmem:[#allocation3 + $0xd8] sm:$0xff] 0.0
      %3904 = vst [vmem:[#allocation3 + $0xe0] sm:$0xff] 0.0
      %3905 = vst [vmem:[#allocation3 + $0xe8] sm:$0xff] 0.0
      %3906 = vst [vmem:[#allocation3 + $0xf0] sm:$0xff] 0.0
      %3907 = vst [vmem:[#allocation3 + $0xf8] sm:$0xff] 0.0
      %s3908 = scalar_lea.vmem [#allocation2], 224
      %v3909 = vld [vmem:[%s3908 + $0x7] sm:$0xff]
      %v3910 = vld [vmem:[%s3908 + $0xf] sm:$0xff]
      %v3911 = vld [vmem:[%s3908 + $0x27] sm:$0xff]
      %v3912 = vld [vmem:[%s3908 + $0x2f] sm:$0xff]
      %v3913 = vld [vmem:[%s3908 + $0x47] sm:$0xff]
      %v3914 = vld [vmem:[%s3908 + $0x4f] sm:$0xff]
      %v3915 = vld [vmem:[%s3908 + $0x67] sm:$0xff]
      %v3916 = vld [vmem:[%s3908 + $0x6f] sm:$0xff]
      %v3917 = vld [vmem:[%s3908 + $0x87] sm:$0xff]
      %v3918 = vld [vmem:[%s3908 + $0x8f] sm:$0xff]
      %v3919 = vld [vmem:[%s3908 + $0xa7] sm:$0xff]
      %v3920 = vld [vmem:[%s3908 + $0xaf] sm:$0xff]
      %v3921 = vld [vmem:[%s3908 + $0xc7] sm:$0xff]
      %v3922 = vld [vmem:[%s3908 + $0xcf] sm:$0xff]
      %v3923 = vld [vmem:[%s3908 + $0xe7] sm:$0xff]
      %v3924 = vld [vmem:[%s3908 + $0xef] sm:$0xff]
      %v3925 = vld [vmem:[%s3908 + $0x107] sm:$0xff]
      %v3926 = vld [vmem:[%s3908 + $0x10f] sm:$0xff]
      %v3927 = vld [vmem:[%s3908 + $0x127] sm:$0xff]
      %v3928 = vld [vmem:[%s3908 + $0x12f] sm:$0xff]
      %v3929 = vld [vmem:[%s3908 + $0x147] sm:$0xff]
      %v3930 = vld [vmem:[%s3908 + $0x14f] sm:$0xff]
      %v3931 = vld [vmem:[%s3908 + $0x167] sm:$0xff]
      %v3932 = vld [vmem:[%s3908 + $0x16f] sm:$0xff]
      %v3933 = vld [vmem:[%s3908 + $0x187] sm:$0xff]
      %v3934 = vld [vmem:[%s3908 + $0x18f] sm:$0xff]
      %v3935 = vld [vmem:[%s3908 + $0x1a7] sm:$0xff]
      %v3936 = vld [vmem:[%s3908 + $0x1af] sm:$0xff]
      %v3937 = vld [vmem:[%s3908 + $0x1c7] sm:$0xff]
      %v3938 = vld [vmem:[%s3908 + $0x1cf] sm:$0xff]
      %v3939 = vld [vmem:[%s3908 + $0x1e7] sm:$0xff]
      %v3940 = vld [vmem:[%s3908 + $0x1ef] sm:$0xff]
      %v3941 = vld [vmem:[#allocation3] sm:$0xff]
      %v3942 = vld [vmem:[#allocation3 + $0x8] sm:$0xff]
      %v3943 = vld [vmem:[#allocation3 + $0x10] sm:$0xff]
      %v3944 = vld [vmem:[#allocation3 + $0x18] sm:$0xff]
      %v3945 = vld [vmem:[#allocation3 + $0x20] sm:$0xff]
      %v3946 = vld [vmem:[#allocation3 + $0x28] sm:$0xff]
      %v3947 = vld [vmem:[#allocation3 + $0x30] sm:$0xff]
      %v3948 = vld [vmem:[#allocation3 + $0x38] sm:$0xff]
      %v3949 = vld [vmem:[#allocation3 + $0x40] sm:$0xff]
      %v3950 = vld [vmem:[#allocation3 + $0x48] sm:$0xff]
      %v3951 = vld [vmem:[#allocation3 + $0x50] sm:$0xff]
      %v3952 = vld [vmem:[#allocation3 + $0x58] sm:$0xff]
      %v3953 = vld [vmem:[#allocation3 + $0x60] sm:$0xff]
      %v3954 = vld [vmem:[#allocation3 + $0x68] sm:$0xff]
      %v3955 = vld [vmem:[#allocation3 + $0x70] sm:$0xff]
      %v3956 = vld [vmem:[#allocation3 + $0x78] sm:$0xff]
      %v3957 = vld [vmem:[#allocation3 + $0x80] sm:$0xff]
      %v3958 = vld [vmem:[#allocation3 + $0x88] sm:$0xff]
      %v3959 = vld [vmem:[#allocation3 + $0x90] sm:$0xff]
      %v3960 = vld [vmem:[#allocation3 + $0x98] sm:$0xff]
      %v3961 = vld [vmem:[#allocation3 + $0xa0] sm:$0xff]
      %v3962 = vld [vmem:[#allocation3 + $0xa8] sm:$0xff]
      %v3963 = vld [vmem:[#allocation3 + $0xb0] sm:$0xff]
      %v3964 = vld [vmem:[#allocation3 + $0xb8] sm:$0xff]
      %v3965 = vld [vmem:[#allocation3 + $0xc0] sm:$0xff]
      %v3966 = vld [vmem:[#allocation3 + $0xc8] sm:$0xff]
      %v3967 = vld [vmem:[#allocation3 + $0xd0] sm:$0xff]
      %v3968 = vld [vmem:[#allocation3 + $0xd8] sm:$0xff]
      %v3969 = vld [vmem:[#allocation3 + $0xe0] sm:$0xff]
      %v3970 = vld [vmem:[#allocation3 + $0xe8] sm:$0xff]
      %v3971 = vld [vmem:[#allocation3 + $0xf0] sm:$0xff]
      %v3972 = vld [vmem:[#allocation3 + $0xf8] sm:$0xff]
      %v3973 = vpack.c.bf16 %v3910, %v3909
      %v3974 = vpack.c.bf16 %v3912, %v3911
      %v3975 = vpack.c.bf16 %v3914, %v3913
      %v3976 = vpack.c.bf16 %v3916, %v3915
      %v3977 = vpack.c.bf16 %v3918, %v3917
      %v3978 = vpack.c.bf16 %v3920, %v3919
      %v3979 = vpack.c.bf16 %v3922, %v3921
      %v3980 = vpack.c.bf16 %v3924, %v3923
      %v3981 = vpack.c.bf16 %v3926, %v3925
      %v3982 = vpack.c.bf16 %v3928, %v3927
      %v3983 = vpack.c.bf16 %v3930, %v3929
      %v3984 = vpack.c.bf16 %v3932, %v3931
      %v3985 = vpack.c.bf16 %v3934, %v3933
      %v3986 = vpack.c.bf16 %v3936, %v3935
      %v3987 = vpack.c.bf16 %v3938, %v3937
      %v3988 = vpack.c.bf16 %v3940, %v3939
      %v3989 = vld [vmem:[%s3] sm:$0xf]
      %v3990 = vld [vmem:[%s3 + $0x4] sm:$0xf]
      %v3991 = vld [vmem:[%s3 + $0x8] sm:$0xf]
      %v3992 = vld [vmem:[%s3 + $0xc] sm:$0xf]
      %v3993 = vld [vmem:[%s3 + $0x10] sm:$0xf]
      %v3994 = vld [vmem:[%s3 + $0x14] sm:$0xf]
      %v3995 = vld [vmem:[%s3 + $0x18] sm:$0xf]
      %v3996 = vld [vmem:[%s3 + $0x1c] sm:$0xf]
      %v3997 = vld [vmem:[%s3 + $0x20] sm:$0xf]
      %v3998 = vld [vmem:[%s3 + $0x24] sm:$0xf]
      %v3999 = vld [vmem:[%s3 + $0x28] sm:$0xf]
      %v4000 = vld [vmem:[%s3 + $0x2c] sm:$0xf]
      %v4001 = vld [vmem:[%s3 + $0x30] sm:$0xf]
      %v4002 = vld [vmem:[%s3 + $0x34] sm:$0xf]
      %v4003 = vld [vmem:[%s3 + $0x38] sm:$0xf]
      %v4004 = vld [vmem:[%s3 + $0x3c] sm:$0xf]
      %v4021 = vunpack.c.l.b16 %v3989
      %v4022 = vunpack.c.l.b16 %v3990
      %v4023 = vunpack.c.l.b16 %v3991
      %v4024 = vunpack.c.l.b16 %v3992
      %v4025 = vunpack.c.l.b16 %v3993
      %v4026 = vunpack.c.l.b16 %v3994
      %v4027 = vunpack.c.l.b16 %v3995
      %v4028 = vunpack.c.l.b16 %v3996
      %v4029 = vunpack.c.l.b16 %v3997
      %v4030 = vunpack.c.l.b16 %v3998
      %v4031 = vunpack.c.l.b16 %v3999
      %v4032 = vunpack.c.l.b16 %v4000
      %v4033 = vunpack.c.l.b16 %v4001
      %v4034 = vunpack.c.l.b16 %v4002
      %v4035 = vunpack.c.l.b16 %v4003
      %v4036 = vunpack.c.l.b16 %v4004
      %v4037 = vpack.c.b16 %v4022, %v4021
      %v4038 = vpack.c.b16 %v4024, %v4023
      %v4039 = vpack.c.b16 %v4026, %v4025
      %v4040 = vpack.c.b16 %v4028, %v4027
      %v4041 = vpack.c.b16 %v4030, %v4029
      %v4042 = vpack.c.b16 %v4032, %v4031
      %v4043 = vpack.c.b16 %v4034, %v4033
      %v4044 = vpack.c.b16 %v4036, %v4035
      %4053 = vmatprep.subr.bf16.mxu0 0
      %4054 = vmatpush1.bf16.msra.mxu0 %v4044
      %4055 = vmatprep.subr.bf16.mxu0 0
      %4056 = vmatpush1.bf16.msra.mxu0 %v4043
      %4057 = vmatprep.subr.bf16.mxu0 0
      %4058 = vmatpush1.bf16.msra.mxu0 %v4042
      %4059 = vmatprep.subr.bf16.mxu0 0
      %4060 = vmatpush1.bf16.msra.mxu0 %v4041
      %4061 = vmatprep.subr.bf16.mxu0 0
      %4062 = vmatpush1.bf16.msra.mxu0 %v4040
      %4063 = vmatprep.subr.bf16.mxu0 0
      %4064 = vmatpush1.bf16.msra.mxu0 %v4039
      %4065 = vmatprep.subr.bf16.mxu0 0
      %4066 = vmatpush1.bf16.msra.mxu0 %v4038
      %4067 = vmatprep.subr.bf16.mxu0 0
      %4068 = vmatpush1.bf16.msra.mxu0 %v4037
      %4069 = vmatprep.subr.bf16.mxu0 0
      %4070 = vmatpush2.bf16.msra.mxu0 0
      %4071 = vmatprep.subr.bf16.mxu0 0
      %4072 = vmatpush2.bf16.msra.mxu0 0
      %4073 = vmatprep.subr.bf16.mxu0 0
      %4074 = vmatpush2.bf16.msra.mxu0 0
      %4075 = vmatprep.subr.bf16.mxu0 0
      %4076 = vmatpush2.bf16.msra.mxu0 0
      %4077 = vmatprep.subr.bf16.mxu0 0
      %4078 = vmatpush2.bf16.msra.mxu0 0
      %4079 = vmatprep.subr.bf16.mxu0 0
      %4080 = vmatpush2.bf16.msra.mxu0 0
      %4081 = vmatprep.subr.bf16.mxu0 0
      %4082 = vmatpush2.bf16.msra.mxu0 0
      %4083 = vmatprep.subr.bf16.mxu0 0
      %4084 = vmatpush2.bf16.msra.mxu0 0
      %4085 = vmatprep.mubr.bf16.mxu0 0
      %4086 = vmatmul.mubr.bf16.gmra.mxu0 %v3973
      %v4087 = vpop.f32.mrf.mxu0
      %v4088 = vadd.f32 0.0, %v4087
      %v4089 = vpop.f32.mrf.mxu0
      %v4090 = vpop.f32.mrf.mxu0
      %v4091 = vadd.f32 0.0, %v4090
      %v4092 = vpop.f32.mrf.mxu0
      %4093 = vmatprep.mubr.bf16.mxu0 0
      %4094 = vmatmul.mubr.bf16.gmra.mxu0 %v3974
      %v4095 = vpop.f32.mrf.mxu0
      %v4096 = vadd.f32 0.0, %v4095
      %v4097 = vpop.f32.mrf.mxu0
      %v4098 = vpop.f32.mrf.mxu0
      %v4099 = vadd.f32 0.0, %v4098
      %v4100 = vpop.f32.mrf.mxu0
      %4101 = vmatprep.mubr.bf16.mxu0 0
      %4102 = vmatmul.mubr.bf16.gmra.mxu0 %v3975
      %v4103 = vpop.f32.mrf.mxu0
      %v4104 = vadd.f32 0.0, %v4103
      %v4105 = vpop.f32.mrf.mxu0
      %v4106 = vpop.f32.mrf.mxu0
      %v4107 = vadd.f32 0.0, %v4106
      %v4108 = vpop.f32.mrf.mxu0
      %4109 = vmatprep.mubr.bf16.mxu0 0
      %4110 = vmatmul.mubr.bf16.gmra.mxu0 %v3976
      %v4111 = vpop.f32.mrf.mxu0
      %v4112 = vadd.f32 0.0, %v4111
      %v4113 = vpop.f32.mrf.mxu0
      %v4114 = vpop.f32.mrf.mxu0
      %v4115 = vadd.f32 0.0, %v4114
      %v4116 = vpop.f32.mrf.mxu0
      %4117 = vmatprep.mubr.bf16.mxu0 0
      %4118 = vmatmul.mubr.bf16.gmra.mxu0 %v3977
      %v4119 = vpop.f32.mrf.mxu0
      %v4120 = vadd.f32 0.0, %v4119
      %v4121 = vpop.f32.mrf.mxu0
      %v4122 = vpop.f32.mrf.mxu0
      %v4123 = vadd.f32 0.0, %v4122
      %v4124 = vpop.f32.mrf.mxu0
      %4125 = vmatprep.mubr.bf16.mxu0 0
      %4126 = vmatmul.mubr.bf16.gmra.mxu0 %v3978
      %v4127 = vpop.f32.mrf.mxu0
      %v4128 = vadd.f32 0.0, %v4127
      %v4129 = vpop.f32.mrf.mxu0
      %v4130 = vpop.f32.mrf.mxu0
      %v4131 = vadd.f32 0.0, %v4130
      %v4132 = vpop.f32.mrf.mxu0
      %4133 = vmatprep.mubr.bf16.mxu0 0
      %4134 = vmatmul.mubr.bf16.gmra.mxu0 %v3979
      %v4135 = vpop.f32.mrf.mxu0
      %v4136 = vadd.f32 0.0, %v4135
      %v4137 = vpop.f32.mrf.mxu0
      %v4138 = vpop.f32.mrf.mxu0
      %v4139 = vadd.f32 0.0, %v4138
      %v4140 = vpop.f32.mrf.mxu0
      %4141 = vmatprep.mubr.bf16.mxu0 0
      %4142 = vmatmul.mubr.bf16.gmra.mxu0 %v3980
      %v4143 = vpop.f32.mrf.mxu0
      %v4144 = vadd.f32 0.0, %v4143
      %v4145 = vpop.f32.mrf.mxu0
      %v4146 = vpop.f32.mrf.mxu0
      %v4147 = vadd.f32 0.0, %v4146
      %v4148 = vpop.f32.mrf.mxu0
      %4149 = vmatprep.mubr.bf16.mxu0 0
      %4150 = vmatmul.mubr.bf16.gmra.mxu0 %v3981
      %v4151 = vpop.f32.mrf.mxu0
      %v4152 = vadd.f32 0.0, %v4151
      %v4153 = vpop.f32.mrf.mxu0
      %v4154 = vpop.f32.mrf.mxu0
      %v4155 = vadd.f32 0.0, %v4154
      %v4156 = vpop.f32.mrf.mxu0
      %4157 = vmatprep.mubr.bf16.mxu0 0
      %4158 = vmatmul.mubr.bf16.gmra.mxu0 %v3982
      %v4159 = vpop.f32.mrf.mxu0
      %v4160 = vadd.f32 0.0, %v4159
      %v4161 = vpop.f32.mrf.mxu0
      %v4162 = vpop.f32.mrf.mxu0
      %v4163 = vadd.f32 0.0, %v4162
      %v4164 = vpop.f32.mrf.mxu0
      %4165 = vmatprep.mubr.bf16.mxu0 0
      %4166 = vmatmul.mubr.bf16.gmra.mxu0 %v3983
      %v4167 = vpop.f32.mrf.mxu0
      %v4168 = vadd.f32 0.0, %v4167
      %v4169 = vpop.f32.mrf.mxu0
      %v4170 = vpop.f32.mrf.mxu0
      %v4171 = vadd.f32 0.0, %v4170
      %v4172 = vpop.f32.mrf.mxu0
      %4173 = vmatprep.mubr.bf16.mxu0 0
      %4174 = vmatmul.mubr.bf16.gmra.mxu0 %v3984
      %v4175 = vpop.f32.mrf.mxu0
      %v4176 = vadd.f32 0.0, %v4175
      %v4177 = vpop.f32.mrf.mxu0
      %v4178 = vpop.f32.mrf.mxu0
      %v4179 = vadd.f32 0.0, %v4178
      %v4180 = vpop.f32.mrf.mxu0
      %4181 = vmatprep.mubr.bf16.mxu0 0
      %4182 = vmatmul.mubr.bf16.gmra.mxu0 %v3985
      %v4183 = vpop.f32.mrf.mxu0
      %v4184 = vadd.f32 0.0, %v4183
      %v4185 = vpop.f32.mrf.mxu0
      %v4186 = vpop.f32.mrf.mxu0
      %v4187 = vadd.f32 0.0, %v4186
      %v4188 = vpop.f32.mrf.mxu0
      %4189 = vmatprep.mubr.bf16.mxu0 0
      %4190 = vmatmul.mubr.bf16.gmra.mxu0 %v3986
      %v4191 = vpop.f32.mrf.mxu0
      %v4192 = vadd.f32 0.0, %v4191
      %v4193 = vpop.f32.mrf.mxu0
      %v4194 = vpop.f32.mrf.mxu0
      %v4195 = vadd.f32 0.0, %v4194
      %v4196 = vpop.f32.mrf.mxu0
      %4197 = vmatprep.mubr.bf16.mxu0 0
      %4198 = vmatmul.mubr.bf16.gmra.mxu0 %v3987
      %v4199 = vpop.f32.mrf.mxu0
      %v4200 = vadd.f32 0.0, %v4199
      %v4201 = vpop.f32.mrf.mxu0
      %v4202 = vpop.f32.mrf.mxu0
      %v4203 = vadd.f32 0.0, %v4202
      %v4204 = vpop.f32.mrf.mxu0
      %4205 = vmatprep.mubr.bf16.mxu0 0
      %4206 = vmatmul.mubr.bf16.gmra.mxu0 %v3988
      %v4207 = vpop.f32.mrf.mxu0
      %v4208 = vadd.f32 0.0, %v4207
      %v4209 = vpop.f32.mrf.mxu0
      %v4210 = vpop.f32.mrf.mxu0
      %v4211 = vadd.f32 0.0, %v4210
      %v4212 = vpop.f32.mrf.mxu0
      %4213 = vdwg.mxu0
      %v4214 = vadd.f32 %v3941, %v4088
      %v4215 = vadd.f32 %v3942, %v4091
      %v4216 = vadd.f32 %v3943, %v4096
      %v4217 = vadd.f32 %v3944, %v4099
      %v4218 = vadd.f32 %v3945, %v4104
      %v4219 = vadd.f32 %v3946, %v4107
      %v4220 = vadd.f32 %v3947, %v4112
      %v4221 = vadd.f32 %v3948, %v4115
      %v4222 = vadd.f32 %v3949, %v4120
      %v4223 = vadd.f32 %v3950, %v4123
      %v4224 = vadd.f32 %v3951, %v4128
      %v4225 = vadd.f32 %v3952, %v4131
      %v4226 = vadd.f32 %v3953, %v4136
      %v4227 = vadd.f32 %v3954, %v4139
      %v4228 = vadd.f32 %v3955, %v4144
      %v4229 = vadd.f32 %v3956, %v4147
      %v4230 = vadd.f32 %v3957, %v4152
      %v4231 = vadd.f32 %v3958, %v4155
      %v4232 = vadd.f32 %v3959, %v4160
      %v4233 = vadd.f32 %v3960, %v4163
      %v4234 = vadd.f32 %v3961, %v4168
      %v4235 = vadd.f32 %v3962, %v4171
      %v4236 = vadd.f32 %v3963, %v4176
      %v4237 = vadd.f32 %v3964, %v4179
      %v4238 = vadd.f32 %v3965, %v4184
      %v4239 = vadd.f32 %v3966, %v4187
      %v4240 = vadd.f32 %v3967, %v4192
      %v4241 = vadd.f32 %v3968, %v4195
      %v4242 = vadd.f32 %v3969, %v4200
      %v4243 = vadd.f32 %v3970, %v4203
      %v4244 = vadd.f32 %v3971, %v4208
      %v4245 = vadd.f32 %v3972, %v4211
      %4246 = vst [vmem:[#allocation3] sm:$0xff] %v4214
      %4247 = vst [vmem:[#allocation3 + $0x8] sm:$0xff] %v4215
      %4248 = vst [vmem:[#allocation3 + $0x10] sm:$0xff] %v4216
      %4249 = vst [vmem:[#allocation3 + $0x18] sm:$0xff] %v4217
      %4250 = vst [vmem:[#allocation3 + $0x20] sm:$0xff] %v4218
      %4251 = vst [vmem:[#allocation3 + $0x28] sm:$0xff] %v4219
      %4252 = vst [vmem:[#allocation3 + $0x30] sm:$0xff] %v4220
      %4253 = vst [vmem:[#allocation3 + $0x38] sm:$0xff] %v4221
      %4254 = vst [vmem:[#allocation3 + $0x40] sm:$0xff] %v4222
      %4255 = vst [vmem:[#allocation3 + $0x48] sm:$0xff] %v4223
      %4256 = vst [vmem:[#allocation3 + $0x50] sm:$0xff] %v4224
      %4257 = vst [vmem:[#allocation3 + $0x58] sm:$0xff] %v4225
      %4258 = vst [vmem:[#allocation3 + $0x60] sm:$0xff] %v4226
      %4259 = vst [vmem:[#allocation3 + $0x68] sm:$0xff] %v4227
      %4260 = vst [vmem:[#allocation3 + $0x70] sm:$0xff] %v4228
      %4261 = vst [vmem:[#allocation3 + $0x78] sm:$0xff] %v4229
      %4262 = vst [vmem:[#allocation3 + $0x80] sm:$0xff] %v4230
      %4263 = vst [vmem:[#allocation3 + $0x88] sm:$0xff] %v4231
      %4264 = vst [vmem:[#allocation3 + $0x90] sm:$0xff] %v4232
      %4265 = vst [vmem:[#allocation3 + $0x98] sm:$0xff] %v4233
      %4266 = vst [vmem:[#allocation3 + $0xa0] sm:$0xff] %v4234
      %4267 = vst [vmem:[#allocation3 + $0xa8] sm:$0xff] %v4235
      %4268 = vst [vmem:[#allocation3 + $0xb0] sm:$0xff] %v4236
      %4269 = vst [vmem:[#allocation3 + $0xb8] sm:$0xff] %v4237
      %4270 = vst [vmem:[#allocation3 + $0xc0] sm:$0xff] %v4238
      %4271 = vst [vmem:[#allocation3 + $0xc8] sm:$0xff] %v4239
      %4272 = vst [vmem:[#allocation3 + $0xd0] sm:$0xff] %v4240
      %4273 = vst [vmem:[#allocation3 + $0xd8] sm:$0xff] %v4241
      %4274 = vst [vmem:[#allocation3 + $0xe0] sm:$0xff] %v4242
      %4275 = vst [vmem:[#allocation3 + $0xe8] sm:$0xff] %v4243
      %4276 = vst [vmem:[#allocation3 + $0xf0] sm:$0xff] %v4244
      %4277 = vst [vmem:[#allocation3 + $0xf8] sm:$0xff] %v4245
      %v4278 = vld [vmem:[%s3908 + $0x8] sm:$0xff]
      %v4279 = vld [vmem:[%s3908 + $0x10] sm:$0xff]
      %v4280 = vld [vmem:[%s3908 + $0x28] sm:$0xff]
      %v4281 = vld [vmem:[%s3908 + $0x30] sm:$0xff]
      %v4282 = vld [vmem:[%s3908 + $0x48] sm:$0xff]
      %v4283 = vld [vmem:[%s3908 + $0x50] sm:$0xff]
      %v4284 = vld [vmem:[%s3908 + $0x68] sm:$0xff]
      %v4285 = vld [vmem:[%s3908 + $0x70] sm:$0xff]
      %v4286 = vld [vmem:[%s3908 + $0x88] sm:$0xff]
      %v4287 = vld [vmem:[%s3908 + $0x90] sm:$0xff]
      %v4288 = vld [vmem:[%s3908 + $0xa8] sm:$0xff]
      %v4289 = vld [vmem:[%s3908 + $0xb0] sm:$0xff]
      %v4290 = vld [vmem:[%s3908 + $0xc8] sm:$0xff]
      %v4291 = vld [vmem:[%s3908 + $0xd0] sm:$0xff]
      %v4292 = vld [vmem:[%s3908 + $0xe8] sm:$0xff]
      %v4293 = vld [vmem:[%s3908 + $0xf0] sm:$0xff]
      %v4294 = vld [vmem:[%s3908 + $0x108] sm:$0xff]
      %v4295 = vld [vmem:[%s3908 + $0x110] sm:$0xff]
      %v4296 = vld [vmem:[%s3908 + $0x128] sm:$0xff]
      %v4297 = vld [vmem:[%s3908 + $0x130] sm:$0xff]
      %v4298 = vld [vmem:[%s3908 + $0x148] sm:$0xff]
      %v4299 = vld [vmem:[%s3908 + $0x150] sm:$0xff]
      %v4300 = vld [vmem:[%s3908 + $0x168] sm:$0xff]
      %v4301 = vld [vmem:[%s3908 + $0x170] sm:$0xff]
      %v4302 = vld [vmem:[%s3908 + $0x188] sm:$0xff]
      %v4303 = vld [vmem:[%s3908 + $0x190] sm:$0xff]
      %v4304 = vld [vmem:[%s3908 + $0x1a8] sm:$0xff]
      %v4305 = vld [vmem:[%s3908 + $0x1b0] sm:$0xff]
      %v4306 = vld [vmem:[%s3908 + $0x1c8] sm:$0xff]
      %v4307 = vld [vmem:[%s3908 + $0x1d0] sm:$0xff]
      %v4308 = vld [vmem:[%s3908 + $0x1e8] sm:$0xff]
      %v4309 = vld [vmem:[%s3908 + $0x1f0] sm:$0xff]
      %v4310 = vld [vmem:[#allocation3] sm:$0xff]
      %v4311 = vld [vmem:[#allocation3 + $0x8] sm:$0xff]
      %v4312 = vld [vmem:[#allocation3 + $0x10] sm:$0xff]
      %v4313 = vld [vmem:[#allocation3 + $0x18] sm:$0xff]
      %v4314 = vld [vmem:[#allocation3 + $0x20] sm:$0xff]
      %v4315 = vld [vmem:[#allocation3 + $0x28] sm:$0xff]
      %v4316 = vld [vmem:[#allocation3 + $0x30] sm:$0xff]
      %v4317 = vld [vmem:[#allocation3 + $0x38] sm:$0xff]
      %v4318 = vld [vmem:[#allocation3 + $0x40] sm:$0xff]
      %v4319 = vld [vmem:[#allocation3 + $0x48] sm:$0xff]
      %v4320 = vld [vmem:[#allocation3 + $0x50] sm:$0xff]
      %v4321 = vld [vmem:[#allocation3 + $0x58] sm:$0xff]
      %v4322 = vld [vmem:[#allocation3 + $0x60] sm:$0xff]
      %v4323 = vld [vmem:[#allocation3 + $0x68] sm:$0xff]
      %v4324 = vld [vmem:[#allocation3 + $0x70] sm:$0xff]
      %v4325 = vld [vmem:[#allocation3 + $0x78] sm:$0xff]
      %v4326 = vld [vmem:[#allocation3 + $0x80] sm:$0xff]
      %v4327 = vld [vmem:[#allocation3 + $0x88] sm:$0xff]
      %v4328 = vld [vmem:[#allocation3 + $0x90] sm:$0xff]
      %v4329 = vld [vmem:[#allocation3 + $0x98] sm:$0xff]
      %v4330 = vld [vmem:[#allocation3 + $0xa0] sm:$0xff]
      %v4331 = vld [vmem:[#allocation3 + $0xa8] sm:$0xff]
      %v4332 = vld [vmem:[#allocation3 + $0xb0] sm:$0xff]
      %v4333 = vld [vmem:[#allocation3 + $0xb8] sm:$0xff]
      %v4334 = vld [vmem:[#allocation3 + $0xc0] sm:$0xff]
      %v4335 = vld [vmem:[#allocation3 + $0xc8] sm:$0xff]
      %v4336 = vld [vmem:[#allocation3 + $0xd0] sm:$0xff]
      %v4337 = vld [vmem:[#allocation3 + $0xd8] sm:$0xff]
      %v4338 = vld [vmem:[#allocation3 + $0xe0] sm:$0xff]
      %v4339 = vld [vmem:[#allocation3 + $0xe8] sm:$0xff]
      %v4340 = vld [vmem:[#allocation3 + $0xf0] sm:$0xff]
      %v4341 = vld [vmem:[#allocation3 + $0xf8] sm:$0xff]
      %v4342 = vpack.c.bf16 %v4279, %v4278
      %v4343 = vpack.c.bf16 %v4281, %v4280
      %v4344 = vpack.c.bf16 %v4283, %v4282
      %v4345 = vpack.c.bf16 %v4285, %v4284
      %v4346 = vpack.c.bf16 %v4287, %v4286
      %v4347 = vpack.c.bf16 %v4289, %v4288
      %v4348 = vpack.c.bf16 %v4291, %v4290
      %v4349 = vpack.c.bf16 %v4293, %v4292
      %v4350 = vpack.c.bf16 %v4295, %v4294
      %v4351 = vpack.c.bf16 %v4297, %v4296
      %v4352 = vpack.c.bf16 %v4299, %v4298
      %v4353 = vpack.c.bf16 %v4301, %v4300
      %v4354 = vpack.c.bf16 %v4303, %v4302
      %v4355 = vpack.c.bf16 %v4305, %v4304
      %v4356 = vpack.c.bf16 %v4307, %v4306
      %v4357 = vpack.c.bf16 %v4309, %v4308
      %s4358 = scalar_lea.vmem %s3, 64
      %v4359 = vld [vmem:[%s4358] sm:$0xf]
      %v4360 = vld [vmem:[%s4358 + $0x4] sm:$0xf]
      %v4361 = vld [vmem:[%s4358 + $0x8] sm:$0xf]
      %v4362 = vld [vmem:[%s4358 + $0xc] sm:$0xf]
      %v4363 = vld [vmem:[%s4358 + $0x10] sm:$0xf]
      %v4364 = vld [vmem:[%s4358 + $0x14] sm:$0xf]
      %v4365 = vld [vmem:[%s4358 + $0x18] sm:$0xf]
      %v4366 = vld [vmem:[%s4358 + $0x1c] sm:$0xf]
      %v4367 = vld [vmem:[%s4358 + $0x20] sm:$0xf]
      %v4368 = vld [vmem:[%s4358 + $0x24] sm:$0xf]
      %v4369 = vld [vmem:[%s4358 + $0x28] sm:$0xf]
      %v4370 = vld [vmem:[%s4358 + $0x2c] sm:$0xf]
      %v4371 = vld [vmem:[%s4358 + $0x30] sm:$0xf]
      %v4372 = vld [vmem:[%s4358 + $0x34] sm:$0xf]
      %v4373 = vld [vmem:[%s4358 + $0x38] sm:$0xf]
      %v4374 = vld [vmem:[%s4358 + $0x3c] sm:$0xf]
      %v4391 = vunpack.c.l.b16 %v4359
      %v4392 = vunpack.c.l.b16 %v4360
      %v4393 = vunpack.c.l.b16 %v4361
      %v4394 = vunpack.c.l.b16 %v4362
      %v4395 = vunpack.c.l.b16 %v4363
      %v4396 = vunpack.c.l.b16 %v4364
      %v4397 = vunpack.c.l.b16 %v4365
      %v4398 = vunpack.c.l.b16 %v4366
      %v4399 = vunpack.c.l.b16 %v4367
      %v4400 = vunpack.c.l.b16 %v4368
      %v4401 = vunpack.c.l.b16 %v4369
      %v4402 = vunpack.c.l.b16 %v4370
      %v4403 = vunpack.c.l.b16 %v4371
      %v4404 = vunpack.c.l.b16 %v4372
      %v4405 = vunpack.c.l.b16 %v4373
      %v4406 = vunpack.c.l.b16 %v4374
      %v4407 = vpack.c.b16 %v4392, %v4391
      %v4408 = vpack.c.b16 %v4394, %v4393
      %v4409 = vpack.c.b16 %v4396, %v4395
      %v4410 = vpack.c.b16 %v4398, %v4397
      %v4411 = vpack.c.b16 %v4400, %v4399
      %v4412 = vpack.c.b16 %v4402, %v4401
      %v4413 = vpack.c.b16 %v4404, %v4403
      %v4414 = vpack.c.b16 %v4406, %v4405
      %4423 = vmatprep.subr.bf16.mxu0 0
      %4424 = vmatpush1.bf16.msra.mxu0 %v4414
      %4425 = vmatprep.subr.bf16.mxu0 0
      %4426 = vmatpush1.bf16.msra.mxu0 %v4413
      %4427 = vmatprep.subr.bf16.mxu0 0
      %4428 = vmatpush1.bf16.msra.mxu0 %v4412
      %4429 = vmatprep.subr.bf16.mxu0 0
      %4430 = vmatpush1.bf16.msra.mxu0 %v4411
      %4431 = vmatprep.subr.bf16.mxu0 0
      %4432 = vmatpush1.bf16.msra.mxu0 %v4410
      %4433 = vmatprep.subr.bf16.mxu0 0
      %4434 = vmatpush1.bf16.msra.mxu0 %v4409
      %4435 = vmatprep.subr.bf16.mxu0 0
      %4436 = vmatpush1.bf16.msra.mxu0 %v4408
      %4437 = vmatprep.subr.bf16.mxu0 0
      %4438 = vmatpush1.bf16.msra.mxu0 %v4407
      %4439 = vmatprep.subr.bf16.mxu0 0
      %4440 = vmatpush2.bf16.msra.mxu0 0
      %4441 = vmatprep.subr.bf16.mxu0 0
      %4442 = vmatpush2.bf16.msra.mxu0 0
      %4443 = vmatprep.subr.bf16.mxu0 0
      %4444 = vmatpush2.bf16.msra.mxu0 0
      %4445 = vmatprep.subr.bf16.mxu0 0
      %4446 = vmatpush2.bf16.msra.mxu0 0
      %4447 = vmatprep.subr.bf16.mxu0 0
      %4448 = vmatpush2.bf16.msra.mxu0 0
      %4449 = vmatprep.subr.bf16.mxu0 0
      %4450 = vmatpush2.bf16.msra.mxu0 0
      %4451 = vmatprep.subr.bf16.mxu0 0
      %4452 = vmatpush2.bf16.msra.mxu0 0
      %4453 = vmatprep.subr.bf16.mxu0 0
      %4454 = vmatpush2.bf16.msra.mxu0 0
      %4455 = vmatprep.mubr.bf16.mxu0 0
      %4456 = vmatmul.mubr.bf16.gmra.mxu0 %v4342
      %v4457 = vpop.f32.mrf.mxu0
      %v4458 = vadd.f32 0.0, %v4457
      %v4459 = vpop.f32.mrf.mxu0
      %v4460 = vpop.f32.mrf.mxu0
      %v4461 = vadd.f32 0.0, %v4460
      %v4462 = vpop.f32.mrf.mxu0
      %4463 = vmatprep.mubr.bf16.mxu0 0
      %4464 = vmatmul.mubr.bf16.gmra.mxu0 %v4343
      %v4465 = vpop.f32.mrf.mxu0
      %v4466 = vadd.f32 0.0, %v4465
      %v4467 = vpop.f32.mrf.mxu0
      %v4468 = vpop.f32.mrf.mxu0
      %v4469 = vadd.f32 0.0, %v4468
      %v4470 = vpop.f32.mrf.mxu0
      %4471 = vmatprep.mubr.bf16.mxu0 0
      %4472 = vmatmul.mubr.bf16.gmra.mxu0 %v4344
      %v4473 = vpop.f32.mrf.mxu0
      %v4474 = vadd.f32 0.0, %v4473
      %v4475 = vpop.f32.mrf.mxu0
      %v4476 = vpop.f32.mrf.mxu0
      %v4477 = vadd.f32 0.0, %v4476
      %v4478 = vpop.f32.mrf.mxu0
      %4479 = vmatprep.mubr.bf16.mxu0 0
      %4480 = vmatmul.mubr.bf16.gmra.mxu0 %v4345
      %v4481 = vpop.f32.mrf.mxu0
      %v4482 = vadd.f32 0.0, %v4481
      %v4483 = vpop.f32.mrf.mxu0
      %v4484 = vpop.f32.mrf.mxu0
      %v4485 = vadd.f32 0.0, %v4484
      %v4486 = vpop.f32.mrf.mxu0
      %4487 = vmatprep.mubr.bf16.mxu0 0
      %4488 = vmatmul.mubr.bf16.gmra.mxu0 %v4346
      %v4489 = vpop.f32.mrf.mxu0
      %v4490 = vadd.f32 0.0, %v4489
      %v4491 = vpop.f32.mrf.mxu0
      %v4492 = vpop.f32.mrf.mxu0
      %v4493 = vadd.f32 0.0, %v4492
      %v4494 = vpop.f32.mrf.mxu0
      %4495 = vmatprep.mubr.bf16.mxu0 0
      %4496 = vmatmul.mubr.bf16.gmra.mxu0 %v4347
      %v4497 = vpop.f32.mrf.mxu0
      %v4498 = vadd.f32 0.0, %v4497
      %v4499 = vpop.f32.mrf.mxu0
      %v4500 = vpop.f32.mrf.mxu0
      %v4501 = vadd.f32 0.0, %v4500
      %v4502 = vpop.f32.mrf.mxu0
      %4503 = vmatprep.mubr.bf16.mxu0 0
      %4504 = vmatmul.mubr.bf16.gmra.mxu0 %v4348
      %v4505 = vpop.f32.mrf.mxu0
      %v4506 = vadd.f32 0.0, %v4505
      %v4507 = vpop.f32.mrf.mxu0
      %v4508 = vpop.f32.mrf.mxu0
      %v4509 = vadd.f32 0.0, %v4508
      %v4510 = vpop.f32.mrf.mxu0
      %4511 = vmatprep.mubr.bf16.mxu0 0
      %4512 = vmatmul.mubr.bf16.gmra.mxu0 %v4349
      %v4513 = vpop.f32.mrf.mxu0
      %v4514 = vadd.f32 0.0, %v4513
      %v4515 = vpop.f32.mrf.mxu0
      %v4516 = vpop.f32.mrf.mxu0
      %v4517 = vadd.f32 0.0, %v4516
      %v4518 = vpop.f32.mrf.mxu0
      %4519 = vmatprep.mubr.bf16.mxu0 0
      %4520 = vmatmul.mubr.bf16.gmra.mxu0 %v4350
      %v4521 = vpop.f32.mrf.mxu0
      %v4522 = vadd.f32 0.0, %v4521
      %v4523 = vpop.f32.mrf.mxu0
      %v4524 = vpop.f32.mrf.mxu0
      %v4525 = vadd.f32 0.0, %v4524
      %v4526 = vpop.f32.mrf.mxu0
      %4527 = vmatprep.mubr.bf16.mxu0 0
      %4528 = vmatmul.mubr.bf16.gmra.mxu0 %v4351
      %v4529 = vpop.f32.mrf.mxu0
      %v4530 = vadd.f32 0.0, %v4529
      %v4531 = vpop.f32.mrf.mxu0
      %v4532 = vpop.f32.mrf.mxu0
      %v4533 = vadd.f32 0.0, %v4532
      %v4534 = vpop.f32.mrf.mxu0
      %4535 = vmatprep.mubr.bf16.mxu0 0
      %4536 = vmatmul.mubr.bf16.gmra.mxu0 %v4352
      %v4537 = vpop.f32.mrf.mxu0
      %v4538 = vadd.f32 0.0, %v4537
      %v4539 = vpop.f32.mrf.mxu0
      %v4540 = vpop.f32.mrf.mxu0
      %v4541 = vadd.f32 0.0, %v4540
      %v4542 = vpop.f32.mrf.mxu0
      %4543 = vmatprep.mubr.bf16.mxu0 0
      %4544 = vmatmul.mubr.bf16.gmra.mxu0 %v4353
      %v4545 = vpop.f32.mrf.mxu0
      %v4546 = vadd.f32 0.0, %v4545
      %v4547 = vpop.f32.mrf.mxu0
      %v4548 = vpop.f32.mrf.mxu0
      %v4549 = vadd.f32 0.0, %v4548
      %v4550 = vpop.f32.mrf.mxu0
      %4551 = vmatprep.mubr.bf16.mxu0 0
      %4552 = vmatmul.mubr.bf16.gmra.mxu0 %v4354
      %v4553 = vpop.f32.mrf.mxu0
      %v4554 = vadd.f32 0.0, %v4553
      %v4555 = vpop.f32.mrf.mxu0
      %v4556 = vpop.f32.mrf.mxu0
      %v4557 = vadd.f32 0.0, %v4556
      %v4558 = vpop.f32.mrf.mxu0
      %4559 = vmatprep.mubr.bf16.mxu0 0
      %4560 = vmatmul.mubr.bf16.gmra.mxu0 %v4355
      %v4561 = vpop.f32.mrf.mxu0
      %v4562 = vadd.f32 0.0, %v4561
      %v4563 = vpop.f32.mrf.mxu0
      %v4564 = vpop.f32.mrf.mxu0
      %v4565 = vadd.f32 0.0, %v4564
      %v4566 = vpop.f32.mrf.mxu0
      %4567 = vmatprep.mubr.bf16.mxu0 0
      %4568 = vmatmul.mubr.bf16.gmra.mxu0 %v4356
      %v4569 = vpop.f32.mrf.mxu0
      %v4570 = vadd.f32 0.0, %v4569
      %v4571 = vpop.f32.mrf.mxu0
      %v4572 = vpop.f32.mrf.mxu0
      %v4573 = vadd.f32 0.0, %v4572
      %v4574 = vpop.f32.mrf.mxu0
      %4575 = vmatprep.mubr.bf16.mxu0 0
      %4576 = vmatmul.mubr.bf16.gmra.mxu0 %v4357
      %v4577 = vpop.f32.mrf.mxu0
      %v4578 = vadd.f32 0.0, %v4577
      %v4579 = vpop.f32.mrf.mxu0
      %v4580 = vpop.f32.mrf.mxu0
      %v4581 = vadd.f32 0.0, %v4580
      %v4582 = vpop.f32.mrf.mxu0
      %4583 = vdwg.mxu0
      %v4584 = vadd.f32 %v4310, %v4458
      %v4585 = vadd.f32 %v4311, %v4461
      %v4586 = vadd.f32 %v4312, %v4466
      %v4587 = vadd.f32 %v4313, %v4469
      %v4588 = vadd.f32 %v4314, %v4474
      %v4589 = vadd.f32 %v4315, %v4477
      %v4590 = vadd.f32 %v4316, %v4482
      %v4591 = vadd.f32 %v4317, %v4485
      %v4592 = vadd.f32 %v4318, %v4490
      %v4593 = vadd.f32 %v4319, %v4493
      %v4594 = vadd.f32 %v4320, %v4498
      %v4595 = vadd.f32 %v4321, %v4501
      %v4596 = vadd.f32 %v4322, %v4506
      %v4597 = vadd.f32 %v4323, %v4509
      %v4598 = vadd.f32 %v4324, %v4514
      %v4599 = vadd.f32 %v4325, %v4517
      %v4600 = vadd.f32 %v4326, %v4522
      %v4601 = vadd.f32 %v4327, %v4525
      %v4602 = vadd.f32 %v4328, %v4530
      %v4603 = vadd.f32 %v4329, %v4533
      %v4604 = vadd.f32 %v4330, %v4538
      %v4605 = vadd.f32 %v4331, %v4541
      %v4606 = vadd.f32 %v4332, %v4546
      %v4607 = vadd.f32 %v4333, %v4549
      %v4608 = vadd.f32 %v4334, %v4554
      %v4609 = vadd.f32 %v4335, %v4557
      %v4610 = vadd.f32 %v4336, %v4562
      %v4611 = vadd.f32 %v4337, %v4565
      %v4612 = vadd.f32 %v4338, %v4570
      %v4613 = vadd.f32 %v4339, %v4573
      %v4614 = vadd.f32 %v4340, %v4578
      %v4615 = vadd.f32 %v4341, %v4581
      %4616 = vst [vmem:[#allocation3] sm:$0xff] %v4584
      %4617 = vst [vmem:[#allocation3 + $0x8] sm:$0xff] %v4585
      %4618 = vst [vmem:[#allocation3 + $0x10] sm:$0xff] %v4586
      %4619 = vst [vmem:[#allocation3 + $0x18] sm:$0xff] %v4587
      %4620 = vst [vmem:[#allocation3 + $0x20] sm:$0xff] %v4588
      %4621 = vst [vmem:[#allocation3 + $0x28] sm:$0xff] %v4589
      %4622 = vst [vmem:[#allocation3 + $0x30] sm:$0xff] %v4590
      %4623 = vst [vmem:[#allocation3 + $0x38] sm:$0xff] %v4591
      %4624 = vst [vmem:[#allocation3 + $0x40] sm:$0xff] %v4592
      %4625 = vst [vmem:[#allocation3 + $0x48] sm:$0xff] %v4593
      %4626 = vst [vmem:[#allocation3 + $0x50] sm:$0xff] %v4594
      %4627 = vst [vmem:[#allocation3 + $0x58] sm:$0xff] %v4595
      %4628 = vst [vmem:[#allocation3 + $0x60] sm:$0xff] %v4596
      %4629 = vst [vmem:[#allocation3 + $0x68] sm:$0xff] %v4597
      %4630 = vst [vmem:[#allocation3 + $0x70] sm:$0xff] %v4598
      %4631 = vst [vmem:[#allocation3 + $0x78] sm:$0xff] %v4599
      %4632 = vst [vmem:[#allocation3 + $0x80] sm:$0xff] %v4600
      %4633 = vst [vmem:[#allocation3 + $0x88] sm:$0xff] %v4601
      %4634 = vst [vmem:[#allocation3 + $0x90] sm:$0xff] %v4602
      %4635 = vst [vmem:[#allocation3 + $0x98] sm:$0xff] %v4603
      %4636 = vst [vmem:[#allocation3 + $0xa0] sm:$0xff] %v4604
      %4637 = vst [vmem:[#allocation3 + $0xa8] sm:$0xff] %v4605
      %4638 = vst [vmem:[#allocation3 + $0xb0] sm:$0xff] %v4606
      %4639 = vst [vmem:[#allocation3 + $0xb8] sm:$0xff] %v4607
      %4640 = vst [vmem:[#allocation3 + $0xc0] sm:$0xff] %v4608
      %4641 = vst [vmem:[#allocation3 + $0xc8] sm:$0xff] %v4609
      %4642 = vst [vmem:[#allocation3 + $0xd0] sm:$0xff] %v4610
      %4643 = vst [vmem:[#allocation3 + $0xd8] sm:$0xff] %v4611
      %4644 = vst [vmem:[#allocation3 + $0xe0] sm:$0xff] %v4612
      %4645 = vst [vmem:[#allocation3 + $0xe8] sm:$0xff] %v4613
      %4646 = vst [vmem:[#allocation3 + $0xf0] sm:$0xff] %v4614
      %4647 = vst [vmem:[#allocation3 + $0xf8] sm:$0xff] %v4615
      %v4648 = vld [vmem:[%s3908 + $0x9] sm:$0xff]
      %v4649 = vld [vmem:[%s3908 + $0x11] sm:$0xff]
      %v4650 = vld [vmem:[%s3908 + $0x29] sm:$0xff]
      %v4651 = vld [vmem:[%s3908 + $0x31] sm:$0xff]
      %v4652 = vld [vmem:[%s3908 + $0x49] sm:$0xff]
      %v4653 = vld [vmem:[%s3908 + $0x51] sm:$0xff]
      %v4654 = vld [vmem:[%s3908 + $0x69] sm:$0xff]
      %v4655 = vld [vmem:[%s3908 + $0x71] sm:$0xff]
      %v4656 = vld [vmem:[%s3908 + $0x89] sm:$0xff]
      %v4657 = vld [vmem:[%s3908 + $0x91] sm:$0xff]
      %v4658 = vld [vmem:[%s3908 + $0xa9] sm:$0xff]
      %v4659 = vld [vmem:[%s3908 + $0xb1] sm:$0xff]
      %v4660 = vld [vmem:[%s3908 + $0xc9] sm:$0xff]
      %v4661 = vld [vmem:[%s3908 + $0xd1] sm:$0xff]
      %v4662 = vld [vmem:[%s3908 + $0xe9] sm:$0xff]
      %v4663 = vld [vmem:[%s3908 + $0xf1] sm:$0xff]
      %v4664 = vld [vmem:[%s3908 + $0x109] sm:$0xff]
      %v4665 = vld [vmem:[%s3908 + $0x111] sm:$0xff]
      %v4666 = vld [vmem:[%s3908 + $0x129] sm:$0xff]
      %v4667 = vld [vmem:[%s3908 + $0x131] sm:$0xff]
      %v4668 = vld [vmem:[%s3908 + $0x149] sm:$0xff]
      %v4669 = vld [vmem:[%s3908 + $0x151] sm:$0xff]
      %v4670 = vld [vmem:[%s3908 + $0x169] sm:$0xff]
      %v4671 = vld [vmem:[%s3908 + $0x171] sm:$0xff]
      %v4672 = vld [vmem:[%s3908 + $0x189] sm:$0xff]
      %v4673 = vld [vmem:[%s3908 + $0x191] sm:$0xff]
      %v4674 = vld [vmem:[%s3908 + $0x1a9] sm:$0xff]
      %v4675 = vld [vmem:[%s3908 + $0x1b1] sm:$0xff]
      %v4676 = vld [vmem:[%s3908 + $0x1c9] sm:$0xff]
      %v4677 = vld [vmem:[%s3908 + $0x1d1] sm:$0xff]
      %v4678 = vld [vmem:[%s3908 + $0x1e9] sm:$0xff]
      %v4679 = vld [vmem:[%s3908 + $0x1f1] sm:$0xff]
      %v4680 = vld [vmem:[#allocation3] sm:$0xff]
      %v4681 = vld [vmem:[#allocation3 + $0x8] sm:$0xff]
      %v4682 = vld [vmem:[#allocation3 + $0x10] sm:$0xff]
      %v4683 = vld [vmem:[#allocation3 + $0x18] sm:$0xff]
      %v4684 = vld [vmem:[#allocation3 + $0x20] sm:$0xff]
      %v4685 = vld [vmem:[#allocation3 + $0x28] sm:$0xff]
      %v4686 = vld [vmem:[#allocation3 + $0x30] sm:$0xff]
      %v4687 = vld [vmem:[#allocation3 + $0x38] sm:$0xff]
      %v4688 = vld [vmem:[#allocation3 + $0x40] sm:$0xff]
      %v4689 = vld [vmem:[#allocation3 + $0x48] sm:$0xff]
      %v4690 = vld [vmem:[#allocation3 + $0x50] sm:$0xff]
      %v4691 = vld [vmem:[#allocation3 + $0x58] sm:$0xff]
      %v4692 = vld [vmem:[#allocation3 + $0x60] sm:$0xff]
      %v4693 = vld [vmem:[#allocation3 + $0x68] sm:$0xff]
      %v4694 = vld [vmem:[#allocation3 + $0x70] sm:$0xff]
      %v4695 = vld [vmem:[#allocation3 + $0x78] sm:$0xff]
      %v4696 = vld [vmem:[#allocation3 + $0x80] sm:$0xff]
      %v4697 = vld [vmem:[#allocation3 + $0x88] sm:$0xff]
      %v4698 = vld [vmem:[#allocation3 + $0x90] sm:$0xff]
      %v4699 = vld [vmem:[#allocation3 + $0x98] sm:$0xff]
      %v4700 = vld [vmem:[#allocation3 + $0xa0] sm:$0xff]
      %v4701 = vld [vmem:[#allocation3 + $0xa8] sm:$0xff]
      %v4702 = vld [vmem:[#allocation3 + $0xb0] sm:$0xff]
      %v4703 = vld [vmem:[#allocation3 + $0xb8] sm:$0xff]
      %v4704 = vld [vmem:[#allocation3 + $0xc0] sm:$0xff]
      %v4705 = vld [vmem:[#allocation3 + $0xc8] sm:$0xff]
      %v4706 = vld [vmem:[#allocation3 + $0xd0] sm:$0xff]
      %v4707 = vld [vmem:[#allocation3 + $0xd8] sm:$0xff]
      %v4708 = vld [vmem:[#allocation3 + $0xe0] sm:$0xff]
      %v4709 = vld [vmem:[#allocation3 + $0xe8] sm:$0xff]
      %v4710 = vld [vmem:[#allocation3 + $0xf0] sm:$0xff]
      %v4711 = vld [vmem:[#allocation3 + $0xf8] sm:$0xff]
      %v4712 = vpack.c.bf16 %v4649, %v4648
      %v4713 = vpack.c.bf16 %v4651, %v4650
      %v4714 = vpack.c.bf16 %v4653, %v4652
      %v4715 = vpack.c.bf16 %v4655, %v4654
      %v4716 = vpack.c.bf16 %v4657, %v4656
      %v4717 = vpack.c.bf16 %v4659, %v4658
      %v4718 = vpack.c.bf16 %v4661, %v4660
      %v4719 = vpack.c.bf16 %v4663, %v4662
      %v4720 = vpack.c.bf16 %v4665, %v4664
      %v4721 = vpack.c.bf16 %v4667, %v4666
      %v4722 = vpack.c.bf16 %v4669, %v4668
      %v4723 = vpack.c.bf16 %v4671, %v4670
      %v4724 = vpack.c.bf16 %v4673, %v4672
      %v4725 = vpack.c.bf16 %v4675, %v4674
      %v4726 = vpack.c.bf16 %v4677, %v4676
      %v4727 = vpack.c.bf16 %v4679, %v4678
      %s4728 = scalar_lea.vmem %s3, 128
      %v4729 = vld [vmem:[%s4728] sm:$0xf]
      %v4730 = vld [vmem:[%s4728 + $0x4] sm:$0xf]
      %v4731 = vld [vmem:[%s4728 + $0x8] sm:$0xf]
      %v4732 = vld [vmem:[%s4728 + $0xc] sm:$0xf]
      %v4733 = vld [vmem:[%s4728 + $0x10] sm:$0xf]
      %v4734 = vld [vmem:[%s4728 + $0x14] sm:$0xf]
      %v4735 = vld [vmem:[%s4728 + $0x18] sm:$0xf]
      %v4736 = vld [vmem:[%s4728 + $0x1c] sm:$0xf]
      %v4737 = vld [vmem:[%s4728 + $0x20] sm:$0xf]
      %v4738 = vld [vmem:[%s4728 + $0x24] sm:$0xf]
      %v4739 = vld [vmem:[%s4728 + $0x28] sm:$0xf]
      %v4740 = vld [vmem:[%s4728 + $0x2c] sm:$0xf]
      %v4741 = vld [vmem:[%s4728 + $0x30] sm:$0xf]
      %v4742 = vld [vmem:[%s4728 + $0x34] sm:$0xf]
      %v4743 = vld [vmem:[%s4728 + $0x38] sm:$0xf]
      %v4744 = vld [vmem:[%s4728 + $0x3c] sm:$0xf]
      %v4761 = vunpack.c.l.b16 %v4729
      %v4762 = vunpack.c.l.b16 %v4730
      %v4763 = vunpack.c.l.b16 %v4731
      %v4764 = vunpack.c.l.b16 %v4732
      %v4765 = vunpack.c.l.b16 %v4733
      %v4766 = vunpack.c.l.b16 %v4734
      %v4767 = vunpack.c.l.b16 %v4735
      %v4768 = vunpack.c.l.b16 %v4736
      %v4769 = vunpack.c.l.b16 %v4737
      %v4770 = vunpack.c.l.b16 %v4738
      %v4771 = vunpack.c.l.b16 %v4739
      %v4772 = vunpack.c.l.b16 %v4740
      %v4773 = vunpack.c.l.b16 %v4741
      %v4774 = vunpack.c.l.b16 %v4742
      %v4775 = vunpack.c.l.b16 %v4743
      %v4776 = vunpack.c.l.b16 %v4744
      %v4777 = vpack.c.b16 %v4762, %v4761
      %v4778 = vpack.c.b16 %v4764, %v4763
      %v4779 = vpack.c.b16 %v4766, %v4765
      %v4780 = vpack.c.b16 %v4768, %v4767
      %v4781 = vpack.c.b16 %v4770, %v4769
      %v4782 = vpack.c.b16 %v4772, %v4771
      %v4783 = vpack.c.b16 %v4774, %v4773
      %v4784 = vpack.c.b16 %v4776, %v4775
      %4793 = vmatprep.subr.bf16.mxu0 0
      %4794 = vmatpush1.bf16.msra.mxu0 %v4784
      %4795 = vmatprep.subr.bf16.mxu0 0
      %4796 = vmatpush1.bf16.msra.mxu0 %v4783
      %4797 = vmatprep.subr.bf16.mxu0 0
      %4798 = vmatpush1.bf16.msra.mxu0 %v4782
      %4799 = vmatprep.subr.bf16.mxu0 0
      %4800 = vmatpush1.bf16.msra.mxu0 %v4781
      %4801 = vmatprep.subr.bf16.mxu0 0
      %4802 = vmatpush1.bf16.msra.mxu0 %v4780
      %4803 = vmatprep.subr.bf16.mxu0 0
      %4804 = vmatpush1.bf16.msra.mxu0 %v4779
      %4805 = vmatprep.subr.bf16.mxu0 0
      %4806 = vmatpush1.bf16.msra.mxu0 %v4778
      %4807 = vmatprep.subr.bf16.mxu0 0
      %4808 = vmatpush1.bf16.msra.mxu0 %v4777
      %4809 = vmatprep.subr.bf16.mxu0 0
      %4810 = vmatpush2.bf16.msra.mxu0 0
      %4811 = vmatprep.subr.bf16.mxu0 0
      %4812 = vmatpush2.bf16.msra.mxu0 0
      %4813 = vmatprep.subr.bf16.mxu0 0
      %4814 = vmatpush2.bf16.msra.mxu0 0
      %4815 = vmatprep.subr.bf16.mxu0 0
      %4816 = vmatpush2.bf16.msra.mxu0 0
      %4817 = vmatprep.subr.bf16.mxu0 0
      %4818 = vmatpush2.bf16.msra.mxu0 0
      %4819 = vmatprep.subr.bf16.mxu0 0
      %4820 = vmatpush2.bf16.msra.mxu0 0
      %4821 = vmatprep.subr.bf16.mxu0 0
      %4822 = vmatpush2.bf16.msra.mxu0 0
      %4823 = vmatprep.subr.bf16.mxu0 0
      %4824 = vmatpush2.bf16.msra.mxu0 0
      %4825 = vmatprep.mubr.bf16.mxu0 0
      %4826 = vmatmul.mubr.bf16.gmra.mxu0 %v4712
      %v4827 = vpop.f32.mrf.mxu0
      %v4828 = vadd.f32 0.0, %v4827
      %v4829 = vpop.f32.mrf.mxu0
      %v4830 = vpop.f32.mrf.mxu0
      %v4831 = vadd.f32 0.0, %v4830
      %v4832 = vpop.f32.mrf.mxu0
      %4833 = vmatprep.mubr.bf16.mxu0 0
      %4834 = vmatmul.mubr.bf16.gmra.mxu0 %v4713
      %v4835 = vpop.f32.mrf.mxu0
      %v4836 = vadd.f32 0.0, %v4835
      %v4837 = vpop.f32.mrf.mxu0
      %v4838 = vpop.f32.mrf.mxu0
      %v4839 = vadd.f32 0.0, %v4838
      %v4840 = vpop.f32.mrf.mxu0
      %4841 = vmatprep.mubr.bf16.mxu0 0
      %4842 = vmatmul.mubr.bf16.gmra.mxu0 %v4714
      %v4843 = vpop.f32.mrf.mxu0
      %v4844 = vadd.f32 0.0, %v4843
      %v4845 = vpop.f32.mrf.mxu0
      %v4846 = vpop.f32.mrf.mxu0
      %v4847 = vadd.f32 0.0, %v4846
      %v4848 = vpop.f32.mrf.mxu0
      %4849 = vmatprep.mubr.bf16.mxu0 0
      %4850 = vmatmul.mubr.bf16.gmra.mxu0 %v4715
      %v4851 = vpop.f32.mrf.mxu0
      %v4852 = vadd.f32 0.0, %v4851
      %v4853 = vpop.f32.mrf.mxu0
      %v4854 = vpop.f32.mrf.mxu0
      %v4855 = vadd.f32 0.0, %v4854
      %v4856 = vpop.f32.mrf.mxu0
      %4857 = vmatprep.mubr.bf16.mxu0 0
      %4858 = vmatmul.mubr.bf16.gmra.mxu0 %v4716
      %v4859 = vpop.f32.mrf.mxu0
      %v4860 = vadd.f32 0.0, %v4859
      %v4861 = vpop.f32.mrf.mxu0
      %v4862 = vpop.f32.mrf.mxu0
      %v4863 = vadd.f32 0.0, %v4862
      %v4864 = vpop.f32.mrf.mxu0
      %4865 = vmatprep.mubr.bf16.mxu0 0
      %4866 = vmatmul.mubr.bf16.gmra.mxu0 %v4717
      %v4867 = vpop.f32.mrf.mxu0
      %v4868 = vadd.f32 0.0, %v4867
      %v4869 = vpop.f32.mrf.mxu0
      %v4870 = vpop.f32.mrf.mxu0
      %v4871 = vadd.f32 0.0, %v4870
      %v4872 = vpop.f32.mrf.mxu0
      %4873 = vmatprep.mubr.bf16.mxu0 0
      %4874 = vmatmul.mubr.bf16.gmra.mxu0 %v4718
      %v4875 = vpop.f32.mrf.mxu0
      %v4876 = vadd.f32 0.0, %v4875
      %v4877 = vpop.f32.mrf.mxu0
      %v4878 = vpop.f32.mrf.mxu0
      %v4879 = vadd.f32 0.0, %v4878
      %v4880 = vpop.f32.mrf.mxu0
      %4881 = vmatprep.mubr.bf16.mxu0 0
      %4882 = vmatmul.mubr.bf16.gmra.mxu0 %v4719
      %v4883 = vpop.f32.mrf.mxu0
      %v4884 = vadd.f32 0.0, %v4883
      %v4885 = vpop.f32.mrf.mxu0
      %v4886 = vpop.f32.mrf.mxu0
      %v4887 = vadd.f32 0.0, %v4886
      %v4888 = vpop.f32.mrf.mxu0
      %4889 = vmatprep.mubr.bf16.mxu0 0
      %4890 = vmatmul.mubr.bf16.gmra.mxu0 %v4720
      %v4891 = vpop.f32.mrf.mxu0
      %v4892 = vadd.f32 0.0, %v4891
      %v4893 = vpop.f32.mrf.mxu0
      %v4894 = vpop.f32.mrf.mxu0
      %v4895 = vadd.f32 0.0, %v4894
      %v4896 = vpop.f32.mrf.mxu0
      %4897 = vmatprep.mubr.bf16.mxu0 0
      %4898 = vmatmul.mubr.bf16.gmra.mxu0 %v4721
      %v4899 = vpop.f32.mrf.mxu0
      %v4900 = vadd.f32 0.0, %v4899
      %v4901 = vpop.f32.mrf.mxu0
      %v4902 = vpop.f32.mrf.mxu0
      %v4903 = vadd.f32 0.0, %v4902
      %v4904 = vpop.f32.mrf.mxu0
      %4905 = vmatprep.mubr.bf16.mxu0 0
      %4906 = vmatmul.mubr.bf16.gmra.mxu0 %v4722
      %v4907 = vpop.f32.mrf.mxu0
      %v4908 = vadd.f32 0.0, %v4907
      %v4909 = vpop.f32.mrf.mxu0
      %v4910 = vpop.f32.mrf.mxu0
      %v4911 = vadd.f32 0.0, %v4910
      %v4912 = vpop.f32.mrf.mxu0
      %4913 = vmatprep.mubr.bf16.mxu0 0
      %4914 = vmatmul.mubr.bf16.gmra.mxu0 %v4723
      %v4915 = vpop.f32.mrf.mxu0
      %v4916 = vadd.f32 0.0, %v4915
      %v4917 = vpop.f32.mrf.mxu0
      %v4918 = vpop.f32.mrf.mxu0
      %v4919 = vadd.f32 0.0, %v4918
      %v4920 = vpop.f32.mrf.mxu0
      %4921 = vmatprep.mubr.bf16.mxu0 0
      %4922 = vmatmul.mubr.bf16.gmra.mxu0 %v4724
      %v4923 = vpop.f32.mrf.mxu0
      %v4924 = vadd.f32 0.0, %v4923
      %v4925 = vpop.f32.mrf.mxu0
      %v4926 = vpop.f32.mrf.mxu0
      %v4927 = vadd.f32 0.0, %v4926
      %v4928 = vpop.f32.mrf.mxu0
      %4929 = vmatprep.mubr.bf16.mxu0 0
      %4930 = vmatmul.mubr.bf16.gmra.mxu0 %v4725
      %v4931 = vpop.f32.mrf.mxu0
      %v4932 = vadd.f32 0.0, %v4931
      %v4933 = vpop.f32.mrf.mxu0
      %v4934 = vpop.f32.mrf.mxu0
      %v4935 = vadd.f32 0.0, %v4934
      %v4936 = vpop.f32.mrf.mxu0
      %4937 = vmatprep.mubr.bf16.mxu0 0
      %4938 = vmatmul.mubr.bf16.gmra.mxu0 %v4726
      %v4939 = vpop.f32.mrf.mxu0
      %v4940 = vadd.f32 0.0, %v4939
      %v4941 = vpop.f32.mrf.mxu0
      %v4942 = vpop.f32.mrf.mxu0
      %v4943 = vadd.f32 0.0, %v4942
      %v4944 = vpop.f32.mrf.mxu0
      %4945 = vmatprep.mubr.bf16.mxu0 0
      %4946 = vmatmul.mubr.bf16.gmra.mxu0 %v4727
      %v4947 = vpop.f32.mrf.mxu0
      %v4948 = vadd.f32 0.0, %v4947
      %v4949 = vpop.f32.mrf.mxu0
      %v4950 = vpop.f32.mrf.mxu0
      %v4951 = vadd.f32 0.0, %v4950
      %v4952 = vpop.f32.mrf.mxu0
      %4953 = vdwg.mxu0
      %v4954 = vadd.f32 %v4680, %v4828
      %v4955 = vadd.f32 %v4681, %v4831
      %v4956 = vadd.f32 %v4682, %v4836
      %v4957 = vadd.f32 %v4683, %v4839
      %v4958 = vadd.f32 %v4684, %v4844
      %v4959 = vadd.f32 %v4685, %v4847
      %v4960 = vadd.f32 %v4686, %v4852
      %v4961 = vadd.f32 %v4687, %v4855
      %v4962 = vadd.f32 %v4688, %v4860
      %v4963 = vadd.f32 %v4689, %v4863
      %v4964 = vadd.f32 %v4690, %v4868
      %v4965 = vadd.f32 %v4691, %v4871
      %v4966 = vadd.f32 %v4692, %v4876
      %v4967 = vadd.f32 %v4693, %v4879
      %v4968 = vadd.f32 %v4694, %v4884
      %v4969 = vadd.f32 %v4695, %v4887
      %v4970 = vadd.f32 %v4696, %v4892
      %v4971 = vadd.f32 %v4697, %v4895
      %v4972 = vadd.f32 %v4698, %v4900
      %v4973 = vadd.f32 %v4699, %v4903
      %v4974 = vadd.f32 %v4700, %v4908
      %v4975 = vadd.f32 %v4701, %v4911
      %v4976 = vadd.f32 %v4702, %v4916
      %v4977 = vadd.f32 %v4703, %v4919
      %v4978 = vadd.f32 %v4704, %v4924
      %v4979 = vadd.f32 %v4705, %v4927
      %v4980 = vadd.f32 %v4706, %v4932
      %v4981 = vadd.f32 %v4707, %v4935
      %v4982 = vadd.f32 %v4708, %v4940
      %v4983 = vadd.f32 %v4709, %v4943
      %v4984 = vadd.f32 %v4710, %v4948
      %v4985 = vadd.f32 %v4711, %v4951
      %4986 = vst [vmem:[#allocation3] sm:$0xff] %v4954
      %4987 = vst [vmem:[#allocation3 + $0x8] sm:$0xff] %v4955
      %4988 = vst [vmem:[#allocation3 + $0x10] sm:$0xff] %v4956
      %4989 = vst [vmem:[#allocation3 + $0x18] sm:$0xff] %v4957
      %4990 = vst [vmem:[#allocation3 + $0x20] sm:$0xff] %v4958
      %4991 = vst [vmem:[#allocation3 + $0x28] sm:$0xff] %v4959
      %4992 = vst [vmem:[#allocation3 + $0x30] sm:$0xff] %v4960
      %4993 = vst [vmem:[#allocation3 + $0x38] sm:$0xff] %v4961
      %4994 = vst [vmem:[#allocation3 + $0x40] sm:$0xff] %v4962
      %4995 = vst [vmem:[#allocation3 + $0x48] sm:$0xff] %v4963
      %4996 = vst [vmem:[#allocation3 + $0x50] sm:$0xff] %v4964
      %4997 = vst [vmem:[#allocation3 + $0x58] sm:$0xff] %v4965
      %4998 = vst [vmem:[#allocation3 + $0x60] sm:$0xff] %v4966
      %4999 = vst [vmem:[#allocation3 + $0x68] sm:$0xff] %v4967
      %5000 = vst [vmem:[#allocation3 + $0x70] sm:$0xff] %v4968
      %5001 = vst [vmem:[#allocation3 + $0x78] sm:$0xff] %v4969
      %5002 = vst [vmem:[#allocation3 + $0x80] sm:$0xff] %v4970
      %5003 = vst [vmem:[#allocation3 + $0x88] sm:$0xff] %v4971
      %5004 = vst [vmem:[#allocation3 + $0x90] sm:$0xff] %v4972
      %5005 = vst [vmem:[#allocation3 + $0x98] sm:$0xff] %v4973
      %5006 = vst [vmem:[#allocation3 + $0xa0] sm:$0xff] %v4974
      %5007 = vst [vmem:[#allocation3 + $0xa8] sm:$0xff] %v4975
      %5008 = vst [vmem:[#allocation3 + $0xb0] sm:$0xff] %v4976
      %5009 = vst [vmem:[#allocation3 + $0xb8] sm:$0xff] %v4977
      %5010 = vst [vmem:[#allocation3 + $0xc0] sm:$0xff] %v4978
      %5011 = vst [vmem:[#allocation3 + $0xc8] sm:$0xff] %v4979
      %5012 = vst [vmem:[#allocation3 + $0xd0] sm:$0xff] %v4980
      %5013 = vst [vmem:[#allocation3 + $0xd8] sm:$0xff] %v4981
      %5014 = vst [vmem:[#allocation3 + $0xe0] sm:$0xff] %v4982
      %5015 = vst [vmem:[#allocation3 + $0xe8] sm:$0xff] %v4983
      %5016 = vst [vmem:[#allocation3 + $0xf0] sm:$0xff] %v4984
      %5017 = vst [vmem:[#allocation3 + $0xf8] sm:$0xff] %v4985
      %v5018 = vld [vmem:[%s3843 + $0x7] sm:$0xff]
      %v5019 = vld [vmem:[%s3843 + $0xf] sm:$0xff]
      %v5020 = vld [vmem:[%s3843 + $0x27] sm:$0xff]
      %v5021 = vld [vmem:[%s3843 + $0x2f] sm:$0xff]
      %v5022 = vld [vmem:[%s3843 + $0x47] sm:$0xff]
      %v5023 = vld [vmem:[%s3843 + $0x4f] sm:$0xff]
      %v5024 = vld [vmem:[%s3843 + $0x67] sm:$0xff]
      %v5025 = vld [vmem:[%s3843 + $0x6f] sm:$0xff]
      %v5026 = vld [vmem:[%s3843 + $0x87] sm:$0xff]
      %v5027 = vld [vmem:[%s3843 + $0x8f] sm:$0xff]
      %v5028 = vld [vmem:[%s3843 + $0xa7] sm:$0xff]
      %v5029 = vld [vmem:[%s3843 + $0xaf] sm:$0xff]
      %v5030 = vld [vmem:[%s3843 + $0xc7] sm:$0xff]
      %v5031 = vld [vmem:[%s3843 + $0xcf] sm:$0xff]
      %v5032 = vld [vmem:[%s3843 + $0xe7] sm:$0xff]
      %v5033 = vld [vmem:[%s3843 + $0xef] sm:$0xff]
      %v5034 = vld [vmem:[%s3843 + $0x107] sm:$0xff]
      %v5035 = vld [vmem:[%s3843 + $0x10f] sm:$0xff]
      %v5036 = vld [vmem:[%s3843 + $0x127] sm:$0xff]
      %v5037 = vld [vmem:[%s3843 + $0x12f] sm:$0xff]
      %v5038 = vld [vmem:[%s3843 + $0x147] sm:$0xff]
      %v5039 = vld [vmem:[%s3843 + $0x14f] sm:$0xff]
      %v5040 = vld [vmem:[%s3843 + $0x167] sm:$0xff]
      %v5041 = vld [vmem:[%s3843 + $0x16f] sm:$0xff]
      %v5042 = vld [vmem:[%s3843 + $0x187] sm:$0xff]
      %v5043 = vld [vmem:[%s3843 + $0x18f] sm:$0xff]
      %v5044 = vld [vmem:[%s3843 + $0x1a7] sm:$0xff]
      %v5045 = vld [vmem:[%s3843 + $0x1af] sm:$0xff]
      %v5046 = vld [vmem:[%s3843 + $0x1c7] sm:$0xff]
      %v5047 = vld [vmem:[%s3843 + $0x1cf] sm:$0xff]
      %v5048 = vld [vmem:[%s3843 + $0x1e7] sm:$0xff]
      %v5049 = vld [vmem:[%s3843 + $0x1ef] sm:$0xff]
      %v5050 = vld [vmem:[#allocation3] sm:$0xff]
      %v5051 = vld [vmem:[#allocation3 + $0x8] sm:$0xff]
      %v5052 = vld [vmem:[#allocation3 + $0x10] sm:$0xff]
      %v5053 = vld [vmem:[#allocation3 + $0x18] sm:$0xff]
      %v5054 = vld [vmem:[#allocation3 + $0x20] sm:$0xff]
      %v5055 = vld [vmem:[#allocation3 + $0x28] sm:$0xff]
      %v5056 = vld [vmem:[#allocation3 + $0x30] sm:$0xff]
      %v5057 = vld [vmem:[#allocation3 + $0x38] sm:$0xff]
      %v5058 = vld [vmem:[#allocation3 + $0x40] sm:$0xff]
      %v5059 = vld [vmem:[#allocation3 + $0x48] sm:$0xff]
      %v5060 = vld [vmem:[#allocation3 + $0x50] sm:$0xff]
      %v5061 = vld [vmem:[#allocation3 + $0x58] sm:$0xff]
      %v5062 = vld [vmem:[#allocation3 + $0x60] sm:$0xff]
      %v5063 = vld [vmem:[#allocation3 + $0x68] sm:$0xff]
      %v5064 = vld [vmem:[#allocation3 + $0x70] sm:$0xff]
      %v5065 = vld [vmem:[#allocation3 + $0x78] sm:$0xff]
      %v5066 = vld [vmem:[#allocation3 + $0x80] sm:$0xff]
      %v5067 = vld [vmem:[#allocation3 + $0x88] sm:$0xff]
      %v5068 = vld [vmem:[#allocation3 + $0x90] sm:$0xff]
      %v5069 = vld [vmem:[#allocation3 + $0x98] sm:$0xff]
      %v5070 = vld [vmem:[#allocation3 + $0xa0] sm:$0xff]
      %v5071 = vld [vmem:[#allocation3 + $0xa8] sm:$0xff]
      %v5072 = vld [vmem:[#allocation3 + $0xb0] sm:$0xff]
      %v5073 = vld [vmem:[#allocation3 + $0xb8] sm:$0xff]
      %v5074 = vld [vmem:[#allocation3 + $0xc0] sm:$0xff]
      %v5075 = vld [vmem:[#allocation3 + $0xc8] sm:$0xff]
      %v5076 = vld [vmem:[#allocation3 + $0xd0] sm:$0xff]
      %v5077 = vld [vmem:[#allocation3 + $0xd8] sm:$0xff]
      %v5078 = vld [vmem:[#allocation3 + $0xe0] sm:$0xff]
      %v5079 = vld [vmem:[#allocation3 + $0xe8] sm:$0xff]
      %v5080 = vld [vmem:[#allocation3 + $0xf0] sm:$0xff]
      %v5081 = vld [vmem:[#allocation3 + $0xf8] sm:$0xff]
      %v5082 = vpack.c.bf16 %v5019, %v5018
      %v5083 = vpack.c.bf16 %v5021, %v5020
      %v5084 = vpack.c.bf16 %v5023, %v5022
      %v5085 = vpack.c.bf16 %v5025, %v5024
      %v5086 = vpack.c.bf16 %v5027, %v5026
      %v5087 = vpack.c.bf16 %v5029, %v5028
      %v5088 = vpack.c.bf16 %v5031, %v5030
      %v5089 = vpack.c.bf16 %v5033, %v5032
      %v5090 = vpack.c.bf16 %v5035, %v5034
      %v5091 = vpack.c.bf16 %v5037, %v5036
      %v5092 = vpack.c.bf16 %v5039, %v5038
      %v5093 = vpack.c.bf16 %v5041, %v5040
      %v5094 = vpack.c.bf16 %v5043, %v5042
      %v5095 = vpack.c.bf16 %v5045, %v5044
      %v5096 = vpack.c.bf16 %v5047, %v5046
      %v5097 = vpack.c.bf16 %v5049, %v5048
      %s5098 = scalar_lea.vmem %s3, 192
      %v5099 = vld [vmem:[%s5098] sm:$0xf]
      %v5100 = vld [vmem:[%s5098 + $0x4] sm:$0xf]
      %v5101 = vld [vmem:[%s5098 + $0x8] sm:$0xf]
      %v5102 = vld [vmem:[%s5098 + $0xc] sm:$0xf]
      %v5103 = vld [vmem:[%s5098 + $0x10] sm:$0xf]
      %v5104 = vld [vmem:[%s5098 + $0x14] sm:$0xf]
      %v5105 = vld [vmem:[%s5098 + $0x18] sm:$0xf]
      %v5106 = vld [vmem:[%s5098 + $0x1c] sm:$0xf]
      %v5107 = vld [vmem:[%s5098 + $0x20] sm:$0xf]
      %v5108 = vld [vmem:[%s5098 + $0x24] sm:$0xf]
      %v5109 = vld [vmem:[%s5098 + $0x28] sm:$0xf]
      %v5110 = vld [vmem:[%s5098 + $0x2c] sm:$0xf]
      %v5111 = vld [vmem:[%s5098 + $0x30] sm:$0xf]
      %v5112 = vld [vmem:[%s5098 + $0x34] sm:$0xf]
      %v5113 = vld [vmem:[%s5098 + $0x38] sm:$0xf]
      %v5114 = vld [vmem:[%s5098 + $0x3c] sm:$0xf]
      %v5131 = vunpack.c.l.b16 %v5099
      %v5132 = vunpack.c.l.b16 %v5100
      %v5133 = vunpack.c.l.b16 %v5101
      %v5134 = vunpack.c.l.b16 %v5102
      %v5135 = vunpack.c.l.b16 %v5103
      %v5136 = vunpack.c.l.b16 %v5104
      %v5137 = vunpack.c.l.b16 %v5105
      %v5138 = vunpack.c.l.b16 %v5106
      %v5139 = vunpack.c.l.b16 %v5107
      %v5140 = vunpack.c.l.b16 %v5108
      %v5141 = vunpack.c.l.b16 %v5109
      %v5142 = vunpack.c.l.b16 %v5110
      %v5143 = vunpack.c.l.b16 %v5111
      %v5144 = vunpack.c.l.b16 %v5112
      %v5145 = vunpack.c.l.b16 %v5113
      %v5146 = vunpack.c.l.b16 %v5114
      %v5147 = vpack.c.b16 %v5132, %v5131
      %v5148 = vpack.c.b16 %v5134, %v5133
      %v5149 = vpack.c.b16 %v5136, %v5135
      %v5150 = vpack.c.b16 %v5138, %v5137
      %v5151 = vpack.c.b16 %v5140, %v5139
      %v5152 = vpack.c.b16 %v5142, %v5141
      %v5153 = vpack.c.b16 %v5144, %v5143
      %v5154 = vpack.c.b16 %v5146, %v5145
      %5163 = vmatprep.subr.bf16.mxu0 0
      %5164 = vmatpush1.bf16.msra.mxu0 %v5154
      %5165 = vmatprep.subr.bf16.mxu0 0
      %5166 = vmatpush1.bf16.msra.mxu0 %v5153
      %5167 = vmatprep.subr.bf16.mxu0 0
      %5168 = vmatpush1.bf16.msra.mxu0 %v5152
      %5169 = vmatprep.subr.bf16.mxu0 0
      %5170 = vmatpush1.bf16.msra.mxu0 %v5151
      %5171 = vmatprep.subr.bf16.mxu0 0
      %5172 = vmatpush1.bf16.msra.mxu0 %v5150
      %5173 = vmatprep.subr.bf16.mxu0 0
      %5174 = vmatpush1.bf16.msra.mxu0 %v5149
      %5175 = vmatprep.subr.bf16.mxu0 0
      %5176 = vmatpush1.bf16.msra.mxu0 %v5148
      %5177 = vmatprep.subr.bf16.mxu0 0
      %5178 = vmatpush1.bf16.msra.mxu0 %v5147
      %5179 = vmatprep.subr.bf16.mxu0 0
      %5180 = vmatpush2.bf16.msra.mxu0 0
      %5181 = vmatprep.subr.bf16.mxu0 0
      %5182 = vmatpush2.bf16.msra.mxu0 0
      %5183 = vmatprep.subr.bf16.mxu0 0
      %5184 = vmatpush2.bf16.msra.mxu0 0
      %5185 = vmatprep.subr.bf16.mxu0 0
      %5186 = vmatpush2.bf16.msra.mxu0 0
      %5187 = vmatprep.subr.bf16.mxu0 0
      %5188 = vmatpush2.bf16.msra.mxu0 0
      %5189 = vmatprep.subr.bf16.mxu0 0
      %5190 = vmatpush2.bf16.msra.mxu0 0
      %5191 = vmatprep.subr.bf16.mxu0 0
      %5192 = vmatpush2.bf16.msra.mxu0 0
      %5193 = vmatprep.subr.bf16.mxu0 0
      %5194 = vmatpush2.bf16.msra.mxu0 0
      %5195 = vmatprep.mubr.bf16.mxu0 0
      %5196 = vmatmul.mubr.bf16.gmra.mxu0 %v5082
      %v5197 = vpop.f32.mrf.mxu0
      %v5198 = vadd.f32 0.0, %v5197
      %v5199 = vpop.f32.mrf.mxu0
      %v5200 = vpop.f32.mrf.mxu0
      %v5201 = vadd.f32 0.0, %v5200
      %v5202 = vpop.f32.mrf.mxu0
      %5203 = vmatprep.mubr.bf16.mxu0 0
      %5204 = vmatmul.mubr.bf16.gmra.mxu0 %v5083
      %v5205 = vpop.f32.mrf.mxu0
      %v5206 = vadd.f32 0.0, %v5205
      %v5207 = vpop.f32.mrf.mxu0
      %v5208 = vpop.f32.mrf.mxu0
      %v5209 = vadd.f32 0.0, %v5208
      %v5210 = vpop.f32.mrf.mxu0
      %5211 = vmatprep.mubr.bf16.mxu0 0
      %5212 = vmatmul.mubr.bf16.gmra.mxu0 %v5084
      %v5213 = vpop.f32.mrf.mxu0
      %v5214 = vadd.f32 0.0, %v5213
      %v5215 = vpop.f32.mrf.mxu0
      %v5216 = vpop.f32.mrf.mxu0
      %v5217 = vadd.f32 0.0, %v5216
      %v5218 = vpop.f32.mrf.mxu0
      %5219 = vmatprep.mubr.bf16.mxu0 0
      %5220 = vmatmul.mubr.bf16.gmra.mxu0 %v5085
      %v5221 = vpop.f32.mrf.mxu0
      %v5222 = vadd.f32 0.0, %v5221
      %v5223 = vpop.f32.mrf.mxu0
      %v5224 = vpop.f32.mrf.mxu0
      %v5225 = vadd.f32 0.0, %v5224
      %v5226 = vpop.f32.mrf.mxu0
      %5227 = vmatprep.mubr.bf16.mxu0 0
      %5228 = vmatmul.mubr.bf16.gmra.mxu0 %v5086
      %v5229 = vpop.f32.mrf.mxu0
      %v5230 = vadd.f32 0.0, %v5229
      %v5231 = vpop.f32.mrf.mxu0
      %v5232 = vpop.f32.mrf.mxu0
      %v5233 = vadd.f32 0.0, %v5232
      %v5234 = vpop.f32.mrf.mxu0
      %5235 = vmatprep.mubr.bf16.mxu0 0
      %5236 = vmatmul.mubr.bf16.gmra.mxu0 %v5087
      %v5237 = vpop.f32.mrf.mxu0
      %v5238 = vadd.f32 0.0, %v5237
      %v5239 = vpop.f32.mrf.mxu0
      %v5240 = vpop.f32.mrf.mxu0
      %v5241 = vadd.f32 0.0, %v5240
      %v5242 = vpop.f32.mrf.mxu0
      %5243 = vmatprep.mubr.bf16.mxu0 0
      %5244 = vmatmul.mubr.bf16.gmra.mxu0 %v5088
      %v5245 = vpop.f32.mrf.mxu0
      %v5246 = vadd.f32 0.0, %v5245
      %v5247 = vpop.f32.mrf.mxu0
      %v5248 = vpop.f32.mrf.mxu0
      %v5249 = vadd.f32 0.0, %v5248
      %v5250 = vpop.f32.mrf.mxu0
      %5251 = vmatprep.mubr.bf16.mxu0 0
      %5252 = vmatmul.mubr.bf16.gmra.mxu0 %v5089
      %v5253 = vpop.f32.mrf.mxu0
      %v5254 = vadd.f32 0.0, %v5253
      %v5255 = vpop.f32.mrf.mxu0
      %v5256 = vpop.f32.mrf.mxu0
      %v5257 = vadd.f32 0.0, %v5256
      %v5258 = vpop.f32.mrf.mxu0
      %5259 = vmatprep.mubr.bf16.mxu0 0
      %5260 = vmatmul.mubr.bf16.gmra.mxu0 %v5090
      %v5261 = vpop.f32.mrf.mxu0
      %v5262 = vadd.f32 0.0, %v5261
      %v5263 = vpop.f32.mrf.mxu0
      %v5264 = vpop.f32.mrf.mxu0
      %v5265 = vadd.f32 0.0, %v5264
      %v5266 = vpop.f32.mrf.mxu0
      %5267 = vmatprep.mubr.bf16.mxu0 0
      %5268 = vmatmul.mubr.bf16.gmra.mxu0 %v5091
      %v5269 = vpop.f32.mrf.mxu0
      %v5270 = vadd.f32 0.0, %v5269
      %v5271 = vpop.f32.mrf.mxu0
      %v5272 = vpop.f32.mrf.mxu0
      %v5273 = vadd.f32 0.0, %v5272
      %v5274 = vpop.f32.mrf.mxu0
      %5275 = vmatprep.mubr.bf16.mxu0 0
      %5276 = vmatmul.mubr.bf16.gmra.mxu0 %v5092
      %v5277 = vpop.f32.mrf.mxu0
      %v5278 = vadd.f32 0.0, %v5277
      %v5279 = vpop.f32.mrf.mxu0
      %v5280 = vpop.f32.mrf.mxu0
      %v5281 = vadd.f32 0.0, %v5280
      %v5282 = vpop.f32.mrf.mxu0
      %5283 = vmatprep.mubr.bf16.mxu0 0
      %5284 = vmatmul.mubr.bf16.gmra.mxu0 %v5093
      %v5285 = vpop.f32.mrf.mxu0
      %v5286 = vadd.f32 0.0, %v5285
      %v5287 = vpop.f32.mrf.mxu0
      %v5288 = vpop.f32.mrf.mxu0
      %v5289 = vadd.f32 0.0, %v5288
      %v5290 = vpop.f32.mrf.mxu0
      %5291 = vmatprep.mubr.bf16.mxu0 0
      %5292 = vmatmul.mubr.bf16.gmra.mxu0 %v5094
      %v5293 = vpop.f32.mrf.mxu0
      %v5294 = vadd.f32 0.0, %v5293
      %v5295 = vpop.f32.mrf.mxu0
      %v5296 = vpop.f32.mrf.mxu0
      %v5297 = vadd.f32 0.0, %v5296
      %v5298 = vpop.f32.mrf.mxu0
      %5299 = vmatprep.mubr.bf16.mxu0 0
      %5300 = vmatmul.mubr.bf16.gmra.mxu0 %v5095
      %v5301 = vpop.f32.mrf.mxu0
      %v5302 = vadd.f32 0.0, %v5301
      %v5303 = vpop.f32.mrf.mxu0
      %v5304 = vpop.f32.mrf.mxu0
      %v5305 = vadd.f32 0.0, %v5304
      %v5306 = vpop.f32.mrf.mxu0
      %5307 = vmatprep.mubr.bf16.mxu0 0
      %5308 = vmatmul.mubr.bf16.gmra.mxu0 %v5096
      %v5309 = vpop.f32.mrf.mxu0
      %v5310 = vadd.f32 0.0, %v5309
      %v5311 = vpop.f32.mrf.mxu0
      %v5312 = vpop.f32.mrf.mxu0
      %v5313 = vadd.f32 0.0, %v5312
      %v5314 = vpop.f32.mrf.mxu0
      %5315 = vmatprep.mubr.bf16.mxu0 0
      %5316 = vmatmul.mubr.bf16.gmra.mxu0 %v5097
      %v5317 = vpop.f32.mrf.mxu0
      %v5318 = vadd.f32 0.0, %v5317
      %v5319 = vpop.f32.mrf.mxu0
      %v5320 = vpop.f32.mrf.mxu0
      %v5321 = vadd.f32 0.0, %v5320
      %v5322 = vpop.f32.mrf.mxu0
      %5323 = vdwg.mxu0
      %v5324 = vadd.f32 %v5050, %v5198
      %v5325 = vadd.f32 %v5051, %v5201
      %v5326 = vadd.f32 %v5052, %v5206
      %v5327 = vadd.f32 %v5053, %v5209
      %v5328 = vadd.f32 %v5054, %v5214
      %v5329 = vadd.f32 %v5055, %v5217
      %v5330 = vadd.f32 %v5056, %v5222
      %v5331 = vadd.f32 %v5057, %v5225
      %v5332 = vadd.f32 %v5058, %v5230
      %v5333 = vadd.f32 %v5059, %v5233
      %v5334 = vadd.f32 %v5060, %v5238
      %v5335 = vadd.f32 %v5061, %v5241
      %v5336 = vadd.f32 %v5062, %v5246
      %v5337 = vadd.f32 %v5063, %v5249
      %v5338 = vadd.f32 %v5064, %v5254
      %v5339 = vadd.f32 %v5065, %v5257
      %v5340 = vadd.f32 %v5066, %v5262
      %v5341 = vadd.f32 %v5067, %v5265
      %v5342 = vadd.f32 %v5068, %v5270
      %v5343 = vadd.f32 %v5069, %v5273
      %v5344 = vadd.f32 %v5070, %v5278
      %v5345 = vadd.f32 %v5071, %v5281
      %v5346 = vadd.f32 %v5072, %v5286
      %v5347 = vadd.f32 %v5073, %v5289
      %v5348 = vadd.f32 %v5074, %v5294
      %v5349 = vadd.f32 %v5075, %v5297
      %v5350 = vadd.f32 %v5076, %v5302
      %v5351 = vadd.f32 %v5077, %v5305
      %v5352 = vadd.f32 %v5078, %v5310
      %v5353 = vadd.f32 %v5079, %v5313
      %v5354 = vadd.f32 %v5080, %v5318
      %v5355 = vadd.f32 %v5081, %v5321
      %5356 = vst [vmem:[#allocation3] sm:$0xff] %v5324
      %5357 = vst [vmem:[#allocation3 + $0x8] sm:$0xff] %v5325
      %5358 = vst [vmem:[#allocation3 + $0x10] sm:$0xff] %v5326
      %5359 = vst [vmem:[#allocation3 + $0x18] sm:$0xff] %v5327
      %5360 = vst [vmem:[#allocation3 + $0x20] sm:$0xff] %v5328
      %5361 = vst [vmem:[#allocation3 + $0x28] sm:$0xff] %v5329
      %5362 = vst [vmem:[#allocation3 + $0x30] sm:$0xff] %v5330
      %5363 = vst [vmem:[#allocation3 + $0x38] sm:$0xff] %v5331
      %5364 = vst [vmem:[#allocation3 + $0x40] sm:$0xff] %v5332
      %5365 = vst [vmem:[#allocation3 + $0x48] sm:$0xff] %v5333
      %5366 = vst [vmem:[#allocation3 + $0x50] sm:$0xff] %v5334
      %5367 = vst [vmem:[#allocation3 + $0x58] sm:$0xff] %v5335
      %5368 = vst [vmem:[#allocation3 + $0x60] sm:$0xff] %v5336
      %5369 = vst [vmem:[#allocation3 + $0x68] sm:$0xff] %v5337
      %5370 = vst [vmem:[#allocation3 + $0x70] sm:$0xff] %v5338
      %5371 = vst [vmem:[#allocation3 + $0x78] sm:$0xff] %v5339
      %5372 = vst [vmem:[#allocation3 + $0x80] sm:$0xff] %v5340
      %5373 = vst [vmem:[#allocation3 + $0x88] sm:$0xff] %v5341
      %5374 = vst [vmem:[#allocation3 + $0x90] sm:$0xff] %v5342
      %5375 = vst [vmem:[#allocation3 + $0x98] sm:$0xff] %v5343
      %5376 = vst [vmem:[#allocation3 + $0xa0] sm:$0xff] %v5344
      %5377 = vst [vmem:[#allocation3 + $0xa8] sm:$0xff] %v5345
      %5378 = vst [vmem:[#allocation3 + $0xb0] sm:$0xff] %v5346
      %5379 = vst [vmem:[#allocation3 + $0xb8] sm:$0xff] %v5347
      %5380 = vst [vmem:[#allocation3 + $0xc0] sm:$0xff] %v5348
      %5381 = vst [vmem:[#allocation3 + $0xc8] sm:$0xff] %v5349
      %5382 = vst [vmem:[#allocation3 + $0xd0] sm:$0xff] %v5350
      %5383 = vst [vmem:[#allocation3 + $0xd8] sm:$0xff] %v5351
      %5384 = vst [vmem:[#allocation3 + $0xe0] sm:$0xff] %v5352
      %5385 = vst [vmem:[#allocation3 + $0xe8] sm:$0xff] %v5353
      %5386 = vst [vmem:[#allocation3 + $0xf0] sm:$0xff] %v5354
      %5387 = vst [vmem:[#allocation3 + $0xf8] sm:$0xff] %v5355
      %v5388 = vld [vmem:[%s3843 + $0x8] sm:$0xff]
      %v5389 = vld [vmem:[%s3843 + $0x10] sm:$0xff]
      %v5390 = vld [vmem:[%s3843 + $0x28] sm:$0xff]
      %v5391 = vld [vmem:[%s3843 + $0x30] sm:$0xff]
      %v5392 = vld [vmem:[%s3843 + $0x48] sm:$0xff]
      %v5393 = vld [vmem:[%s3843 + $0x50] sm:$0xff]
      %v5394 = vld [vmem:[%s3843 + $0x68] sm:$0xff]
      %v5395 = vld [vmem:[%s3843 + $0x70] sm:$0xff]
      %v5396 = vld [vmem:[%s3843 + $0x88] sm:$0xff]
      %v5397 = vld [vmem:[%s3843 + $0x90] sm:$0xff]
      %v5398 = vld [vmem:[%s3843 + $0xa8] sm:$0xff]
      %v5399 = vld [vmem:[%s3843 + $0xb0] sm:$0xff]
      %v5400 = vld [vmem:[%s3843 + $0xc8] sm:$0xff]
      %v5401 = vld [vmem:[%s3843 + $0xd0] sm:$0xff]
      %v5402 = vld [vmem:[%s3843 + $0xe8] sm:$0xff]
      %v5403 = vld [vmem:[%s3843 + $0xf0] sm:$0xff]
      %v5404 = vld [vmem:[%s3843 + $0x108] sm:$0xff]
      %v5405 = vld [vmem:[%s3843 + $0x110] sm:$0xff]
      %v5406 = vld [vmem:[%s3843 + $0x128] sm:$0xff]
      %v5407 = vld [vmem:[%s3843 + $0x130] sm:$0xff]
      %v5408 = vld [vmem:[%s3843 + $0x148] sm:$0xff]
      %v5409 = vld [vmem:[%s3843 + $0x150] sm:$0xff]
      %v5410 = vld [vmem:[%s3843 + $0x168] sm:$0xff]
      %v5411 = vld [vmem:[%s3843 + $0x170] sm:$0xff]
      %v5412 = vld [vmem:[%s3843 + $0x188] sm:$0xff]
      %v5413 = vld [vmem:[%s3843 + $0x190] sm:$0xff]
      %v5414 = vld [vmem:[%s3843 + $0x1a8] sm:$0xff]
      %v5415 = vld [vmem:[%s3843 + $0x1b0] sm:$0xff]
      %v5416 = vld [vmem:[%s3843 + $0x1c8] sm:$0xff]
      %v5417 = vld [vmem:[%s3843 + $0x1d0] sm:$0xff]
      %v5418 = vld [vmem:[%s3843 + $0x1e8] sm:$0xff]
      %v5419 = vld [vmem:[%s3843 + $0x1f0] sm:$0xff]
      %v5420 = vld [vmem:[#allocation3] sm:$0xff]
      %v5421 = vld [vmem:[#allocation3 + $0x8] sm:$0xff]
      %v5422 = vld [vmem:[#allocation3 + $0x10] sm:$0xff]
      %v5423 = vld [vmem:[#allocation3 + $0x18] sm:$0xff]
      %v5424 = vld [vmem:[#allocation3 + $0x20] sm:$0xff]
      %v5425 = vld [vmem:[#allocation3 + $0x28] sm:$0xff]
      %v5426 = vld [vmem:[#allocation3 + $0x30] sm:$0xff]
      %v5427 = vld [vmem:[#allocation3 + $0x38] sm:$0xff]
      %v5428 = vld [vmem:[#allocation3 + $0x40] sm:$0xff]
      %v5429 = vld [vmem:[#allocation3 + $0x48] sm:$0xff]
      %v5430 = vld [vmem:[#allocation3 + $0x50] sm:$0xff]
      %v5431 = vld [vmem:[#allocation3 + $0x58] sm:$0xff]
      %v5432 = vld [vmem:[#allocation3 + $0x60] sm:$0xff]
      %v5433 = vld [vmem:[#allocation3 + $0x68] sm:$0xff]
      %v5434 = vld [vmem:[#allocation3 + $0x70] sm:$0xff]
      %v5435 = vld [vmem:[#allocation3 + $0x78] sm:$0xff]
      %v5436 = vld [vmem:[#allocation3 + $0x80] sm:$0xff]
      %v5437 = vld [vmem:[#allocation3 + $0x88] sm:$0xff]
      %v5438 = vld [vmem:[#allocation3 + $0x90] sm:$0xff]
      %v5439 = vld [vmem:[#allocation3 + $0x98] sm:$0xff]
      %v5440 = vld [vmem:[#allocation3 + $0xa0] sm:$0xff]
      %v5441 = vld [vmem:[#allocation3 + $0xa8] sm:$0xff]
      %v5442 = vld [vmem:[#allocation3 + $0xb0] sm:$0xff]
      %v5443 = vld [vmem:[#allocation3 + $0xb8] sm:$0xff]
      %v5444 = vld [vmem:[#allocation3 + $0xc0] sm:$0xff]
      %v5445 = vld [vmem:[#allocation3 + $0xc8] sm:$0xff]
      %v5446 = vld [vmem:[#allocation3 + $0xd0] sm:$0xff]
      %v5447 = vld [vmem:[#allocation3 + $0xd8] sm:$0xff]
      %v5448 = vld [vmem:[#allocation3 + $0xe0] sm:$0xff]
      %v5449 = vld [vmem:[#allocation3 + $0xe8] sm:$0xff]
      %v5450 = vld [vmem:[#allocation3 + $0xf0] sm:$0xff]
      %v5451 = vld [vmem:[#allocation3 + $0xf8] sm:$0xff]
      %v5452 = vpack.c.bf16 %v5389, %v5388
      %v5453 = vpack.c.bf16 %v5391, %v5390
      %v5454 = vpack.c.bf16 %v5393, %v5392
      %v5455 = vpack.c.bf16 %v5395, %v5394
      %v5456 = vpack.c.bf16 %v5397, %v5396
      %v5457 = vpack.c.bf16 %v5399, %v5398
      %v5458 = vpack.c.bf16 %v5401, %v5400
      %v5459 = vpack.c.bf16 %v5403, %v5402
      %v5460 = vpack.c.bf16 %v5405, %v5404
      %v5461 = vpack.c.bf16 %v5407, %v5406
      %v5462 = vpack.c.bf16 %v5409, %v5408
      %v5463 = vpack.c.bf16 %v5411, %v5410
      %v5464 = vpack.c.bf16 %v5413, %v5412
      %v5465 = vpack.c.bf16 %v5415, %v5414
      %v5466 = vpack.c.bf16 %v5417, %v5416
      %v5467 = vpack.c.bf16 %v5419, %v5418
      %s5468 = scalar_lea.vmem %s3, 256
      %v5469 = vld [vmem:[%s5468] sm:$0xf]
      %v5470 = vld [vmem:[%s5468 + $0x4] sm:$0xf]
      %v5471 = vld [vmem:[%s5468 + $0x8] sm:$0xf]
      %v5472 = vld [vmem:[%s5468 + $0xc] sm:$0xf]
      %v5473 = vld [vmem:[%s5468 + $0x10] sm:$0xf]
      %v5474 = vld [vmem:[%s5468 + $0x14] sm:$0xf]
      %v5475 = vld [vmem:[%s5468 + $0x18] sm:$0xf]
      %v5476 = vld [vmem:[%s5468 + $0x1c] sm:$0xf]
      %v5477 = vld [vmem:[%s5468 + $0x20] sm:$0xf]
      %v5478 = vld [vmem:[%s5468 + $0x24] sm:$0xf]
      %v5479 = vld [vmem:[%s5468 + $0x28] sm:$0xf]
      %v5480 = vld [vmem:[%s5468 + $0x2c] sm:$0xf]
      %v5481 = vld [vmem:[%s5468 + $0x30] sm:$0xf]
      %v5482 = vld [vmem:[%s5468 + $0x34] sm:$0xf]
      %v5483 = vld [vmem:[%s5468 + $0x38] sm:$0xf]
      %v5484 = vld [vmem:[%s5468 + $0x3c] sm:$0xf]
      %v5501 = vunpack.c.l.b16 %v5469
      %v5502 = vunpack.c.l.b16 %v5470
      %v5503 = vunpack.c.l.b16 %v5471
      %v5504 = vunpack.c.l.b16 %v5472
      %v5505 = vunpack.c.l.b16 %v5473
      %v5506 = vunpack.c.l.b16 %v5474
      %v5507 = vunpack.c.l.b16 %v5475
      %v5508 = vunpack.c.l.b16 %v5476
      %v5509 = vunpack.c.l.b16 %v5477
      %v5510 = vunpack.c.l.b16 %v5478
      %v5511 = vunpack.c.l.b16 %v5479
      %v5512 = vunpack.c.l.b16 %v5480
      %v5513 = vunpack.c.l.b16 %v5481
      %v5514 = vunpack.c.l.b16 %v5482
      %v5515 = vunpack.c.l.b16 %v5483
      %v5516 = vunpack.c.l.b16 %v5484
      %v5517 = vpack.c.b16 %v5502, %v5501
      %v5518 = vpack.c.b16 %v5504, %v5503
      %v5519 = vpack.c.b16 %v5506, %v5505
      %v5520 = vpack.c.b16 %v5508, %v5507
      %v5521 = vpack.c.b16 %v5510, %v5509
      %v5522 = vpack.c.b16 %v5512, %v5511
      %v5523 = vpack.c.b16 %v5514, %v5513
      %v5524 = vpack.c.b16 %v5516, %v5515
      %5533 = vmatprep.subr.bf16.mxu0 0
      %5534 = vmatpush1.bf16.msra.mxu0 %v5524
      %5535 = vmatprep.subr.bf16.mxu0 0
      %5536 = vmatpush1.bf16.msra.mxu0 %v5523
      %5537 = vmatprep.subr.bf16.mxu0 0
      %5538 = vmatpush1.bf16.msra.mxu0 %v5522
      %5539 = vmatprep.subr.bf16.mxu0 0
      %5540 = vmatpush1.bf16.msra.mxu0 %v5521
      %5541 = vmatprep.subr.bf16.mxu0 0
      %5542 = vmatpush1.bf16.msra.mxu0 %v5520
      %5543 = vmatprep.subr.bf16.mxu0 0
      %5544 = vmatpush1.bf16.msra.mxu0 %v5519
      %5545 = vmatprep.subr.bf16.mxu0 0
      %5546 = vmatpush1.bf16.msra.mxu0 %v5518
      %5547 = vmatprep.subr.bf16.mxu0 0
      %5548 = vmatpush1.bf16.msra.mxu0 %v5517
      %5549 = vmatprep.subr.bf16.mxu0 0
      %5550 = vmatpush2.bf16.msra.mxu0 0
      %5551 = vmatprep.subr.bf16.mxu0 0
      %5552 = vmatpush2.bf16.msra.mxu0 0
      %5553 = vmatprep.subr.bf16.mxu0 0
      %5554 = vmatpush2.bf16.msra.mxu0 0
      %5555 = vmatprep.subr.bf16.mxu0 0
      %5556 = vmatpush2.bf16.msra.mxu0 0
      %5557 = vmatprep.subr.bf16.mxu0 0
      %5558 = vmatpush2.bf16.msra.mxu0 0
      %5559 = vmatprep.subr.bf16.mxu0 0
      %5560 = vmatpush2.bf16.msra.mxu0 0
      %5561 = vmatprep.subr.bf16.mxu0 0
      %5562 = vmatpush2.bf16.msra.mxu0 0
      %5563 = vmatprep.subr.bf16.mxu0 0
      %5564 = vmatpush2.bf16.msra.mxu0 0
      %5565 = vmatprep.mubr.bf16.mxu0 0
      %5566 = vmatmul.mubr.bf16.gmra.mxu0 %v5452
      %v5567 = vpop.f32.mrf.mxu0
      %v5568 = vadd.f32 0.0, %v5567
      %v5569 = vpop.f32.mrf.mxu0
      %v5570 = vpop.f32.mrf.mxu0
      %v5571 = vadd.f32 0.0, %v5570
      %v5572 = vpop.f32.mrf.mxu0
      %5573 = vmatprep.mubr.bf16.mxu0 0
      %5574 = vmatmul.mubr.bf16.gmra.mxu0 %v5453
      %v5575 = vpop.f32.mrf.mxu0
      %v5576 = vadd.f32 0.0, %v5575
      %v5577 = vpop.f32.mrf.mxu0
      %v5578 = vpop.f32.mrf.mxu0
      %v5579 = vadd.f32 0.0, %v5578
      %v5580 = vpop.f32.mrf.mxu0
      %5581 = vmatprep.mubr.bf16.mxu0 0
      %5582 = vmatmul.mubr.bf16.gmra.mxu0 %v5454
      %v5583 = vpop.f32.mrf.mxu0
      %v5584 = vadd.f32 0.0, %v5583
      %v5585 = vpop.f32.mrf.mxu0
      %v5586 = vpop.f32.mrf.mxu0
      %v5587 = vadd.f32 0.0, %v5586
      %v5588 = vpop.f32.mrf.mxu0
      %5589 = vmatprep.mubr.bf16.mxu0 0
      %5590 = vmatmul.mubr.bf16.gmra.mxu0 %v5455
      %v5591 = vpop.f32.mrf.mxu0
      %v5592 = vadd.f32 0.0, %v5591
      %v5593 = vpop.f32.mrf.mxu0
      %v5594 = vpop.f32.mrf.mxu0
      %v5595 = vadd.f32 0.0, %v5594
      %v5596 = vpop.f32.mrf.mxu0
      %5597 = vmatprep.mubr.bf16.mxu0 0
      %5598 = vmatmul.mubr.bf16.gmra.mxu0 %v5456
      %v5599 = vpop.f32.mrf.mxu0
      %v5600 = vadd.f32 0.0, %v5599
      %v5601 = vpop.f32.mrf.mxu0
      %v5602 = vpop.f32.mrf.mxu0
      %v5603 = vadd.f32 0.0, %v5602
      %v5604 = vpop.f32.mrf.mxu0
      %5605 = vmatprep.mubr.bf16.mxu0 0
      %5606 = vmatmul.mubr.bf16.gmra.mxu0 %v5457
      %v5607 = vpop.f32.mrf.mxu0
      %v5608 = vadd.f32 0.0, %v5607
      %v5609 = vpop.f32.mrf.mxu0
      %v5610 = vpop.f32.mrf.mxu0
      %v5611 = vadd.f32 0.0, %v5610
      %v5612 = vpop.f32.mrf.mxu0
      %5613 = vmatprep.mubr.bf16.mxu0 0
      %5614 = vmatmul.mubr.bf16.gmra.mxu0 %v5458
      %v5615 = vpop.f32.mrf.mxu0
      %v5616 = vadd.f32 0.0, %v5615
      %v5617 = vpop.f32.mrf.mxu0
      %v5618 = vpop.f32.mrf.mxu0
      %v5619 = vadd.f32 0.0, %v5618
      %v5620 = vpop.f32.mrf.mxu0
      %5621 = vmatprep.mubr.bf16.mxu0 0
      %5622 = vmatmul.mubr.bf16.gmra.mxu0 %v5459
      %v5623 = vpop.f32.mrf.mxu0
      %v5624 = vadd.f32 0.0, %v5623
      %v5625 = vpop.f32.mrf.mxu0
      %v5626 = vpop.f32.mrf.mxu0
      %v5627 = vadd.f32 0.0, %v5626
      %v5628 = vpop.f32.mrf.mxu0
      %5629 = vmatprep.mubr.bf16.mxu0 0
      %5630 = vmatmul.mubr.bf16.gmra.mxu0 %v5460
      %v5631 = vpop.f32.mrf.mxu0
      %v5632 = vadd.f32 0.0, %v5631
      %v5633 = vpop.f32.mrf.mxu0
      %v5634 = vpop.f32.mrf.mxu0
      %v5635 = vadd.f32 0.0, %v5634
      %v5636 = vpop.f32.mrf.mxu0
      %5637 = vmatprep.mubr.bf16.mxu0 0
      %5638 = vmatmul.mubr.bf16.gmra.mxu0 %v5461
      %v5639 = vpop.f32.mrf.mxu0
      %v5640 = vadd.f32 0.0, %v5639
      %v5641 = vpop.f32.mrf.mxu0
      %v5642 = vpop.f32.mrf.mxu0
      %v5643 = vadd.f32 0.0, %v5642
      %v5644 = vpop.f32.mrf.mxu0
      %5645 = vmatprep.mubr.bf16.mxu0 0
      %5646 = vmatmul.mubr.bf16.gmra.mxu0 %v5462
      %v5647 = vpop.f32.mrf.mxu0
      %v5648 = vadd.f32 0.0, %v5647
      %v5649 = vpop.f32.mrf.mxu0
      %v5650 = vpop.f32.mrf.mxu0
      %v5651 = vadd.f32 0.0, %v5650
      %v5652 = vpop.f32.mrf.mxu0
      %5653 = vmatprep.mubr.bf16.mxu0 0
      %5654 = vmatmul.mubr.bf16.gmra.mxu0 %v5463
      %v5655 = vpop.f32.mrf.mxu0
      %v5656 = vadd.f32 0.0, %v5655
      %v5657 = vpop.f32.mrf.mxu0
      %v5658 = vpop.f32.mrf.mxu0
      %v5659 = vadd.f32 0.0, %v5658
      %v5660 = vpop.f32.mrf.mxu0
      %5661 = vmatprep.mubr.bf16.mxu0 0
      %5662 = vmatmul.mubr.bf16.gmra.mxu0 %v5464
      %v5663 = vpop.f32.mrf.mxu0
      %v5664 = vadd.f32 0.0, %v5663
      %v5665 = vpop.f32.mrf.mxu0
      %v5666 = vpop.f32.mrf.mxu0
      %v5667 = vadd.f32 0.0, %v5666
      %v5668 = vpop.f32.mrf.mxu0
      %5669 = vmatprep.mubr.bf16.mxu0 0
      %5670 = vmatmul.mubr.bf16.gmra.mxu0 %v5465
      %v5671 = vpop.f32.mrf.mxu0
      %v5672 = vadd.f32 0.0, %v5671
      %v5673 = vpop.f32.mrf.mxu0
      %v5674 = vpop.f32.mrf.mxu0
      %v5675 = vadd.f32 0.0, %v5674
      %v5676 = vpop.f32.mrf.mxu0
      %5677 = vmatprep.mubr.bf16.mxu0 0
      %5678 = vmatmul.mubr.bf16.gmra.mxu0 %v5466
      %v5679 = vpop.f32.mrf.mxu0
      %v5680 = vadd.f32 0.0, %v5679
      %v5681 = vpop.f32.mrf.mxu0
      %v5682 = vpop.f32.mrf.mxu0
      %v5683 = vadd.f32 0.0, %v5682
      %v5684 = vpop.f32.mrf.mxu0
      %5685 = vmatprep.mubr.bf16.mxu0 0
      %5686 = vmatmul.mubr.bf16.gmra.mxu0 %v5467
      %v5687 = vpop.f32.mrf.mxu0
      %v5688 = vadd.f32 0.0, %v5687
      %v5689 = vpop.f32.mrf.mxu0
      %v5690 = vpop.f32.mrf.mxu0
      %v5691 = vadd.f32 0.0, %v5690
      %v5692 = vpop.f32.mrf.mxu0
      %5693 = vdwg.mxu0
      %v5694 = vadd.f32 %v5420, %v5568
      %v5695 = vadd.f32 %v5421, %v5571
      %v5696 = vadd.f32 %v5422, %v5576
      %v5697 = vadd.f32 %v5423, %v5579
      %v5698 = vadd.f32 %v5424, %v5584
      %v5699 = vadd.f32 %v5425, %v5587
      %v5700 = vadd.f32 %v5426, %v5592
      %v5701 = vadd.f32 %v5427, %v5595
      %v5702 = vadd.f32 %v5428, %v5600
      %v5703 = vadd.f32 %v5429, %v5603
      %v5704 = vadd.f32 %v5430, %v5608
      %v5705 = vadd.f32 %v5431, %v5611
      %v5706 = vadd.f32 %v5432, %v5616
      %v5707 = vadd.f32 %v5433, %v5619
      %v5708 = vadd.f32 %v5434, %v5624
      %v5709 = vadd.f32 %v5435, %v5627
      %v5710 = vadd.f32 %v5436, %v5632
      %v5711 = vadd.f32 %v5437, %v5635
      %v5712 = vadd.f32 %v5438, %v5640
      %v5713 = vadd.f32 %v5439, %v5643
      %v5714 = vadd.f32 %v5440, %v5648
      %v5715 = vadd.f32 %v5441, %v5651
      %v5716 = vadd.f32 %v5442, %v5656
      %v5717 = vadd.f32 %v5443, %v5659
      %v5718 = vadd.f32 %v5444, %v5664
      %v5719 = vadd.f32 %v5445, %v5667
      %v5720 = vadd.f32 %v5446, %v5672
      %v5721 = vadd.f32 %v5447, %v5675
      %v5722 = vadd.f32 %v5448, %v5680
      %v5723 = vadd.f32 %v5449, %v5683
      %v5724 = vadd.f32 %v5450, %v5688
      %v5725 = vadd.f32 %v5451, %v5691
      %5726 = vst [vmem:[#allocation3] sm:$0xff] %v5694
      %5727 = vst [vmem:[#allocation3 + $0x8] sm:$0xff] %v5695
      %5728 = vst [vmem:[#allocation3 + $0x10] sm:$0xff] %v5696
      %5729 = vst [vmem:[#allocation3 + $0x18] sm:$0xff] %v5697
      %5730 = vst [vmem:[#allocation3 + $0x20] sm:$0xff] %v5698
      %5731 = vst [vmem:[#allocation3 + $0x28] sm:$0xff] %v5699
      %5732 = vst [vmem:[#allocation3 + $0x30] sm:$0xff] %v5700
      %5733 = vst [vmem:[#allocation3 + $0x38] sm:$0xff] %v5701
      %5734 = vst [vmem:[#allocation3 + $0x40] sm:$0xff] %v5702
      %5735 = vst [vmem:[#allocation3 + $0x48] sm:$0xff] %v5703
      %5736 = vst [vmem:[#allocation3 + $0x50] sm:$0xff] %v5704
      %5737 = vst [vmem:[#allocation3 + $0x58] sm:$0xff] %v5705
      %5738 = vst [vmem:[#allocation3 + $0x60] sm:$0xff] %v5706
      %5739 = vst [vmem:[#allocation3 + $0x68] sm:$0xff] %v5707
      %5740 = vst [vmem:[#allocation3 + $0x70] sm:$0xff] %v5708
      %5741 = vst [vmem:[#allocation3 + $0x78] sm:$0xff] %v5709
      %5742 = vst [vmem:[#allocation3 + $0x80] sm:$0xff] %v5710
      %5743 = vst [vmem:[#allocation3 + $0x88] sm:$0xff] %v5711
      %5744 = vst [vmem:[#allocation3 + $0x90] sm:$0xff] %v5712
      %5745 = vst [vmem:[#allocation3 + $0x98] sm:$0xff] %v5713
      %5746 = vst [vmem:[#allocation3 + $0xa0] sm:$0xff] %v5714
      %5747 = vst [vmem:[#allocation3 + $0xa8] sm:$0xff] %v5715
      %5748 = vst [vmem:[#allocation3 + $0xb0] sm:$0xff] %v5716
      %5749 = vst [vmem:[#allocation3 + $0xb8] sm:$0xff] %v5717
      %5750 = vst [vmem:[#allocation3 + $0xc0] sm:$0xff] %v5718
      %5751 = vst [vmem:[#allocation3 + $0xc8] sm:$0xff] %v5719
      %5752 = vst [vmem:[#allocation3 + $0xd0] sm:$0xff] %v5720
      %5753 = vst [vmem:[#allocation3 + $0xd8] sm:$0xff] %v5721
      %5754 = vst [vmem:[#allocation3 + $0xe0] sm:$0xff] %v5722
      %5755 = vst [vmem:[#allocation3 + $0xe8] sm:$0xff] %v5723
      %5756 = vst [vmem:[#allocation3 + $0xf0] sm:$0xff] %v5724
      %5757 = vst [vmem:[#allocation3 + $0xf8] sm:$0xff] %v5725
      %v5758 = vld [vmem:[%s3843 + $0x9] sm:$0xff]
      %v5759 = vld [vmem:[%s3843 + $0x11] sm:$0xff]
      %v5760 = vld [vmem:[%s3843 + $0x29] sm:$0xff]
      %v5761 = vld [vmem:[%s3843 + $0x31] sm:$0xff]
      %v5762 = vld [vmem:[%s3843 + $0x49] sm:$0xff]
      %v5763 = vld [vmem:[%s3843 + $0x51] sm:$0xff]
      %v5764 = vld [vmem:[%s3843 + $0x69] sm:$0xff]
      %v5765 = vld [vmem:[%s3843 + $0x71] sm:$0xff]
      %v5766 = vld [vmem:[%s3843 + $0x89] sm:$0xff]
      %v5767 = vld [vmem:[%s3843 + $0x91] sm:$0xff]
      %v5768 = vld [vmem:[%s3843 + $0xa9] sm:$0xff]
      %v5769 = vld [vmem:[%s3843 + $0xb1] sm:$0xff]
      %v5770 = vld [vmem:[%s3843 + $0xc9] sm:$0xff]
      %v5771 = vld [vmem:[%s3843 + $0xd1] sm:$0xff]
      %v5772 = vld [vmem:[%s3843 + $0xe9] sm:$0xff]
      %v5773 = vld [vmem:[%s3843 + $0xf1] sm:$0xff]
      %v5774 = vld [vmem:[%s3843 + $0x109] sm:$0xff]
      %v5775 = vld [vmem:[%s3843 + $0x111] sm:$0xff]
      %v5776 = vld [vmem:[%s3843 + $0x129] sm:$0xff]
      %v5777 = vld [vmem:[%s3843 + $0x131] sm:$0xff]
      %v5778 = vld [vmem:[%s3843 + $0x149] sm:$0xff]
      %v5779 = vld [vmem:[%s3843 + $0x151] sm:$0xff]
      %v5780 = vld [vmem:[%s3843 + $0x169] sm:$0xff]
      %v5781 = vld [vmem:[%s3843 + $0x171] sm:$0xff]
      %v5782 = vld [vmem:[%s3843 + $0x189] sm:$0xff]
      %v5783 = vld [vmem:[%s3843 + $0x191] sm:$0xff]
      %v5784 = vld [vmem:[%s3843 + $0x1a9] sm:$0xff]
      %v5785 = vld [vmem:[%s3843 + $0x1b1] sm:$0xff]
      %v5786 = vld [vmem:[%s3843 + $0x1c9] sm:$0xff]
      %v5787 = vld [vmem:[%s3843 + $0x1d1] sm:$0xff]
      %v5788 = vld [vmem:[%s3843 + $0x1e9] sm:$0xff]
      %v5789 = vld [vmem:[%s3843 + $0x1f1] sm:$0xff]
      %v5790 = vld [vmem:[#allocation3] sm:$0xff]
      %v5791 = vld [vmem:[#allocation3 + $0x8] sm:$0xff]
      %v5792 = vld [vmem:[#allocation3 + $0x10] sm:$0xff]
      %v5793 = vld [vmem:[#allocation3 + $0x18] sm:$0xff]
      %v5794 = vld [vmem:[#allocation3 + $0x20] sm:$0xff]
      %v5795 = vld [vmem:[#allocation3 + $0x28] sm:$0xff]
      %v5796 = vld [vmem:[#allocation3 + $0x30] sm:$0xff]
      %v5797 = vld [vmem:[#allocation3 + $0x38] sm:$0xff]
      %v5798 = vld [vmem:[#allocation3 + $0x40] sm:$0xff]
      %v5799 = vld [vmem:[#allocation3 + $0x48] sm:$0xff]
      %v5800 = vld [vmem:[#allocation3 + $0x50] sm:$0xff]
      %v5801 = vld [vmem:[#allocation3 + $0x58] sm:$0xff]
      %v5802 = vld [vmem:[#allocation3 + $0x60] sm:$0xff]
      %v5803 = vld [vmem:[#allocation3 + $0x68] sm:$0xff]
      %v5804 = vld [vmem:[#allocation3 + $0x70] sm:$0xff]
      %v5805 = vld [vmem:[#allocation3 + $0x78] sm:$0xff]
      %v5806 = vld [vmem:[#allocation3 + $0x80] sm:$0xff]
      %v5807 = vld [vmem:[#allocation3 + $0x88] sm:$0xff]
      %v5808 = vld [vmem:[#allocation3 + $0x90] sm:$0xff]
      %v5809 = vld [vmem:[#allocation3 + $0x98] sm:$0xff]
      %v5810 = vld [vmem:[#allocation3 + $0xa0] sm:$0xff]
      %v5811 = vld [vmem:[#allocation3 + $0xa8] sm:$0xff]
      %v5812 = vld [vmem:[#allocation3 + $0xb0] sm:$0xff]
      %v5813 = vld [vmem:[#allocation3 + $0xb8] sm:$0xff]
      %v5814 = vld [vmem:[#allocation3 + $0xc0] sm:$0xff]
      %v5815 = vld [vmem:[#allocation3 + $0xc8] sm:$0xff]
      %v5816 = vld [vmem:[#allocation3 + $0xd0] sm:$0xff]
      %v5817 = vld [vmem:[#allocation3 + $0xd8] sm:$0xff]
      %v5818 = vld [vmem:[#allocation3 + $0xe0] sm:$0xff]
      %v5819 = vld [vmem:[#allocation3 + $0xe8] sm:$0xff]
      %v5820 = vld [vmem:[#allocation3 + $0xf0] sm:$0xff]
      %v5821 = vld [vmem:[#allocation3 + $0xf8] sm:$0xff]
      %v5822 = vpack.c.bf16 %v5759, %v5758
      %v5823 = vpack.c.bf16 %v5761, %v5760
      %v5824 = vpack.c.bf16 %v5763, %v5762
      %v5825 = vpack.c.bf16 %v5765, %v5764
      %v5826 = vpack.c.bf16 %v5767, %v5766
      %v5827 = vpack.c.bf16 %v5769, %v5768
      %v5828 = vpack.c.bf16 %v5771, %v5770
      %v5829 = vpack.c.bf16 %v5773, %v5772
      %v5830 = vpack.c.bf16 %v5775, %v5774
      %v5831 = vpack.c.bf16 %v5777, %v5776
      %v5832 = vpack.c.bf16 %v5779, %v5778
      %v5833 = vpack.c.bf16 %v5781, %v5780
      %v5834 = vpack.c.bf16 %v5783, %v5782
      %v5835 = vpack.c.bf16 %v5785, %v5784
      %v5836 = vpack.c.bf16 %v5787, %v5786
      %v5837 = vpack.c.bf16 %v5789, %v5788
      %s5838 = scalar_lea.vmem %s3, 320
      %v5839 = vld [vmem:[%s5838] sm:$0xf]
      %v5840 = vld [vmem:[%s5838 + $0x4] sm:$0xf]
      %v5841 = vld [vmem:[%s5838 + $0x8] sm:$0xf]
      %v5842 = vld [vmem:[%s5838 + $0xc] sm:$0xf]
      %v5843 = vld [vmem:[%s5838 + $0x10] sm:$0xf]
      %v5844 = vld [vmem:[%s5838 + $0x14] sm:$0xf]
      %v5845 = vld [vmem:[%s5838 + $0x18] sm:$0xf]
      %v5846 = vld [vmem:[%s5838 + $0x1c] sm:$0xf]
      %v5847 = vld [vmem:[%s5838 + $0x20] sm:$0xf]
      %v5848 = vld [vmem:[%s5838 + $0x24] sm:$0xf]
      %v5849 = vld [vmem:[%s5838 + $0x28] sm:$0xf]
      %v5850 = vld [vmem:[%s5838 + $0x2c] sm:$0xf]
      %v5851 = vld [vmem:[%s5838 + $0x30] sm:$0xf]
      %v5852 = vld [vmem:[%s5838 + $0x34] sm:$0xf]
      %v5853 = vld [vmem:[%s5838 + $0x38] sm:$0xf]
      %v5854 = vld [vmem:[%s5838 + $0x3c] sm:$0xf]
      %v5871 = vunpack.c.l.b16 %v5839
      %v5872 = vunpack.c.l.b16 %v5840
      %v5873 = vunpack.c.l.b16 %v5841
      %v5874 = vunpack.c.l.b16 %v5842
      %v5875 = vunpack.c.l.b16 %v5843
      %v5876 = vunpack.c.l.b16 %v5844
      %v5877 = vunpack.c.l.b16 %v5845
      %v5878 = vunpack.c.l.b16 %v5846
      %v5879 = vunpack.c.l.b16 %v5847
      %v5880 = vunpack.c.l.b16 %v5848
      %v5881 = vunpack.c.l.b16 %v5849
      %v5882 = vunpack.c.l.b16 %v5850
      %v5883 = vunpack.c.l.b16 %v5851
      %v5884 = vunpack.c.l.b16 %v5852
      %v5885 = vunpack.c.l.b16 %v5853
      %v5886 = vunpack.c.l.b16 %v5854
      %v5887 = vpack.c.b16 %v5872, %v5871
      %v5888 = vpack.c.b16 %v5874, %v5873
      %v5889 = vpack.c.b16 %v5876, %v5875
      %v5890 = vpack.c.b16 %v5878, %v5877
      %v5891 = vpack.c.b16 %v5880, %v5879
      %v5892 = vpack.c.b16 %v5882, %v5881
      %v5893 = vpack.c.b16 %v5884, %v5883
      %v5894 = vpack.c.b16 %v5886, %v5885
      %5903 = vmatprep.subr.bf16.mxu0 0
      %5904 = vmatpush1.bf16.msra.mxu0 %v5894
      %5905 = vmatprep.subr.bf16.mxu0 0
      %5906 = vmatpush1.bf16.msra.mxu0 %v5893
      %5907 = vmatprep.subr.bf16.mxu0 0
      %5908 = vmatpush1.bf16.msra.mxu0 %v5892
      %5909 = vmatprep.subr.bf16.mxu0 0
      %5910 = vmatpush1.bf16.msra.mxu0 %v5891
      %5911 = vmatprep.subr.bf16.mxu0 0
      %5912 = vmatpush1.bf16.msra.mxu0 %v5890
      %5913 = vmatprep.subr.bf16.mxu0 0
      %5914 = vmatpush1.bf16.msra.mxu0 %v5889
      %5915 = vmatprep.subr.bf16.mxu0 0
      %5916 = vmatpush1.bf16.msra.mxu0 %v5888
      %5917 = vmatprep.subr.bf16.mxu0 0
      %5918 = vmatpush1.bf16.msra.mxu0 %v5887
      %5919 = vmatprep.subr.bf16.mxu0 0
      %5920 = vmatpush2.bf16.msra.mxu0 0
      %5921 = vmatprep.subr.bf16.mxu0 0
      %5922 = vmatpush2.bf16.msra.mxu0 0
      %5923 = vmatprep.subr.bf16.mxu0 0
      %5924 = vmatpush2.bf16.msra.mxu0 0
      %5925 = vmatprep.subr.bf16.mxu0 0
      %5926 = vmatpush2.bf16.msra.mxu0 0
      %5927 = vmatprep.subr.bf16.mxu0 0
      %5928 = vmatpush2.bf16.msra.mxu0 0
      %5929 = vmatprep.subr.bf16.mxu0 0
      %5930 = vmatpush2.bf16.msra.mxu0 0
      %5931 = vmatprep.subr.bf16.mxu0 0
      %5932 = vmatpush2.bf16.msra.mxu0 0
      %5933 = vmatprep.subr.bf16.mxu0 0
      %5934 = vmatpush2.bf16.msra.mxu0 0
      %5935 = vmatprep.mubr.bf16.mxu0 0
      %5936 = vmatmul.mubr.bf16.gmra.mxu0 %v5822
      %v5937 = vpop.f32.mrf.mxu0
      %v5938 = vadd.f32 0.0, %v5937
      %v5939 = vpop.f32.mrf.mxu0
      %v5940 = vpop.f32.mrf.mxu0
      %v5941 = vadd.f32 0.0, %v5940
      %v5942 = vpop.f32.mrf.mxu0
      %5943 = vmatprep.mubr.bf16.mxu0 0
      %5944 = vmatmul.mubr.bf16.gmra.mxu0 %v5823
      %v5945 = vpop.f32.mrf.mxu0
      %v5946 = vadd.f32 0.0, %v5945
      %v5947 = vpop.f32.mrf.mxu0
      %v5948 = vpop.f32.mrf.mxu0
      %v5949 = vadd.f32 0.0, %v5948
      %v5950 = vpop.f32.mrf.mxu0
      %5951 = vmatprep.mubr.bf16.mxu0 0
      %5952 = vmatmul.mubr.bf16.gmra.mxu0 %v5824
      %v5953 = vpop.f32.mrf.mxu0
      %v5954 = vadd.f32 0.0, %v5953
      %v5955 = vpop.f32.mrf.mxu0
      %v5956 = vpop.f32.mrf.mxu0
      %v5957 = vadd.f32 0.0, %v5956
      %v5958 = vpop.f32.mrf.mxu0
      %5959 = vmatprep.mubr.bf16.mxu0 0
      %5960 = vmatmul.mubr.bf16.gmra.mxu0 %v5825
      %v5961 = vpop.f32.mrf.mxu0
      %v5962 = vadd.f32 0.0, %v5961
      %v5963 = vpop.f32.mrf.mxu0
      %v5964 = vpop.f32.mrf.mxu0
      %v5965 = vadd.f32 0.0, %v5964
      %v5966 = vpop.f32.mrf.mxu0
      %5967 = vmatprep.mubr.bf16.mxu0 0
      %5968 = vmatmul.mubr.bf16.gmra.mxu0 %v5826
      %v5969 = vpop.f32.mrf.mxu0
      %v5970 = vadd.f32 0.0, %v5969
      %v5971 = vpop.f32.mrf.mxu0
      %v5972 = vpop.f32.mrf.mxu0
      %v5973 = vadd.f32 0.0, %v5972
      %v5974 = vpop.f32.mrf.mxu0
      %5975 = vmatprep.mubr.bf16.mxu0 0
      %5976 = vmatmul.mubr.bf16.gmra.mxu0 %v5827
      %v5977 = vpop.f32.mrf.mxu0
      %v5978 = vadd.f32 0.0, %v5977
      %v5979 = vpop.f32.mrf.mxu0
      %v5980 = vpop.f32.mrf.mxu0
      %v5981 = vadd.f32 0.0, %v5980
      %v5982 = vpop.f32.mrf.mxu0
      %5983 = vmatprep.mubr.bf16.mxu0 0
      %5984 = vmatmul.mubr.bf16.gmra.mxu0 %v5828
      %v5985 = vpop.f32.mrf.mxu0
      %v5986 = vadd.f32 0.0, %v5985
      %v5987 = vpop.f32.mrf.mxu0
      %v5988 = vpop.f32.mrf.mxu0
      %v5989 = vadd.f32 0.0, %v5988
      %v5990 = vpop.f32.mrf.mxu0
      %5991 = vmatprep.mubr.bf16.mxu0 0
      %5992 = vmatmul.mubr.bf16.gmra.mxu0 %v5829
      %v5993 = vpop.f32.mrf.mxu0
      %v5994 = vadd.f32 0.0, %v5993
      %v5995 = vpop.f32.mrf.mxu0
      %v5996 = vpop.f32.mrf.mxu0
      %v5997 = vadd.f32 0.0, %v5996
      %v5998 = vpop.f32.mrf.mxu0
      %5999 = vmatprep.mubr.bf16.mxu0 0
      %6000 = vmatmul.mubr.bf16.gmra.mxu0 %v5830
      %v6001 = vpop.f32.mrf.mxu0
      %v6002 = vadd.f32 0.0, %v6001
      %v6003 = vpop.f32.mrf.mxu0
      %v6004 = vpop.f32.mrf.mxu0
      %v6005 = vadd.f32 0.0, %v6004
      %v6006 = vpop.f32.mrf.mxu0
      %6007 = vmatprep.mubr.bf16.mxu0 0
      %6008 = vmatmul.mubr.bf16.gmra.mxu0 %v5831
      %v6009 = vpop.f32.mrf.mxu0
      %v6010 = vadd.f32 0.0, %v6009
      %v6011 = vpop.f32.mrf.mxu0
      %v6012 = vpop.f32.mrf.mxu0
      %v6013 = vadd.f32 0.0, %v6012
      %v6014 = vpop.f32.mrf.mxu0
      %6015 = vmatprep.mubr.bf16.mxu0 0
      %6016 = vmatmul.mubr.bf16.gmra.mxu0 %v5832
      %v6017 = vpop.f32.mrf.mxu0
      %v6018 = vadd.f32 0.0, %v6017
      %v6019 = vpop.f32.mrf.mxu0
      %v6020 = vpop.f32.mrf.mxu0
      %v6021 = vadd.f32 0.0, %v6020
      %v6022 = vpop.f32.mrf.mxu0
      %6023 = vmatprep.mubr.bf16.mxu0 0
      %6024 = vmatmul.mubr.bf16.gmra.mxu0 %v5833
      %v6025 = vpop.f32.mrf.mxu0
      %v6026 = vadd.f32 0.0, %v6025
      %v6027 = vpop.f32.mrf.mxu0
      %v6028 = vpop.f32.mrf.mxu0
      %v6029 = vadd.f32 0.0, %v6028
      %v6030 = vpop.f32.mrf.mxu0
      %6031 = vmatprep.mubr.bf16.mxu0 0
      %6032 = vmatmul.mubr.bf16.gmra.mxu0 %v5834
      %v6033 = vpop.f32.mrf.mxu0
      %v6034 = vadd.f32 0.0, %v6033
      %v6035 = vpop.f32.mrf.mxu0
      %v6036 = vpop.f32.mrf.mxu0
      %v6037 = vadd.f32 0.0, %v6036
      %v6038 = vpop.f32.mrf.mxu0
      %6039 = vmatprep.mubr.bf16.mxu0 0
      %6040 = vmatmul.mubr.bf16.gmra.mxu0 %v5835
      %v6041 = vpop.f32.mrf.mxu0
      %v6042 = vadd.f32 0.0, %v6041
      %v6043 = vpop.f32.mrf.mxu0
      %v6044 = vpop.f32.mrf.mxu0
      %v6045 = vadd.f32 0.0, %v6044
      %v6046 = vpop.f32.mrf.mxu0
      %6047 = vmatprep.mubr.bf16.mxu0 0
      %6048 = vmatmul.mubr.bf16.gmra.mxu0 %v5836
      %v6049 = vpop.f32.mrf.mxu0
      %v6050 = vadd.f32 0.0, %v6049
      %v6051 = vpop.f32.mrf.mxu0
      %v6052 = vpop.f32.mrf.mxu0
      %v6053 = vadd.f32 0.0, %v6052
      %v6054 = vpop.f32.mrf.mxu0
      %6055 = vmatprep.mubr.bf16.mxu0 0
      %6056 = vmatmul.mubr.bf16.gmra.mxu0 %v5837
      %v6057 = vpop.f32.mrf.mxu0
      %v6058 = vadd.f32 0.0, %v6057
      %v6059 = vpop.f32.mrf.mxu0
      %v6060 = vpop.f32.mrf.mxu0
      %v6061 = vadd.f32 0.0, %v6060
      %v6062 = vpop.f32.mrf.mxu0
      %6063 = vdwg.mxu0
      %v6064 = vadd.f32 %v5790, %v5938
      %v6065 = vadd.f32 %v5791, %v5941
      %v6066 = vadd.f32 %v5792, %v5946
      %v6067 = vadd.f32 %v5793, %v5949
      %v6068 = vadd.f32 %v5794, %v5954
      %v6069 = vadd.f32 %v5795, %v5957
      %v6070 = vadd.f32 %v5796, %v5962
      %v6071 = vadd.f32 %v5797, %v5965
      %v6072 = vadd.f32 %v5798, %v5970
      %v6073 = vadd.f32 %v5799, %v5973
      %v6074 = vadd.f32 %v5800, %v5978
      %v6075 = vadd.f32 %v5801, %v5981
      %v6076 = vadd.f32 %v5802, %v5986
      %v6077 = vadd.f32 %v5803, %v5989
      %v6078 = vadd.f32 %v5804, %v5994
      %v6079 = vadd.f32 %v5805, %v5997
      %v6080 = vadd.f32 %v5806, %v6002
      %v6081 = vadd.f32 %v5807, %v6005
      %v6082 = vadd.f32 %v5808, %v6010
      %v6083 = vadd.f32 %v5809, %v6013
      %v6084 = vadd.f32 %v5810, %v6018
      %v6085 = vadd.f32 %v5811, %v6021
      %v6086 = vadd.f32 %v5812, %v6026
      %v6087 = vadd.f32 %v5813, %v6029
      %v6088 = vadd.f32 %v5814, %v6034
      %v6089 = vadd.f32 %v5815, %v6037
      %v6090 = vadd.f32 %v5816, %v6042
      %v6091 = vadd.f32 %v5817, %v6045
      %v6092 = vadd.f32 %v5818, %v6050
      %v6093 = vadd.f32 %v5819, %v6053
      %v6094 = vadd.f32 %v5820, %v6058
      %v6095 = vadd.f32 %v5821, %v6061
      %6096 = vst [vmem:[#allocation3] sm:$0xff] %v6064
      %6097 = vst [vmem:[#allocation3 + $0x8] sm:$0xff] %v6065
      %6098 = vst [vmem:[#allocation3 + $0x10] sm:$0xff] %v6066
      %6099 = vst [vmem:[#allocation3 + $0x18] sm:$0xff] %v6067
      %6100 = vst [vmem:[#allocation3 + $0x20] sm:$0xff] %v6068
      %6101 = vst [vmem:[#allocation3 + $0x28] sm:$0xff] %v6069
      %6102 = vst [vmem:[#allocation3 + $0x30] sm:$0xff] %v6070
      %6103 = vst [vmem:[#allocation3 + $0x38] sm:$0xff] %v6071
      %6104 = vst [vmem:[#allocation3 + $0x40] sm:$0xff] %v6072
      %6105 = vst [vmem:[#allocation3 + $0x48] sm:$0xff] %v6073
      %6106 = vst [vmem:[#allocation3 + $0x50] sm:$0xff] %v6074
      %6107 = vst [vmem:[#allocation3 + $0x58] sm:$0xff] %v6075
      %6108 = vst [vmem:[#allocation3 + $0x60] sm:$0xff] %v6076
      %6109 = vst [vmem:[#allocation3 + $0x68] sm:$0xff] %v6077
      %6110 = vst [vmem:[#allocation3 + $0x70] sm:$0xff] %v6078
      %6111 = vst [vmem:[#allocation3 + $0x78] sm:$0xff] %v6079
      %6112 = vst [vmem:[#allocation3 + $0x80] sm:$0xff] %v6080
      %6113 = vst [vmem:[#allocation3 + $0x88] sm:$0xff] %v6081
      %6114 = vst [vmem:[#allocation3 + $0x90] sm:$0xff] %v6082
      %6115 = vst [vmem:[#allocation3 + $0x98] sm:$0xff] %v6083
      %6116 = vst [vmem:[#allocation3 + $0xa0] sm:$0xff] %v6084
      %6117 = vst [vmem:[#allocation3 + $0xa8] sm:$0xff] %v6085
      %6118 = vst [vmem:[#allocation3 + $0xb0] sm:$0xff] %v6086
      %6119 = vst [vmem:[#allocation3 + $0xb8] sm:$0xff] %v6087
      %6120 = vst [vmem:[#allocation3 + $0xc0] sm:$0xff] %v6088
      %6121 = vst [vmem:[#allocation3 + $0xc8] sm:$0xff] %v6089
      %6122 = vst [vmem:[#allocation3 + $0xd0] sm:$0xff] %v6090
      %6123 = vst [vmem:[#allocation3 + $0xd8] sm:$0xff] %v6091
      %6124 = vst [vmem:[#allocation3 + $0xe0] sm:$0xff] %v6092
      %6125 = vst [vmem:[#allocation3 + $0xe8] sm:$0xff] %v6093
      %6126 = vst [vmem:[#allocation3 + $0xf0] sm:$0xff] %v6094
      %6127 = vst [vmem:[#allocation3 + $0xf8] sm:$0xff] %v6095
      %s6128 = scalar_lea.vmem [#allocation2], 288
      %v6129 = vld [vmem:[%s6128 + $0x7] sm:$0xff]
      %v6130 = vld [vmem:[%s6128 + $0xf] sm:$0xff]
      %v6131 = vld [vmem:[%s6128 + $0x27] sm:$0xff]
      %v6132 = vld [vmem:[%s6128 + $0x2f] sm:$0xff]
      %v6133 = vld [vmem:[%s6128 + $0x47] sm:$0xff]
      %v6134 = vld [vmem:[%s6128 + $0x4f] sm:$0xff]
      %v6135 = vld [vmem:[%s6128 + $0x67] sm:$0xff]
      %v6136 = vld [vmem:[%s6128 + $0x6f] sm:$0xff]
      %v6137 = vld [vmem:[%s6128 + $0x87] sm:$0xff]
      %v6138 = vld [vmem:[%s6128 + $0x8f] sm:$0xff]
      %v6139 = vld [vmem:[%s6128 + $0xa7] sm:$0xff]
      %v6140 = vld [vmem:[%s6128 + $0xaf] sm:$0xff]
      %v6141 = vld [vmem:[%s6128 + $0xc7] sm:$0xff]
      %v6142 = vld [vmem:[%s6128 + $0xcf] sm:$0xff]
      %v6143 = vld [vmem:[%s6128 + $0xe7] sm:$0xff]
      %v6144 = vld [vmem:[%s6128 + $0xef] sm:$0xff]
      %v6145 = vld [vmem:[%s6128 + $0x107] sm:$0xff]
      %v6146 = vld [vmem:[%s6128 + $0x10f] sm:$0xff]
      %v6147 = vld [vmem:[%s6128 + $0x127] sm:$0xff]
      %v6148 = vld [vmem:[%s6128 + $0x12f] sm:$0xff]
      %v6149 = vld [vmem:[%s6128 + $0x147] sm:$0xff]
      %v6150 = vld [vmem:[%s6128 + $0x14f] sm:$0xff]
      %v6151 = vld [vmem:[%s6128 + $0x167] sm:$0xff]
      %v6152 = vld [vmem:[%s6128 + $0x16f] sm:$0xff]
      %v6153 = vld [vmem:[%s6128 + $0x187] sm:$0xff]
      %v6154 = vld [vmem:[%s6128 + $0x18f] sm:$0xff]
      %v6155 = vld [vmem:[%s6128 + $0x1a7] sm:$0xff]
      %v6156 = vld [vmem:[%s6128 + $0x1af] sm:$0xff]
      %v6157 = vld [vmem:[%s6128 + $0x1c7] sm:$0xff]
      %v6158 = vld [vmem:[%s6128 + $0x1cf] sm:$0xff]
      %v6159 = vld [vmem:[%s6128 + $0x1e7] sm:$0xff]
      %v6160 = vld [vmem:[%s6128 + $0x1ef] sm:$0xff]
      %v6161 = vld [vmem:[#allocation3] sm:$0xff]
      %v6162 = vld [vmem:[#allocation3 + $0x8] sm:$0xff]
      %v6163 = vld [vmem:[#allocation3 + $0x10] sm:$0xff]
      %v6164 = vld [vmem:[#allocation3 + $0x18] sm:$0xff]
      %v6165 = vld [vmem:[#allocation3 + $0x20] sm:$0xff]
      %v6166 = vld [vmem:[#allocation3 + $0x28] sm:$0xff]
      %v6167 = vld [vmem:[#allocation3 + $0x30] sm:$0xff]
      %v6168 = vld [vmem:[#allocation3 + $0x38] sm:$0xff]
      %v6169 = vld [vmem:[#allocation3 + $0x40] sm:$0xff]
      %v6170 = vld [vmem:[#allocation3 + $0x48] sm:$0xff]
      %v6171 = vld [vmem:[#allocation3 + $0x50] sm:$0xff]
      %v6172 = vld [vmem:[#allocation3 + $0x58] sm:$0xff]
      %v6173 = vld [vmem:[#allocation3 + $0x60] sm:$0xff]
      %v6174 = vld [vmem:[#allocation3 + $0x68] sm:$0xff]
      %v6175 = vld [vmem:[#allocation3 + $0x70] sm:$0xff]
      %v6176 = vld [vmem:[#allocation3 + $0x78] sm:$0xff]
      %v6177 = vld [vmem:[#allocation3 + $0x80] sm:$0xff]
      %v6178 = vld [vmem:[#allocation3 + $0x88] sm:$0xff]
      %v6179 = vld [vmem:[#allocation3 + $0x90] sm:$0xff]
      %v6180 = vld [vmem:[#allocation3 + $0x98] sm:$0xff]
      %v6181 = vld [vmem:[#allocation3 + $0xa0] sm:$0xff]
      %v6182 = vld [vmem:[#allocation3 + $0xa8] sm:$0xff]
      %v6183 = vld [vmem:[#allocation3 + $0xb0] sm:$0xff]
      %v6184 = vld [vmem:[#allocation3 + $0xb8] sm:$0xff]
      %v6185 = vld [vmem:[#allocation3 + $0xc0] sm:$0xff]
      %v6186 = vld [vmem:[#allocation3 + $0xc8] sm:$0xff]
      %v6187 = vld [vmem:[#allocation3 + $0xd0] sm:$0xff]
      %v6188 = vld [vmem:[#allocation3 + $0xd8] sm:$0xff]
      %v6189 = vld [vmem:[#allocation3 + $0xe0] sm:$0xff]
      %v6190 = vld [vmem:[#allocation3 + $0xe8] sm:$0xff]
      %v6191 = vld [vmem:[#allocation3 + $0xf0] sm:$0xff]
      %v6192 = vld [vmem:[#allocation3 + $0xf8] sm:$0xff]
      %v6193 = vpack.c.bf16 %v6130, %v6129
      %v6194 = vpack.c.bf16 %v6132, %v6131
      %v6195 = vpack.c.bf16 %v6134, %v6133
      %v6196 = vpack.c.bf16 %v6136, %v6135
      %v6197 = vpack.c.bf16 %v6138, %v6137
      %v6198 = vpack.c.bf16 %v6140, %v6139
      %v6199 = vpack.c.bf16 %v6142, %v6141
      %v6200 = vpack.c.bf16 %v6144, %v6143
      %v6201 = vpack.c.bf16 %v6146, %v6145
      %v6202 = vpack.c.bf16 %v6148, %v6147
      %v6203 = vpack.c.bf16 %v6150, %v6149
      %v6204 = vpack.c.bf16 %v6152, %v6151
      %v6205 = vpack.c.bf16 %v6154, %v6153
      %v6206 = vpack.c.bf16 %v6156, %v6155
      %v6207 = vpack.c.bf16 %v6158, %v6157
      %v6208 = vpack.c.bf16 %v6160, %v6159
      %s6209 = scalar_lea.vmem %s3, 384
      %v6210 = vld [vmem:[%s6209] sm:$0xf]
      %v6211 = vld [vmem:[%s6209 + $0x4] sm:$0xf]
      %v6212 = vld [vmem:[%s6209 + $0x8] sm:$0xf]
      %v6213 = vld [vmem:[%s6209 + $0xc] sm:$0xf]
      %v6214 = vld [vmem:[%s6209 + $0x10] sm:$0xf]
      %v6215 = vld [vmem:[%s6209 + $0x14] sm:$0xf]
      %v6216 = vld [vmem:[%s6209 + $0x18] sm:$0xf]
      %v6217 = vld [vmem:[%s6209 + $0x1c] sm:$0xf]
      %v6218 = vld [vmem:[%s6209 + $0x20] sm:$0xf]
      %v6219 = vld [vmem:[%s6209 + $0x24] sm:$0xf]
      %v6220 = vld [vmem:[%s6209 + $0x28] sm:$0xf]
      %v6221 = vld [vmem:[%s6209 + $0x2c] sm:$0xf]
      %v6222 = vld [vmem:[%s6209 + $0x30] sm:$0xf]
      %v6223 = vld [vmem:[%s6209 + $0x34] sm:$0xf]
      %v6224 = vld [vmem:[%s6209 + $0x38] sm:$0xf]
      %v6225 = vld [vmem:[%s6209 + $0x3c] sm:$0xf]
      %v6242 = vunpack.c.l.b16 %v6210
      %v6243 = vunpack.c.l.b16 %v6211
      %v6244 = vunpack.c.l.b16 %v6212
      %v6245 = vunpack.c.l.b16 %v6213
      %v6246 = vunpack.c.l.b16 %v6214
      %v6247 = vunpack.c.l.b16 %v6215
      %v6248 = vunpack.c.l.b16 %v6216
      %v6249 = vunpack.c.l.b16 %v6217
      %v6250 = vunpack.c.l.b16 %v6218
      %v6251 = vunpack.c.l.b16 %v6219
      %v6252 = vunpack.c.l.b16 %v6220
      %v6253 = vunpack.c.l.b16 %v6221
      %v6254 = vunpack.c.l.b16 %v6222
      %v6255 = vunpack.c.l.b16 %v6223
      %v6256 = vunpack.c.l.b16 %v6224
      %v6257 = vunpack.c.l.b16 %v6225
      %v6258 = vpack.c.b16 %v6243, %v6242
      %v6259 = vpack.c.b16 %v6245, %v6244
      %v6260 = vpack.c.b16 %v6247, %v6246
      %v6261 = vpack.c.b16 %v6249, %v6248
      %v6262 = vpack.c.b16 %v6251, %v6250
      %v6263 = vpack.c.b16 %v6253, %v6252
      %v6264 = vpack.c.b16 %v6255, %v6254
      %v6265 = vpack.c.b16 %v6257, %v6256
      %6274 = vmatprep.subr.bf16.mxu0 0
      %6275 = vmatpush1.bf16.msra.mxu0 %v6265
      %6276 = vmatprep.subr.bf16.mxu0 0
      %6277 = vmatpush1.bf16.msra.mxu0 %v6264
      %6278 = vmatprep.subr.bf16.mxu0 0
      %6279 = vmatpush1.bf16.msra.mxu0 %v6263
      %6280 = vmatprep.subr.bf16.mxu0 0
      %6281 = vmatpush1.bf16.msra.mxu0 %v6262
      %6282 = vmatprep.subr.bf16.mxu0 0
      %6283 = vmatpush1.bf16.msra.mxu0 %v6261
      %6284 = vmatprep.subr.bf16.mxu0 0
      %6285 = vmatpush1.bf16.msra.mxu0 %v6260
      %6286 = vmatprep.subr.bf16.mxu0 0
      %6287 = vmatpush1.bf16.msra.mxu0 %v6259
      %6288 = vmatprep.subr.bf16.mxu0 0
      %6289 = vmatpush1.bf16.msra.mxu0 %v6258
      %6290 = vmatprep.subr.bf16.mxu0 0
      %6291 = vmatpush2.bf16.msra.mxu0 0
      %6292 = vmatprep.subr.bf16.mxu0 0
      %6293 = vmatpush2.bf16.msra.mxu0 0
      %6294 = vmatprep.subr.bf16.mxu0 0
      %6295 = vmatpush2.bf16.msra.mxu0 0
      %6296 = vmatprep.subr.bf16.mxu0 0
      %6297 = vmatpush2.bf16.msra.mxu0 0
      %6298 = vmatprep.subr.bf16.mxu0 0
      %6299 = vmatpush2.bf16.msra.mxu0 0
      %6300 = vmatprep.subr.bf16.mxu0 0
      %6301 = vmatpush2.bf16.msra.mxu0 0
      %6302 = vmatprep.subr.bf16.mxu0 0
      %6303 = vmatpush2.bf16.msra.mxu0 0
      %6304 = vmatprep.subr.bf16.mxu0 0
      %6305 = vmatpush2.bf16.msra.mxu0 0
      %6306 = vmatprep.mubr.bf16.mxu0 0
      %6307 = vmatmul.mubr.bf16.gmra.mxu0 %v6193
      %v6308 = vpop.f32.mrf.mxu0
      %v6309 = vadd.f32 0.0, %v6308
      %v6310 = vpop.f32.mrf.mxu0
      %v6311 = vpop.f32.mrf.mxu0
      %v6312 = vadd.f32 0.0, %v6311
      %v6313 = vpop.f32.mrf.mxu0
      %6314 = vmatprep.mubr.bf16.mxu0 0
      %6315 = vmatmul.mubr.bf16.gmra.mxu0 %v6194
      %v6316 = vpop.f32.mrf.mxu0
      %v6317 = vadd.f32 0.0, %v6316
      %v6318 = vpop.f32.mrf.mxu0
      %v6319 = vpop.f32.mrf.mxu0
      %v6320 = vadd.f32 0.0, %v6319
      %v6321 = vpop.f32.mrf.mxu0
      %6322 = vmatprep.mubr.bf16.mxu0 0
      %6323 = vmatmul.mubr.bf16.gmra.mxu0 %v6195
      %v6324 = vpop.f32.mrf.mxu0
      %v6325 = vadd.f32 0.0, %v6324
      %v6326 = vpop.f32.mrf.mxu0
      %v6327 = vpop.f32.mrf.mxu0
      %v6328 = vadd.f32 0.0, %v6327
      %v6329 = vpop.f32.mrf.mxu0
      %6330 = vmatprep.mubr.bf16.mxu0 0
      %6331 = vmatmul.mubr.bf16.gmra.mxu0 %v6196
      %v6332 = vpop.f32.mrf.mxu0
      %v6333 = vadd.f32 0.0, %v6332
      %v6334 = vpop.f32.mrf.mxu0
      %v6335 = vpop.f32.mrf.mxu0
      %v6336 = vadd.f32 0.0, %v6335
      %v6337 = vpop.f32.mrf.mxu0
      %6338 = vmatprep.mubr.bf16.mxu0 0
      %6339 = vmatmul.mubr.bf16.gmra.mxu0 %v6197
      %v6340 = vpop.f32.mrf.mxu0
      %v6341 = vadd.f32 0.0, %v6340
      %v6342 = vpop.f32.mrf.mxu0
      %v6343 = vpop.f32.mrf.mxu0
      %v6344 = vadd.f32 0.0, %v6343
      %v6345 = vpop.f32.mrf.mxu0
      %6346 = vmatprep.mubr.bf16.mxu0 0
      %6347 = vmatmul.mubr.bf16.gmra.mxu0 %v6198
      %v6348 = vpop.f32.mrf.mxu0
      %v6349 = vadd.f32 0.0, %v6348
      %v6350 = vpop.f32.mrf.mxu0
      %v6351 = vpop.f32.mrf.mxu0
      %v6352 = vadd.f32 0.0, %v6351
      %v6353 = vpop.f32.mrf.mxu0
      %6354 = vmatprep.mubr.bf16.mxu0 0
      %6355 = vmatmul.mubr.bf16.gmra.mxu0 %v6199
      %v6356 = vpop.f32.mrf.mxu0
      %v6357 = vadd.f32 0.0, %v6356
      %v6358 = vpop.f32.mrf.mxu0
      %v6359 = vpop.f32.mrf.mxu0
      %v6360 = vadd.f32 0.0, %v6359
      %v6361 = vpop.f32.mrf.mxu0
      %6362 = vmatprep.mubr.bf16.mxu0 0
      %6363 = vmatmul.mubr.bf16.gmra.mxu0 %v6200
      %v6364 = vpop.f32.mrf.mxu0
      %v6365 = vadd.f32 0.0, %v6364
      %v6366 = vpop.f32.mrf.mxu0
      %v6367 = vpop.f32.mrf.mxu0
      %v6368 = vadd.f32 0.0, %v6367
      %v6369 = vpop.f32.mrf.mxu0
      %6370 = vmatprep.mubr.bf16.mxu0 0
      %6371 = vmatmul.mubr.bf16.gmra.mxu0 %v6201
      %v6372 = vpop.f32.mrf.mxu0
      %v6373 = vadd.f32 0.0, %v6372
      %v6374 = vpop.f32.mrf.mxu0
      %v6375 = vpop.f32.mrf.mxu0
      %v6376 = vadd.f32 0.0, %v6375
      %v6377 = vpop.f32.mrf.mxu0
      %6378 = vmatprep.mubr.bf16.mxu0 0
      %6379 = vmatmul.mubr.bf16.gmra.mxu0 %v6202
      %v6380 = vpop.f32.mrf.mxu0
      %v6381 = vadd.f32 0.0, %v6380
      %v6382 = vpop.f32.mrf.mxu0
      %v6383 = vpop.f32.mrf.mxu0
      %v6384 = vadd.f32 0.0, %v6383
      %v6385 = vpop.f32.mrf.mxu0
      %6386 = vmatprep.mubr.bf16.mxu0 0
      %6387 = vmatmul.mubr.bf16.gmra.mxu0 %v6203
      %v6388 = vpop.f32.mrf.mxu0
      %v6389 = vadd.f32 0.0, %v6388
      %v6390 = vpop.f32.mrf.mxu0
      %v6391 = vpop.f32.mrf.mxu0
      %v6392 = vadd.f32 0.0, %v6391
      %v6393 = vpop.f32.mrf.mxu0
      %6394 = vmatprep.mubr.bf16.mxu0 0
      %6395 = vmatmul.mubr.bf16.gmra.mxu0 %v6204
      %v6396 = vpop.f32.mrf.mxu0
      %v6397 = vadd.f32 0.0, %v6396
      %v6398 = vpop.f32.mrf.mxu0
      %v6399 = vpop.f32.mrf.mxu0
      %v6400 = vadd.f32 0.0, %v6399
      %v6401 = vpop.f32.mrf.mxu0
      %6402 = vmatprep.mubr.bf16.mxu0 0
      %6403 = vmatmul.mubr.bf16.gmra.mxu0 %v6205
      %v6404 = vpop.f32.mrf.mxu0
      %v6405 = vadd.f32 0.0, %v6404
      %v6406 = vpop.f32.mrf.mxu0
      %v6407 = vpop.f32.mrf.mxu0
      %v6408 = vadd.f32 0.0, %v6407
      %v6409 = vpop.f32.mrf.mxu0
      %6410 = vmatprep.mubr.bf16.mxu0 0
      %6411 = vmatmul.mubr.bf16.gmra.mxu0 %v6206
      %v6412 = vpop.f32.mrf.mxu0
      %v6413 = vadd.f32 0.0, %v6412
      %v6414 = vpop.f32.mrf.mxu0
      %v6415 = vpop.f32.mrf.mxu0
      %v6416 = vadd.f32 0.0, %v6415
      %v6417 = vpop.f32.mrf.mxu0
      %6418 = vmatprep.mubr.bf16.mxu0 0
      %6419 = vmatmul.mubr.bf16.gmra.mxu0 %v6207
      %v6420 = vpop.f32.mrf.mxu0
      %v6421 = vadd.f32 0.0, %v6420
      %v6422 = vpop.f32.mrf.mxu0
      %v6423 = vpop.f32.mrf.mxu0
      %v6424 = vadd.f32 0.0, %v6423
      %v6425 = vpop.f32.mrf.mxu0
      %6426 = vmatprep.mubr.bf16.mxu0 0
      %6427 = vmatmul.mubr.bf16.gmra.mxu0 %v6208
      %v6428 = vpop.f32.mrf.mxu0
      %v6429 = vadd.f32 0.0, %v6428
      %v6430 = vpop.f32.mrf.mxu0
      %v6431 = vpop.f32.mrf.mxu0
      %v6432 = vadd.f32 0.0, %v6431
      %v6433 = vpop.f32.mrf.mxu0
      %6434 = vdwg.mxu0
      %v6435 = vadd.f32 %v6161, %v6309
      %v6436 = vadd.f32 %v6162, %v6312
      %v6437 = vadd.f32 %v6163, %v6317
      %v6438 = vadd.f32 %v6164, %v6320
      %v6439 = vadd.f32 %v6165, %v6325
      %v6440 = vadd.f32 %v6166, %v6328
      %v6441 = vadd.f32 %v6167, %v6333
      %v6442 = vadd.f32 %v6168, %v6336
      %v6443 = vadd.f32 %v6169, %v6341
      %v6444 = vadd.f32 %v6170, %v6344
      %v6445 = vadd.f32 %v6171, %v6349
      %v6446 = vadd.f32 %v6172, %v6352
      %v6447 = vadd.f32 %v6173, %v6357
      %v6448 = vadd.f32 %v6174, %v6360
      %v6449 = vadd.f32 %v6175, %v6365
      %v6450 = vadd.f32 %v6176, %v6368
      %v6451 = vadd.f32 %v6177, %v6373
      %v6452 = vadd.f32 %v6178, %v6376
      %v6453 = vadd.f32 %v6179, %v6381
      %v6454 = vadd.f32 %v6180, %v6384
      %v6455 = vadd.f32 %v6181, %v6389
      %v6456 = vadd.f32 %v6182, %v6392
      %v6457 = vadd.f32 %v6183, %v6397
      %v6458 = vadd.f32 %v6184, %v6400
      %v6459 = vadd.f32 %v6185, %v6405
      %v6460 = vadd.f32 %v6186, %v6408
      %v6461 = vadd.f32 %v6187, %v6413
      %v6462 = vadd.f32 %v6188, %v6416
      %v6463 = vadd.f32 %v6189, %v6421
      %v6464 = vadd.f32 %v6190, %v6424
      %v6465 = vadd.f32 %v6191, %v6429
      %v6466 = vadd.f32 %v6192, %v6432
      %6467 = vst [vmem:[#allocation3] sm:$0xff] %v6435
      %6468 = vst [vmem:[#allocation3 + $0x8] sm:$0xff] %v6436
      %6469 = vst [vmem:[#allocation3 + $0x10] sm:$0xff] %v6437
      %6470 = vst [vmem:[#allocation3 + $0x18] sm:$0xff] %v6438
      %6471 = vst [vmem:[#allocation3 + $0x20] sm:$0xff] %v6439
      %6472 = vst [vmem:[#allocation3 + $0x28] sm:$0xff] %v6440
      %6473 = vst [vmem:[#allocation3 + $0x30] sm:$0xff] %v6441
      %6474 = vst [vmem:[#allocation3 + $0x38] sm:$0xff] %v6442
      %6475 = vst [vmem:[#allocation3 + $0x40] sm:$0xff] %v6443
      %6476 = vst [vmem:[#allocation3 + $0x48] sm:$0xff] %v6444
      %6477 = vst [vmem:[#allocation3 + $0x50] sm:$0xff] %v6445
      %6478 = vst [vmem:[#allocation3 + $0x58] sm:$0xff] %v6446
      %6479 = vst [vmem:[#allocation3 + $0x60] sm:$0xff] %v6447
      %6480 = vst [vmem:[#allocation3 + $0x68] sm:$0xff] %v6448
      %6481 = vst [vmem:[#allocation3 + $0x70] sm:$0xff] %v6449
      %6482 = vst [vmem:[#allocation3 + $0x78] sm:$0xff] %v6450
      %6483 = vst [vmem:[#allocation3 + $0x80] sm:$0xff] %v6451
      %6484 = vst [vmem:[#allocation3 + $0x88] sm:$0xff] %v6452
      %6485 = vst [vmem:[#allocation3 + $0x90] sm:$0xff] %v6453
      %6486 = vst [vmem:[#allocation3 + $0x98] sm:$0xff] %v6454
      %6487 = vst [vmem:[#allocation3 + $0xa0] sm:$0xff] %v6455
      %6488 = vst [vmem:[#allocation3 + $0xa8] sm:$0xff] %v6456
      %6489 = vst [vmem:[#allocation3 + $0xb0] sm:$0xff] %v6457
      %6490 = vst [vmem:[#allocation3 + $0xb8] sm:$0xff] %v6458
      %6491 = vst [vmem:[#allocation3 + $0xc0] sm:$0xff] %v6459
      %6492 = vst [vmem:[#allocation3 + $0xc8] sm:$0xff] %v6460
      %6493 = vst [vmem:[#allocation3 + $0xd0] sm:$0xff] %v6461
      %6494 = vst [vmem:[#allocation3 + $0xd8] sm:$0xff] %v6462
      %6495 = vst [vmem:[#allocation3 + $0xe0] sm:$0xff] %v6463
      %6496 = vst [vmem:[#allocation3 + $0xe8] sm:$0xff] %v6464
      %6497 = vst [vmem:[#allocation3 + $0xf0] sm:$0xff] %v6465
      %6498 = vst [vmem:[#allocation3 + $0xf8] sm:$0xff] %v6466
      %v6499 = vld [vmem:[%s6128 + $0x8] sm:$0xff]
      %v6500 = vld [vmem:[%s6128 + $0x10] sm:$0xff]
      %v6501 = vld [vmem:[%s6128 + $0x28] sm:$0xff]
      %v6502 = vld [vmem:[%s6128 + $0x30] sm:$0xff]
      %v6503 = vld [vmem:[%s6128 + $0x48] sm:$0xff]
      %v6504 = vld [vmem:[%s6128 + $0x50] sm:$0xff]
      %v6505 = vld [vmem:[%s6128 + $0x68] sm:$0xff]
      %v6506 = vld [vmem:[%s6128 + $0x70] sm:$0xff]
      %v6507 = vld [vmem:[%s6128 + $0x88] sm:$0xff]
      %v6508 = vld [vmem:[%s6128 + $0x90] sm:$0xff]
      %v6509 = vld [vmem:[%s6128 + $0xa8] sm:$0xff]
      %v6510 = vld [vmem:[%s6128 + $0xb0] sm:$0xff]
      %v6511 = vld [vmem:[%s6128 + $0xc8] sm:$0xff]
      %v6512 = vld [vmem:[%s6128 + $0xd0] sm:$0xff]
      %v6513 = vld [vmem:[%s6128 + $0xe8] sm:$0xff]
      %v6514 = vld [vmem:[%s6128 + $0xf0] sm:$0xff]
      %v6515 = vld [vmem:[%s6128 + $0x108] sm:$0xff]
      %v6516 = vld [vmem:[%s6128 + $0x110] sm:$0xff]
      %v6517 = vld [vmem:[%s6128 + $0x128] sm:$0xff]
      %v6518 = vld [vmem:[%s6128 + $0x130] sm:$0xff]
      %v6519 = vld [vmem:[%s6128 + $0x148] sm:$0xff]
      %v6520 = vld [vmem:[%s6128 + $0x150] sm:$0xff]
      %v6521 = vld [vmem:[%s6128 + $0x168] sm:$0xff]
      %v6522 = vld [vmem:[%s6128 + $0x170] sm:$0xff]
      %v6523 = vld [vmem:[%s6128 + $0x188] sm:$0xff]
      %v6524 = vld [vmem:[%s6128 + $0x190] sm:$0xff]
      %v6525 = vld [vmem:[%s6128 + $0x1a8] sm:$0xff]
      %v6526 = vld [vmem:[%s6128 + $0x1b0] sm:$0xff]
      %v6527 = vld [vmem:[%s6128 + $0x1c8] sm:$0xff]
      %v6528 = vld [vmem:[%s6128 + $0x1d0] sm:$0xff]
      %v6529 = vld [vmem:[%s6128 + $0x1e8] sm:$0xff]
      %v6530 = vld [vmem:[%s6128 + $0x1f0] sm:$0xff]
      %v6531 = vld [vmem:[#allocation3] sm:$0xff]
      %v6532 = vld [vmem:[#allocation3 + $0x8] sm:$0xff]
      %v6533 = vld [vmem:[#allocation3 + $0x10] sm:$0xff]
      %v6534 = vld [vmem:[#allocation3 + $0x18] sm:$0xff]
      %v6535 = vld [vmem:[#allocation3 + $0x20] sm:$0xff]
      %v6536 = vld [vmem:[#allocation3 + $0x28] sm:$0xff]
      %v6537 = vld [vmem:[#allocation3 + $0x30] sm:$0xff]
      %v6538 = vld [vmem:[#allocation3 + $0x38] sm:$0xff]
      %v6539 = vld [vmem:[#allocation3 + $0x40] sm:$0xff]
      %v6540 = vld [vmem:[#allocation3 + $0x48] sm:$0xff]
      %v6541 = vld [vmem:[#allocation3 + $0x50] sm:$0xff]
      %v6542 = vld [vmem:[#allocation3 + $0x58] sm:$0xff]
      %v6543 = vld [vmem:[#allocation3 + $0x60] sm:$0xff]
      %v6544 = vld [vmem:[#allocation3 + $0x68] sm:$0xff]
      %v6545 = vld [vmem:[#allocation3 + $0x70] sm:$0xff]
      %v6546 = vld [vmem:[#allocation3 + $0x78] sm:$0xff]
      %v6547 = vld [vmem:[#allocation3 + $0x80] sm:$0xff]
      %v6548 = vld [vmem:[#allocation3 + $0x88] sm:$0xff]
      %v6549 = vld [vmem:[#allocation3 + $0x90] sm:$0xff]
      %v6550 = vld [vmem:[#allocation3 + $0x98] sm:$0xff]
      %v6551 = vld [vmem:[#allocation3 + $0xa0] sm:$0xff]
      %v6552 = vld [vmem:[#allocation3 + $0xa8] sm:$0xff]
      %v6553 = vld [vmem:[#allocation3 + $0xb0] sm:$0xff]
      %v6554 = vld [vmem:[#allocation3 + $0xb8] sm:$0xff]
      %v6555 = vld [vmem:[#allocation3 + $0xc0] sm:$0xff]
      %v6556 = vld [vmem:[#allocation3 + $0xc8] sm:$0xff]
      %v6557 = vld [vmem:[#allocation3 + $0xd0] sm:$0xff]
      %v6558 = vld [vmem:[#allocation3 + $0xd8] sm:$0xff]
      %v6559 = vld [vmem:[#allocation3 + $0xe0] sm:$0xff]
      %v6560 = vld [vmem:[#allocation3 + $0xe8] sm:$0xff]
      %v6561 = vld [vmem:[#allocation3 + $0xf0] sm:$0xff]
      %v6562 = vld [vmem:[#allocation3 + $0xf8] sm:$0xff]
      %v6563 = vpack.c.bf16 %v6500, %v6499
      %v6564 = vpack.c.bf16 %v6502, %v6501
      %v6565 = vpack.c.bf16 %v6504, %v6503
      %v6566 = vpack.c.bf16 %v6506, %v6505
      %v6567 = vpack.c.bf16 %v6508, %v6507
      %v6568 = vpack.c.bf16 %v6510, %v6509
      %v6569 = vpack.c.bf16 %v6512, %v6511
      %v6570 = vpack.c.bf16 %v6514, %v6513
      %v6571 = vpack.c.bf16 %v6516, %v6515
      %v6572 = vpack.c.bf16 %v6518, %v6517
      %v6573 = vpack.c.bf16 %v6520, %v6519
      %v6574 = vpack.c.bf16 %v6522, %v6521
      %v6575 = vpack.c.bf16 %v6524, %v6523
      %v6576 = vpack.c.bf16 %v6526, %v6525
      %v6577 = vpack.c.bf16 %v6528, %v6527
      %v6578 = vpack.c.bf16 %v6530, %v6529
      %s6579 = scalar_lea.vmem %s3, 448
      %v6580 = vld [vmem:[%s6579] sm:$0xf]
      %v6581 = vld [vmem:[%s6579 + $0x4] sm:$0xf]
      %v6582 = vld [vmem:[%s6579 + $0x8] sm:$0xf]
      %v6583 = vld [vmem:[%s6579 + $0xc] sm:$0xf]
      %v6584 = vld [vmem:[%s6579 + $0x10] sm:$0xf]
      %v6585 = vld [vmem:[%s6579 + $0x14] sm:$0xf]
      %v6586 = vld [vmem:[%s6579 + $0x18] sm:$0xf]
      %v6587 = vld [vmem:[%s6579 + $0x1c] sm:$0xf]
      %v6588 = vld [vmem:[%s6579 + $0x20] sm:$0xf]
      %v6589 = vld [vmem:[%s6579 + $0x24] sm:$0xf]
      %v6590 = vld [vmem:[%s6579 + $0x28] sm:$0xf]
      %v6591 = vld [vmem:[%s6579 + $0x2c] sm:$0xf]
      %v6592 = vld [vmem:[%s6579 + $0x30] sm:$0xf]
      %v6593 = vld [vmem:[%s6579 + $0x34] sm:$0xf]
      %v6594 = vld [vmem:[%s6579 + $0x38] sm:$0xf]
      %v6595 = vld [vmem:[%s6579 + $0x3c] sm:$0xf]
      %v6612 = vunpack.c.l.b16 %v6580
      %v6613 = vunpack.c.l.b16 %v6581
      %v6614 = vunpack.c.l.b16 %v6582
      %v6615 = vunpack.c.l.b16 %v6583
      %v6616 = vunpack.c.l.b16 %v6584
      %v6617 = vunpack.c.l.b16 %v6585
      %v6618 = vunpack.c.l.b16 %v6586
      %v6619 = vunpack.c.l.b16 %v6587
      %v6620 = vunpack.c.l.b16 %v6588
      %v6621 = vunpack.c.l.b16 %v6589
      %v6622 = vunpack.c.l.b16 %v6590
      %v6623 = vunpack.c.l.b16 %v6591
      %v6624 = vunpack.c.l.b16 %v6592
      %v6625 = vunpack.c.l.b16 %v6593
      %v6626 = vunpack.c.l.b16 %v6594
      %v6627 = vunpack.c.l.b16 %v6595
      %v6628 = vpack.c.b16 %v6613, %v6612
      %v6629 = vpack.c.b16 %v6615, %v6614
      %v6630 = vpack.c.b16 %v6617, %v6616
      %v6631 = vpack.c.b16 %v6619, %v6618
      %v6632 = vpack.c.b16 %v6621, %v6620
      %v6633 = vpack.c.b16 %v6623, %v6622
      %v6634 = vpack.c.b16 %v6625, %v6624
      %v6635 = vpack.c.b16 %v6627, %v6626
      %6644 = vmatprep.subr.bf16.mxu0 0
      %6645 = vmatpush1.bf16.msra.mxu0 %v6635
      %6646 = vmatprep.subr.bf16.mxu0 0
      %6647 = vmatpush1.bf16.msra.mxu0 %v6634
      %6648 = vmatprep.subr.bf16.mxu0 0
      %6649 = vmatpush1.bf16.msra.mxu0 %v6633
      %6650 = vmatprep.subr.bf16.mxu0 0
      %6651 = vmatpush1.bf16.msra.mxu0 %v6632
      %6652 = vmatprep.subr.bf16.mxu0 0
      %6653 = vmatpush1.bf16.msra.mxu0 %v6631
      %6654 = vmatprep.subr.bf16.mxu0 0
      %6655 = vmatpush1.bf16.msra.mxu0 %v6630
      %6656 = vmatprep.subr.bf16.mxu0 0
      %6657 = vmatpush1.bf16.msra.mxu0 %v6629
      %6658 = vmatprep.subr.bf16.mxu0 0
      %6659 = vmatpush1.bf16.msra.mxu0 %v6628
      %6660 = vmatprep.subr.bf16.mxu0 0
      %6661 = vmatpush2.bf16.msra.mxu0 0
      %6662 = vmatprep.subr.bf16.mxu0 0
      %6663 = vmatpush2.bf16.msra.mxu0 0
      %6664 = vmatprep.subr.bf16.mxu0 0
      %6665 = vmatpush2.bf16.msra.mxu0 0
      %6666 = vmatprep.subr.bf16.mxu0 0
      %6667 = vmatpush2.bf16.msra.mxu0 0
      %6668 = vmatprep.subr.bf16.mxu0 0
      %6669 = vmatpush2.bf16.msra.mxu0 0
      %6670 = vmatprep.subr.bf16.mxu0 0
      %6671 = vmatpush2.bf16.msra.mxu0 0
      %6672 = vmatprep.subr.bf16.mxu0 0
      %6673 = vmatpush2.bf16.msra.mxu0 0
      %6674 = vmatprep.subr.bf16.mxu0 0
      %6675 = vmatpush2.bf16.msra.mxu0 0
      %6676 = vmatprep.mubr.bf16.mxu0 0
      %6677 = vmatmul.mubr.bf16.gmra.mxu0 %v6563
      %v6678 = vpop.f32.mrf.mxu0
      %v6679 = vadd.f32 0.0, %v6678
      %v6680 = vpop.f32.mrf.mxu0
      %v6681 = vpop.f32.mrf.mxu0
      %v6682 = vadd.f32 0.0, %v6681
      %v6683 = vpop.f32.mrf.mxu0
      %6684 = vmatprep.mubr.bf16.mxu0 0
      %6685 = vmatmul.mubr.bf16.gmra.mxu0 %v6564
      %v6686 = vpop.f32.mrf.mxu0
      %v6687 = vadd.f32 0.0, %v6686
      %v6688 = vpop.f32.mrf.mxu0
      %v6689 = vpop.f32.mrf.mxu0
      %v6690 = vadd.f32 0.0, %v6689
      %v6691 = vpop.f32.mrf.mxu0
      %6692 = vmatprep.mubr.bf16.mxu0 0
      %6693 = vmatmul.mubr.bf16.gmra.mxu0 %v6565
      %v6694 = vpop.f32.mrf.mxu0
      %v6695 = vadd.f32 0.0, %v6694
      %v6696 = vpop.f32.mrf.mxu0
      %v6697 = vpop.f32.mrf.mxu0
      %v6698 = vadd.f32 0.0, %v6697
      %v6699 = vpop.f32.mrf.mxu0
      %6700 = vmatprep.mubr.bf16.mxu0 0
      %6701 = vmatmul.mubr.bf16.gmra.mxu0 %v6566
      %v6702 = vpop.f32.mrf.mxu0
      %v6703 = vadd.f32 0.0, %v6702
      %v6704 = vpop.f32.mrf.mxu0
      %v6705 = vpop.f32.mrf.mxu0
      %v6706 = vadd.f32 0.0, %v6705
      %v6707 = vpop.f32.mrf.mxu0
      %6708 = vmatprep.mubr.bf16.mxu0 0
      %6709 = vmatmul.mubr.bf16.gmra.mxu0 %v6567
      %v6710 = vpop.f32.mrf.mxu0
      %v6711 = vadd.f32 0.0, %v6710
      %v6712 = vpop.f32.mrf.mxu0
      %v6713 = vpop.f32.mrf.mxu0
      %v6714 = vadd.f32 0.0, %v6713
      %v6715 = vpop.f32.mrf.mxu0
      %6716 = vmatprep.mubr.bf16.mxu0 0
      %6717 = vmatmul.mubr.bf16.gmra.mxu0 %v6568
      %v6718 = vpop.f32.mrf.mxu0
      %v6719 = vadd.f32 0.0, %v6718
      %v6720 = vpop.f32.mrf.mxu0
      %v6721 = vpop.f32.mrf.mxu0
      %v6722 = vadd.f32 0.0, %v6721
      %v6723 = vpop.f32.mrf.mxu0
      %6724 = vmatprep.mubr.bf16.mxu0 0
      %6725 = vmatmul.mubr.bf16.gmra.mxu0 %v6569
      %v6726 = vpop.f32.mrf.mxu0
      %v6727 = vadd.f32 0.0, %v6726
      %v6728 = vpop.f32.mrf.mxu0
      %v6729 = vpop.f32.mrf.mxu0
      %v6730 = vadd.f32 0.0, %v6729
      %v6731 = vpop.f32.mrf.mxu0
      %6732 = vmatprep.mubr.bf16.mxu0 0
      %6733 = vmatmul.mubr.bf16.gmra.mxu0 %v6570
      %v6734 = vpop.f32.mrf.mxu0
      %v6735 = vadd.f32 0.0, %v6734
      %v6736 = vpop.f32.mrf.mxu0
      %v6737 = vpop.f32.mrf.mxu0
      %v6738 = vadd.f32 0.0, %v6737
      %v6739 = vpop.f32.mrf.mxu0
      %6740 = vmatprep.mubr.bf16.mxu0 0
      %6741 = vmatmul.mubr.bf16.gmra.mxu0 %v6571
      %v6742 = vpop.f32.mrf.mxu0
      %v6743 = vadd.f32 0.0, %v6742
      %v6744 = vpop.f32.mrf.mxu0
      %v6745 = vpop.f32.mrf.mxu0
      %v6746 = vadd.f32 0.0, %v6745
      %v6747 = vpop.f32.mrf.mxu0
      %6748 = vmatprep.mubr.bf16.mxu0 0
      %6749 = vmatmul.mubr.bf16.gmra.mxu0 %v6572
      %v6750 = vpop.f32.mrf.mxu0
      %v6751 = vadd.f32 0.0, %v6750
      %v6752 = vpop.f32.mrf.mxu0
      %v6753 = vpop.f32.mrf.mxu0
      %v6754 = vadd.f32 0.0, %v6753
      %v6755 = vpop.f32.mrf.mxu0
      %6756 = vmatprep.mubr.bf16.mxu0 0
      %6757 = vmatmul.mubr.bf16.gmra.mxu0 %v6573
      %v6758 = vpop.f32.mrf.mxu0
      %v6759 = vadd.f32 0.0, %v6758
      %v6760 = vpop.f32.mrf.mxu0
      %v6761 = vpop.f32.mrf.mxu0
      %v6762 = vadd.f32 0.0, %v6761
      %v6763 = vpop.f32.mrf.mxu0
      %6764 = vmatprep.mubr.bf16.mxu0 0
      %6765 = vmatmul.mubr.bf16.gmra.mxu0 %v6574
      %v6766 = vpop.f32.mrf.mxu0
      %v6767 = vadd.f32 0.0, %v6766
      %v6768 = vpop.f32.mrf.mxu0
      %v6769 = vpop.f32.mrf.mxu0
      %v6770 = vadd.f32 0.0, %v6769
      %v6771 = vpop.f32.mrf.mxu0
      %6772 = vmatprep.mubr.bf16.mxu0 0
      %6773 = vmatmul.mubr.bf16.gmra.mxu0 %v6575
      %v6774 = vpop.f32.mrf.mxu0
      %v6775 = vadd.f32 0.0, %v6774
      %v6776 = vpop.f32.mrf.mxu0
      %v6777 = vpop.f32.mrf.mxu0
      %v6778 = vadd.f32 0.0, %v6777
      %v6779 = vpop.f32.mrf.mxu0
      %6780 = vmatprep.mubr.bf16.mxu0 0
      %6781 = vmatmul.mubr.bf16.gmra.mxu0 %v6576
      %v6782 = vpop.f32.mrf.mxu0
      %v6783 = vadd.f32 0.0, %v6782
      %v6784 = vpop.f32.mrf.mxu0
      %v6785 = vpop.f32.mrf.mxu0
      %v6786 = vadd.f32 0.0, %v6785
      %v6787 = vpop.f32.mrf.mxu0
      %6788 = vmatprep.mubr.bf16.mxu0 0
      %6789 = vmatmul.mubr.bf16.gmra.mxu0 %v6577
      %v6790 = vpop.f32.mrf.mxu0
      %v6791 = vadd.f32 0.0, %v6790
      %v6792 = vpop.f32.mrf.mxu0
      %v6793 = vpop.f32.mrf.mxu0
      %v6794 = vadd.f32 0.0, %v6793
      %v6795 = vpop.f32.mrf.mxu0
      %6796 = vmatprep.mubr.bf16.mxu0 0
      %6797 = vmatmul.mubr.bf16.gmra.mxu0 %v6578
      %v6798 = vpop.f32.mrf.mxu0
      %v6799 = vadd.f32 0.0, %v6798
      %v6800 = vpop.f32.mrf.mxu0
      %v6801 = vpop.f32.mrf.mxu0
      %v6802 = vadd.f32 0.0, %v6801
      %v6803 = vpop.f32.mrf.mxu0
      %6804 = vdwg.mxu0
      %v6805 = vadd.f32 %v6531, %v6679
      %v6806 = vadd.f32 %v6532, %v6682
      %v6807 = vadd.f32 %v6533, %v6687
      %v6808 = vadd.f32 %v6534, %v6690
      %v6809 = vadd.f32 %v6535, %v6695
      %v6810 = vadd.f32 %v6536, %v6698
      %v6811 = vadd.f32 %v6537, %v6703
      %v6812 = vadd.f32 %v6538, %v6706
      %v6813 = vadd.f32 %v6539, %v6711
      %v6814 = vadd.f32 %v6540, %v6714
      %v6815 = vadd.f32 %v6541, %v6719
      %v6816 = vadd.f32 %v6542, %v6722
      %v6817 = vadd.f32 %v6543, %v6727
      %v6818 = vadd.f32 %v6544, %v6730
      %v6819 = vadd.f32 %v6545, %v6735
      %v6820 = vadd.f32 %v6546, %v6738
      %v6821 = vadd.f32 %v6547, %v6743
      %v6822 = vadd.f32 %v6548, %v6746
      %v6823 = vadd.f32 %v6549, %v6751
      %v6824 = vadd.f32 %v6550, %v6754
      %v6825 = vadd.f32 %v6551, %v6759
      %v6826 = vadd.f32 %v6552, %v6762
      %v6827 = vadd.f32 %v6553, %v6767
      %v6828 = vadd.f32 %v6554, %v6770
      %v6829 = vadd.f32 %v6555, %v6775
      %v6830 = vadd.f32 %v6556, %v6778
      %v6831 = vadd.f32 %v6557, %v6783
      %v6832 = vadd.f32 %v6558, %v6786
      %v6833 = vadd.f32 %v6559, %v6791
      %v6834 = vadd.f32 %v6560, %v6794
      %v6835 = vadd.f32 %v6561, %v6799
      %v6836 = vadd.f32 %v6562, %v6802
      %6837 = vst [vmem:[#allocation3] sm:$0xff] %v6805
      %6838 = vst [vmem:[#allocation3 + $0x8] sm:$0xff] %v6806
      %6839 = vst [vmem:[#allocation3 + $0x10] sm:$0xff] %v6807
      %6840 = vst [vmem:[#allocation3 + $0x18] sm:$0xff] %v6808
      %6841 = vst [vmem:[#allocation3 + $0x20] sm:$0xff] %v6809
      %6842 = vst [vmem:[#allocation3 + $0x28] sm:$0xff] %v6810
      %6843 = vst [vmem:[#allocation3 + $0x30] sm:$0xff] %v6811
      %6844 = vst [vmem:[#allocation3 + $0x38] sm:$0xff] %v6812
      %6845 = vst [vmem:[#allocation3 + $0x40] sm:$0xff] %v6813
      %6846 = vst [vmem:[#allocation3 + $0x48] sm:$0xff] %v6814
      %6847 = vst [vmem:[#allocation3 + $0x50] sm:$0xff] %v6815
      %6848 = vst [vmem:[#allocation3 + $0x58] sm:$0xff] %v6816
      %6849 = vst [vmem:[#allocation3 + $0x60] sm:$0xff] %v6817
      %6850 = vst [vmem:[#allocation3 + $0x68] sm:$0xff] %v6818
      %6851 = vst [vmem:[#allocation3 + $0x70] sm:$0xff] %v6819
      %6852 = vst [vmem:[#allocation3 + $0x78] sm:$0xff] %v6820
      %6853 = vst [vmem:[#allocation3 + $0x80] sm:$0xff] %v6821
      %6854 = vst [vmem:[#allocation3 + $0x88] sm:$0xff] %v6822
      %6855 = vst [vmem:[#allocation3 + $0x90] sm:$0xff] %v6823
      %6856 = vst [vmem:[#allocation3 + $0x98] sm:$0xff] %v6824
      %6857 = vst [vmem:[#allocation3 + $0xa0] sm:$0xff] %v6825
      %6858 = vst [vmem:[#allocation3 + $0xa8] sm:$0xff] %v6826
      %6859 = vst [vmem:[#allocation3 + $0xb0] sm:$0xff] %v6827
      %6860 = vst [vmem:[#allocation3 + $0xb8] sm:$0xff] %v6828
      %6861 = vst [vmem:[#allocation3 + $0xc0] sm:$0xff] %v6829
      %6862 = vst [vmem:[#allocation3 + $0xc8] sm:$0xff] %v6830
      %6863 = vst [vmem:[#allocation3 + $0xd0] sm:$0xff] %v6831
      %6864 = vst [vmem:[#allocation3 + $0xd8] sm:$0xff] %v6832
      %6865 = vst [vmem:[#allocation3 + $0xe0] sm:$0xff] %v6833
      %6866 = vst [vmem:[#allocation3 + $0xe8] sm:$0xff] %v6834
      %6867 = vst [vmem:[#allocation3 + $0xf0] sm:$0xff] %v6835
      %6868 = vst [vmem:[#allocation3 + $0xf8] sm:$0xff] %v6836
      %v6869 = vld [vmem:[%s6128 + $0x9] sm:$0xff]
      %v6870 = vld [vmem:[%s6128 + $0x11] sm:$0xff]
      %v6871 = vld [vmem:[%s6128 + $0x29] sm:$0xff]
      %v6872 = vld [vmem:[%s6128 + $0x31] sm:$0xff]
      %v6873 = vld [vmem:[%s6128 + $0x49] sm:$0xff]
      %v6874 = vld [vmem:[%s6128 + $0x51] sm:$0xff]
      %v6875 = vld [vmem:[%s6128 + $0x69] sm:$0xff]
      %v6876 = vld [vmem:[%s6128 + $0x71] sm:$0xff]
      %v6877 = vld [vmem:[%s6128 + $0x89] sm:$0xff]
      %v6878 = vld [vmem:[%s6128 + $0x91] sm:$0xff]
      %v6879 = vld [vmem:[%s6128 + $0xa9] sm:$0xff]
      %v6880 = vld [vmem:[%s6128 + $0xb1] sm:$0xff]
      %v6881 = vld [vmem:[%s6128 + $0xc9] sm:$0xff]
      %v6882 = vld [vmem:[%s6128 + $0xd1] sm:$0xff]
      %v6883 = vld [vmem:[%s6128 + $0xe9] sm:$0xff]
      %v6884 = vld [vmem:[%s6128 + $0xf1] sm:$0xff]
      %v6885 = vld [vmem:[%s6128 + $0x109] sm:$0xff]
      %v6886 = vld [vmem:[%s6128 + $0x111] sm:$0xff]
      %v6887 = vld [vmem:[%s6128 + $0x129] sm:$0xff]
      %v6888 = vld [vmem:[%s6128 + $0x131] sm:$0xff]
      %v6889 = vld [vmem:[%s6128 + $0x149] sm:$0xff]
      %v6890 = vld [vmem:[%s6128 + $0x151] sm:$0xff]
      %v6891 = vld [vmem:[%s6128 + $0x169] sm:$0xff]
      %v6892 = vld [vmem:[%s6128 + $0x171] sm:$0xff]
      %v6893 = vld [vmem:[%s6128 + $0x189] sm:$0xff]
      %v6894 = vld [vmem:[%s6128 + $0x191] sm:$0xff]
      %v6895 = vld [vmem:[%s6128 + $0x1a9] sm:$0xff]
      %v6896 = vld [vmem:[%s6128 + $0x1b1] sm:$0xff]
      %v6897 = vld [vmem:[%s6128 + $0x1c9] sm:$0xff]
      %v6898 = vld [vmem:[%s6128 + $0x1d1] sm:$0xff]
      %v6899 = vld [vmem:[%s6128 + $0x1e9] sm:$0xff]
      %v6900 = vld [vmem:[%s6128 + $0x1f1] sm:$0xff]
      %v6901 = vld [vmem:[#allocation3] sm:$0xff]
      %v6902 = vld [vmem:[#allocation3 + $0x8] sm:$0xff]
      %v6903 = vld [vmem:[#allocation3 + $0x10] sm:$0xff]
      %v6904 = vld [vmem:[#allocation3 + $0x18] sm:$0xff]
      %v6905 = vld [vmem:[#allocation3 + $0x20] sm:$0xff]
      %v6906 = vld [vmem:[#allocation3 + $0x28] sm:$0xff]
      %v6907 = vld [vmem:[#allocation3 + $0x30] sm:$0xff]
      %v6908 = vld [vmem:[#allocation3 + $0x38] sm:$0xff]
      %v6909 = vld [vmem:[#allocation3 + $0x40] sm:$0xff]
      %v6910 = vld [vmem:[#allocation3 + $0x48] sm:$0xff]
      %v6911 = vld [vmem:[#allocation3 + $0x50] sm:$0xff]
      %v6912 = vld [vmem:[#allocation3 + $0x58] sm:$0xff]
      %v6913 = vld [vmem:[#allocation3 + $0x60] sm:$0xff]
      %v6914 = vld [vmem:[#allocation3 + $0x68] sm:$0xff]
      %v6915 = vld [vmem:[#allocation3 + $0x70] sm:$0xff]
      %v6916 = vld [vmem:[#allocation3 + $0x78] sm:$0xff]
      %v6917 = vld [vmem:[#allocation3 + $0x80] sm:$0xff]
      %v6918 = vld [vmem:[#allocation3 + $0x88] sm:$0xff]
      %v6919 = vld [vmem:[#allocation3 + $0x90] sm:$0xff]
      %v6920 = vld [vmem:[#allocation3 + $0x98] sm:$0xff]
      %v6921 = vld [vmem:[#allocation3 + $0xa0] sm:$0xff]
      %v6922 = vld [vmem:[#allocation3 + $0xa8] sm:$0xff]
      %v6923 = vld [vmem:[#allocation3 + $0xb0] sm:$0xff]
      %v6924 = vld [vmem:[#allocation3 + $0xb8] sm:$0xff]
      %v6925 = vld [vmem:[#allocation3 + $0xc0] sm:$0xff]
      %v6926 = vld [vmem:[#allocation3 + $0xc8] sm:$0xff]
      %v6927 = vld [vmem:[#allocation3 + $0xd0] sm:$0xff]
      %v6928 = vld [vmem:[#allocation3 + $0xd8] sm:$0xff]
      %v6929 = vld [vmem:[#allocation3 + $0xe0] sm:$0xff]
      %v6930 = vld [vmem:[#allocation3 + $0xe8] sm:$0xff]
      %v6931 = vld [vmem:[#allocation3 + $0xf0] sm:$0xff]
      %v6932 = vld [vmem:[#allocation3 + $0xf8] sm:$0xff]
      %v6933 = vpack.c.bf16 %v6870, %v6869
      %v6934 = vpack.c.bf16 %v6872, %v6871
      %v6935 = vpack.c.bf16 %v6874, %v6873
      %v6936 = vpack.c.bf16 %v6876, %v6875
      %v6937 = vpack.c.bf16 %v6878, %v6877
      %v6938 = vpack.c.bf16 %v6880, %v6879
      %v6939 = vpack.c.bf16 %v6882, %v6881
      %v6940 = vpack.c.bf16 %v6884, %v6883
      %v6941 = vpack.c.bf16 %v6886, %v6885
      %v6942 = vpack.c.bf16 %v6888, %v6887
      %v6943 = vpack.c.bf16 %v6890, %v6889
      %v6944 = vpack.c.bf16 %v6892, %v6891
      %v6945 = vpack.c.bf16 %v6894, %v6893
      %v6946 = vpack.c.bf16 %v6896, %v6895
      %v6947 = vpack.c.bf16 %v6898, %v6897
      %v6948 = vpack.c.bf16 %v6900, %v6899
      %s6949 = scalar_lea.vmem %s3, 512
      %v6950 = vld [vmem:[%s6949] sm:$0xf]
      %v6951 = vld [vmem:[%s6949 + $0x4] sm:$0xf]
      %v6952 = vld [vmem:[%s6949 + $0x8] sm:$0xf]
      %v6953 = vld [vmem:[%s6949 + $0xc] sm:$0xf]
      %v6954 = vld [vmem:[%s6949 + $0x10] sm:$0xf]
      %v6955 = vld [vmem:[%s6949 + $0x14] sm:$0xf]
      %v6956 = vld [vmem:[%s6949 + $0x18] sm:$0xf]
      %v6957 = vld [vmem:[%s6949 + $0x1c] sm:$0xf]
      %v6958 = vld [vmem:[%s6949 + $0x20] sm:$0xf]
      %v6959 = vld [vmem:[%s6949 + $0x24] sm:$0xf]
      %v6960 = vld [vmem:[%s6949 + $0x28] sm:$0xf]
      %v6961 = vld [vmem:[%s6949 + $0x2c] sm:$0xf]
      %v6962 = vld [vmem:[%s6949 + $0x30] sm:$0xf]
      %v6963 = vld [vmem:[%s6949 + $0x34] sm:$0xf]
      %v6964 = vld [vmem:[%s6949 + $0x38] sm:$0xf]
      %v6965 = vld [vmem:[%s6949 + $0x3c] sm:$0xf]
      %v6982 = vunpack.c.l.b16 %v6950
      %v6983 = vunpack.c.l.b16 %v6951
      %v6984 = vunpack.c.l.b16 %v6952
      %v6985 = vunpack.c.l.b16 %v6953
      %v6986 = vunpack.c.l.b16 %v6954
      %v6987 = vunpack.c.l.b16 %v6955
      %v6988 = vunpack.c.l.b16 %v6956
      %v6989 = vunpack.c.l.b16 %v6957
      %v6990 = vunpack.c.l.b16 %v6958
      %v6991 = vunpack.c.l.b16 %v6959
      %v6992 = vunpack.c.l.b16 %v6960
      %v6993 = vunpack.c.l.b16 %v6961
      %v6994 = vunpack.c.l.b16 %v6962
      %v6995 = vunpack.c.l.b16 %v6963
      %v6996 = vunpack.c.l.b16 %v6964
      %v6997 = vunpack.c.l.b16 %v6965
      %v6998 = vpack.c.b16 %v6983, %v6982
      %v6999 = vpack.c.b16 %v6985, %v6984
      %v7000 = vpack.c.b16 %v6987, %v6986
      %v7001 = vpack.c.b16 %v6989, %v6988
      %v7002 = vpack.c.b16 %v6991, %v6990
      %v7003 = vpack.c.b16 %v6993, %v6992
      %v7004 = vpack.c.b16 %v6995, %v6994
      %v7005 = vpack.c.b16 %v6997, %v6996
      %7014 = vmatprep.subr.bf16.mxu0 0
      %7015 = vmatpush1.bf16.msra.mxu0 %v7005
      %7016 = vmatprep.subr.bf16.mxu0 0
      %7017 = vmatpush1.bf16.msra.mxu0 %v7004
      %7018 = vmatprep.subr.bf16.mxu0 0
      %7019 = vmatpush1.bf16.msra.mxu0 %v7003
      %7020 = vmatprep.subr.bf16.mxu0 0
      %7021 = vmatpush1.bf16.msra.mxu0 %v7002
      %7022 = vmatprep.subr.bf16.mxu0 0
      %7023 = vmatpush1.bf16.msra.mxu0 %v7001
      %7024 = vmatprep.subr.bf16.mxu0 0
      %7025 = vmatpush1.bf16.msra.mxu0 %v7000
      %7026 = vmatprep.subr.bf16.mxu0 0
      %7027 = vmatpush1.bf16.msra.mxu0 %v6999
      %7028 = vmatprep.subr.bf16.mxu0 0
      %7029 = vmatpush1.bf16.msra.mxu0 %v6998
      %7030 = vmatprep.subr.bf16.mxu0 0
      %7031 = vmatpush2.bf16.msra.mxu0 0
      %7032 = vmatprep.subr.bf16.mxu0 0
      %7033 = vmatpush2.bf16.msra.mxu0 0
      %7034 = vmatprep.subr.bf16.mxu0 0
      %7035 = vmatpush2.bf16.msra.mxu0 0
      %7036 = vmatprep.subr.bf16.mxu0 0
      %7037 = vmatpush2.bf16.msra.mxu0 0
      %7038 = vmatprep.subr.bf16.mxu0 0
      %7039 = vmatpush2.bf16.msra.mxu0 0
      %7040 = vmatprep.subr.bf16.mxu0 0
      %7041 = vmatpush2.bf16.msra.mxu0 0
      %7042 = vmatprep.subr.bf16.mxu0 0
      %7043 = vmatpush2.bf16.msra.mxu0 0
      %7044 = vmatprep.subr.bf16.mxu0 0
      %7045 = vmatpush2.bf16.msra.mxu0 0
      %7046 = vmatprep.mubr.bf16.mxu0 0
      %7047 = vmatmul.mubr.bf16.gmra.mxu0 %v6933
      %v7048 = vpop.f32.mrf.mxu0
      %v7049 = vadd.f32 0.0, %v7048
      %v7050 = vpop.f32.mrf.mxu0
      %v7051 = vpop.f32.mrf.mxu0
      %v7052 = vadd.f32 0.0, %v7051
      %v7053 = vpop.f32.mrf.mxu0
      %7054 = vmatprep.mubr.bf16.mxu0 0
      %7055 = vmatmul.mubr.bf16.gmra.mxu0 %v6934
      %v7056 = vpop.f32.mrf.mxu0
      %v7057 = vadd.f32 0.0, %v7056
      %v7058 = vpop.f32.mrf.mxu0
      %v7059 = vpop.f32.mrf.mxu0
      %v7060 = vadd.f32 0.0, %v7059
      %v7061 = vpop.f32.mrf.mxu0
      %7062 = vmatprep.mubr.bf16.mxu0 0
      %7063 = vmatmul.mubr.bf16.gmra.mxu0 %v6935
      %v7064 = vpop.f32.mrf.mxu0
      %v7065 = vadd.f32 0.0, %v7064
      %v7066 = vpop.f32.mrf.mxu0
      %v7067 = vpop.f32.mrf.mxu0
      %v7068 = vadd.f32 0.0, %v7067
      %v7069 = vpop.f32.mrf.mxu0
      %7070 = vmatprep.mubr.bf16.mxu0 0
      %7071 = vmatmul.mubr.bf16.gmra.mxu0 %v6936
      %v7072 = vpop.f32.mrf.mxu0
      %v7073 = vadd.f32 0.0, %v7072
      %v7074 = vpop.f32.mrf.mxu0
      %v7075 = vpop.f32.mrf.mxu0
      %v7076 = vadd.f32 0.0, %v7075
      %v7077 = vpop.f32.mrf.mxu0
      %7078 = vmatprep.mubr.bf16.mxu0 0
      %7079 = vmatmul.mubr.bf16.gmra.mxu0 %v6937
      %v7080 = vpop.f32.mrf.mxu0
      %v7081 = vadd.f32 0.0, %v7080
      %v7082 = vpop.f32.mrf.mxu0
      %v7083 = vpop.f32.mrf.mxu0
      %v7084 = vadd.f32 0.0, %v7083
      %v7085 = vpop.f32.mrf.mxu0
      %7086 = vmatprep.mubr.bf16.mxu0 0
      %7087 = vmatmul.mubr.bf16.gmra.mxu0 %v6938
      %v7088 = vpop.f32.mrf.mxu0
      %v7089 = vadd.f32 0.0, %v7088
      %v7090 = vpop.f32.mrf.mxu0
      %v7091 = vpop.f32.mrf.mxu0
      %v7092 = vadd.f32 0.0, %v7091
      %v7093 = vpop.f32.mrf.mxu0
      %7094 = vmatprep.mubr.bf16.mxu0 0
      %7095 = vmatmul.mubr.bf16.gmra.mxu0 %v6939
      %v7096 = vpop.f32.mrf.mxu0
      %v7097 = vadd.f32 0.0, %v7096
      %v7098 = vpop.f32.mrf.mxu0
      %v7099 = vpop.f32.mrf.mxu0
      %v7100 = vadd.f32 0.0, %v7099
      %v7101 = vpop.f32.mrf.mxu0
      %7102 = vmatprep.mubr.bf16.mxu0 0
      %7103 = vmatmul.mubr.bf16.gmra.mxu0 %v6940
      %v7104 = vpop.f32.mrf.mxu0
      %v7105 = vadd.f32 0.0, %v7104
      %v7106 = vpop.f32.mrf.mxu0
      %v7107 = vpop.f32.mrf.mxu0
      %v7108 = vadd.f32 0.0, %v7107
      %v7109 = vpop.f32.mrf.mxu0
      %7110 = vmatprep.mubr.bf16.mxu0 0
      %7111 = vmatmul.mubr.bf16.gmra.mxu0 %v6941
      %v7112 = vpop.f32.mrf.mxu0
      %v7113 = vadd.f32 0.0, %v7112
      %v7114 = vpop.f32.mrf.mxu0
      %v7115 = vpop.f32.mrf.mxu0
      %v7116 = vadd.f32 0.0, %v7115
      %v7117 = vpop.f32.mrf.mxu0
      %7118 = vmatprep.mubr.bf16.mxu0 0
      %7119 = vmatmul.mubr.bf16.gmra.mxu0 %v6942
      %v7120 = vpop.f32.mrf.mxu0
      %v7121 = vadd.f32 0.0, %v7120
      %v7122 = vpop.f32.mrf.mxu0
      %v7123 = vpop.f32.mrf.mxu0
      %v7124 = vadd.f32 0.0, %v7123
      %v7125 = vpop.f32.mrf.mxu0
      %7126 = vmatprep.mubr.bf16.mxu0 0
      %7127 = vmatmul.mubr.bf16.gmra.mxu0 %v6943
      %v7128 = vpop.f32.mrf.mxu0
      %v7129 = vadd.f32 0.0, %v7128
      %v7130 = vpop.f32.mrf.mxu0
      %v7131 = vpop.f32.mrf.mxu0
      %v7132 = vadd.f32 0.0, %v7131
      %v7133 = vpop.f32.mrf.mxu0
      %7134 = vmatprep.mubr.bf16.mxu0 0
      %7135 = vmatmul.mubr.bf16.gmra.mxu0 %v6944
      %v7136 = vpop.f32.mrf.mxu0
      %v7137 = vadd.f32 0.0, %v7136
      %v7138 = vpop.f32.mrf.mxu0
      %v7139 = vpop.f32.mrf.mxu0
      %v7140 = vadd.f32 0.0, %v7139
      %v7141 = vpop.f32.mrf.mxu0
      %7142 = vmatprep.mubr.bf16.mxu0 0
      %7143 = vmatmul.mubr.bf16.gmra.mxu0 %v6945
      %v7144 = vpop.f32.mrf.mxu0
      %v7145 = vadd.f32 0.0, %v7144
      %v7146 = vpop.f32.mrf.mxu0
      %v7147 = vpop.f32.mrf.mxu0
      %v7148 = vadd.f32 0.0, %v7147
      %v7149 = vpop.f32.mrf.mxu0
      %7150 = vmatprep.mubr.bf16.mxu0 0
      %7151 = vmatmul.mubr.bf16.gmra.mxu0 %v6946
      %v7152 = vpop.f32.mrf.mxu0
      %v7153 = vadd.f32 0.0, %v7152
      %v7154 = vpop.f32.mrf.mxu0
      %v7155 = vpop.f32.mrf.mxu0
      %v7156 = vadd.f32 0.0, %v7155
      %v7157 = vpop.f32.mrf.mxu0
      %7158 = vmatprep.mubr.bf16.mxu0 0
      %7159 = vmatmul.mubr.bf16.gmra.mxu0 %v6947
      %v7160 = vpop.f32.mrf.mxu0
      %v7161 = vadd.f32 0.0, %v7160
      %v7162 = vpop.f32.mrf.mxu0
      %v7163 = vpop.f32.mrf.mxu0
      %v7164 = vadd.f32 0.0, %v7163
      %v7165 = vpop.f32.mrf.mxu0
      %7166 = vmatprep.mubr.bf16.mxu0 0
      %7167 = vmatmul.mubr.bf16.gmra.mxu0 %v6948
      %v7168 = vpop.f32.mrf.mxu0
      %v7169 = vadd.f32 0.0, %v7168
      %v7170 = vpop.f32.mrf.mxu0
      %v7171 = vpop.f32.mrf.mxu0
      %v7172 = vadd.f32 0.0, %v7171
      %v7173 = vpop.f32.mrf.mxu0
      %7174 = vdwg.mxu0
      %v7175 = vadd.f32 %v6901, %v7049
      %v7176 = vadd.f32 %v6902, %v7052
      %v7177 = vadd.f32 %v6903, %v7057
      %v7178 = vadd.f32 %v6904, %v7060
      %v7179 = vadd.f32 %v6905, %v7065
      %v7180 = vadd.f32 %v6906, %v7068
      %v7181 = vadd.f32 %v6907, %v7073
      %v7182 = vadd.f32 %v6908, %v7076
      %v7183 = vadd.f32 %v6909, %v7081
      %v7184 = vadd.f32 %v6910, %v7084
      %v7185 = vadd.f32 %v6911, %v7089
      %v7186 = vadd.f32 %v6912, %v7092
      %v7187 = vadd.f32 %v6913, %v7097
      %v7188 = vadd.f32 %v6914, %v7100
      %v7189 = vadd.f32 %v6915, %v7105
      %v7190 = vadd.f32 %v6916, %v7108
      %v7191 = vadd.f32 %v6917, %v7113
      %v7192 = vadd.f32 %v6918, %v7116
      %v7193 = vadd.f32 %v6919, %v7121
      %v7194 = vadd.f32 %v6920, %v7124
      %v7195 = vadd.f32 %v6921, %v7129
      %v7196 = vadd.f32 %v6922, %v7132
      %v7197 = vadd.f32 %v6923, %v7137
      %v7198 = vadd.f32 %v6924, %v7140
      %v7199 = vadd.f32 %v6925, %v7145
      %v7200 = vadd.f32 %v6926, %v7148
      %v7201 = vadd.f32 %v6927, %v7153
      %v7202 = vadd.f32 %v6928, %v7156
      %v7203 = vadd.f32 %v6929, %v7161
      %v7204 = vadd.f32 %v6930, %v7164
      %v7205 = vadd.f32 %v6931, %v7169
      %v7206 = vadd.f32 %v6932, %v7172
      %7207 = vst [vmem:[#allocation3] sm:$0xff] %v7175
      %7208 = vst [vmem:[#allocation3 + $0x8] sm:$0xff] %v7176
      %7209 = vst [vmem:[#allocation3 + $0x10] sm:$0xff] %v7177
      %7210 = vst [vmem:[#allocation3 + $0x18] sm:$0xff] %v7178
      %7211 = vst [vmem:[#allocation3 + $0x20] sm:$0xff] %v7179
      %7212 = vst [vmem:[#allocation3 + $0x28] sm:$0xff] %v7180
      %7213 = vst [vmem:[#allocation3 + $0x30] sm:$0xff] %v7181
      %7214 = vst [vmem:[#allocation3 + $0x38] sm:$0xff] %v7182
      %7215 = vst [vmem:[#allocation3 + $0x40] sm:$0xff] %v7183
      %7216 = vst [vmem:[#allocation3 + $0x48] sm:$0xff] %v7184
      %7217 = vst [vmem:[#allocation3 + $0x50] sm:$0xff] %v7185
      %7218 = vst [vmem:[#allocation3 + $0x58] sm:$0xff] %v7186
      %7219 = vst [vmem:[#allocation3 + $0x60] sm:$0xff] %v7187
      %7220 = vst [vmem:[#allocation3 + $0x68] sm:$0xff] %v7188
      %7221 = vst [vmem:[#allocation3 + $0x70] sm:$0xff] %v7189
      %7222 = vst [vmem:[#allocation3 + $0x78] sm:$0xff] %v7190
      %7223 = vst [vmem:[#allocation3 + $0x80] sm:$0xff] %v7191
      %7224 = vst [vmem:[#allocation3 + $0x88] sm:$0xff] %v7192
      %7225 = vst [vmem:[#allocation3 + $0x90] sm:$0xff] %v7193
      %7226 = vst [vmem:[#allocation3 + $0x98] sm:$0xff] %v7194
      %7227 = vst [vmem:[#allocation3 + $0xa0] sm:$0xff] %v7195
      %7228 = vst [vmem:[#allocation3 + $0xa8] sm:$0xff] %v7196
      %7229 = vst [vmem:[#allocation3 + $0xb0] sm:$0xff] %v7197
      %7230 = vst [vmem:[#allocation3 + $0xb8] sm:$0xff] %v7198
      %7231 = vst [vmem:[#allocation3 + $0xc0] sm:$0xff] %v7199
      %7232 = vst [vmem:[#allocation3 + $0xc8] sm:$0xff] %v7200
      %7233 = vst [vmem:[#allocation3 + $0xd0] sm:$0xff] %v7201
      %7234 = vst [vmem:[#allocation3 + $0xd8] sm:$0xff] %v7202
      %7235 = vst [vmem:[#allocation3 + $0xe0] sm:$0xff] %v7203
      %7236 = vst [vmem:[#allocation3 + $0xe8] sm:$0xff] %v7204
      %7237 = vst [vmem:[#allocation3 + $0xf0] sm:$0xff] %v7205
      %7238 = vst [vmem:[#allocation3 + $0xf8] sm:$0xff] %v7206
      %v7239 = vld [vmem:[#allocation3] sm:$0xff]
      %v7240 = vld [vmem:[#allocation3 + $0x8] sm:$0xff]
      %v7241 = vld [vmem:[#allocation3 + $0x10] sm:$0xff]
      %v7242 = vld [vmem:[#allocation3 + $0x18] sm:$0xff]
      %v7243 = vld [vmem:[#allocation3 + $0x20] sm:$0xff]
      %v7244 = vld [vmem:[#allocation3 + $0x28] sm:$0xff]
      %v7245 = vld [vmem:[#allocation3 + $0x30] sm:$0xff]
      %v7246 = vld [vmem:[#allocation3 + $0x38] sm:$0xff]
      %v7247 = vld [vmem:[#allocation3 + $0x40] sm:$0xff]
      %v7248 = vld [vmem:[#allocation3 + $0x48] sm:$0xff]
      %v7249 = vld [vmem:[#allocation3 + $0x50] sm:$0xff]
      %v7250 = vld [vmem:[#allocation3 + $0x58] sm:$0xff]
      %v7251 = vld [vmem:[#allocation3 + $0x60] sm:$0xff]
      %v7252 = vld [vmem:[#allocation3 + $0x68] sm:$0xff]
      %v7253 = vld [vmem:[#allocation3 + $0x70] sm:$0xff]
      %v7254 = vld [vmem:[#allocation3 + $0x78] sm:$0xff]
      %v7255 = vld [vmem:[#allocation3 + $0x80] sm:$0xff]
      %v7256 = vld [vmem:[#allocation3 + $0x88] sm:$0xff]
      %v7257 = vld [vmem:[#allocation3 + $0x90] sm:$0xff]
      %v7258 = vld [vmem:[#allocation3 + $0x98] sm:$0xff]
      %v7259 = vld [vmem:[#allocation3 + $0xa0] sm:$0xff]
      %v7260 = vld [vmem:[#allocation3 + $0xa8] sm:$0xff]
      %v7261 = vld [vmem:[#allocation3 + $0xb0] sm:$0xff]
      %v7262 = vld [vmem:[#allocation3 + $0xb8] sm:$0xff]
      %v7263 = vld [vmem:[#allocation3 + $0xc0] sm:$0xff]
      %v7264 = vld [vmem:[#allocation3 + $0xc8] sm:$0xff]
      %v7265 = vld [vmem:[#allocation3 + $0xd0] sm:$0xff]
      %v7266 = vld [vmem:[#allocation3 + $0xd8] sm:$0xff]
      %v7267 = vld [vmem:[#allocation3 + $0xe0] sm:$0xff]
      %v7268 = vld [vmem:[#allocation3 + $0xe8] sm:$0xff]
      %v7269 = vld [vmem:[#allocation3 + $0xf0] sm:$0xff]
      %v7270 = vld [vmem:[#allocation3 + $0xf8] sm:$0xff]
      %v7271 = vld [vmem:[%s8] sm:$0x1]
      %v7273 = vlaneseq
      %v7274 = vshrl.u32 %v7273, 7
      %v7275 = vsub.s32 0, %v7274
      %v7276 = vrot.slane %v7271, %v7275
      %v7278 = vmul.f32 %v7239, %v7276
      %v7279 = vmul.f32 %v7240, %v7276
      %v7280 = vmul.f32 %v7241, %v7276
      %v7281 = vmul.f32 %v7242, %v7276
      %v7282 = vmul.f32 %v7243, %v7276
      %v7283 = vmul.f32 %v7244, %v7276
      %v7284 = vmul.f32 %v7245, %v7276
      %v7285 = vmul.f32 %v7246, %v7276
      %v7286 = vmul.f32 %v7247, %v7276
      %v7287 = vmul.f32 %v7248, %v7276
      %v7288 = vmul.f32 %v7249, %v7276
      %v7289 = vmul.f32 %v7250, %v7276
      %v7290 = vmul.f32 %v7251, %v7276
      %v7291 = vmul.f32 %v7252, %v7276
      %v7292 = vmul.f32 %v7253, %v7276
      %v7293 = vmul.f32 %v7254, %v7276
      %v7294 = vmul.f32 %v7255, %v7276
      %v7295 = vmul.f32 %v7256, %v7276
      %v7296 = vmul.f32 %v7257, %v7276
      %v7297 = vmul.f32 %v7258, %v7276
      %v7298 = vmul.f32 %v7259, %v7276
      %v7299 = vmul.f32 %v7260, %v7276
      %v7300 = vmul.f32 %v7261, %v7276
      %v7301 = vmul.f32 %v7262, %v7276
      %v7302 = vmul.f32 %v7263, %v7276
      %v7303 = vmul.f32 %v7264, %v7276
      %v7304 = vmul.f32 %v7265, %v7276
      %v7305 = vmul.f32 %v7266, %v7276
      %v7306 = vmul.f32 %v7267, %v7276
      %v7307 = vmul.f32 %v7268, %v7276
      %v7308 = vmul.f32 %v7269, %v7276
      %v7309 = vmul.f32 %v7270, %v7276
      %v7310 = vld [vmem:[%s9] sm:$0x1]
      %v7312 = vlaneseq
      %v7313 = vshrl.u32 %v7312, 7
      %v7314 = vsub.s32 0, %v7313
      %v7315 = vrot.slane %v7310, %v7314
      %v7317 = vadd.f32 %v7278, %v7315
      %v7318 = vadd.f32 %v7279, %v7315
      %v7319 = vadd.f32 %v7280, %v7315
      %v7320 = vadd.f32 %v7281, %v7315
      %v7321 = vadd.f32 %v7282, %v7315
      %v7322 = vadd.f32 %v7283, %v7315
      %v7323 = vadd.f32 %v7284, %v7315
      %v7324 = vadd.f32 %v7285, %v7315
      %v7325 = vadd.f32 %v7286, %v7315
      %v7326 = vadd.f32 %v7287, %v7315
      %v7327 = vadd.f32 %v7288, %v7315
      %v7328 = vadd.f32 %v7289, %v7315
      %v7329 = vadd.f32 %v7290, %v7315
      %v7330 = vadd.f32 %v7291, %v7315
      %v7331 = vadd.f32 %v7292, %v7315
      %v7332 = vadd.f32 %v7293, %v7315
      %v7333 = vadd.f32 %v7294, %v7315
      %v7334 = vadd.f32 %v7295, %v7315
      %v7335 = vadd.f32 %v7296, %v7315
      %v7336 = vadd.f32 %v7297, %v7315
      %v7337 = vadd.f32 %v7298, %v7315
      %v7338 = vadd.f32 %v7299, %v7315
      %v7339 = vadd.f32 %v7300, %v7315
      %v7340 = vadd.f32 %v7301, %v7315
      %v7341 = vadd.f32 %v7302, %v7315
      %v7342 = vadd.f32 %v7303, %v7315
      %v7343 = vadd.f32 %v7304, %v7315
      %v7344 = vadd.f32 %v7305, %v7315
      %v7345 = vadd.f32 %v7306, %v7315
      %v7346 = vadd.f32 %v7307, %v7315
      %v7347 = vadd.f32 %v7308, %v7315
      %v7348 = vadd.f32 %v7309, %v7315
      %v7349 = vadd.f32 %v7317, %v3683
      %v7350 = vadd.f32 %v7318, %v3684
      %v7351 = vadd.f32 %v7319, %v3685
      %v7352 = vadd.f32 %v7320, %v3686
      %v7353 = vadd.f32 %v7321, %v3687
      %v7354 = vadd.f32 %v7322, %v3688
      %v7355 = vadd.f32 %v7323, %v3689
      %v7356 = vadd.f32 %v7324, %v3690
      %v7357 = vadd.f32 %v7325, %v3691
      %v7358 = vadd.f32 %v7326, %v3692
      %v7359 = vadd.f32 %v7327, %v3693
      %v7360 = vadd.f32 %v7328, %v3694
      %v7361 = vadd.f32 %v7329, %v3695
      %v7362 = vadd.f32 %v7330, %v3696
      %v7363 = vadd.f32 %v7331, %v3697
      %v7364 = vadd.f32 %v7332, %v3698
      %v7365 = vadd.f32 %v7333, %v3699
      %v7366 = vadd.f32 %v7334, %v3700
      %v7367 = vadd.f32 %v7335, %v3701
      %v7368 = vadd.f32 %v7336, %v3702
      %v7369 = vadd.f32 %v7337, %v3703
      %v7370 = vadd.f32 %v7338, %v3704
      %v7371 = vadd.f32 %v7339, %v3705
      %v7372 = vadd.f32 %v7340, %v3706
      %v7373 = vadd.f32 %v7341, %v3707
      %v7374 = vadd.f32 %v7342, %v3708
      %v7375 = vadd.f32 %v7343, %v3709
      %v7376 = vadd.f32 %v7344, %v3710
      %v7377 = vadd.f32 %v7345, %v3711
      %v7378 = vadd.f32 %v7346, %v3712
      %v7379 = vadd.f32 %v7347, %v3713
      %v7380 = vadd.f32 %v7348, %v3714
      %v7381 = vmax.f32 %v7349, 0.0
      %v7382 = vmax.f32 %v7350, 0.0
      %v7383 = vmax.f32 %v7351, 0.0
      %v7384 = vmax.f32 %v7352, 0.0
      %v7385 = vmax.f32 %v7353, 0.0
      %v7386 = vmax.f32 %v7354, 0.0
      %v7387 = vmax.f32 %v7355, 0.0
      %v7388 = vmax.f32 %v7356, 0.0
      %v7389 = vmax.f32 %v7357, 0.0
      %v7390 = vmax.f32 %v7358, 0.0
      %v7391 = vmax.f32 %v7359, 0.0
      %v7392 = vmax.f32 %v7360, 0.0
      %v7393 = vmax.f32 %v7361, 0.0
      %v7394 = vmax.f32 %v7362, 0.0
      %v7395 = vmax.f32 %v7363, 0.0
      %v7396 = vmax.f32 %v7364, 0.0
      %v7397 = vmax.f32 %v7365, 0.0
      %v7398 = vmax.f32 %v7366, 0.0
      %v7399 = vmax.f32 %v7367, 0.0
      %v7400 = vmax.f32 %v7368, 0.0
      %v7401 = vmax.f32 %v7369, 0.0
      %v7402 = vmax.f32 %v7370, 0.0
      %v7403 = vmax.f32 %v7371, 0.0
      %v7404 = vmax.f32 %v7372, 0.0
      %v7405 = vmax.f32 %v7373, 0.0
      %v7406 = vmax.f32 %v7374, 0.0
      %v7407 = vmax.f32 %v7375, 0.0
      %v7408 = vmax.f32 %v7376, 0.0
      %v7409 = vmax.f32 %v7377, 0.0
      %v7410 = vmax.f32 %v7378, 0.0
      %v7411 = vmax.f32 %v7379, 0.0
      %v7412 = vmax.f32 %v7380, 0.0
      %7413 = vst [vmem:[%s359] sm:$0xff] %v7381
      %7414 = vst [vmem:[%s359 + $0x8] sm:$0xff] %v7382
      %7415 = vst [vmem:[%s359 + $0x10] sm:$0xff] %v7383
      %7416 = vst [vmem:[%s359 + $0x18] sm:$0xff] %v7384
      %7417 = vst [vmem:[%s359 + $0x20] sm:$0xff] %v7385
      %7418 = vst [vmem:[%s359 + $0x28] sm:$0xff] %v7386
      %7419 = vst [vmem:[%s359 + $0x30] sm:$0xff] %v7387
      %7420 = vst [vmem:[%s359 + $0x38] sm:$0xff] %v7388
      %7421 = vst [vmem:[%s359 + $0x40] sm:$0xff] %v7389
      %7422 = vst [vmem:[%s359 + $0x48] sm:$0xff] %v7390
      %7423 = vst [vmem:[%s359 + $0x50] sm:$0xff] %v7391
      %7424 = vst [vmem:[%s359 + $0x58] sm:$0xff] %v7392
      %7425 = vst [vmem:[%s359 + $0x60] sm:$0xff] %v7393
      %7426 = vst [vmem:[%s359 + $0x68] sm:$0xff] %v7394
      %7427 = vst [vmem:[%s359 + $0x70] sm:$0xff] %v7395
      %7428 = vst [vmem:[%s359 + $0x78] sm:$0xff] %v7396
      %7429 = vst [vmem:[%s359 + $0x80] sm:$0xff] %v7397
      %7430 = vst [vmem:[%s359 + $0x88] sm:$0xff] %v7398
      %7431 = vst [vmem:[%s359 + $0x90] sm:$0xff] %v7399
      %7432 = vst [vmem:[%s359 + $0x98] sm:$0xff] %v7400
      %7433 = vst [vmem:[%s359 + $0xa0] sm:$0xff] %v7401
      %7434 = vst [vmem:[%s359 + $0xa8] sm:$0xff] %v7402
      %7435 = vst [vmem:[%s359 + $0xb0] sm:$0xff] %v7403
      %7436 = vst [vmem:[%s359 + $0xb8] sm:$0xff] %v7404
      %7437 = vst [vmem:[%s359 + $0xc0] sm:$0xff] %v7405
      %7438 = vst [vmem:[%s359 + $0xc8] sm:$0xff] %v7406
      %7439 = vst [vmem:[%s359 + $0xd0] sm:$0xff] %v7407
      %7440 = vst [vmem:[%s359 + $0xd8] sm:$0xff] %v7408
      %7441 = vst [vmem:[%s359 + $0xe0] sm:$0xff] %v7409
      %7442 = vst [vmem:[%s359 + $0xe8] sm:$0xff] %v7410
      %7443 = vst [vmem:[%s359 + $0xf0] sm:$0xff] %v7411
      %7444 = vst [vmem:[%s359 + $0xf8] sm:$0xff] %v7412
      %p7445 = scmp.lt.s32.totalorder %s21, 1
      %s7446 = scalar_select %p7445, %s21, 1
      %s7447 = smul.addr %s7446, 32
      %s7448 = smul.addr %s7447, 8
      %s7449 = scalar_lea.vmem %s10, %s7448
      // Predicated region
      $region61: #{basic_block_forward.1} parent=59 // pred_check
        %p7450 = pneg %p254
      $region62: #{basic_block_forward.1} parent=59 // pred_check_branch
        %7452 = sbr.rel (%p7450) target = $region64
      $region63: #{basic_block_forward.1} parent=59 // pred_region
        _
      $region64: #{basic_block_forward.1} parent=59 // pred_fallthru
        _
    $region60: #{basic_block_forward.1} parent=5 // pred_fallthru
      _
    %p7453 = scmp.le.s32.totalorder 2, %s16
    // Predicated region
    $region65: #{basic_block_forward.1} parent=5 // pred_check
      %p7454 = pneg %p7453
    $region66: #{basic_block_forward.1} parent=5 // pred_check_branch
      %7456 = sbr.rel (%p7454) target = $region68
    $region67: #{basic_block_forward.1} parent=5 // pred_region
      %s7457 = ssub.s32 %s16, 2
      // Predicated region
      $region69: #{basic_block_forward.1} parent=67 // pred_check
        %p7458 = pneg %p260
      $region70: #{basic_block_forward.1} parent=67 // pred_check_branch
        %7460 = sbr.rel (%p7458) target = $region72
      $region71: #{basic_block_forward.1} parent=67 // pred_region
        %p7461 = scmp.lt.s32.totalorder %s22, 1
        %s7462 = scalar_select %p7461, %s22, 1
        %s7463 = smul.addr %s7462, 32
        %s7464 = smul.addr %s7463, 8
        %s7465 = scalar_lea.vmem %s10, %s7464
      $region72: #{basic_block_forward.1} parent=67 // pred_fallthru
        _
    $region68: #{basic_block_forward.1} parent=5 // pred_fallthru
      _
  $region6: #{basic_block_forward.1} parent=0 // loop_footer
    %s20 = sadd.s32 1, %s16
  $region7: #{basic_block_forward.1} parent=0 // loop_footer_branch
    %15 = sbr.rel target = $region3
  $region8: #{basic_block_forward.1} parent=0 // loop_exit
    _

</llo_original>
